<compile_context>
chip_gen: v5e
topology: v5e:2x2
jax: 0.10.0
libtpu: 0.0.40
codegen_flags: <defaults>
</compile_context>

<pallas_src>
import jax
import jax.numpy as jnp
from jax import lax
from jax.experimental import pallas as pl
from jax.experimental.pallas import tpu as pltpu

EPS = 1e-5
F32 = jnp.float32
BF16 = jnp.bfloat16
LANE = 128
_LB = 16          # halo left border: interior writes start on a bf16 sublane tile


def _im2col_3x3(xp, Ho, Wo, stride):
    """xp: (B, Hp, Wp, C) bf16 value -> (B*Ho*Wo, 9*C) bf16 patches.

    Tap order (dy, dx) with channels fastest, matching w.reshape(9*C, Cout).
    """
    Bb, _, _, C = xp.shape
    taps = []
    for dy in range(3):
        for dx in range(3):
            taps.append(xp[:, dy:dy + (Ho - 1) * stride + 1:stride,
                              dx:dx + (Wo - 1) * stride + 1:stride, :])
    # TODO(synk): for stride=2 these strided slices relayout in VMEM every step;
    # a wrapper-side tap pre-gather (or 9 accumulated matmuls) would avoid it.
    return jnp.concatenate(taps, axis=-1).reshape(Bb * Ho * Wo, 9 * C)


def _make_kernel_a(has_proj, stride, Bb, Ho, Wo, Cin, Cout):
    """Pass A: conv1 (3x3/stride) [+ 1x1 shortcut conv] + per-block BN partials."""
    rows = Ho * Wo

    def kernel(*refs):
        if has_proj:
            (xp_ref, xsc_ref, w1_ref, b1_ref, wsc_ref, bsc_ref,
             y1_ref, ysc_ref, s1_ref, q1_ref, ss_ref, qs_ref) = refs
        else:
            (xp_ref, w1_ref, b1_ref, y1_ref, s1_ref, q1_ref) = refs

        # conv1 for the whole batch block: one MXU matmul, fused K = 9*Cin,
        # bf16 operands, f32 accumulation.
        patches = _im2col_3x3(xp_ref[...], Ho, Wo, stride)
        y1 = jnp.dot(patches, w1_ref[...],
                     preferred_element_type=jnp.float32) + b1_ref[...]

        # per-block BN1 partial stats (f32), reduced + folded in the wrapper.
        s1_ref[...] = jnp.sum(y1, axis=0, keepdims=True).reshape(1, 1, Cout)
        q1_ref[...] = jnp.sum(y1 * y1, axis=0, keepdims=True).reshape(1, 1, Cout)
        y1_ref[...] = y1.reshape(Bb, Ho, Wo, Cout).astype(BF16)   # pre-BN, bf16

        if has_proj:
            # 1x1/stride shortcut conv (input pre-subsampled by the wrapper).
            ysc = jnp.dot(xsc_ref[...].reshape(Bb * rows, Cin), wsc_ref[...],
                          preferred_element_type=jnp.float32) + bsc_ref[...]
            ss_ref[...] = jnp.sum(ysc, axis=0, keepdims=True).reshape(1, 1, Cout)
            qs_ref[...] = jnp.sum(ysc * ysc, axis=0, keepdims=True).reshape(1, 1, Cout)
            ysc_ref[...] = ysc.reshape(Bb, rows, Cout).astype(BF16)

    return kernel


def _make_kernel_b(Bb, Ho, Wo, Cout):
    """Pass B: BN1(folded)+ReLU -> conv2 (3x3/1) + per-block BN2 partials."""
    rows = Ho * Wo

    def kernel(y1_ref, sc1_ref, sh1_ref, w2_ref, b2_ref,
               y2_ref, s2_ref, q2_ref, apad_ref):
        C = Cout
        # zero only the halo strips conv2 actually reads -- done EVERY step so
        # the kernel stays correct under a "parallel" (megacore-sharded) grid.
        apad_ref[:, 0:1, _LB - 1:_LB + Wo + 1, :] = jnp.zeros((Bb, 1, Wo + 2, C), BF16)
        apad_ref[:, Ho + 1:Ho + 2, _LB - 1:_LB + Wo + 1, :] = jnp.zeros((Bb, 1, Wo + 2, C), BF16)
        apad_ref[:, :, _LB - 1:_LB, :] = jnp.zeros((Bb, Ho + 2, 1, C), BF16)
        apad_ref[:, :, _LB + Wo:_LB + Wo + 1, :] = jnp.zeros((Bb, Ho + 2, 1, C), BF16)

        # BN1 as a single folded scale/shift + ReLU, staged bf16 into the
        # 16-sublane-aligned interior of the halo scratch.
        a = jnp.maximum(y1_ref[...].astype(F32) * sc1_ref[...].reshape(1, 1, 1, C)
                        + sh1_ref[...].reshape(1, 1, 1, C), 0.0)
        apad_ref[:, 1:Ho + 1, _LB:_LB + Wo, :] = a.astype(BF16)

        # conv2: one MXU matmul, fused K = 9*Cout, bf16 operands, f32 acc.
        ap = apad_ref[:, :, _LB - 1:_LB + Wo + 1, :]
        patches = _im2col_3x3(ap, Ho, Wo, 1)
        y2 = jnp.dot(patches, w2_ref[...],
                     preferred_element_type=jnp.float32) + b2_ref[...]

        s2_ref[...] = jnp.sum(y2, axis=0, keepdims=True).reshape(1, 1, C)
        q2_ref[...] = jnp.sum(y2 * y2, axis=0, keepdims=True).reshape(1, 1, C)
        y2_ref[...] = y2.reshape(Bb, rows, C).astype(BF16)

    return kernel


def _make_kernel_c(has_proj, Bb, Cout):
    """Pass C: folded BN apply + residual add + final ReLU + fused NHWC->NCHW."""

    def kernel(*refs):
        if has_proj:
            y2_ref, ysc_ref, s2_ref, h2_ref, ss_ref, hs_ref, o_ref = refs
            short = (ysc_ref[...].astype(F32) * ss_ref[...].reshape(1, 1, Cout)
                     + hs_ref[...].reshape(1, 1, Cout))
        else:
            y2_ref, xid_ref, s2_ref, h2_ref, o_ref = refs
            short = xid_ref[...]
        fx = (y2_ref[...].astype(F32) * s2_ref[...].reshape(1, 1, Cout)
              + h2_ref[...].reshape(1, 1, Cout))
        res = jnp.maximum(fx + short, 0.0)                 # (Bb, rows, Cout) f32
        # fused NHWC -> NCHW: per-image 2-D XLU transpose, lane-dense store.
        for b in range(Bb):
            o_ref[b] = res[b].T

    return kernel


def basicblock_forward(x_nchw, params, stride):
    N, Cin, H, W = x_nchw.shape
    Cout = params["w1"].shape[-1]
    has_proj = (stride != 1) or (Cin != Cout)
    Ho = (H - 1) // stride + 1
    Wo = (W - 1) // stride + 1
    rows = Ho * Wo
    Hp, Wp = H + 2, W + 2
    count = float(N * rows)

    # ---------------- layout glue (pure indexing, no FLOPs) ----------------
    xt = jnp.transpose(x_nchw, (0, 2, 3, 1)).astype(F32)            # NHWC
    x_pad = jnp.pad(xt, ((0, 0), (1, 1), (1, 1), (0, 0))).astype(BF16)
    cvec = lambda v: v.reshape(1, -1).astype(F32)
    w1r = params["w1"].reshape(9 * Cin, Cout).astype(BF16)
    w2r = params["w2"].reshape(9 * Cout, Cout).astype(BF16)

    # ---------------- batch block size + scoped-VMEM budget ----------------
    def vbytes(shape, dtype):
        # VMEM bytes of a block with its minor dim padded to full 128-lane tiles
        n = 1
        for d in shape[:-1]:
            n *= int(d)
        minor = -(-int(shape[-1]) // LANE) * LANE
        return n * minor * jnp.dtype(dtype).itemsize

    per_a = (vbytes((Hp, Wp, Cin), BF16) + vbytes((rows, 9 * Cin), BF16)
             + vbytes((rows, Cout), F32) + vbytes((Ho, Wo, Cout), BF16))
    if has_proj:
        per_a += (vbytes((rows, Cin), BF16) + vbytes((rows, Cout), F32)
                  + vbytes((rows, Cout), BF16))
    per_b = (vbytes((Ho, Wo, Cout), BF16)
             + vbytes((Ho + 2, _LB + Wo + 1, Cout), BF16)     # halo scratch
             + vbytes((Ho, Wo, Cout), F32)                    # BN1+ReLU staging
             + vbytes((rows, 9 * Cout), BF16)
             + vbytes((rows, Cout), F32) + vbytes((rows, Cout), BF16))
    per_c = (2 * vbytes((rows, Cout), BF16) + 2 * vbytes((rows, Cout), F32)
             + vbytes((Cout, rows), F32))
    per_img = max(per_a, per_b, per_c)
    resident = (vbytes((9 * Cin, Cout), BF16) + vbytes((9 * Cout, Cout), BF16)
                + vbytes((Cin, Cout), BF16) + 8 * vbytes((1, Cout), F32))

    BLOCK_BUDGET = 14 << 20             # per-step block bytes, pre double-buffer
    Bb = max(1, min(N, 32, BLOCK_BUDGET // max(per_img, 1)))
    while N % Bb:
        Bb -= 1
    G = N // Bb

    # explicit scoped-VMEM: double-buffered blocks + resident weights + slack,
    # capped well below v7x's 64 MiB physical VMEM, no artificial floor.
    vmem_limit = int(min(48 << 20, 2 * Bb * per_img + resident + (8 << 20)))

    def cparams():
        return pltpu.CompilerParams(dimension_semantics=("parallel",),
                                    vmem_limit_bytes=vmem_limit)

    def blk(*inner):
        nd = len(inner)
        return pl.BlockSpec((Bb,) + tuple(inner), lambda g: (g,) + (0,) * nd)

    def const(*shape):
        nd = len(shape)
        return pl.BlockSpec(tuple(shape), lambda g: (0,) * nd)

    stat_sh = jax.ShapeDtypeStruct((G, 1, Cout), F32)
    stat_spec = pl.BlockSpec((1, 1, Cout), lambda g: (g, 0, 0))
    y1_sh = jax.ShapeDtypeStruct((N, Ho, Wo, Cout), BF16)
    yflat_sh = jax.ShapeDtypeStruct((N, rows, Cout), BF16)

    def fold(s_part, q_part, g, be):
        # exact train-mode BN folded to a single affine: y*scale + shift
        s = jnp.sum(s_part, axis=(0, 1))
        q = jnp.sum(q_part, axis=(0, 1))
        mu = s / count
        var = jnp.maximum(q / count - mu * mu, 0.0)
        scale = g.astype(F32) * lax.rsqrt(var + EPS)
        return scale.reshape(1, Cout), (be.astype(F32) - mu * scale).reshape(1, Cout)

    # -------- pass A: conv1 (+ 1x1 shortcut conv) + BN partial stats --------
    kernel_a = _make_kernel_a(has_proj, stride, Bb, Ho, Wo, Cin, Cout)
    if has_proj:
        x_sc = xt[:, ::stride, ::stride, :].reshape(N, rows, Cin).astype(BF16)
        inputs_a = [x_pad, x_sc, w1r, cvec(params["b1"]),
                    params["wsc"].astype(BF16), cvec(params["bsc"])]
        in_specs_a = [blk(Hp, Wp, Cin), blk(rows, Cin),
                      const(9 * Cin, Cout), const(1, Cout),
                      const(Cin, Cout), const(1, Cout)]
        out_shape_a = (y1_sh, yflat_sh, stat_sh, stat_sh, stat_sh, stat_sh)
        out_specs_a = (blk(Ho, Wo, Cout), blk(rows, Cout),
                       stat_spec, stat_spec, stat_spec, stat_spec)
    else:
        inputs_a = [x_pad, w1r, cvec(params["b1"])]
        in_specs_a = [blk(Hp, Wp, Cin), const(9 * Cin, Cout), const(1, Cout)]
        out_shape_a = (y1_sh, stat_sh, stat_sh)
        out_specs_a = (blk(Ho, Wo, Cout), stat_spec, stat_spec)

    outs_a = pl.pallas_call(
        kernel_a, grid=(G,),
        in_specs=in_specs_a, out_shape=out_shape_a, out_specs=out_specs_a,
        compiler_params=cparams(),
    )(*inputs_a)
    if has_proj:
        y1, ysc, s1p, q1p, ssp, qsp = outs_a
        scale_sc, shift_sc = fold(ssp, qsp, params["gsc"], params["besc"])
    else:
        y1, s1p, q1p = outs_a
    scale1, shift1 = fold(s1p, q1p, params["g1"], params["be1"])

    # -------- pass B: BN1(folded)+ReLU -> conv2 + BN2 partial stats --------
    kernel_b = _make_kernel_b(Bb, Ho, Wo, Cout)
    y2, s2p, q2p = pl.pallas_call(
        kernel_b, grid=(G,),
        in_specs=[blk(Ho, Wo, Cout), const(1, Cout), const(1, Cout),
                  const(9 * Cout, Cout), const(1, Cout)],
        out_shape=(yflat_sh, stat_sh, stat_sh),
        out_specs=(blk(rows, Cout), stat_spec, stat_spec),
        scratch_shapes=[pltpu.VMEM((Bb, Ho + 2, _LB + Wo + 1, Cout), BF16)],
        compiler_params=cparams(),
    )(y1, scale1, shift1, w2r, cvec(params["b2"]))
    scale2, shift2 = fold(s2p, q2p, params["g2"], params["be2"])

    # ---- pass C: BN2/BNsc apply + residual + ReLU + fused NHWC->NCHW store ----
    kernel_c = _make_kernel_c(has_proj, Bb, Cout)
    if has_proj:
        inputs_c = [y2, ysc, scale2, shift2, scale_sc, shift_sc]
        in_specs_c = [blk(rows, Cout), blk(rows, Cout)] + [const(1, Cout)] * 4
    else:
        inputs_c = [y2, xt.reshape(N, rows, Cout), scale2, shift2]
        in_specs_c = [blk(rows, Cout), blk(rows, Cout)] + [const(1, Cout)] * 2

    out = pl.pallas_call(
        kernel_c, grid=(G,),
        in_specs=in_specs_c,
        out_shape=jax.ShapeDtypeStruct((N, Cout, rows), F32),
        out_specs=blk(Cout, rows),
        compiler_params=cparams(),
    )(*inputs_c)

    return out.reshape(N, Cout, Ho, Wo)     # NCHW, contiguous reshape (free)


def init_params(key, cin, cout):
    ks = jax.random.split(key, 12)
    p = {}
    p["w1"] = 0.2 * jax.random.normal(ks[0], (3, 3, cin, cout), jnp.float32)
    p["b1"] = 0.1 * jax.random.normal(ks[1], (cout,), jnp.float32)
    p["g1"] = 1.0 + 0.1 * jax.random.normal(ks[2], (cout,), jnp.float32)
    p["be1"] = 0.1 * jax.random.normal(ks[3], (cout,), jnp.float32)
    p["w2"] = 0.2 * jax.random.normal(ks[4], (3, 3, cout, cout), jnp.float32)
    p["b2"] = 0.1 * jax.random.normal(ks[5], (cout,), jnp.float32)
    p["g2"] = 1.0 + 0.1 * jax.random.normal(ks[6], (cout,), jnp.float32)
    p["be2"] = 0.1 * jax.random.normal(ks[7], (cout,), jnp.float32)
    p["wsc"] = 0.2 * jax.random.normal(ks[8], (cin, cout), jnp.float32)
    p["bsc"] = 0.1 * jax.random.normal(ks[9], (cout,), jnp.float32)
    p["gsc"] = 1.0 + 0.1 * jax.random.normal(ks[10], (cout,), jnp.float32)
    p["besc"] = 0.1 * jax.random.normal(ks[11], (cout,), jnp.float32)
    return p


def reference_forward(x_nchw, p, stride):
    # pure-JAX reference in f32: NHWC, train-mode BN (biased variance)
    x = jnp.transpose(x_nchw, (0, 2, 3, 1)).astype(jnp.float32)
    cin, cout = p["wsc"].shape

    def conv(x, w, b, s, pad):
        y = lax.conv_general_dilated(x, w, (s, s), [(pad, pad), (pad, pad)],
                                     dimension_numbers=("NHWC", "HWIO", "NHWC"))
        return y + b.reshape(1, 1, 1, -1)

    def bn(y, g, be):
        mu = jnp.mean(y, axis=(0, 1, 2), keepdims=True)
        var = jnp.mean((y - mu) ** 2, axis=(0, 1, 2), keepdims=True)
        return (y - mu) * lax.rsqrt(var + EPS) * g.reshape(1, 1, 1, -1) \
            + be.reshape(1, 1, 1, -1)

    fx = jnp.maximum(bn(conv(x, p["w1"], p["b1"], stride, 1), p["g1"], p["be1"]), 0.0)
    fx = bn(conv(fx, p["w2"], p["b2"], 1, 1), p["g2"], p["be2"])
    if (stride != 1) or (cin != cout):
        sc = bn(conv(x, p["wsc"].reshape(1, 1, cin, cout), p["bsc"], stride, 0),
                p["gsc"], p["besc"])
    else:
        sc = x
    out = jnp.maximum(sc + fx, 0.0)
    return jnp.transpose(out, (0, 3, 1, 2))


if __name__ == "__main__":
    fwd = jax.jit(basicblock_forward, static_argnums=2)

    def run_case(N, Cin, H, W, Cout, stride, kx, kp):
        x = jax.random.normal(kx, (N, Cin, H, W), jnp.float32)
        params = init_params(kp, Cin, Cout)
        out = jax.block_until_ready(fwd(x, params, stride))
        ref = reference_forward(x, params, stride)
        Ho = (H - 1) // stride + 1
        Wo = (W - 1) // stride + 1
        assert out.shape == (N, Cout, Ho, Wo), out.shape
        # bf16 MXU operands + bf16 inter-pass streams vs. the all-f32 reference
        err = float(jnp.max(jnp.abs(out - ref)))
        assert jnp.allclose(out, ref, atol=7e-2, rtol=7e-2), err

    key = jax.random.PRNGKey(0)
    k1, k2, k3, k4 = jax.random.split(key, 4)
    # dep_in=4 -> dep_out=8, stride=1: exercises the 1x1 projection shortcut
    run_case(2, 4, 16, 16, 8, 1, k1, k2)
    # dep_in=dep_out=8, stride=1: exercises the identity shortcut
    run_case(2, 8, 16, 16, 8, 1, k3, k4)

    print("KERNEL_OK")
</pallas_src>

<mosaic_0001>
module attributes {stable_mosaic.version = 11 : i64} {
  func.func @kernel(%arg0: i32, %arg1: memref<2x256x8xbf16, #tpu.memory_space<vmem>>, %arg2: memref<2x256x8xbf16, #tpu.memory_space<vmem>>, %arg3: memref<1x8xf32, #tpu.memory_space<vmem>>, %arg4: memref<1x8xf32, #tpu.memory_space<vmem>>, %arg5: memref<1x8xf32, #tpu.memory_space<vmem>>, %arg6: memref<1x8xf32, #tpu.memory_space<vmem>>, %arg7: memref<2x8x256xf32, #tpu.memory_space<vmem>>) attributes {dimension_semantics = [#tpu.dimension_semantics<parallel>], iteration_bounds = array<i64: 1>, scalar_prefetch = 0 : i64, scratch_operands = 0 : i64, tpu.core_type = #tpu.core_type<tc>, window_params = [{transform_indices = @transform_0, window_bounds = array<i64: 2, 256, 8>}, {transform_indices = @transform_1, window_bounds = array<i64: 2, 256, 8>}, {pipeline_mode = #tpu.pipeline_mode<synchronous>, transform_indices = @transform_2, window_bounds = array<i64: 1, 8>}, {pipeline_mode = #tpu.pipeline_mode<synchronous>, transform_indices = @transform_3, window_bounds = array<i64: 1, 8>}, {pipeline_mode = #tpu.pipeline_mode<synchronous>, transform_indices = @transform_4, window_bounds = array<i64: 1, 8>}, {pipeline_mode = #tpu.pipeline_mode<synchronous>, transform_indices = @transform_5, window_bounds = array<i64: 1, 8>}, {transform_indices = @transform_6, window_bounds = array<i64: 2, 8, 256>}]} {
    %c0 = arith.constant 0 : index
    %c0_0 = arith.constant 0 : index
    %c0_1 = arith.constant 0 : index
    %0 = vector.load %arg2[%c0, %c0_0, %c0_1] : memref<2x256x8xbf16, #tpu.memory_space<vmem>>, vector<2x256x8xbf16>
    %1 = arith.extf %0 : vector<2x256x8xbf16> to vector<2x256x8xf32>
    %c0_2 = arith.constant 0 : index
    %c0_3 = arith.constant 0 : index
    %2 = vector.load %arg5[%c0_2, %c0_3] : memref<1x8xf32, #tpu.memory_space<vmem>>, vector<1x8xf32>
    %3 = vector.shape_cast %2 : vector<1x8xf32> to vector<1x1x8xf32>
    %4 = vector.broadcast %3 : vector<1x1x8xf32> to vector<2x256x8xf32>
    %5 = arith.mulf %1, %4 : vector<2x256x8xf32>
    %c0_4 = arith.constant 0 : index
    %c0_5 = arith.constant 0 : index
    %6 = vector.load %arg6[%c0_4, %c0_5] : memref<1x8xf32, #tpu.memory_space<vmem>>, vector<1x8xf32>
    %7 = vector.shape_cast %6 : vector<1x8xf32> to vector<1x1x8xf32>
    %8 = vector.broadcast %7 : vector<1x1x8xf32> to vector<2x256x8xf32>
    %9 = arith.addf %5, %8 : vector<2x256x8xf32>
    %c0_6 = arith.constant 0 : index
    %c0_7 = arith.constant 0 : index
    %c0_8 = arith.constant 0 : index
    %10 = vector.load %arg1[%c0_6, %c0_7, %c0_8] : memref<2x256x8xbf16, #tpu.memory_space<vmem>>, vector<2x256x8xbf16>
    %11 = arith.extf %10 : vector<2x256x8xbf16> to vector<2x256x8xf32>
    %c0_9 = arith.constant 0 : index
    %c0_10 = arith.constant 0 : index
    %12 = vector.load %arg3[%c0_9, %c0_10] : memref<1x8xf32, #tpu.memory_space<vmem>>, vector<1x8xf32>
    %13 = vector.shape_cast %12 : vector<1x8xf32> to vector<1x1x8xf32>
    %14 = vector.broadcast %13 : vector<1x1x8xf32> to vector<2x256x8xf32>
    %15 = arith.mulf %11, %14 : vector<2x256x8xf32>
    %c0_11 = arith.constant 0 : index
    %c0_12 = arith.constant 0 : index
    %16 = vector.load %arg4[%c0_11, %c0_12] : memref<1x8xf32, #tpu.memory_space<vmem>>, vector<1x8xf32>
    %17 = vector.shape_cast %16 : vector<1x8xf32> to vector<1x1x8xf32>
    %18 = vector.broadcast %17 : vector<1x1x8xf32> to vector<2x256x8xf32>
    %19 = arith.addf %15, %18 : vector<2x256x8xf32>
    %20 = arith.addf %19, %9 : vector<2x256x8xf32>
    %cst = arith.constant 0.000000e+00 : f32
    %21 = vector.broadcast %cst : f32 to vector<2x256x8xf32>
    %22 = arith.maximumf %20, %21 : vector<2x256x8xf32>
    %23 = vector.extract_strided_slice %22 {offsets = [0, 0, 0], sizes = [1, 256, 8], strides = [1, 1, 1]} : vector<2x256x8xf32> to vector<1x256x8xf32>
    %24 = vector.shape_cast %23 : vector<1x256x8xf32> to vector<256x8xf32>
    %25 = tpu.transpose %24, [1, 0] : vector<256x8xf32> -> vector<8x256xf32>
    %c0_13 = arith.constant 0 : index
    %c0_14 = arith.constant 0 : index
    %c0_15 = arith.constant 0 : index
    %26 = vector.load %arg7[%c0_13, %c0_14, %c0_15] : memref<2x8x256xf32, #tpu.memory_space<vmem>>, vector<1x8x256xf32>
    %27 = vector.shape_cast %26 : vector<1x8x256xf32> to vector<8x256xf32>
    %28 = vector.shape_cast %25 : vector<8x256xf32> to vector<1x8x256xf32>
    tpu.vector_store %arg7[%c0_13, %c0_14, %c0_15], %28 {strides = array<i32>} : memref<2x8x256xf32, #tpu.memory_space<vmem>>, vector<1x8x256xf32>,
    %29 = vector.extract_strided_slice %22 {offsets = [1, 0, 0], sizes = [1, 256, 8], strides = [1, 1, 1]} : vector<2x256x8xf32> to vector<1x256x8xf32>
    %30 = vector.shape_cast %29 : vector<1x256x8xf32> to vector<256x8xf32>
    %31 = tpu.transpose %30, [1, 0] : vector<256x8xf32> -> vector<8x256xf32>
    %c1 = arith.constant 1 : index
    %c0_16 = arith.constant 0 : index
    %c0_17 = arith.constant 0 : index
    %32 = vector.load %arg7[%c1, %c0_16, %c0_17] : memref<2x8x256xf32, #tpu.memory_space<vmem>>, vector<1x8x256xf32>
    %33 = vector.shape_cast %32 : vector<1x8x256xf32> to vector<8x256xf32>
    %34 = vector.shape_cast %31 : vector<8x256xf32> to vector<1x8x256xf32>
    tpu.vector_store %arg7[%c1, %c0_16, %c0_17], %34 {strides = array<i32>} : memref<2x8x256xf32, #tpu.memory_space<vmem>>, vector<1x8x256xf32>,
    return
  }
  func.func @transform_0(%arg0: i32) -> (i32, i32, i32) {
    %c0_i32 = arith.constant 0 : i32
    %c0_i32_0 = arith.constant 0 : i32
    %c0_i32_1 = arith.constant 0 : i32
    return %arg0, %c0_i32, %c0_i32_0 : i32, i32, i32
  }
  func.func @transform_1(%arg0: i32) -> (i32, i32, i32) {
    %c0_i32 = arith.constant 0 : i32
    %c0_i32_0 = arith.constant 0 : i32
    %c0_i32_1 = arith.constant 0 : i32
    return %arg0, %c0_i32, %c0_i32_0 : i32, i32, i32
  }
  func.func @transform_2(%arg0: i32) -> (i32, i32) {
    %c0_i32 = arith.constant 0 : i32
    %c0_i32_0 = arith.constant 0 : i32
    %c0_i32_1 = arith.constant 0 : i32
    return %c0_i32, %c0_i32_0 : i32, i32
  }
  func.func @transform_3(%arg0: i32) -> (i32, i32) {
    %c0_i32 = arith.constant 0 : i32
    %c0_i32_0 = arith.constant 0 : i32
    %c0_i32_1 = arith.constant 0 : i32
    return %c0_i32, %c0_i32_0 : i32, i32
  }
  func.func @transform_4(%arg0: i32) -> (i32, i32) {
    %c0_i32 = arith.constant 0 : i32
    %c0_i32_0 = arith.constant 0 : i32
    %c0_i32_1 = arith.constant 0 : i32
    return %c0_i32, %c0_i32_0 : i32, i32
  }
  func.func @transform_5(%arg0: i32) -> (i32, i32) {
    %c0_i32 = arith.constant 0 : i32
    %c0_i32_0 = arith.constant 0 : i32
    %c0_i32_1 = arith.constant 0 : i32
    return %c0_i32, %c0_i32_0 : i32, i32
  }
  func.func @transform_6(%arg0: i32) -> (i32, i32, i32) {
    %c0_i32 = arith.constant 0 : i32
    %c0_i32_0 = arith.constant 0 : i32
    %c0_i32_1 = arith.constant 0 : i32
    return %arg0, %c0_i32, %c0_i32_0 : i32, i32, i32
  }
}

module attributes {stable_mosaic.version = 11 : i64} {
  func.func @kernel(%arg0: i32, %arg1: memref<2x18x18x4xbf16, #tpu.memory_space<vmem>>, %arg2: memref<2x256x4xbf16, #tpu.memory_space<vmem>>, %arg3: memref<36x8xbf16, #tpu.memory_space<vmem>>, %arg4: memref<1x8xf32, #tpu.memory_space<vmem>>, %arg5: memref<4x8xbf16, #tpu.memory_space<vmem>>, %arg6: memref<1x8xf32, #tpu.memory_space<vmem>>, %arg7: memref<2x16x16x8xbf16, #tpu.memory_space<vmem>>, %arg8: memref<2x256x8xbf16, #tpu.memory_space<vmem>>, %arg9: memref<1x1x8xf32, #tpu.memory_space<vmem>>, %arg10: memref<1x1x8xf32, #tpu.memory_space<vmem>>, %arg11: memref<1x1x8xf32, #tpu.memory_space<vmem>>, %arg12: memref<1x1x8xf32, #tpu.memory_space<vmem>>) attributes {dimension_semantics = [#tpu.dimension_semantics<parallel>], iteration_bounds = array<i64: 1>, scalar_prefetch = 0 : i64, scratch_operands = 0 : i64, tpu.core_type = #tpu.core_type<tc>, window_params = [{transform_indices = @transform_0, window_bounds = array<i64: 2, 18, 18, 4>}, {transform_indices = @transform_1, window_bounds = array<i64: 2, 256, 4>}, {pipeline_mode = #tpu.pipeline_mode<synchronous>, transform_indices = @transform_2, window_bounds = array<i64: 36, 8>}, {pipeline_mode = #tpu.pipeline_mode<synchronous>, transform_indices = @transform_3, window_bounds = array<i64: 1, 8>}, {pipeline_mode = #tpu.pipeline_mode<synchronous>, transform_indices = @transform_4, window_bounds = array<i64: 4, 8>}, {pipeline_mode = #tpu.pipeline_mode<synchronous>, transform_indices = @transform_5, window_bounds = array<i64: 1, 8>}, {transform_indices = @transform_6, window_bounds = array<i64: 2, 16, 16, 8>}, {transform_indices = @transform_7, window_bounds = array<i64: 2, 256, 8>}, {transform_indices = @transform_8, window_bounds = array<i64: 1, 1, 8>}, {transform_indices = @transform_9, window_bounds = array<i64: 1, 1, 8>}, {transform_indices = @transform_10, window_bounds = array<i64: 1, 1, 8>}, {transform_indices = @transform_11, window_bounds = array<i64: 1, 1, 8>}]} {
    %c0 = arith.constant 0 : index
    %c0_0 = arith.constant 0 : index
    %c0_1 = arith.constant 0 : index
    %c0_2 = arith.constant 0 : index
    %0 = vector.load %arg1[%c0, %c0_0, %c0_1, %c0_2] : memref<2x18x18x4xbf16, #tpu.memory_space<vmem>>, vector<2x18x18x4xbf16>
    %1 = vector.extract_strided_slice %0 {offsets = [0, 0, 0, 0], sizes = [2, 16, 16, 4], strides = [1, 1, 1, 1]} : vector<2x18x18x4xbf16> to vector<2x16x16x4xbf16>
    %2 = vector.extract_strided_slice %0 {offsets = [0, 0, 1, 0], sizes = [2, 16, 16, 4], strides = [1, 1, 1, 1]} : vector<2x18x18x4xbf16> to vector<2x16x16x4xbf16>
    %3 = vector.extract_strided_slice %0 {offsets = [0, 0, 2, 0], sizes = [2, 16, 16, 4], strides = [1, 1, 1, 1]} : vector<2x18x18x4xbf16> to vector<2x16x16x4xbf16>
    %4 = vector.extract_strided_slice %0 {offsets = [0, 1, 0, 0], sizes = [2, 16, 16, 4], strides = [1, 1, 1, 1]} : vector<2x18x18x4xbf16> to vector<2x16x16x4xbf16>
    %5 = vector.extract_strided_slice %0 {offsets = [0, 1, 1, 0], sizes = [2, 16, 16, 4], strides = [1, 1, 1, 1]} : vector<2x18x18x4xbf16> to vector<2x16x16x4xbf16>
    %6 = vector.extract_strided_slice %0 {offsets = [0, 1, 2, 0], sizes = [2, 16, 16, 4], strides = [1, 1, 1, 1]} : vector<2x18x18x4xbf16> to vector<2x16x16x4xbf16>
    %7 = vector.extract_strided_slice %0 {offsets = [0, 2, 0, 0], sizes = [2, 16, 16, 4], strides = [1, 1, 1, 1]} : vector<2x18x18x4xbf16> to vector<2x16x16x4xbf16>
    %8 = vector.extract_strided_slice %0 {offsets = [0, 2, 1, 0], sizes = [2, 16, 16, 4], strides = [1, 1, 1, 1]} : vector<2x18x18x4xbf16> to vector<2x16x16x4xbf16>
    %9 = vector.extract_strided_slice %0 {offsets = [0, 2, 2, 0], sizes = [2, 16, 16, 4], strides = [1, 1, 1, 1]} : vector<2x18x18x4xbf16> to vector<2x16x16x4xbf16>
    %10 = tpu.concatenate %1, %2, %3, %4, %5, %6, %7, %8, %9 in 3 : vector<2x16x16x4xbf16>, vector<2x16x16x4xbf16>, vector<2x16x16x4xbf16>, vector<2x16x16x4xbf16>, vector<2x16x16x4xbf16>, vector<2x16x16x4xbf16>, vector<2x16x16x4xbf16>, vector<2x16x16x4xbf16>, vector<2x16x16x4xbf16> -> vector<2x16x16x36xbf16>
    %11 = vector.shape_cast %10 : vector<2x16x16x36xbf16> to vector<512x36xbf16>
    %c0_3 = arith.constant 0 : index
    %c0_4 = arith.constant 0 : index
    %12 = vector.load %arg3[%c0_3, %c0_4] : memref<36x8xbf16, #tpu.memory_space<vmem>>, vector<36x8xbf16>
    %cst = arith.constant dense<0.000000e+00> : vector<512x8xf32>
    %13 = tpu.matmul %11, %12, %cst {dimension_numbers = #tpu.dot_dimension_numbers<[1], [0], [0], [1], [0, 0, 1, 1], [], []>} : vector<512x36xbf16>, vector<36x8xbf16>, vector<512x8xf32> -> vector<512x8xf32>
    %c0_5 = arith.constant 0 : index
    %c0_6 = arith.constant 0 : index
    %14 = vector.load %arg4[%c0_5, %c0_6] : memref<1x8xf32, #tpu.memory_space<vmem>>, vector<1x8xf32>
    %15 = vector.broadcast %14 : vector<1x8xf32> to vector<512x8xf32>
    %16 = arith.addf %13, %15 : vector<512x8xf32>
    %cst_7 = arith.constant dense<0.000000e+00> : vector<8xf32>
    %17 = vector.multi_reduction <add>, %16, %cst_7 [0] : vector<512x8xf32> to vector<8xf32>
    %18 = vector.shape_cast %17 : vector<8xf32> to vector<1x8xf32>
    %19 = vector.shape_cast %18 : vector<1x8xf32> to vector<1x1x8xf32>
    %c0_8 = arith.constant 0 : index
    %c0_9 = arith.constant 0 : index
    %c0_10 = arith.constant 0 : index
    %20 = vector.load %arg9[%c0_8, %c0_9, %c0_10] : memref<1x1x8xf32, #tpu.memory_space<vmem>>, vector<1x1x8xf32>
    tpu.vector_store %arg9[%c0_8, %c0_9, %c0_10], %19 {strides = array<i32>} : memref<1x1x8xf32, #tpu.memory_space<vmem>>, vector<1x1x8xf32>,
    %21 = arith.mulf %16, %16 : vector<512x8xf32>
    %cst_11 = arith.constant dense<0.000000e+00> : vector<8xf32>
    %22 = vector.multi_reduction <add>, %21, %cst_11 [0] : vector<512x8xf32> to vector<8xf32>
    %23 = vector.shape_cast %22 : vector<8xf32> to vector<1x8xf32>
    %24 = vector.shape_cast %23 : vector<1x8xf32> to vector<1x1x8xf32>
    %c0_12 = arith.constant 0 : index
    %c0_13 = arith.constant 0 : index
    %c0_14 = arith.constant 0 : index
    %25 = vector.load %arg10[%c0_12, %c0_13, %c0_14] : memref<1x1x8xf32, #tpu.memory_space<vmem>>, vector<1x1x8xf32>
    tpu.vector_store %arg10[%c0_12, %c0_13, %c0_14], %24 {strides = array<i32>} : memref<1x1x8xf32, #tpu.memory_space<vmem>>, vector<1x1x8xf32>,
    %26 = vector.shape_cast %16 : vector<512x8xf32> to vector<2x16x16x8xf32>
    %27 = arith.truncf %26 : vector<2x16x16x8xf32> to vector<2x16x16x8xbf16>
    %c0_15 = arith.constant 0 : index
    %c0_16 = arith.constant 0 : index
    %c0_17 = arith.constant 0 : index
    %c0_18 = arith.constant 0 : index
    %28 = vector.load %arg7[%c0_15, %c0_16, %c0_17, %c0_18] : memref<2x16x16x8xbf16, #tpu.memory_space<vmem>>, vector<2x16x16x8xbf16>
    tpu.vector_store %arg7[%c0_15, %c0_16, %c0_17, %c0_18], %27 {strides = array<i32>} : memref<2x16x16x8xbf16, #tpu.memory_space<vmem>>, vector<2x16x16x8xbf16>,
    %c0_19 = arith.constant 0 : index
    %c0_20 = arith.constant 0 : index
    %c0_21 = arith.constant 0 : index
    %29 = vector.load %arg2[%c0_19, %c0_20, %c0_21] : memref<2x256x4xbf16, #tpu.memory_space<vmem>>, vector<2x256x4xbf16>
    %30 = vector.shape_cast %29 : vector<2x256x4xbf16> to vector<512x4xbf16>
    %c0_22 = arith.constant 0 : index
    %c0_23 = arith.constant 0 : index
    %31 = vector.load %arg5[%c0_22, %c0_23] : memref<4x8xbf16, #tpu.memory_space<vmem>>, vector<4x8xbf16>
    %cst_24 = arith.constant dense<0.000000e+00> : vector<512x8xf32>
    %32 = tpu.matmul %30, %31, %cst_24 {dimension_numbers = #tpu.dot_dimension_numbers<[1], [0], [0], [1], [0, 0, 1, 1], [], []>} : vector<512x4xbf16>, vector<4x8xbf16>, vector<512x8xf32> -> vector<512x8xf32>
    %c0_25 = arith.constant 0 : index
    %c0_26 = arith.constant 0 : index
    %33 = vector.load %arg6[%c0_25, %c0_26] : memref<1x8xf32, #tpu.memory_space<vmem>>, vector<1x8xf32>
    %34 = vector.broadcast %33 : vector<1x8xf32> to vector<512x8xf32>
    %35 = arith.addf %32, %34 : vector<512x8xf32>
    %cst_27 = arith.constant dense<0.000000e+00> : vector<8xf32>
    %36 = vector.multi_reduction <add>, %35, %cst_27 [0] : vector<512x8xf32> to vector<8xf32>
    %37 = vector.shape_cast %36 : vector<8xf32> to vector<1x8xf32>
    %38 = vector.shape_cast %37 : vector<1x8xf32> to vector<1x1x8xf32>
    %c0_28 = arith.constant 0 : index
    %c0_29 = arith.constant 0 : index
    %c0_30 = arith.constant 0 : index
    %39 = vector.load %arg11[%c0_28, %c0_29, %c0_30] : memref<1x1x8xf32, #tpu.memory_space<vmem>>, vector<1x1x8xf32>
    tpu.vector_store %arg11[%c0_28, %c0_29, %c0_30], %38 {strides = array<i32>} : memref<1x1x8xf32, #tpu.memory_space<vmem>>, vector<1x1x8xf32>,
    %40 = arith.mulf %35, %35 : vector<512x8xf32>
    %cst_31 = arith.constant dense<0.000000e+00> : vector<8xf32>
    %41 = vector.multi_reduction <add>, %40, %cst_31 [0] : vector<512x8xf32> to vector<8xf32>
    %42 = vector.shape_cast %41 : vector<8xf32> to vector<1x8xf32>
    %43 = vector.shape_cast %42 : vector<1x8xf32> to vector<1x1x8xf32>
    %c0_32 = arith.constant 0 : index
    %c0_33 = arith.constant 0 : index
    %c0_34 = arith.constant 0 : index
    %44 = vector.load %arg12[%c0_32, %c0_33, %c0_34] : memref<1x1x8xf32, #tpu.memory_space<vmem>>, vector<1x1x8xf32>
    tpu.vector_store %arg12[%c0_32, %c0_33, %c0_34], %43 {strides = array<i32>} : memref<1x1x8xf32, #tpu.memory_space<vmem>>, vector<1x1x8xf32>,
    %45 = vector.shape_cast %35 : vector<512x8xf32> to vector<2x256x8xf32>
    %46 = arith.truncf %45 : vector<2x256x8xf32> to vector<2x256x8xbf16>
    %c0_35 = arith.constant 0 : index
    %c0_36 = arith.constant 0 : index
    %c0_37 = arith.constant 0 : index
    %47 = vector.load %arg8[%c0_35, %c0_36, %c0_37] : memref<2x256x8xbf16, #tpu.memory_space<vmem>>, vector<2x256x8xbf16>
    tpu.vector_store %arg8[%c0_35, %c0_36, %c0_37], %46 {strides = array<i32>} : memref<2x256x8xbf16, #tpu.memory_space<vmem>>, vector<2x256x8xbf16>,
    return
  }
  func.func @transform_0(%arg0: i32) -> (i32, i32, i32, i32) {
    %c0_i32 = arith.constant 0 : i32
    %c0_i32_0 = arith.constant 0 : i32
    %c0_i32_1 = arith.constant 0 : i32
    %c0_i32_2 = arith.constant 0 : i32
    return %arg0, %c0_i32, %c0_i32_0, %c0_i32_1 : i32, i32, i32, i32
  }
  func.func @transform_1(%arg0: i32) -> (i32, i32, i32) {
    %c0_i32 = arith.constant 0 : i32
    %c0_i32_0 = arith.constant 0 : i32
    %c0_i32_1 = arith.constant 0 : i32
    return %arg0, %c0_i32, %c0_i32_0 : i32, i32, i32
  }
  func.func @transform_2(%arg0: i32) -> (i32, i32) {
    %c0_i32 = arith.constant 0 : i32
    %c0_i32_0 = arith.constant 0 : i32
    %c0_i32_1 = arith.constant 0 : i32
    return %c0_i32, %c0_i32_0 : i32, i32
  }
  func.func @transform_3(%arg0: i32) -> (i32, i32) {
    %c0_i32 = arith.constant 0 : i32
    %c0_i32_0 = arith.constant 0 : i32
    %c0_i32_1 = arith.constant 0 : i32
    return %c0_i32, %c0_i32_0 : i32, i32
  }
  func.func @transform_4(%arg0: i32) -> (i32, i32) {
    %c0_i32 = arith.constant 0 : i32
    %c0_i32_0 = arith.constant 0 : i32
    %c0_i32_1 = arith.constant 0 : i32
    return %c0_i32, %c0_i32_0 : i32, i32
  }
  func.func @transform_5(%arg0: i32) -> (i32, i32) {
    %c0_i32 = arith.constant 0 : i32
    %c0_i32_0 = arith.constant 0 : i32
    %c0_i32_1 = arith.constant 0 : i32
    return %c0_i32, %c0_i32_0 : i32, i32
  }
  func.func @transform_6(%arg0: i32) -> (i32, i32, i32, i32) {
    %c0_i32 = arith.constant 0 : i32
    %c0_i32_0 = arith.constant 0 : i32
    %c0_i32_1 = arith.constant 0 : i32
    %c0_i32_2 = arith.constant 0 : i32
    return %arg0, %c0_i32, %c0_i32_0, %c0_i32_1 : i32, i32, i32, i32
  }
  func.func @transform_7(%arg0: i32) -> (i32, i32, i32) {
    %c0_i32 = arith.constant 0 : i32
    %c0_i32_0 = arith.constant 0 : i32
    %c0_i32_1 = arith.constant 0 : i32
    return %arg0, %c0_i32, %c0_i32_0 : i32, i32, i32
  }
  func.func @transform_8(%arg0: i32) -> (i32, i32, i32) {
    %c0_i32 = arith.constant 0 : i32
    %c0_i32_0 = arith.constant 0 : i32
    %c0_i32_1 = arith.constant 0 : i32
    return %arg0, %c0_i32, %c0_i32_0 : i32, i32, i32
  }
  func.func @transform_9(%arg0: i32) -> (i32, i32, i32) {
    %c0_i32 = arith.constant 0 : i32
    %c0_i32_0 = arith.constant 0 : i32
    %c0_i32_1 = arith.constant 0 : i32
    return %arg0, %c0_i32, %c0_i32_0 : i32, i32, i32
  }
  func.func @transform_10(%arg0: i32) -> (i32, i32, i32) {
    %c0_i32 = arith.constant 0 : i32
    %c0_i32_0 = arith.constant 0 : i32
    %c0_i32_1 = arith.constant 0 : i32
    return %arg0, %c0_i32, %c0_i32_0 : i32, i32, i32
  }
  func.func @transform_11(%arg0: i32) -> (i32, i32, i32) {
    %c0_i32 = arith.constant 0 : i32
    %c0_i32_0 = arith.constant 0 : i32
    %c0_i32_1 = arith.constant 0 : i32
    return %arg0, %c0_i32, %c0_i32_0 : i32, i32, i32
  }
}

module attributes {stable_mosaic.version = 11 : i64} {
  func.func @kernel(%arg0: i32, %arg1: memref<2x16x16x8xbf16, #tpu.memory_space<vmem>>, %arg2: memref<1x8xf32, #tpu.memory_space<vmem>>, %arg3: memref<1x8xf32, #tpu.memory_space<vmem>>, %arg4: memref<72x8xbf16, #tpu.memory_space<vmem>>, %arg5: memref<1x8xf32, #tpu.memory_space<vmem>>, %arg6: memref<2x256x8xbf16, #tpu.memory_space<vmem>>, %arg7: memref<1x1x8xf32, #tpu.memory_space<vmem>>, %arg8: memref<1x1x8xf32, #tpu.memory_space<vmem>>, %arg9: memref<2x18x33x8xbf16, #tpu.memory_space<vmem>>) attributes {dimension_semantics = [#tpu.dimension_semantics<parallel>], iteration_bounds = array<i64: 1>, scalar_prefetch = 0 : i64, scratch_operands = 1 : i64, tpu.core_type = #tpu.core_type<tc>, window_params = [{transform_indices = @transform_0, window_bounds = array<i64: 2, 16, 16, 8>}, {pipeline_mode = #tpu.pipeline_mode<synchronous>, transform_indices = @transform_1, window_bounds = array<i64: 1, 8>}, {pipeline_mode = #tpu.pipeline_mode<synchronous>, transform_indices = @transform_2, window_bounds = array<i64: 1, 8>}, {pipeline_mode = #tpu.pipeline_mode<synchronous>, transform_indices = @transform_3, window_bounds = array<i64: 72, 8>}, {pipeline_mode = #tpu.pipeline_mode<synchronous>, transform_indices = @transform_4, window_bounds = array<i64: 1, 8>}, {transform_indices = @transform_5, window_bounds = array<i64: 2, 256, 8>}, {transform_indices = @transform_6, window_bounds = array<i64: 1, 1, 8>}, {transform_indices = @transform_7, window_bounds = array<i64: 1, 1, 8>}]} {
    %cst = arith.constant 0.000000e+00 : bf16
    %0 = vector.broadcast %cst : bf16 to vector<2x1x18x8xbf16>
    %c0 = arith.constant 0 : index
    %c0_0 = arith.constant 0 : index
    %c15 = arith.constant 15 : index
    %c0_1 = arith.constant 0 : index
    %1 = vector.load %arg9[%c0, %c0_0, %c15, %c0_1] : memref<2x18x33x8xbf16, #tpu.memory_space<vmem>>, vector<2x1x18x8xbf16>
    tpu.vector_store %arg9[%c0, %c0_0, %c15, %c0_1], %0 {strides = array<i32>} : memref<2x18x33x8xbf16, #tpu.memory_space<vmem>>, vector<2x1x18x8xbf16>,
    %cst_2 = arith.constant 0.000000e+00 : bf16
    %2 = vector.broadcast %cst_2 : bf16 to vector<2x1x18x8xbf16>
    %c0_3 = arith.constant 0 : index
    %c17 = arith.constant 17 : index
    %c15_4 = arith.constant 15 : index
    %c0_5 = arith.constant 0 : index
    %3 = vector.load %arg9[%c0_3, %c17, %c15_4, %c0_5] : memref<2x18x33x8xbf16, #tpu.memory_space<vmem>>, vector<2x1x18x8xbf16>
    tpu.vector_store %arg9[%c0_3, %c17, %c15_4, %c0_5], %2 {strides = array<i32>} : memref<2x18x33x8xbf16, #tpu.memory_space<vmem>>, vector<2x1x18x8xbf16>,
    %cst_6 = arith.constant 0.000000e+00 : bf16
    %4 = vector.broadcast %cst_6 : bf16 to vector<2x18x1x8xbf16>
    %c0_7 = arith.constant 0 : index
    %c0_8 = arith.constant 0 : index
    %c15_9 = arith.constant 15 : index
    %c0_10 = arith.constant 0 : index
    %5 = vector.load %arg9[%c0_7, %c0_8, %c15_9, %c0_10] : memref<2x18x33x8xbf16, #tpu.memory_space<vmem>>, vector<2x18x1x8xbf16>
    tpu.vector_store %arg9[%c0_7, %c0_8, %c15_9, %c0_10], %4 {strides = array<i32>} : memref<2x18x33x8xbf16, #tpu.memory_space<vmem>>, vector<2x18x1x8xbf16>,
    %cst_11 = arith.constant 0.000000e+00 : bf16
    %6 = vector.broadcast %cst_11 : bf16 to vector<2x18x1x8xbf16>
    %c0_12 = arith.constant 0 : index
    %c0_13 = arith.constant 0 : index
    %c32 = arith.constant 32 : index
    %c0_14 = arith.constant 0 : index
    %7 = vector.load %arg9[%c0_12, %c0_13, %c32, %c0_14] : memref<2x18x33x8xbf16, #tpu.memory_space<vmem>>, vector<2x18x1x8xbf16>
    tpu.vector_store %arg9[%c0_12, %c0_13, %c32, %c0_14], %6 {strides = array<i32>} : memref<2x18x33x8xbf16, #tpu.memory_space<vmem>>, vector<2x18x1x8xbf16>,
    %c0_15 = arith.constant 0 : index
    %c0_16 = arith.constant 0 : index
    %c0_17 = arith.constant 0 : index
    %c0_18 = arith.constant 0 : index
    %8 = vector.load %arg1[%c0_15, %c0_16, %c0_17, %c0_18] : memref<2x16x16x8xbf16, #tpu.memory_space<vmem>>, vector<2x16x16x8xbf16>
    %9 = arith.extf %8 : vector<2x16x16x8xbf16> to vector<2x16x16x8xf32>
    %c0_19 = arith.constant 0 : index
    %c0_20 = arith.constant 0 : index
    %10 = vector.load %arg2[%c0_19, %c0_20] : memref<1x8xf32, #tpu.memory_space<vmem>>, vector<1x8xf32>
    %11 = vector.shape_cast %10 : vector<1x8xf32> to vector<1x1x1x8xf32>
    %12 = vector.broadcast %11 : vector<1x1x1x8xf32> to vector<2x16x16x8xf32>
    %13 = arith.mulf %9, %12 : vector<2x16x16x8xf32>
    %c0_21 = arith.constant 0 : index
    %c0_22 = arith.constant 0 : index
    %14 = vector.load %arg3[%c0_21, %c0_22] : memref<1x8xf32, #tpu.memory_space<vmem>>, vector<1x8xf32>
    %15 = vector.shape_cast %14 : vector<1x8xf32> to vector<1x1x1x8xf32>
    %16 = vector.broadcast %15 : vector<1x1x1x8xf32> to vector<2x16x16x8xf32>
    %17 = arith.addf %13, %16 : vector<2x16x16x8xf32>
    %cst_23 = arith.constant 0.000000e+00 : f32
    %18 = vector.broadcast %cst_23 : f32 to vector<2x16x16x8xf32>
    %19 = arith.maximumf %17, %18 : vector<2x16x16x8xf32>
    %20 = arith.truncf %19 : vector<2x16x16x8xf32> to vector<2x16x16x8xbf16>
    %c0_24 = arith.constant 0 : index
    %c1 = arith.constant 1 : index
    %c16 = arith.constant 16 : index
    %c0_25 = arith.constant 0 : index
    %21 = vector.load %arg9[%c0_24, %c1, %c16, %c0_25] : memref<2x18x33x8xbf16, #tpu.memory_space<vmem>>, vector<2x16x16x8xbf16>
    tpu.vector_store %arg9[%c0_24, %c1, %c16, %c0_25], %20 {strides = array<i32>} : memref<2x18x33x8xbf16, #tpu.memory_space<vmem>>, vector<2x16x16x8xbf16>,
    %c0_26 = arith.constant 0 : index
    %c0_27 = arith.constant 0 : index
    %c15_28 = arith.constant 15 : index
    %c0_29 = arith.constant 0 : index
    %22 = vector.load %arg9[%c0_26, %c0_27, %c15_28, %c0_29] : memref<2x18x33x8xbf16, #tpu.memory_space<vmem>>, vector<2x18x18x8xbf16>
    %23 = vector.extract_strided_slice %22 {offsets = [0, 0, 0, 0], sizes = [2, 16, 16, 8], strides = [1, 1, 1, 1]} : vector<2x18x18x8xbf16> to vector<2x16x16x8xbf16>
    %24 = vector.extract_strided_slice %22 {offsets = [0, 0, 1, 0], sizes = [2, 16, 16, 8], strides = [1, 1, 1, 1]} : vector<2x18x18x8xbf16> to vector<2x16x16x8xbf16>
    %25 = vector.extract_strided_slice %22 {offsets = [0, 0, 2, 0], sizes = [2, 16, 16, 8], strides = [1, 1, 1, 1]} : vector<2x18x18x8xbf16> to vector<2x16x16x8xbf16>
    %26 = vector.extract_strided_slice %22 {offsets = [0, 1, 0, 0], sizes = [2, 16, 16, 8], strides = [1, 1, 1, 1]} : vector<2x18x18x8xbf16> to vector<2x16x16x8xbf16>
    %27 = vector.extract_strided_slice %22 {offsets = [0, 1, 1, 0], sizes = [2, 16, 16, 8], strides = [1, 1, 1, 1]} : vector<2x18x18x8xbf16> to vector<2x16x16x8xbf16>
    %28 = vector.extract_strided_slice %22 {offsets = [0, 1, 2, 0], sizes = [2, 16, 16, 8], strides = [1, 1, 1, 1]} : vector<2x18x18x8xbf16> to vector<2x16x16x8xbf16>
    %29 = vector.extract_strided_slice %22 {offsets = [0, 2, 0, 0], sizes = [2, 16, 16, 8], strides = [1, 1, 1, 1]} : vector<2x18x18x8xbf16> to vector<2x16x16x8xbf16>
    %30 = vector.extract_strided_slice %22 {offsets = [0, 2, 1, 0], sizes = [2, 16, 16, 8], strides = [1, 1, 1, 1]} : vector<2x18x18x8xbf16> to vector<2x16x16x8xbf16>
    %31 = vector.extract_strided_slice %22 {offsets = [0, 2, 2, 0], sizes = [2, 16, 16, 8], strides = [1, 1, 1, 1]} : vector<2x18x18x8xbf16> to vector<2x16x16x8xbf16>
    %32 = tpu.concatenate %23, %24, %25, %26, %27, %28, %29, %30, %31 in 3 : vector<2x16x16x8xbf16>, vector<2x16x16x8xbf16>, vector<2x16x16x8xbf16>, vector<2x16x16x8xbf16>, vector<2x16x16x8xbf16>, vector<2x16x16x8xbf16>, vector<2x16x16x8xbf16>, vector<2x16x16x8xbf16>, vector<2x16x16x8xbf16> -> vector<2x16x16x72xbf16>
    %33 = vector.shape_cast %32 : vector<2x16x16x72xbf16> to vector<512x72xbf16>
    %c0_30 = arith.constant 0 : index
    %c0_31 = arith.constant 0 : index
    %34 = vector.load %arg4[%c0_30, %c0_31] : memref<72x8xbf16, #tpu.memory_space<vmem>>, vector<72x8xbf16>
    %cst_32 = arith.constant dense<0.000000e+00> : vector<512x8xf32>
    %35 = tpu.matmul %33, %34, %cst_32 {dimension_numbers = #tpu.dot_dimension_numbers<[1], [0], [0], [1], [0, 0, 1, 1], [], []>} : vector<512x72xbf16>, vector<72x8xbf16>, vector<512x8xf32> -> vector<512x8xf32>
    %c0_33 = arith.constant 0 : index
    %c0_34 = arith.constant 0 : index
    %36 = vector.load %arg5[%c0_33, %c0_34] : memref<1x8xf32, #tpu.memory_space<vmem>>, vector<1x8xf32>
    %37 = vector.broadcast %36 : vector<1x8xf32> to vector<512x8xf32>
    %38 = arith.addf %35, %37 : vector<512x8xf32>
    %cst_35 = arith.constant dense<0.000000e+00> : vector<8xf32>
    %39 = vector.multi_reduction <add>, %38, %cst_35 [0] : vector<512x8xf32> to vector<8xf32>
    %40 = vector.shape_cast %39 : vector<8xf32> to vector<1x8xf32>
    %41 = vector.shape_cast %40 : vector<1x8xf32> to vector<1x1x8xf32>
    %c0_36 = arith.constant 0 : index
    %c0_37 = arith.constant 0 : index
    %c0_38 = arith.constant 0 : index
    %42 = vector.load %arg7[%c0_36, %c0_37, %c0_38] : memref<1x1x8xf32, #tpu.memory_space<vmem>>, vector<1x1x8xf32>
    tpu.vector_store %arg7[%c0_36, %c0_37, %c0_38], %41 {strides = array<i32>} : memref<1x1x8xf32, #tpu.memory_space<vmem>>, vector<1x1x8xf32>,
    %43 = arith.mulf %38, %38 : vector<512x8xf32>
    %cst_39 = arith.constant dense<0.000000e+00> : vector<8xf32>
    %44 = vector.multi_reduction <add>, %43, %cst_39 [0] : vector<512x8xf32> to vector<8xf32>
    %45 = vector.shape_cast %44 : vector<8xf32> to vector<1x8xf32>
    %46 = vector.shape_cast %45 : vector<1x8xf32> to vector<1x1x8xf32>
    %c0_40 = arith.constant 0 : index
    %c0_41 = arith.constant 0 : index
    %c0_42 = arith.constant 0 : index
    %47 = vector.load %arg8[%c0_40, %c0_41, %c0_42] : memref<1x1x8xf32, #tpu.memory_space<vmem>>, vector<1x1x8xf32>
    tpu.vector_store %arg8[%c0_40, %c0_41, %c0_42], %46 {strides = array<i32>} : memref<1x1x8xf32, #tpu.memory_space<vmem>>, vector<1x1x8xf32>,
    %48 = vector.shape_cast %38 : vector<512x8xf32> to vector<2x256x8xf32>
    %49 = arith.truncf %48 : vector<2x256x8xf32> to vector<2x256x8xbf16>
    %c0_43 = arith.constant 0 : index
    %c0_44 = arith.constant 0 : index
    %c0_45 = arith.constant 0 : index
    %50 = vector.load %arg6[%c0_43, %c0_44, %c0_45] : memref<2x256x8xbf16, #tpu.memory_space<vmem>>, vector<2x256x8xbf16>
    tpu.vector_store %arg6[%c0_43, %c0_44, %c0_45], %49 {strides = array<i32>} : memref<2x256x8xbf16, #tpu.memory_space<vmem>>, vector<2x256x8xbf16>,
    return
  }
  func.func @transform_0(%arg0: i32) -> (i32, i32, i32, i32) {
    %c0_i32 = arith.constant 0 : i32
    %c0_i32_0 = arith.constant 0 : i32
    %c0_i32_1 = arith.constant 0 : i32
    %c0_i32_2 = arith.constant 0 : i32
    return %arg0, %c0_i32, %c0_i32_0, %c0_i32_1 : i32, i32, i32, i32
  }
  func.func @transform_1(%arg0: i32) -> (i32, i32) {
    %c0_i32 = arith.constant 0 : i32
    %c0_i32_0 = arith.constant 0 : i32
    %c0_i32_1 = arith.constant 0 : i32
    return %c0_i32, %c0_i32_0 : i32, i32
  }
  func.func @transform_2(%arg0: i32) -> (i32, i32) {
    %c0_i32 = arith.constant 0 : i32
    %c0_i32_0 = arith.constant 0 : i32
    %c0_i32_1 = arith.constant 0 : i32
    return %c0_i32, %c0_i32_0 : i32, i32
  }
  func.func @transform_3(%arg0: i32) -> (i32, i32) {
    %c0_i32 = arith.constant 0 : i32
    %c0_i32_0 = arith.constant 0 : i32
    %c0_i32_1 = arith.constant 0 : i32
    return %c0_i32, %c0_i32_0 : i32, i32
  }
  func.func @transform_4(%arg0: i32) -> (i32, i32) {
    %c0_i32 = arith.constant 0 : i32
    %c0_i32_0 = arith.constant 0 : i32
    %c0_i32_1 = arith.constant 0 : i32
    return %c0_i32, %c0_i32_0 : i32, i32
  }
  func.func @transform_5(%arg0: i32) -> (i32, i32, i32) {
    %c0_i32 = arith.constant 0 : i32
    %c0_i32_0 = arith.constant 0 : i32
    %c0_i32_1 = arith.constant 0 : i32
    return %arg0, %c0_i32, %c0_i32_0 : i32, i32, i32
  }
  func.func @transform_6(%arg0: i32) -> (i32, i32, i32) {
    %c0_i32 = arith.constant 0 : i32
    %c0_i32_0 = arith.constant 0 : i32
    %c0_i32_1 = arith.constant 0 : i32
    return %arg0, %c0_i32, %c0_i32_0 : i32, i32, i32
  }
  func.func @transform_7(%arg0: i32) -> (i32, i32, i32) {
    %c0_i32 = arith.constant 0 : i32
    %c0_i32_0 = arith.constant 0 : i32
    %c0_i32_1 = arith.constant 0 : i32
    return %arg0, %c0_i32, %c0_i32_0 : i32, i32, i32
  }
}

</mosaic_0001>

<llo_original>
// kernel: basicblock_forward.5
$region0: #{basicblock_forward.5}
  #allocation0 [shape = 'u32[]', space=smem, size = 0x4, offset = 0x4, fixed_abs, tag = 'smem constant byte address 0x4 - core index']
  #allocation1 [shape = 'u32[72,128]{1,0:T(1,128)}', space=vmem, size = 0x9000, scoped, tag = 'internal scratch']
  %s0 = inlined_call_operand.vmem [shape: bf16[2,256,8], index: 0, kind: input, shape index: {}]
  %s1 = inlined_call_operand.vmem [shape: bf16[2,256,8], index: 1, kind: input, shape index: {}]
  %s2 = inlined_call_operand.vmem [shape: f32[1,8], index: 2, kind: input, shape index: {}]
  %s3 = inlined_call_operand.vmem [shape: f32[1,8], index: 3, kind: input, shape index: {}]
  %s4 = inlined_call_operand.vmem [shape: f32[1,8], index: 4, kind: input, shape index: {}]
  %s5 = inlined_call_operand.vmem [shape: f32[1,8], index: 5, kind: input, shape index: {}]
  %s6 = inlined_call_operand.vmem [shape: f32[2,8,256], index: 6, kind: output, shape index: {}]
  %s7 = sld [smem:[#allocation0]]
  $region34: #{basicblock_forward.5} parent=0
    _
  %s9 = ssub.s32 1, %s7
  %s10 = scalar_select 0, %s9, %s7
  // Predicated region
  $region2: #{basicblock_forward.5} parent=0 // pred_check
    _
  $region3: #{basicblock_forward.5} parent=0 // pred_check_branch
    %12 = sbr.rel (0) target = $region5
  $region4: #{basicblock_forward.5} parent=0 // pred_region
    _
  $region5: #{basicblock_forward.5} parent=0 // pred_fallthru
    _
  // Predicated region
  $region6: #{basicblock_forward.5} parent=0 // pred_check
    _
  $region7: #{basicblock_forward.5} parent=0 // pred_check_branch
    %14 = sbr.rel (0) target = $region9
  $region8: #{basicblock_forward.5} parent=0 // pred_region
    _
  $region9: #{basicblock_forward.5} parent=0 // pred_fallthru
    _
  // Predicated region
  $region10: #{basicblock_forward.5} parent=0 // pred_check
    _
  $region11: #{basicblock_forward.5} parent=0 // pred_check_branch
    %16 = sbr.rel (0) target = $region13
  $region12: #{basicblock_forward.5} parent=0 // pred_region
    _
  $region13: #{basicblock_forward.5} parent=0 // pred_fallthru
    _
  // Predicated region
  $region14: #{basicblock_forward.5} parent=0 // pred_check
    _
  $region15: #{basicblock_forward.5} parent=0 // pred_check_branch
    %18 = sbr.rel (0) target = $region17
  $region16: #{basicblock_forward.5} parent=0 // pred_region
    _
  $region17: #{basicblock_forward.5} parent=0 // pred_fallthru
    _
  // Predicated region
  $region18: #{basicblock_forward.5} parent=0 // pred_check
    _
  $region19: #{basicblock_forward.5} parent=0 // pred_check_branch
    %20 = sbr.rel (0) target = $region21
  $region20: #{basicblock_forward.5} parent=0 // pred_region
    _
  $region21: #{basicblock_forward.5} parent=0 // pred_fallthru
    _
  // Predicated region
  $region22: #{basicblock_forward.5} parent=0 // pred_check
    _
  $region23: #{basicblock_forward.5} parent=0 // pred_check_branch
    %22 = sbr.rel (0) target = $region25
  $region24: #{basicblock_forward.5} parent=0 // pred_region
    _
  $region25: #{basicblock_forward.5} parent=0 // pred_fallthru
    _
  %v23 = vld [vmem:[%s1] sm:$0xf]
  %v24 = vld [vmem:[%s1 + $0x4] sm:$0xf]
  %v25 = vld [vmem:[%s1 + $0x8] sm:$0xf]
  %v26 = vld [vmem:[%s1 + $0xc] sm:$0xf]
  %v27 = vld [vmem:[%s1 + $0x10] sm:$0xf]
  %v28 = vld [vmem:[%s1 + $0x14] sm:$0xf]
  %v29 = vld [vmem:[%s1 + $0x18] sm:$0xf]
  %v30 = vld [vmem:[%s1 + $0x1c] sm:$0xf]
  %v31 = vld [vmem:[%s1 + $0x20] sm:$0xf]
  %v32 = vld [vmem:[%s1 + $0x24] sm:$0xf]
  %v33 = vld [vmem:[%s1 + $0x28] sm:$0xf]
  %v34 = vld [vmem:[%s1 + $0x2c] sm:$0xf]
  %v35 = vld [vmem:[%s1 + $0x30] sm:$0xf]
  %v36 = vld [vmem:[%s1 + $0x34] sm:$0xf]
  %v37 = vld [vmem:[%s1 + $0x38] sm:$0xf]
  %v38 = vld [vmem:[%s1 + $0x3c] sm:$0xf]
  %v39 = vld [vmem:[%s1 + $0x40] sm:$0xf]
  %v40 = vld [vmem:[%s1 + $0x44] sm:$0xf]
  %v41 = vld [vmem:[%s1 + $0x48] sm:$0xf]
  %v42 = vld [vmem:[%s1 + $0x4c] sm:$0xf]
  %v43 = vld [vmem:[%s1 + $0x50] sm:$0xf]
  %v44 = vld [vmem:[%s1 + $0x54] sm:$0xf]
  %v45 = vld [vmem:[%s1 + $0x58] sm:$0xf]
  %v46 = vld [vmem:[%s1 + $0x5c] sm:$0xf]
  %v47 = vld [vmem:[%s1 + $0x60] sm:$0xf]
  %v48 = vld [vmem:[%s1 + $0x64] sm:$0xf]
  %v49 = vld [vmem:[%s1 + $0x68] sm:$0xf]
  %v50 = vld [vmem:[%s1 + $0x6c] sm:$0xf]
  %v51 = vld [vmem:[%s1 + $0x70] sm:$0xf]
  %v52 = vld [vmem:[%s1 + $0x74] sm:$0xf]
  %v53 = vld [vmem:[%s1 + $0x78] sm:$0xf]
  %v54 = vld [vmem:[%s1 + $0x7c] sm:$0xf]
  %v55 = vld [vmem:[%s1 + $0x80] sm:$0xf]
  %v56 = vld [vmem:[%s1 + $0x84] sm:$0xf]
  %v57 = vld [vmem:[%s1 + $0x88] sm:$0xf]
  %v58 = vld [vmem:[%s1 + $0x8c] sm:$0xf]
  %v59 = vld [vmem:[%s1 + $0x90] sm:$0xf]
  %v60 = vld [vmem:[%s1 + $0x94] sm:$0xf]
  %v61 = vld [vmem:[%s1 + $0x98] sm:$0xf]
  %v62 = vld [vmem:[%s1 + $0x9c] sm:$0xf]
  %v63 = vld [vmem:[%s1 + $0xa0] sm:$0xf]
  %v64 = vld [vmem:[%s1 + $0xa4] sm:$0xf]
  %v65 = vld [vmem:[%s1 + $0xa8] sm:$0xf]
  %v66 = vld [vmem:[%s1 + $0xac] sm:$0xf]
  %v67 = vld [vmem:[%s1 + $0xb0] sm:$0xf]
  %v68 = vld [vmem:[%s1 + $0xb4] sm:$0xf]
  %v69 = vld [vmem:[%s1 + $0xb8] sm:$0xf]
  %v70 = vld [vmem:[%s1 + $0xbc] sm:$0xf]
  %v71 = vld [vmem:[%s1 + $0xc0] sm:$0xf]
  %v72 = vld [vmem:[%s1 + $0xc4] sm:$0xf]
  %v73 = vld [vmem:[%s1 + $0xc8] sm:$0xf]
  %v74 = vld [vmem:[%s1 + $0xcc] sm:$0xf]
  %v75 = vld [vmem:[%s1 + $0xd0] sm:$0xf]
  %v76 = vld [vmem:[%s1 + $0xd4] sm:$0xf]
  %v77 = vld [vmem:[%s1 + $0xd8] sm:$0xf]
  %v78 = vld [vmem:[%s1 + $0xdc] sm:$0xf]
  %v79 = vld [vmem:[%s1 + $0xe0] sm:$0xf]
  %v80 = vld [vmem:[%s1 + $0xe4] sm:$0xf]
  %v81 = vld [vmem:[%s1 + $0xe8] sm:$0xf]
  %v82 = vld [vmem:[%s1 + $0xec] sm:$0xf]
  %v83 = vld [vmem:[%s1 + $0xf0] sm:$0xf]
  %v84 = vld [vmem:[%s1 + $0xf4] sm:$0xf]
  %v85 = vld [vmem:[%s1 + $0xf8] sm:$0xf]
  %v86 = vld [vmem:[%s1 + $0xfc] sm:$0xf]
  %v87 = vunpack.c.l.bf16 %v23
  %v88 = vunpack.c.l.bf16 %v24
  %v89 = vunpack.c.l.bf16 %v25
  %v90 = vunpack.c.l.bf16 %v26
  %v91 = vunpack.c.l.bf16 %v27
  %v92 = vunpack.c.l.bf16 %v28
  %v93 = vunpack.c.l.bf16 %v29
  %v94 = vunpack.c.l.bf16 %v30
  %v95 = vunpack.c.l.bf16 %v31
  %v96 = vunpack.c.l.bf16 %v32
  %v97 = vunpack.c.l.bf16 %v33
  %v98 = vunpack.c.l.bf16 %v34
  %v99 = vunpack.c.l.bf16 %v35
  %v100 = vunpack.c.l.bf16 %v36
  %v101 = vunpack.c.l.bf16 %v37
  %v102 = vunpack.c.l.bf16 %v38
  %v103 = vunpack.c.l.bf16 %v39
  %v104 = vunpack.c.l.bf16 %v40
  %v105 = vunpack.c.l.bf16 %v41
  %v106 = vunpack.c.l.bf16 %v42
  %v107 = vunpack.c.l.bf16 %v43
  %v108 = vunpack.c.l.bf16 %v44
  %v109 = vunpack.c.l.bf16 %v45
  %v110 = vunpack.c.l.bf16 %v46
  %v111 = vunpack.c.l.bf16 %v47
  %v112 = vunpack.c.l.bf16 %v48
  %v113 = vunpack.c.l.bf16 %v49
  %v114 = vunpack.c.l.bf16 %v50
  %v115 = vunpack.c.l.bf16 %v51
  %v116 = vunpack.c.l.bf16 %v52
  %v117 = vunpack.c.l.bf16 %v53
  %v118 = vunpack.c.l.bf16 %v54
  %v119 = vunpack.c.l.bf16 %v55
  %v120 = vunpack.c.l.bf16 %v56
  %v121 = vunpack.c.l.bf16 %v57
  %v122 = vunpack.c.l.bf16 %v58
  %v123 = vunpack.c.l.bf16 %v59
  %v124 = vunpack.c.l.bf16 %v60
  %v125 = vunpack.c.l.bf16 %v61
  %v126 = vunpack.c.l.bf16 %v62
  %v127 = vunpack.c.l.bf16 %v63
  %v128 = vunpack.c.l.bf16 %v64
  %v129 = vunpack.c.l.bf16 %v65
  %v130 = vunpack.c.l.bf16 %v66
  %v131 = vunpack.c.l.bf16 %v67
  %v132 = vunpack.c.l.bf16 %v68
  %v133 = vunpack.c.l.bf16 %v69
  %v134 = vunpack.c.l.bf16 %v70
  %v135 = vunpack.c.l.bf16 %v71
  %v136 = vunpack.c.l.bf16 %v72
  %v137 = vunpack.c.l.bf16 %v73
  %v138 = vunpack.c.l.bf16 %v74
  %v139 = vunpack.c.l.bf16 %v75
  %v140 = vunpack.c.l.bf16 %v76
  %v141 = vunpack.c.l.bf16 %v77
  %v142 = vunpack.c.l.bf16 %v78
  %v143 = vunpack.c.l.bf16 %v79
  %v144 = vunpack.c.l.bf16 %v80
  %v145 = vunpack.c.l.bf16 %v81
  %v146 = vunpack.c.l.bf16 %v82
  %v147 = vunpack.c.l.bf16 %v83
  %v148 = vunpack.c.l.bf16 %v84
  %v149 = vunpack.c.l.bf16 %v85
  %v150 = vunpack.c.l.bf16 %v86
  %v151 = vld [vmem:[%s4] sm:$0x1]
  %v153 = vperm.slane %v151, 0
  %v155 = vmul.f32 %v87, %v153
  %v156 = vmul.f32 %v88, %v153
  %v157 = vmul.f32 %v89, %v153
  %v158 = vmul.f32 %v90, %v153
  %v159 = vmul.f32 %v91, %v153
  %v160 = vmul.f32 %v92, %v153
  %v161 = vmul.f32 %v93, %v153
  %v162 = vmul.f32 %v94, %v153
  %v163 = vmul.f32 %v95, %v153
  %v164 = vmul.f32 %v96, %v153
  %v165 = vmul.f32 %v97, %v153
  %v166 = vmul.f32 %v98, %v153
  %v167 = vmul.f32 %v99, %v153
  %v168 = vmul.f32 %v100, %v153
  %v169 = vmul.f32 %v101, %v153
  %v170 = vmul.f32 %v102, %v153
  %v171 = vmul.f32 %v103, %v153
  %v172 = vmul.f32 %v104, %v153
  %v173 = vmul.f32 %v105, %v153
  %v174 = vmul.f32 %v106, %v153
  %v175 = vmul.f32 %v107, %v153
  %v176 = vmul.f32 %v108, %v153
  %v177 = vmul.f32 %v109, %v153
  %v178 = vmul.f32 %v110, %v153
  %v179 = vmul.f32 %v111, %v153
  %v180 = vmul.f32 %v112, %v153
  %v181 = vmul.f32 %v113, %v153
  %v182 = vmul.f32 %v114, %v153
  %v183 = vmul.f32 %v115, %v153
  %v184 = vmul.f32 %v116, %v153
  %v185 = vmul.f32 %v117, %v153
  %v186 = vmul.f32 %v118, %v153
  %v187 = vmul.f32 %v119, %v153
  %v188 = vmul.f32 %v120, %v153
  %v189 = vmul.f32 %v121, %v153
  %v190 = vmul.f32 %v122, %v153
  %v191 = vmul.f32 %v123, %v153
  %v192 = vmul.f32 %v124, %v153
  %v193 = vmul.f32 %v125, %v153
  %v194 = vmul.f32 %v126, %v153
  %v195 = vmul.f32 %v127, %v153
  %v196 = vmul.f32 %v128, %v153
  %v197 = vmul.f32 %v129, %v153
  %v198 = vmul.f32 %v130, %v153
  %v199 = vmul.f32 %v131, %v153
  %v200 = vmul.f32 %v132, %v153
  %v201 = vmul.f32 %v133, %v153
  %v202 = vmul.f32 %v134, %v153
  %v203 = vmul.f32 %v135, %v153
  %v204 = vmul.f32 %v136, %v153
  %v205 = vmul.f32 %v137, %v153
  %v206 = vmul.f32 %v138, %v153
  %v207 = vmul.f32 %v139, %v153
  %v208 = vmul.f32 %v140, %v153
  %v209 = vmul.f32 %v141, %v153
  %v210 = vmul.f32 %v142, %v153
  %v211 = vmul.f32 %v143, %v153
  %v212 = vmul.f32 %v144, %v153
  %v213 = vmul.f32 %v145, %v153
  %v214 = vmul.f32 %v146, %v153
  %v215 = vmul.f32 %v147, %v153
  %v216 = vmul.f32 %v148, %v153
  %v217 = vmul.f32 %v149, %v153
  %v218 = vmul.f32 %v150, %v153
  %v219 = vld [vmem:[%s5] sm:$0x1]
  %v221 = vperm.slane %v219, 0
  %v223 = vadd.f32 %v155, %v221
  %v224 = vadd.f32 %v156, %v221
  %v225 = vadd.f32 %v157, %v221
  %v226 = vadd.f32 %v158, %v221
  %v227 = vadd.f32 %v159, %v221
  %v228 = vadd.f32 %v160, %v221
  %v229 = vadd.f32 %v161, %v221
  %v230 = vadd.f32 %v162, %v221
  %v231 = vadd.f32 %v163, %v221
  %v232 = vadd.f32 %v164, %v221
  %v233 = vadd.f32 %v165, %v221
  %v234 = vadd.f32 %v166, %v221
  %v235 = vadd.f32 %v167, %v221
  %v236 = vadd.f32 %v168, %v221
  %v237 = vadd.f32 %v169, %v221
  %v238 = vadd.f32 %v170, %v221
  %v239 = vadd.f32 %v171, %v221
  %v240 = vadd.f32 %v172, %v221
  %v241 = vadd.f32 %v173, %v221
  %v242 = vadd.f32 %v174, %v221
  %v243 = vadd.f32 %v175, %v221
  %v244 = vadd.f32 %v176, %v221
  %v245 = vadd.f32 %v177, %v221
  %v246 = vadd.f32 %v178, %v221
  %v247 = vadd.f32 %v179, %v221
  %v248 = vadd.f32 %v180, %v221
  %v249 = vadd.f32 %v181, %v221
  %v250 = vadd.f32 %v182, %v221
  %v251 = vadd.f32 %v183, %v221
  %v252 = vadd.f32 %v184, %v221
  %v253 = vadd.f32 %v185, %v221
  %v254 = vadd.f32 %v186, %v221
  %v255 = vadd.f32 %v187, %v221
  %v256 = vadd.f32 %v188, %v221
  %v257 = vadd.f32 %v189, %v221
  %v258 = vadd.f32 %v190, %v221
  %v259 = vadd.f32 %v191, %v221
  %v260 = vadd.f32 %v192, %v221
  %v261 = vadd.f32 %v193, %v221
  %v262 = vadd.f32 %v194, %v221
  %v263 = vadd.f32 %v195, %v221
  %v264 = vadd.f32 %v196, %v221
  %v265 = vadd.f32 %v197, %v221
  %v266 = vadd.f32 %v198, %v221
  %v267 = vadd.f32 %v199, %v221
  %v268 = vadd.f32 %v200, %v221
  %v269 = vadd.f32 %v201, %v221
  %v270 = vadd.f32 %v202, %v221
  %v271 = vadd.f32 %v203, %v221
  %v272 = vadd.f32 %v204, %v221
  %v273 = vadd.f32 %v205, %v221
  %v274 = vadd.f32 %v206, %v221
  %v275 = vadd.f32 %v207, %v221
  %v276 = vadd.f32 %v208, %v221
  %v277 = vadd.f32 %v209, %v221
  %v278 = vadd.f32 %v210, %v221
  %v279 = vadd.f32 %v211, %v221
  %v280 = vadd.f32 %v212, %v221
  %v281 = vadd.f32 %v213, %v221
  %v282 = vadd.f32 %v214, %v221
  %v283 = vadd.f32 %v215, %v221
  %v284 = vadd.f32 %v216, %v221
  %v285 = vadd.f32 %v217, %v221
  %v286 = vadd.f32 %v218, %v221
  %v287 = vld [vmem:[%s0] sm:$0xf]
  %v288 = vld [vmem:[%s0 + $0x4] sm:$0xf]
  %v289 = vld [vmem:[%s0 + $0x8] sm:$0xf]
  %v290 = vld [vmem:[%s0 + $0xc] sm:$0xf]
  %v291 = vld [vmem:[%s0 + $0x10] sm:$0xf]
  %v292 = vld [vmem:[%s0 + $0x14] sm:$0xf]
  %v293 = vld [vmem:[%s0 + $0x18] sm:$0xf]
  %v294 = vld [vmem:[%s0 + $0x1c] sm:$0xf]
  %v295 = vld [vmem:[%s0 + $0x20] sm:$0xf]
  %v296 = vld [vmem:[%s0 + $0x24] sm:$0xf]
  %v297 = vld [vmem:[%s0 + $0x28] sm:$0xf]
  %v298 = vld [vmem:[%s0 + $0x2c] sm:$0xf]
  %v299 = vld [vmem:[%s0 + $0x30] sm:$0xf]
  %v300 = vld [vmem:[%s0 + $0x34] sm:$0xf]
  %v301 = vld [vmem:[%s0 + $0x38] sm:$0xf]
  %v302 = vld [vmem:[%s0 + $0x3c] sm:$0xf]
  %v303 = vld [vmem:[%s0 + $0x40] sm:$0xf]
  %v304 = vld [vmem:[%s0 + $0x44] sm:$0xf]
  %v305 = vld [vmem:[%s0 + $0x48] sm:$0xf]
  %v306 = vld [vmem:[%s0 + $0x4c] sm:$0xf]
  %v307 = vld [vmem:[%s0 + $0x50] sm:$0xf]
  %v308 = vld [vmem:[%s0 + $0x54] sm:$0xf]
  %v309 = vld [vmem:[%s0 + $0x58] sm:$0xf]
  %v310 = vld [vmem:[%s0 + $0x5c] sm:$0xf]
  %v311 = vld [vmem:[%s0 + $0x60] sm:$0xf]
  %v312 = vld [vmem:[%s0 + $0x64] sm:$0xf]
  %v313 = vld [vmem:[%s0 + $0x68] sm:$0xf]
  %v314 = vld [vmem:[%s0 + $0x6c] sm:$0xf]
  %v315 = vld [vmem:[%s0 + $0x70] sm:$0xf]
  %v316 = vld [vmem:[%s0 + $0x74] sm:$0xf]
  %v317 = vld [vmem:[%s0 + $0x78] sm:$0xf]
  %v318 = vld [vmem:[%s0 + $0x7c] sm:$0xf]
  %v319 = vld [vmem:[%s0 + $0x80] sm:$0xf]
  %v320 = vld [vmem:[%s0 + $0x84] sm:$0xf]
  %v321 = vld [vmem:[%s0 + $0x88] sm:$0xf]
  %v322 = vld [vmem:[%s0 + $0x8c] sm:$0xf]
  %v323 = vld [vmem:[%s0 + $0x90] sm:$0xf]
  %v324 = vld [vmem:[%s0 + $0x94] sm:$0xf]
  %v325 = vld [vmem:[%s0 + $0x98] sm:$0xf]
  %v326 = vld [vmem:[%s0 + $0x9c] sm:$0xf]
  %v327 = vld [vmem:[%s0 + $0xa0] sm:$0xf]
  %v328 = vld [vmem:[%s0 + $0xa4] sm:$0xf]
  %v329 = vld [vmem:[%s0 + $0xa8] sm:$0xf]
  %v330 = vld [vmem:[%s0 + $0xac] sm:$0xf]
  %v331 = vld [vmem:[%s0 + $0xb0] sm:$0xf]
  %v332 = vld [vmem:[%s0 + $0xb4] sm:$0xf]
  %v333 = vld [vmem:[%s0 + $0xb8] sm:$0xf]
  %v334 = vld [vmem:[%s0 + $0xbc] sm:$0xf]
  %v335 = vld [vmem:[%s0 + $0xc0] sm:$0xf]
  %v336 = vld [vmem:[%s0 + $0xc4] sm:$0xf]
  %v337 = vld [vmem:[%s0 + $0xc8] sm:$0xf]
  %v338 = vld [vmem:[%s0 + $0xcc] sm:$0xf]
  %v339 = vld [vmem:[%s0 + $0xd0] sm:$0xf]
  %v340 = vld [vmem:[%s0 + $0xd4] sm:$0xf]
  %v341 = vld [vmem:[%s0 + $0xd8] sm:$0xf]
  %v342 = vld [vmem:[%s0 + $0xdc] sm:$0xf]
  %v343 = vld [vmem:[%s0 + $0xe0] sm:$0xf]
  %v344 = vld [vmem:[%s0 + $0xe4] sm:$0xf]
  %v345 = vld [vmem:[%s0 + $0xe8] sm:$0xf]
  %v346 = vld [vmem:[%s0 + $0xec] sm:$0xf]
  %v347 = vld [vmem:[%s0 + $0xf0] sm:$0xf]
  %v348 = vld [vmem:[%s0 + $0xf4] sm:$0xf]
  %v349 = vld [vmem:[%s0 + $0xf8] sm:$0xf]
  %v350 = vld [vmem:[%s0 + $0xfc] sm:$0xf]
  %v351 = vunpack.c.l.bf16 %v287
  %v352 = vunpack.c.l.bf16 %v288
  %v353 = vunpack.c.l.bf16 %v289
  %v354 = vunpack.c.l.bf16 %v290
  %v355 = vunpack.c.l.bf16 %v291
  %v356 = vunpack.c.l.bf16 %v292
  %v357 = vunpack.c.l.bf16 %v293
  %v358 = vunpack.c.l.bf16 %v294
  %v359 = vunpack.c.l.bf16 %v295
  %v360 = vunpack.c.l.bf16 %v296
  %v361 = vunpack.c.l.bf16 %v297
  %v362 = vunpack.c.l.bf16 %v298
  %v363 = vunpack.c.l.bf16 %v299
  %v364 = vunpack.c.l.bf16 %v300
  %v365 = vunpack.c.l.bf16 %v301
  %v366 = vunpack.c.l.bf16 %v302
  %v367 = vunpack.c.l.bf16 %v303
  %v368 = vunpack.c.l.bf16 %v304
  %v369 = vunpack.c.l.bf16 %v305
  %v370 = vunpack.c.l.bf16 %v306
  %v371 = vunpack.c.l.bf16 %v307
  %v372 = vunpack.c.l.bf16 %v308
  %v373 = vunpack.c.l.bf16 %v309
  %v374 = vunpack.c.l.bf16 %v310
  %v375 = vunpack.c.l.bf16 %v311
  %v376 = vunpack.c.l.bf16 %v312
  %v377 = vunpack.c.l.bf16 %v313
  %v378 = vunpack.c.l.bf16 %v314
  %v379 = vunpack.c.l.bf16 %v315
  %v380 = vunpack.c.l.bf16 %v316
  %v381 = vunpack.c.l.bf16 %v317
  %v382 = vunpack.c.l.bf16 %v318
  %v383 = vunpack.c.l.bf16 %v319
  %v384 = vunpack.c.l.bf16 %v320
  %v385 = vunpack.c.l.bf16 %v321
  %v386 = vunpack.c.l.bf16 %v322
  %v387 = vunpack.c.l.bf16 %v323
  %v388 = vunpack.c.l.bf16 %v324
  %v389 = vunpack.c.l.bf16 %v325
  %v390 = vunpack.c.l.bf16 %v326
  %v391 = vunpack.c.l.bf16 %v327
  %v392 = vunpack.c.l.bf16 %v328
  %v393 = vunpack.c.l.bf16 %v329
  %v394 = vunpack.c.l.bf16 %v330
  %v395 = vunpack.c.l.bf16 %v331
  %v396 = vunpack.c.l.bf16 %v332
  %v397 = vunpack.c.l.bf16 %v333
  %v398 = vunpack.c.l.bf16 %v334
  %v399 = vunpack.c.l.bf16 %v335
  %v400 = vunpack.c.l.bf16 %v336
  %v401 = vunpack.c.l.bf16 %v337
  %v402 = vunpack.c.l.bf16 %v338
  %v403 = vunpack.c.l.bf16 %v339
  %v404 = vunpack.c.l.bf16 %v340
  %v405 = vunpack.c.l.bf16 %v341
  %v406 = vunpack.c.l.bf16 %v342
  %v407 = vunpack.c.l.bf16 %v343
  %v408 = vunpack.c.l.bf16 %v344
  %v409 = vunpack.c.l.bf16 %v345
  %v410 = vunpack.c.l.bf16 %v346
  %v411 = vunpack.c.l.bf16 %v347
  %v412 = vunpack.c.l.bf16 %v348
  %v413 = vunpack.c.l.bf16 %v349
  %v414 = vunpack.c.l.bf16 %v350
  %v415 = vld [vmem:[%s2] sm:$0x1]
  %v417 = vperm.slane %v415, 0
  %v419 = vmul.f32 %v351, %v417
  %v420 = vmul.f32 %v352, %v417
  %v421 = vmul.f32 %v353, %v417
  %v422 = vmul.f32 %v354, %v417
  %v423 = vmul.f32 %v355, %v417
  %v424 = vmul.f32 %v356, %v417
  %v425 = vmul.f32 %v357, %v417
  %v426 = vmul.f32 %v358, %v417
  %v427 = vmul.f32 %v359, %v417
  %v428 = vmul.f32 %v360, %v417
  %v429 = vmul.f32 %v361, %v417
  %v430 = vmul.f32 %v362, %v417
  %v431 = vmul.f32 %v363, %v417
  %v432 = vmul.f32 %v364, %v417
  %v433 = vmul.f32 %v365, %v417
  %v434 = vmul.f32 %v366, %v417
  %v435 = vmul.f32 %v367, %v417
  %v436 = vmul.f32 %v368, %v417
  %v437 = vmul.f32 %v369, %v417
  %v438 = vmul.f32 %v370, %v417
  %v439 = vmul.f32 %v371, %v417
  %v440 = vmul.f32 %v372, %v417
  %v441 = vmul.f32 %v373, %v417
  %v442 = vmul.f32 %v374, %v417
  %v443 = vmul.f32 %v375, %v417
  %v444 = vmul.f32 %v376, %v417
  %v445 = vmul.f32 %v377, %v417
  %v446 = vmul.f32 %v378, %v417
  %v447 = vmul.f32 %v379, %v417
  %v448 = vmul.f32 %v380, %v417
  %v449 = vmul.f32 %v381, %v417
  %v450 = vmul.f32 %v382, %v417
  %v451 = vmul.f32 %v383, %v417
  %v452 = vmul.f32 %v384, %v417
  %v453 = vmul.f32 %v385, %v417
  %v454 = vmul.f32 %v386, %v417
  %v455 = vmul.f32 %v387, %v417
  %v456 = vmul.f32 %v388, %v417
  %v457 = vmul.f32 %v389, %v417
  %v458 = vmul.f32 %v390, %v417
  %v459 = vmul.f32 %v391, %v417
  %v460 = vmul.f32 %v392, %v417
  %v461 = vmul.f32 %v393, %v417
  %v462 = vmul.f32 %v394, %v417
  %v463 = vmul.f32 %v395, %v417
  %v464 = vmul.f32 %v396, %v417
  %v465 = vmul.f32 %v397, %v417
  %v466 = vmul.f32 %v398, %v417
  %v467 = vmul.f32 %v399, %v417
  %v468 = vmul.f32 %v400, %v417
  %v469 = vmul.f32 %v401, %v417
  %v470 = vmul.f32 %v402, %v417
  %v471 = vmul.f32 %v403, %v417
  %v472 = vmul.f32 %v404, %v417
  %v473 = vmul.f32 %v405, %v417
  %v474 = vmul.f32 %v406, %v417
  %v475 = vmul.f32 %v407, %v417
  %v476 = vmul.f32 %v408, %v417
  %v477 = vmul.f32 %v409, %v417
  %v478 = vmul.f32 %v410, %v417
  %v479 = vmul.f32 %v411, %v417
  %v480 = vmul.f32 %v412, %v417
  %v481 = vmul.f32 %v413, %v417
  %v482 = vmul.f32 %v414, %v417
  %v483 = vld [vmem:[%s3] sm:$0x1]
  %v485 = vperm.slane %v483, 0
  %v487 = vadd.f32 %v419, %v485
  %v488 = vadd.f32 %v420, %v485
  %v489 = vadd.f32 %v421, %v485
  %v490 = vadd.f32 %v422, %v485
  %v491 = vadd.f32 %v423, %v485
  %v492 = vadd.f32 %v424, %v485
  %v493 = vadd.f32 %v425, %v485
  %v494 = vadd.f32 %v426, %v485
  %v495 = vadd.f32 %v427, %v485
  %v496 = vadd.f32 %v428, %v485
  %v497 = vadd.f32 %v429, %v485
  %v498 = vadd.f32 %v430, %v485
  %v499 = vadd.f32 %v431, %v485
  %v500 = vadd.f32 %v432, %v485
  %v501 = vadd.f32 %v433, %v485
  %v502 = vadd.f32 %v434, %v485
  %v503 = vadd.f32 %v435, %v485
  %v504 = vadd.f32 %v436, %v485
  %v505 = vadd.f32 %v437, %v485
  %v506 = vadd.f32 %v438, %v485
  %v507 = vadd.f32 %v439, %v485
  %v508 = vadd.f32 %v440, %v485
  %v509 = vadd.f32 %v441, %v485
  %v510 = vadd.f32 %v442, %v485
  %v511 = vadd.f32 %v443, %v485
  %v512 = vadd.f32 %v444, %v485
  %v513 = vadd.f32 %v445, %v485
  %v514 = vadd.f32 %v446, %v485
  %v515 = vadd.f32 %v447, %v485
  %v516 = vadd.f32 %v448, %v485
  %v517 = vadd.f32 %v449, %v485
  %v518 = vadd.f32 %v450, %v485
  %v519 = vadd.f32 %v451, %v485
  %v520 = vadd.f32 %v452, %v485
  %v521 = vadd.f32 %v453, %v485
  %v522 = vadd.f32 %v454, %v485
  %v523 = vadd.f32 %v455, %v485
  %v524 = vadd.f32 %v456, %v485
  %v525 = vadd.f32 %v457, %v485
  %v526 = vadd.f32 %v458, %v485
  %v527 = vadd.f32 %v459, %v485
  %v528 = vadd.f32 %v460, %v485
  %v529 = vadd.f32 %v461, %v485
  %v530 = vadd.f32 %v462, %v485
  %v531 = vadd.f32 %v463, %v485
  %v532 = vadd.f32 %v464, %v485
  %v533 = vadd.f32 %v465, %v485
  %v534 = vadd.f32 %v466, %v485
  %v535 = vadd.f32 %v467, %v485
  %v536 = vadd.f32 %v468, %v485
  %v537 = vadd.f32 %v469, %v485
  %v538 = vadd.f32 %v470, %v485
  %v539 = vadd.f32 %v471, %v485
  %v540 = vadd.f32 %v472, %v485
  %v541 = vadd.f32 %v473, %v485
  %v542 = vadd.f32 %v474, %v485
  %v543 = vadd.f32 %v475, %v485
  %v544 = vadd.f32 %v476, %v485
  %v545 = vadd.f32 %v477, %v485
  %v546 = vadd.f32 %v478, %v485
  %v547 = vadd.f32 %v479, %v485
  %v548 = vadd.f32 %v480, %v485
  %v549 = vadd.f32 %v481, %v485
  %v550 = vadd.f32 %v482, %v485
  %v551 = vadd.f32 %v487, %v223
  %v552 = vadd.f32 %v488, %v224
  %v553 = vadd.f32 %v489, %v225
  %v554 = vadd.f32 %v490, %v226
  %v555 = vadd.f32 %v491, %v227
  %v556 = vadd.f32 %v492, %v228
  %v557 = vadd.f32 %v493, %v229
  %v558 = vadd.f32 %v494, %v230
  %v559 = vadd.f32 %v495, %v231
  %v560 = vadd.f32 %v496, %v232
  %v561 = vadd.f32 %v497, %v233
  %v562 = vadd.f32 %v498, %v234
  %v563 = vadd.f32 %v499, %v235
  %v564 = vadd.f32 %v500, %v236
  %v565 = vadd.f32 %v501, %v237
  %v566 = vadd.f32 %v502, %v238
  %v567 = vadd.f32 %v503, %v239
  %v568 = vadd.f32 %v504, %v240
  %v569 = vadd.f32 %v505, %v241
  %v570 = vadd.f32 %v506, %v242
  %v571 = vadd.f32 %v507, %v243
  %v572 = vadd.f32 %v508, %v244
  %v573 = vadd.f32 %v509, %v245
  %v574 = vadd.f32 %v510, %v246
  %v575 = vadd.f32 %v511, %v247
  %v576 = vadd.f32 %v512, %v248
  %v577 = vadd.f32 %v513, %v249
  %v578 = vadd.f32 %v514, %v250
  %v579 = vadd.f32 %v515, %v251
  %v580 = vadd.f32 %v516, %v252
  %v581 = vadd.f32 %v517, %v253
  %v582 = vadd.f32 %v518, %v254
  %v583 = vadd.f32 %v519, %v255
  %v584 = vadd.f32 %v520, %v256
  %v585 = vadd.f32 %v521, %v257
  %v586 = vadd.f32 %v522, %v258
  %v587 = vadd.f32 %v523, %v259
  %v588 = vadd.f32 %v524, %v260
  %v589 = vadd.f32 %v525, %v261
  %v590 = vadd.f32 %v526, %v262
  %v591 = vadd.f32 %v527, %v263
  %v592 = vadd.f32 %v528, %v264
  %v593 = vadd.f32 %v529, %v265
  %v594 = vadd.f32 %v530, %v266
  %v595 = vadd.f32 %v531, %v267
  %v596 = vadd.f32 %v532, %v268
  %v597 = vadd.f32 %v533, %v269
  %v598 = vadd.f32 %v534, %v270
  %v599 = vadd.f32 %v535, %v271
  %v600 = vadd.f32 %v536, %v272
  %v601 = vadd.f32 %v537, %v273
  %v602 = vadd.f32 %v538, %v274
  %v603 = vadd.f32 %v539, %v275
  %v604 = vadd.f32 %v540, %v276
  %v605 = vadd.f32 %v541, %v277
  %v606 = vadd.f32 %v542, %v278
  %v607 = vadd.f32 %v543, %v279
  %v608 = vadd.f32 %v544, %v280
  %v609 = vadd.f32 %v545, %v281
  %v610 = vadd.f32 %v546, %v282
  %v611 = vadd.f32 %v547, %v283
  %v612 = vadd.f32 %v548, %v284
  %v613 = vadd.f32 %v549, %v285
  %v614 = vadd.f32 %v550, %v286
  %v615 = vmax.f32 %v551, 0.0
  %v616 = vmax.f32 %v552, 0.0
  %v617 = vmax.f32 %v553, 0.0
  %v618 = vmax.f32 %v554, 0.0
  %v619 = vmax.f32 %v555, 0.0
  %v620 = vmax.f32 %v556, 0.0
  %v621 = vmax.f32 %v557, 0.0
  %v622 = vmax.f32 %v558, 0.0
  %v623 = vmax.f32 %v559, 0.0
  %v624 = vmax.f32 %v560, 0.0
  %v625 = vmax.f32 %v561, 0.0
  %v626 = vmax.f32 %v562, 0.0
  %v627 = vmax.f32 %v563, 0.0
  %v628 = vmax.f32 %v564, 0.0
  %v629 = vmax.f32 %v565, 0.0
  %v630 = vmax.f32 %v566, 0.0
  %v631 = vmax.f32 %v567, 0.0
  %v632 = vmax.f32 %v568, 0.0
  %v633 = vmax.f32 %v569, 0.0
  %v634 = vmax.f32 %v570, 0.0
  %v635 = vmax.f32 %v571, 0.0
  %v636 = vmax.f32 %v572, 0.0
  %v637 = vmax.f32 %v573, 0.0
  %v638 = vmax.f32 %v574, 0.0
  %v639 = vmax.f32 %v575, 0.0
  %v640 = vmax.f32 %v576, 0.0
  %v641 = vmax.f32 %v577, 0.0
  %v642 = vmax.f32 %v578, 0.0
  %v643 = vmax.f32 %v579, 0.0
  %v644 = vmax.f32 %v580, 0.0
  %v645 = vmax.f32 %v581, 0.0
  %v646 = vmax.f32 %v582, 0.0
  %v647 = vmax.f32 %v583, 0.0
  %v648 = vmax.f32 %v584, 0.0
  %v649 = vmax.f32 %v585, 0.0
  %v650 = vmax.f32 %v586, 0.0
  %v651 = vmax.f32 %v587, 0.0
  %v652 = vmax.f32 %v588, 0.0
  %v653 = vmax.f32 %v589, 0.0
  %v654 = vmax.f32 %v590, 0.0
  %v655 = vmax.f32 %v591, 0.0
  %v656 = vmax.f32 %v592, 0.0
  %v657 = vmax.f32 %v593, 0.0
  %v658 = vmax.f32 %v594, 0.0
  %v659 = vmax.f32 %v595, 0.0
  %v660 = vmax.f32 %v596, 0.0
  %v661 = vmax.f32 %v597, 0.0
  %v662 = vmax.f32 %v598, 0.0
  %v663 = vmax.f32 %v599, 0.0
  %v664 = vmax.f32 %v600, 0.0
  %v665 = vmax.f32 %v601, 0.0
  %v666 = vmax.f32 %v602, 0.0
  %v667 = vmax.f32 %v603, 0.0
  %v668 = vmax.f32 %v604, 0.0
  %v669 = vmax.f32 %v605, 0.0
  %v670 = vmax.f32 %v606, 0.0
  %v671 = vmax.f32 %v607, 0.0
  %v672 = vmax.f32 %v608, 0.0
  %v673 = vmax.f32 %v609, 0.0
  %v674 = vmax.f32 %v610, 0.0
  %v675 = vmax.f32 %v611, 0.0
  %v676 = vmax.f32 %v612, 0.0
  %v677 = vmax.f32 %v613, 0.0
  %v678 = vmax.f32 %v614, 0.0
  %679 = vxpose.xlu0.b32.start [1/16] %v615, 128
  %680 = vxpose.xlu0.b32.cont [2/16] %v616, 128
  %681 = vxpose.xlu0.b32.cont [3/16] %v617, 128
  %682 = vxpose.xlu0.b32.cont [4/16] %v618, 128
  %683 = vxpose.xlu0.b32.cont [5/16] %v619, 128
  %684 = vxpose.xlu0.b32.cont [6/16] %v620, 128
  %685 = vxpose.xlu0.b32.cont [7/16] %v621, 128
  %686 = vxpose.xlu0.b32.cont [8/16] %v622, 128
  %687 = vxpose.xlu0.b32.cont [9/16] %v623, 128
  %688 = vxpose.xlu0.b32.cont [10/16] %v624, 128
  %689 = vxpose.xlu0.b32.cont [11/16] %v625, 128
  %690 = vxpose.xlu0.b32.cont [12/16] %v626, 128
  %691 = vxpose.xlu0.b32.cont [13/16] %v627, 128
  %692 = vxpose.xlu0.b32.cont [14/16] %v628, 128
  %693 = vxpose.xlu0.b32.cont [15/16] %v629, 128
  %694 = vxpose.xlu0.b32.end [16/16] %v630, 128
  %v695 = vpop.trf.xlu0
  %v696 = vpop.trf.xlu0
  %v697 = vpop.trf.xlu0
  %v698 = vpop.trf.xlu0
  %v699 = vpop.trf.xlu0
  %v700 = vpop.trf.xlu0
  %v701 = vpop.trf.xlu0
  %v702 = vpop.trf.xlu0
  %v703 = vpop.trf.xlu0
  %v704 = vpop.trf.xlu0
  %v705 = vpop.trf.xlu0
  %v706 = vpop.trf.xlu0
  %v707 = vpop.trf.xlu0
  %v708 = vpop.trf.xlu0
  %v709 = vpop.trf.xlu0
  %v710 = vpop.trf.xlu0
  %711 = vxpose.xlu0.b32.start [1/16] %v631, 128
  %712 = vxpose.xlu0.b32.cont [2/16] %v632, 128
  %713 = vxpose.xlu0.b32.cont [3/16] %v633, 128
  %714 = vxpose.xlu0.b32.cont [4/16] %v634, 128
  %715 = vxpose.xlu0.b32.cont [5/16] %v635, 128
  %716 = vxpose.xlu0.b32.cont [6/16] %v636, 128
  %717 = vxpose.xlu0.b32.cont [7/16] %v637, 128
  %718 = vxpose.xlu0.b32.cont [8/16] %v638, 128
  %719 = vxpose.xlu0.b32.cont [9/16] %v639, 128
  %720 = vxpose.xlu0.b32.cont [10/16] %v640, 128
  %721 = vxpose.xlu0.b32.cont [11/16] %v641, 128
  %722 = vxpose.xlu0.b32.cont [12/16] %v642, 128
  %723 = vxpose.xlu0.b32.cont [13/16] %v643, 128
  %724 = vxpose.xlu0.b32.cont [14/16] %v644, 128
  %725 = vxpose.xlu0.b32.cont [15/16] %v645, 128
  %726 = vxpose.xlu0.b32.end [16/16] %v646, 128
  %v727 = vpop.trf.xlu0
  %v728 = vpop.trf.xlu0
  %v729 = vpop.trf.xlu0
  %v730 = vpop.trf.xlu0
  %v731 = vpop.trf.xlu0
  %v732 = vpop.trf.xlu0
  %v733 = vpop.trf.xlu0
  %v734 = vpop.trf.xlu0
  %v735 = vpop.trf.xlu0
  %v736 = vpop.trf.xlu0
  %v737 = vpop.trf.xlu0
  %v738 = vpop.trf.xlu0
  %v739 = vpop.trf.xlu0
  %v740 = vpop.trf.xlu0
  %v741 = vpop.trf.xlu0
  %v742 = vpop.trf.xlu0
  %743 = vst [vmem:[%s6] sm:$0xff] %v695
  %744 = vst [vmem:[%s6 + $0x8] sm:$0xff] %v727
  %745 = vxpose.xlu0.b32.start [1/16] %v647, 128
  %746 = vxpose.xlu0.b32.cont [2/16] %v648, 128
  %747 = vxpose.xlu0.b32.cont [3/16] %v649, 128
  %748 = vxpose.xlu0.b32.cont [4/16] %v650, 128
  %749 = vxpose.xlu0.b32.cont [5/16] %v651, 128
  %750 = vxpose.xlu0.b32.cont [6/16] %v652, 128
  %751 = vxpose.xlu0.b32.cont [7/16] %v653, 128
  %752 = vxpose.xlu0.b32.cont [8/16] %v654, 128
  %753 = vxpose.xlu0.b32.cont [9/16] %v655, 128
  %754 = vxpose.xlu0.b32.cont [10/16] %v656, 128
  %755 = vxpose.xlu0.b32.cont [11/16] %v657, 128
  %756 = vxpose.xlu0.b32.cont [12/16] %v658, 128
  %757 = vxpose.xlu0.b32.cont [13/16] %v659, 128
  %758 = vxpose.xlu0.b32.cont [14/16] %v660, 128
  %759 = vxpose.xlu0.b32.cont [15/16] %v661, 128
  %760 = vxpose.xlu0.b32.end [16/16] %v662, 128
  %v761 = vpop.trf.xlu0
  %v762 = vpop.trf.xlu0
  %v763 = vpop.trf.xlu0
  %v764 = vpop.trf.xlu0
  %v765 = vpop.trf.xlu0
  %v766 = vpop.trf.xlu0
  %v767 = vpop.trf.xlu0
  %v768 = vpop.trf.xlu0
  %v769 = vpop.trf.xlu0
  %v770 = vpop.trf.xlu0
  %v771 = vpop.trf.xlu0
  %v772 = vpop.trf.xlu0
  %v773 = vpop.trf.xlu0
  %v774 = vpop.trf.xlu0
  %v775 = vpop.trf.xlu0
  %v776 = vpop.trf.xlu0
  %777 = vxpose.xlu0.b32.start [1/16] %v663, 128
  %778 = vxpose.xlu0.b32.cont [2/16] %v664, 128
  %779 = vxpose.xlu0.b32.cont [3/16] %v665, 128
  %780 = vxpose.xlu0.b32.cont [4/16] %v666, 128
  %781 = vxpose.xlu0.b32.cont [5/16] %v667, 128
  %782 = vxpose.xlu0.b32.cont [6/16] %v668, 128
  %783 = vxpose.xlu0.b32.cont [7/16] %v669, 128
  %784 = vxpose.xlu0.b32.cont [8/16] %v670, 128
  %785 = vxpose.xlu0.b32.cont [9/16] %v671, 128
  %786 = vxpose.xlu0.b32.cont [10/16] %v672, 128
  %787 = vxpose.xlu0.b32.cont [11/16] %v673, 128
  %788 = vxpose.xlu0.b32.cont [12/16] %v674, 128
  %789 = vxpose.xlu0.b32.cont [13/16] %v675, 128
  %790 = vxpose.xlu0.b32.cont [14/16] %v676, 128
  %791 = vxpose.xlu0.b32.cont [15/16] %v677, 128
  %792 = vxpose.xlu0.b32.end [16/16] %v678, 128
  %v793 = vpop.trf.xlu0
  %v794 = vpop.trf.xlu0
  %v795 = vpop.trf.xlu0
  %v796 = vpop.trf.xlu0
  %v797 = vpop.trf.xlu0
  %v798 = vpop.trf.xlu0
  %v799 = vpop.trf.xlu0
  %v800 = vpop.trf.xlu0
  %v801 = vpop.trf.xlu0
  %v802 = vpop.trf.xlu0
  %v803 = vpop.trf.xlu0
  %v804 = vpop.trf.xlu0
  %v805 = vpop.trf.xlu0
  %v806 = vpop.trf.xlu0
  %v807 = vpop.trf.xlu0
  %v808 = vpop.trf.xlu0
  %s809 = scalar_lea.vmem %s6, 16
  %810 = vst [vmem:[%s809] sm:$0xff] %v761
  %811 = vst [vmem:[%s809 + $0x8] sm:$0xff] %v793
  // Predicated region
  $region26: #{basicblock_forward.5} parent=0 // pred_check
    _
  $region27: #{basicblock_forward.5} parent=0 // pred_check_branch
    %813 = sbr.rel (0) target = $region29
  $region28: #{basicblock_forward.5} parent=0 // pred_region
    _
  $region29: #{basicblock_forward.5} parent=0 // pred_fallthru
    _
  // Predicated region
  $region30: #{basicblock_forward.5} parent=0 // pred_check
    _
  $region31: #{basicblock_forward.5} parent=0 // pred_check_branch
    %815 = sbr.rel (0) target = $region33
  $region32: #{basicblock_forward.5} parent=0 // pred_region
    _
  $region33: #{basicblock_forward.5} parent=0 // pred_fallthru
    _

// kernel: basicblock_forward.3
$region0: #{basicblock_forward.3}
  #allocation0 [shape = 'u32[]', space=smem, size = 0x4, offset = 0x4, fixed_abs, tag = 'smem constant byte address 0x4 - core index']
  #allocation1 [shape = 'u32[72,128]{1,0:T(1,128)}', space=vmem, size = 0x9000, scoped, tag = 'internal scratch']
  %s0 = inlined_call_operand.vmem [shape: bf16[2,18,18,4], index: 0, kind: input, shape index: {}]
  %s1 = inlined_call_operand.vmem [shape: bf16[2,256,4], index: 1, kind: input, shape index: {}]
  %s2 = inlined_call_operand.vmem [shape: bf16[36,8], index: 2, kind: input, shape index: {}]
  %s3 = inlined_call_operand.vmem [shape: f32[1,8], index: 3, kind: input, shape index: {}]
  %s4 = inlined_call_operand.vmem [shape: bf16[4,8], index: 4, kind: input, shape index: {}]
  %s5 = inlined_call_operand.vmem [shape: f32[1,8], index: 5, kind: input, shape index: {}]
  %s6 = inlined_call_operand.vmem [shape: bf16[2,16,16,8], index: 6, kind: output, shape index: {0}]
  %s7 = inlined_call_operand.vmem [shape: bf16[2,256,8], index: 7, kind: output, shape index: {1}]
  %s8 = inlined_call_operand.vmem [shape: f32[1,1,8], index: 8, kind: output, shape index: {2}]
  %s9 = inlined_call_operand.vmem [shape: f32[1,1,8], index: 9, kind: output, shape index: {3}]
  %s10 = inlined_call_operand.vmem [shape: f32[1,1,8], index: 10, kind: output, shape index: {4}]
  %s11 = inlined_call_operand.vmem [shape: f32[1,1,8], index: 11, kind: output, shape index: {5}]
  %12 = xla_tuple %s6, %s7, %s8, %s9, %s10, %s11
  %s13 = sld [smem:[#allocation0]]
  $region74: #{basicblock_forward.3} parent=0
    _
  %s15 = ssub.s32 1, %s13
  %s16 = scalar_select 0, %s15, %s13
  // Predicated region
  $region2: #{basicblock_forward.3} parent=0 // pred_check
    _
  $region3: #{basicblock_forward.3} parent=0 // pred_check_branch
    %18 = sbr.rel (0) target = $region5
  $region4: #{basicblock_forward.3} parent=0 // pred_region
    _
  $region5: #{basicblock_forward.3} parent=0 // pred_fallthru
    _
  // Predicated region
  $region6: #{basicblock_forward.3} parent=0 // pred_check
    _
  $region7: #{basicblock_forward.3} parent=0 // pred_check_branch
    %20 = sbr.rel (0) target = $region9
  $region8: #{basicblock_forward.3} parent=0 // pred_region
    _
  $region9: #{basicblock_forward.3} parent=0 // pred_fallthru
    _
  // Predicated region
  $region10: #{basicblock_forward.3} parent=0 // pred_check
    _
  $region11: #{basicblock_forward.3} parent=0 // pred_check_branch
    %22 = sbr.rel (0) target = $region13
  $region12: #{basicblock_forward.3} parent=0 // pred_region
    _
  $region13: #{basicblock_forward.3} parent=0 // pred_fallthru
    _
  // Predicated region
  $region14: #{basicblock_forward.3} parent=0 // pred_check
    _
  $region15: #{basicblock_forward.3} parent=0 // pred_check_branch
    %24 = sbr.rel (0) target = $region17
  $region16: #{basicblock_forward.3} parent=0 // pred_region
    _
  $region17: #{basicblock_forward.3} parent=0 // pred_fallthru
    _
  // Predicated region
  $region18: #{basicblock_forward.3} parent=0 // pred_check
    _
  $region19: #{basicblock_forward.3} parent=0 // pred_check_branch
    %26 = sbr.rel (0) target = $region21
  $region20: #{basicblock_forward.3} parent=0 // pred_region
    _
  $region21: #{basicblock_forward.3} parent=0 // pred_fallthru
    _
  // Predicated region
  $region22: #{basicblock_forward.3} parent=0 // pred_check
    _
  $region23: #{basicblock_forward.3} parent=0 // pred_check_branch
    %28 = sbr.rel (0) target = $region25
  $region24: #{basicblock_forward.3} parent=0 // pred_region
    _
  $region25: #{basicblock_forward.3} parent=0 // pred_fallthru
    _
  %v30 = vld [vmem:[%s0] sm:$0xf]
  %v31 = vld [vmem:[%s0 + $0x4] sm:$0xf]
  %v32 = vld [vmem:[%s0 + $0x8] sm:$0x1]
  %v33 = vld [vmem:[%s0 + $0xc] sm:$0xf]
  %v34 = vld [vmem:[%s0 + $0x10] sm:$0xf]
  %v35 = vld [vmem:[%s0 + $0x14] sm:$0x1]
  %v36 = vld [vmem:[%s0 + $0x18] sm:$0xf]
  %v37 = vld [vmem:[%s0 + $0x1c] sm:$0xf]
  %v38 = vld [vmem:[%s0 + $0x20] sm:$0x1]
  %v39 = vld [vmem:[%s0 + $0x24] sm:$0xf]
  %v40 = vld [vmem:[%s0 + $0x28] sm:$0xf]
  %v41 = vld [vmem:[%s0 + $0x2c] sm:$0x1]
  %v42 = vld [vmem:[%s0 + $0x30] sm:$0xf]
  %v43 = vld [vmem:[%s0 + $0x34] sm:$0xf]
  %v44 = vld [vmem:[%s0 + $0x38] sm:$0x1]
  %v45 = vld [vmem:[%s0 + $0x3c] sm:$0xf]
  %v46 = vld [vmem:[%s0 + $0x40] sm:$0xf]
  %v47 = vld [vmem:[%s0 + $0x44] sm:$0x1]
  %v48 = vld [vmem:[%s0 + $0x48] sm:$0xf]
  %v49 = vld [vmem:[%s0 + $0x4c] sm:$0xf]
  %v50 = vld [vmem:[%s0 + $0x50] sm:$0x1]
  %v51 = vld [vmem:[%s0 + $0x54] sm:$0xf]
  %v52 = vld [vmem:[%s0 + $0x58] sm:$0xf]
  %v53 = vld [vmem:[%s0 + $0x5c] sm:$0x1]
  %v54 = vld [vmem:[%s0 + $0x60] sm:$0xf]
  %v55 = vld [vmem:[%s0 + $0x64] sm:$0xf]
  %v56 = vld [vmem:[%s0 + $0x68] sm:$0x1]
  %v57 = vld [vmem:[%s0 + $0x6c] sm:$0xf]
  %v58 = vld [vmem:[%s0 + $0x70] sm:$0xf]
  %v59 = vld [vmem:[%s0 + $0x74] sm:$0x1]
  %v60 = vld [vmem:[%s0 + $0x78] sm:$0xf]
  %v61 = vld [vmem:[%s0 + $0x7c] sm:$0xf]
  %v62 = vld [vmem:[%s0 + $0x80] sm:$0x1]
  %v63 = vld [vmem:[%s0 + $0x84] sm:$0xf]
  %v64 = vld [vmem:[%s0 + $0x88] sm:$0xf]
  %v65 = vld [vmem:[%s0 + $0x8c] sm:$0x1]
  %v66 = vld [vmem:[%s0 + $0x90] sm:$0xf]
  %v67 = vld [vmem:[%s0 + $0x94] sm:$0xf]
  %v68 = vld [vmem:[%s0 + $0x98] sm:$0x1]
  %v69 = vld [vmem:[%s0 + $0x9c] sm:$0xf]
  %v70 = vld [vmem:[%s0 + $0xa0] sm:$0xf]
  %v71 = vld [vmem:[%s0 + $0xa4] sm:$0x1]
  %v72 = vld [vmem:[%s0 + $0xa8] sm:$0xf]
  %v73 = vld [vmem:[%s0 + $0xac] sm:$0xf]
  %v74 = vld [vmem:[%s0 + $0xb0] sm:$0x1]
  %v75 = vld [vmem:[%s0 + $0xb4] sm:$0xf]
  %v76 = vld [vmem:[%s0 + $0xb8] sm:$0xf]
  %v77 = vld [vmem:[%s0 + $0xbc] sm:$0x1]
  %v78 = vld [vmem:[%s0 + $0xc0] sm:$0xf]
  %v79 = vld [vmem:[%s0 + $0xc4] sm:$0xf]
  %v80 = vld [vmem:[%s0 + $0xc8] sm:$0x1]
  %v81 = vld [vmem:[%s0 + $0xcc] sm:$0xf]
  %v82 = vld [vmem:[%s0 + $0xd0] sm:$0xf]
  %v83 = vld [vmem:[%s0 + $0xd4] sm:$0x1]
  %v84 = vld [vmem:[%s0 + $0xd8] sm:$0xf]
  %v85 = vld [vmem:[%s0 + $0xdc] sm:$0xf]
  %v86 = vld [vmem:[%s0 + $0xe0] sm:$0x1]
  %v87 = vld [vmem:[%s0 + $0xe4] sm:$0xf]
  %v88 = vld [vmem:[%s0 + $0xe8] sm:$0xf]
  %v89 = vld [vmem:[%s0 + $0xec] sm:$0x1]
  %v90 = vld [vmem:[%s0 + $0xf0] sm:$0xf]
  %v91 = vld [vmem:[%s0 + $0xf4] sm:$0xf]
  %v92 = vld [vmem:[%s0 + $0xf8] sm:$0x1]
  %v93 = vld [vmem:[%s0 + $0xfc] sm:$0xf]
  %v94 = vld [vmem:[%s0 + $0x100] sm:$0xf]
  %v95 = vld [vmem:[%s0 + $0x104] sm:$0x1]
  %v96 = vld [vmem:[%s0 + $0x108] sm:$0xf]
  %v97 = vld [vmem:[%s0 + $0x10c] sm:$0xf]
  %v98 = vld [vmem:[%s0 + $0x110] sm:$0x1]
  %v99 = vld [vmem:[%s0 + $0x114] sm:$0xf]
  %v100 = vld [vmem:[%s0 + $0x118] sm:$0xf]
  %v101 = vld [vmem:[%s0 + $0x11c] sm:$0x1]
  %v102 = vld [vmem:[%s0 + $0x120] sm:$0xf]
  %v103 = vld [vmem:[%s0 + $0x124] sm:$0xf]
  %v104 = vld [vmem:[%s0 + $0x128] sm:$0x1]
  %v105 = vld [vmem:[%s0 + $0x12c] sm:$0xf]
  %v106 = vld [vmem:[%s0 + $0x130] sm:$0xf]
  %v107 = vld [vmem:[%s0 + $0x134] sm:$0x1]
  %v108 = vld [vmem:[%s0 + $0x138] sm:$0xf]
  %v109 = vld [vmem:[%s0 + $0x13c] sm:$0xf]
  %v110 = vld [vmem:[%s0 + $0x140] sm:$0x1]
  %v111 = vld [vmem:[%s0 + $0x144] sm:$0xf]
  %v112 = vld [vmem:[%s0 + $0x148] sm:$0xf]
  %v113 = vld [vmem:[%s0 + $0x14c] sm:$0x1]
  %v114 = vld [vmem:[%s0 + $0x150] sm:$0xf]
  %v115 = vld [vmem:[%s0 + $0x154] sm:$0xf]
  %v116 = vld [vmem:[%s0 + $0x158] sm:$0x1]
  %v117 = vld [vmem:[%s0 + $0x15c] sm:$0xf]
  %v118 = vld [vmem:[%s0 + $0x160] sm:$0xf]
  %v119 = vld [vmem:[%s0 + $0x164] sm:$0x1]
  %v120 = vld [vmem:[%s0 + $0x168] sm:$0xf]
  %v121 = vld [vmem:[%s0 + $0x16c] sm:$0xf]
  %v122 = vld [vmem:[%s0 + $0x170] sm:$0x1]
  %v123 = vld [vmem:[%s0 + $0x174] sm:$0xf]
  %v124 = vld [vmem:[%s0 + $0x178] sm:$0xf]
  %v125 = vld [vmem:[%s0 + $0x17c] sm:$0x1]
  %v126 = vld [vmem:[%s0 + $0x180] sm:$0xf]
  %v127 = vld [vmem:[%s0 + $0x184] sm:$0xf]
  %v128 = vld [vmem:[%s0 + $0x188] sm:$0x1]
  %v129 = vld [vmem:[%s0 + $0x18c] sm:$0xf]
  %v130 = vld [vmem:[%s0 + $0x190] sm:$0xf]
  %v131 = vld [vmem:[%s0 + $0x194] sm:$0x1]
  %v132 = vld [vmem:[%s0 + $0x198] sm:$0xf]
  %v133 = vld [vmem:[%s0 + $0x19c] sm:$0xf]
  %v134 = vld [vmem:[%s0 + $0x1a0] sm:$0x1]
  %v135 = vld [vmem:[%s0 + $0x1a4] sm:$0xf]
  %v136 = vld [vmem:[%s0 + $0x1a8] sm:$0xf]
  %v137 = vld [vmem:[%s0 + $0x1ac] sm:$0x1]
  %v202 = vunpack.c.l.b16 %v30
  %v203 = vunpack.c.l.b16 %v31
  %v204 = vunpack.c.l.b16 %v33
  %v205 = vunpack.c.l.b16 %v34
  %v206 = vunpack.c.l.b16 %v36
  %v207 = vunpack.c.l.b16 %v37
  %v208 = vunpack.c.l.b16 %v39
  %v209 = vunpack.c.l.b16 %v40
  %v210 = vunpack.c.l.b16 %v42
  %v211 = vunpack.c.l.b16 %v43
  %v212 = vunpack.c.l.b16 %v45
  %v213 = vunpack.c.l.b16 %v46
  %v214 = vunpack.c.l.b16 %v48
  %v215 = vunpack.c.l.b16 %v49
  %v216 = vunpack.c.l.b16 %v51
  %v217 = vunpack.c.l.b16 %v52
  %v218 = vunpack.c.l.b16 %v54
  %v219 = vunpack.c.l.b16 %v55
  %v220 = vunpack.c.l.b16 %v57
  %v221 = vunpack.c.l.b16 %v58
  %v222 = vunpack.c.l.b16 %v60
  %v223 = vunpack.c.l.b16 %v61
  %v224 = vunpack.c.l.b16 %v63
  %v225 = vunpack.c.l.b16 %v64
  %v226 = vunpack.c.l.b16 %v66
  %v227 = vunpack.c.l.b16 %v67
  %v228 = vunpack.c.l.b16 %v69
  %v229 = vunpack.c.l.b16 %v70
  %v230 = vunpack.c.l.b16 %v72
  %v231 = vunpack.c.l.b16 %v73
  %v232 = vunpack.c.l.b16 %v75
  %v233 = vunpack.c.l.b16 %v76
  %v234 = vunpack.c.l.b16 %v84
  %v235 = vunpack.c.l.b16 %v85
  %v236 = vunpack.c.l.b16 %v87
  %v237 = vunpack.c.l.b16 %v88
  %v238 = vunpack.c.l.b16 %v90
  %v239 = vunpack.c.l.b16 %v91
  %v240 = vunpack.c.l.b16 %v93
  %v241 = vunpack.c.l.b16 %v94
  %v242 = vunpack.c.l.b16 %v96
  %v243 = vunpack.c.l.b16 %v97
  %v244 = vunpack.c.l.b16 %v99
  %v245 = vunpack.c.l.b16 %v100
  %v246 = vunpack.c.l.b16 %v102
  %v247 = vunpack.c.l.b16 %v103
  %v248 = vunpack.c.l.b16 %v105
  %v249 = vunpack.c.l.b16 %v106
  %v250 = vunpack.c.l.b16 %v108
  %v251 = vunpack.c.l.b16 %v109
  %v252 = vunpack.c.l.b16 %v111
  %v253 = vunpack.c.l.b16 %v112
  %v254 = vunpack.c.l.b16 %v114
  %v255 = vunpack.c.l.b16 %v115
  %v256 = vunpack.c.l.b16 %v117
  %v257 = vunpack.c.l.b16 %v118
  %v258 = vunpack.c.l.b16 %v120
  %v259 = vunpack.c.l.b16 %v121
  %v260 = vunpack.c.l.b16 %v123
  %v261 = vunpack.c.l.b16 %v124
  %v262 = vunpack.c.l.b16 %v126
  %v263 = vunpack.c.l.b16 %v127
  %v264 = vunpack.c.l.b16 %v129
  %v265 = vunpack.c.l.b16 %v130
  %v266 = vpack.c.b16 %v203, %v202
  %v267 = vpack.c.b16 %v205, %v204
  %v268 = vpack.c.b16 %v207, %v206
  %v269 = vpack.c.b16 %v209, %v208
  %v270 = vpack.c.b16 %v211, %v210
  %v271 = vpack.c.b16 %v213, %v212
  %v272 = vpack.c.b16 %v215, %v214
  %v273 = vpack.c.b16 %v217, %v216
  %v274 = vpack.c.b16 %v219, %v218
  %v275 = vpack.c.b16 %v221, %v220
  %v276 = vpack.c.b16 %v223, %v222
  %v277 = vpack.c.b16 %v225, %v224
  %v278 = vpack.c.b16 %v227, %v226
  %v279 = vpack.c.b16 %v229, %v228
  %v280 = vpack.c.b16 %v231, %v230
  %v281 = vpack.c.b16 %v233, %v232
  %v282 = vpack.c.b16 %v235, %v234
  %v283 = vpack.c.b16 %v237, %v236
  %v284 = vpack.c.b16 %v239, %v238
  %v285 = vpack.c.b16 %v241, %v240
  %v286 = vpack.c.b16 %v243, %v242
  %v287 = vpack.c.b16 %v245, %v244
  %v288 = vpack.c.b16 %v247, %v246
  %v289 = vpack.c.b16 %v249, %v248
  %v290 = vpack.c.b16 %v251, %v250
  %v291 = vpack.c.b16 %v253, %v252
  %v292 = vpack.c.b16 %v255, %v254
  %v293 = vpack.c.b16 %v257, %v256
  %v294 = vpack.c.b16 %v259, %v258
  %v295 = vpack.c.b16 %v261, %v260
  %v296 = vpack.c.b16 %v263, %v262
  %v297 = vpack.c.b16 %v265, %v264
  %v330 = vunpack.c.l.b16 %v32
  %v331 = vunpack.c.l.b16 %v35
  %v332 = vunpack.c.l.b16 %v38
  %v333 = vunpack.c.l.b16 %v41
  %v334 = vunpack.c.l.b16 %v44
  %v335 = vunpack.c.l.b16 %v47
  %v336 = vunpack.c.l.b16 %v50
  %v337 = vunpack.c.l.b16 %v53
  %v338 = vunpack.c.l.b16 %v56
  %v339 = vunpack.c.l.b16 %v59
  %v340 = vunpack.c.l.b16 %v62
  %v341 = vunpack.c.l.b16 %v65
  %v342 = vunpack.c.l.b16 %v68
  %v343 = vunpack.c.l.b16 %v71
  %v344 = vunpack.c.l.b16 %v74
  %v345 = vunpack.c.l.b16 %v77
  %v346 = vunpack.c.l.b16 %v86
  %v347 = vunpack.c.l.b16 %v89
  %v348 = vunpack.c.l.b16 %v92
  %v349 = vunpack.c.l.b16 %v95
  %v350 = vunpack.c.l.b16 %v98
  %v351 = vunpack.c.l.b16 %v101
  %v352 = vunpack.c.l.b16 %v104
  %v353 = vunpack.c.l.b16 %v107
  %v354 = vunpack.c.l.b16 %v110
  %v355 = vunpack.c.l.b16 %v113
  %v356 = vunpack.c.l.b16 %v116
  %v357 = vunpack.c.l.b16 %v119
  %v358 = vunpack.c.l.b16 %v122
  %v359 = vunpack.c.l.b16 %v125
  %v360 = vunpack.c.l.b16 %v128
  %v361 = vunpack.c.l.b16 %v131
  %v362 = vpack.c.b16 %v330, %v330
  %v363 = vpack.c.b16 %v331, %v331
  %v364 = vpack.c.b16 %v332, %v332
  %v365 = vpack.c.b16 %v333, %v333
  %v366 = vpack.c.b16 %v334, %v334
  %v367 = vpack.c.b16 %v335, %v335
  %v368 = vpack.c.b16 %v336, %v336
  %v369 = vpack.c.b16 %v337, %v337
  %v370 = vpack.c.b16 %v338, %v338
  %v371 = vpack.c.b16 %v339, %v339
  %v372 = vpack.c.b16 %v340, %v340
  %v373 = vpack.c.b16 %v341, %v341
  %v374 = vpack.c.b16 %v342, %v342
  %v375 = vpack.c.b16 %v343, %v343
  %v376 = vpack.c.b16 %v344, %v344
  %v377 = vpack.c.b16 %v345, %v345
  %v378 = vpack.c.b16 %v346, %v346
  %v379 = vpack.c.b16 %v347, %v347
  %v380 = vpack.c.b16 %v348, %v348
  %v381 = vpack.c.b16 %v349, %v349
  %v382 = vpack.c.b16 %v350, %v350
  %v383 = vpack.c.b16 %v351, %v351
  %v384 = vpack.c.b16 %v352, %v352
  %v385 = vpack.c.b16 %v353, %v353
  %v386 = vpack.c.b16 %v354, %v354
  %v387 = vpack.c.b16 %v355, %v355
  %v388 = vpack.c.b16 %v356, %v356
  %v389 = vpack.c.b16 %v357, %v357
  %v390 = vpack.c.b16 %v358, %v358
  %v391 = vpack.c.b16 %v359, %v359
  %v392 = vpack.c.b16 %v360, %v360
  %v393 = vpack.c.b16 %v361, %v361
  %vm394 = vsmask.f32 7424
  %v396 = vshrl.u32 %v266, 16
  %v398 = vshll.u32 %v266, 16
  %v400 = vrot.slane %v398, 1
  %v401 = vor.u32 %v396, %v400
  %v403 = vshll.u32 %v362, 16
  %v405 = vrot.slane %v403, 1
  %v406 = vsel %vm394, %v401, %v405
  %v408 = vshrl.u32 %v267, 16
  %v410 = vshll.u32 %v267, 16
  %v412 = vrot.slane %v410, 1
  %v413 = vor.u32 %v408, %v412
  %v415 = vshll.u32 %v363, 16
  %v417 = vrot.slane %v415, 1
  %v418 = vsel %vm394, %v413, %v417
  %v420 = vshrl.u32 %v268, 16
  %v422 = vshll.u32 %v268, 16
  %v424 = vrot.slane %v422, 1
  %v425 = vor.u32 %v420, %v424
  %v427 = vshll.u32 %v364, 16
  %v429 = vrot.slane %v427, 1
  %v430 = vsel %vm394, %v425, %v429
  %v432 = vshrl.u32 %v269, 16
  %v434 = vshll.u32 %v269, 16
  %v436 = vrot.slane %v434, 1
  %v437 = vor.u32 %v432, %v436
  %v439 = vshll.u32 %v365, 16
  %v441 = vrot.slane %v439, 1
  %v442 = vsel %vm394, %v437, %v441
  %v444 = vshrl.u32 %v270, 16
  %v446 = vshll.u32 %v270, 16
  %v448 = vrot.slane %v446, 1
  %v449 = vor.u32 %v444, %v448
  %v451 = vshll.u32 %v366, 16
  %v453 = vrot.slane %v451, 1
  %v454 = vsel %vm394, %v449, %v453
  %v456 = vshrl.u32 %v271, 16
  %v458 = vshll.u32 %v271, 16
  %v460 = vrot.slane %v458, 1
  %v461 = vor.u32 %v456, %v460
  %v463 = vshll.u32 %v367, 16
  %v465 = vrot.slane %v463, 1
  %v466 = vsel %vm394, %v461, %v465
  %v468 = vshrl.u32 %v272, 16
  %v470 = vshll.u32 %v272, 16
  %v472 = vrot.slane %v470, 1
  %v473 = vor.u32 %v468, %v472
  %v475 = vshll.u32 %v368, 16
  %v477 = vrot.slane %v475, 1
  %v478 = vsel %vm394, %v473, %v477
  %v480 = vshrl.u32 %v273, 16
  %v482 = vshll.u32 %v273, 16
  %v484 = vrot.slane %v482, 1
  %v485 = vor.u32 %v480, %v484
  %v487 = vshll.u32 %v369, 16
  %v489 = vrot.slane %v487, 1
  %v490 = vsel %vm394, %v485, %v489
  %v492 = vshrl.u32 %v274, 16
  %v494 = vshll.u32 %v274, 16
  %v496 = vrot.slane %v494, 1
  %v497 = vor.u32 %v492, %v496
  %v499 = vshll.u32 %v370, 16
  %v501 = vrot.slane %v499, 1
  %v502 = vsel %vm394, %v497, %v501
  %v504 = vshrl.u32 %v275, 16
  %v506 = vshll.u32 %v275, 16
  %v508 = vrot.slane %v506, 1
  %v509 = vor.u32 %v504, %v508
  %v511 = vshll.u32 %v371, 16
  %v513 = vrot.slane %v511, 1
  %v514 = vsel %vm394, %v509, %v513
  %v516 = vshrl.u32 %v276, 16
  %v518 = vshll.u32 %v276, 16
  %v520 = vrot.slane %v518, 1
  %v521 = vor.u32 %v516, %v520
  %v523 = vshll.u32 %v372, 16
  %v525 = vrot.slane %v523, 1
  %v526 = vsel %vm394, %v521, %v525
  %v528 = vshrl.u32 %v277, 16
  %v530 = vshll.u32 %v277, 16
  %v532 = vrot.slane %v530, 1
  %v533 = vor.u32 %v528, %v532
  %v535 = vshll.u32 %v373, 16
  %v537 = vrot.slane %v535, 1
  %v538 = vsel %vm394, %v533, %v537
  %v540 = vshrl.u32 %v278, 16
  %v542 = vshll.u32 %v278, 16
  %v544 = vrot.slane %v542, 1
  %v545 = vor.u32 %v540, %v544
  %v547 = vshll.u32 %v374, 16
  %v549 = vrot.slane %v547, 1
  %v550 = vsel %vm394, %v545, %v549
  %v552 = vshrl.u32 %v279, 16
  %v554 = vshll.u32 %v279, 16
  %v556 = vrot.slane %v554, 1
  %v557 = vor.u32 %v552, %v556
  %v559 = vshll.u32 %v375, 16
  %v561 = vrot.slane %v559, 1
  %v562 = vsel %vm394, %v557, %v561
  %v564 = vshrl.u32 %v280, 16
  %v566 = vshll.u32 %v280, 16
  %v568 = vrot.slane %v566, 1
  %v569 = vor.u32 %v564, %v568
  %v571 = vshll.u32 %v376, 16
  %v573 = vrot.slane %v571, 1
  %v574 = vsel %vm394, %v569, %v573
  %v576 = vshrl.u32 %v281, 16
  %v578 = vshll.u32 %v281, 16
  %v580 = vrot.slane %v578, 1
  %v581 = vor.u32 %v576, %v580
  %v583 = vshll.u32 %v377, 16
  %v585 = vrot.slane %v583, 1
  %v586 = vsel %vm394, %v581, %v585
  %v588 = vshrl.u32 %v282, 16
  %v590 = vshll.u32 %v282, 16
  %v592 = vrot.slane %v590, 1
  %v593 = vor.u32 %v588, %v592
  %v595 = vshll.u32 %v378, 16
  %v597 = vrot.slane %v595, 1
  %v598 = vsel %vm394, %v593, %v597
  %v600 = vshrl.u32 %v283, 16
  %v602 = vshll.u32 %v283, 16
  %v604 = vrot.slane %v602, 1
  %v605 = vor.u32 %v600, %v604
  %v607 = vshll.u32 %v379, 16
  %v609 = vrot.slane %v607, 1
  %v610 = vsel %vm394, %v605, %v609
  %v612 = vshrl.u32 %v284, 16
  %v614 = vshll.u32 %v284, 16
  %v616 = vrot.slane %v614, 1
  %v617 = vor.u32 %v612, %v616
  %v619 = vshll.u32 %v380, 16
  %v621 = vrot.slane %v619, 1
  %v622 = vsel %vm394, %v617, %v621
  %v624 = vshrl.u32 %v285, 16
  %v626 = vshll.u32 %v285, 16
  %v628 = vrot.slane %v626, 1
  %v629 = vor.u32 %v624, %v628
  %v631 = vshll.u32 %v381, 16
  %v633 = vrot.slane %v631, 1
  %v634 = vsel %vm394, %v629, %v633
  %v636 = vshrl.u32 %v286, 16
  %v638 = vshll.u32 %v286, 16
  %v640 = vrot.slane %v638, 1
  %v641 = vor.u32 %v636, %v640
  %v643 = vshll.u32 %v382, 16
  %v645 = vrot.slane %v643, 1
  %v646 = vsel %vm394, %v641, %v645
  %v648 = vshrl.u32 %v287, 16
  %v650 = vshll.u32 %v287, 16
  %v652 = vrot.slane %v650, 1
  %v653 = vor.u32 %v648, %v652
  %v655 = vshll.u32 %v383, 16
  %v657 = vrot.slane %v655, 1
  %v658 = vsel %vm394, %v653, %v657
  %v660 = vshrl.u32 %v288, 16
  %v662 = vshll.u32 %v288, 16
  %v664 = vrot.slane %v662, 1
  %v665 = vor.u32 %v660, %v664
  %v667 = vshll.u32 %v384, 16
  %v669 = vrot.slane %v667, 1
  %v670 = vsel %vm394, %v665, %v669
  %v672 = vshrl.u32 %v289, 16
  %v674 = vshll.u32 %v289, 16
  %v676 = vrot.slane %v674, 1
  %v677 = vor.u32 %v672, %v676
  %v679 = vshll.u32 %v385, 16
  %v681 = vrot.slane %v679, 1
  %v682 = vsel %vm394, %v677, %v681
  %v684 = vshrl.u32 %v290, 16
  %v686 = vshll.u32 %v290, 16
  %v688 = vrot.slane %v686, 1
  %v689 = vor.u32 %v684, %v688
  %v691 = vshll.u32 %v386, 16
  %v693 = vrot.slane %v691, 1
  %v694 = vsel %vm394, %v689, %v693
  %v696 = vshrl.u32 %v291, 16
  %v698 = vshll.u32 %v291, 16
  %v700 = vrot.slane %v698, 1
  %v701 = vor.u32 %v696, %v700
  %v703 = vshll.u32 %v387, 16
  %v705 = vrot.slane %v703, 1
  %v706 = vsel %vm394, %v701, %v705
  %v708 = vshrl.u32 %v292, 16
  %v710 = vshll.u32 %v292, 16
  %v712 = vrot.slane %v710, 1
  %v713 = vor.u32 %v708, %v712
  %v715 = vshll.u32 %v388, 16
  %v717 = vrot.slane %v715, 1
  %v718 = vsel %vm394, %v713, %v717
  %v720 = vshrl.u32 %v293, 16
  %v722 = vshll.u32 %v293, 16
  %v724 = vrot.slane %v722, 1
  %v725 = vor.u32 %v720, %v724
  %v727 = vshll.u32 %v389, 16
  %v729 = vrot.slane %v727, 1
  %v730 = vsel %vm394, %v725, %v729
  %v732 = vshrl.u32 %v294, 16
  %v734 = vshll.u32 %v294, 16
  %v736 = vrot.slane %v734, 1
  %v737 = vor.u32 %v732, %v736
  %v739 = vshll.u32 %v390, 16
  %v741 = vrot.slane %v739, 1
  %v742 = vsel %vm394, %v737, %v741
  %v744 = vshrl.u32 %v295, 16
  %v746 = vshll.u32 %v295, 16
  %v748 = vrot.slane %v746, 1
  %v749 = vor.u32 %v744, %v748
  %v751 = vshll.u32 %v391, 16
  %v753 = vrot.slane %v751, 1
  %v754 = vsel %vm394, %v749, %v753
  %v756 = vshrl.u32 %v296, 16
  %v758 = vshll.u32 %v296, 16
  %v760 = vrot.slane %v758, 1
  %v761 = vor.u32 %v756, %v760
  %v763 = vshll.u32 %v392, 16
  %v765 = vrot.slane %v763, 1
  %v766 = vsel %vm394, %v761, %v765
  %v768 = vshrl.u32 %v297, 16
  %v770 = vshll.u32 %v297, 16
  %v772 = vrot.slane %v770, 1
  %v773 = vor.u32 %v768, %v772
  %v775 = vshll.u32 %v393, 16
  %v777 = vrot.slane %v775, 1
  %v778 = vsel %vm394, %v773, %v777
  %779 = vrot.lane.b32.xlu0 %v406, 4
  %v780 = vpop.permute.xlu0 %779
  %781 = vrot.lane.b32.xlu0 %v418, 4
  %v782 = vpop.permute.xlu0 %781
  %783 = vrot.lane.b32.xlu0 %v430, 4
  %v784 = vpop.permute.xlu0 %783
  %785 = vrot.lane.b32.xlu0 %v442, 4
  %v786 = vpop.permute.xlu0 %785
  %787 = vrot.lane.b32.xlu0 %v454, 4
  %v788 = vpop.permute.xlu0 %787
  %789 = vrot.lane.b32.xlu0 %v466, 4
  %v790 = vpop.permute.xlu0 %789
  %791 = vrot.lane.b32.xlu0 %v478, 4
  %v792 = vpop.permute.xlu0 %791
  %793 = vrot.lane.b32.xlu0 %v490, 4
  %v794 = vpop.permute.xlu0 %793
  %795 = vrot.lane.b32.xlu0 %v502, 4
  %v796 = vpop.permute.xlu0 %795
  %797 = vrot.lane.b32.xlu0 %v514, 4
  %v798 = vpop.permute.xlu0 %797
  %799 = vrot.lane.b32.xlu0 %v526, 4
  %v800 = vpop.permute.xlu0 %799
  %801 = vrot.lane.b32.xlu0 %v538, 4
  %v802 = vpop.permute.xlu0 %801
  %803 = vrot.lane.b32.xlu0 %v550, 4
  %v804 = vpop.permute.xlu0 %803
  %805 = vrot.lane.b32.xlu0 %v562, 4
  %v806 = vpop.permute.xlu0 %805
  %807 = vrot.lane.b32.xlu0 %v574, 4
  %v808 = vpop.permute.xlu0 %807
  %809 = vrot.lane.b32.xlu0 %v586, 4
  %v810 = vpop.permute.xlu0 %809
  %811 = vrot.lane.b32.xlu0 %v598, 4
  %v812 = vpop.permute.xlu0 %811
  %813 = vrot.lane.b32.xlu0 %v610, 4
  %v814 = vpop.permute.xlu0 %813
  %815 = vrot.lane.b32.xlu0 %v622, 4
  %v816 = vpop.permute.xlu0 %815
  %817 = vrot.lane.b32.xlu0 %v634, 4
  %v818 = vpop.permute.xlu0 %817
  %819 = vrot.lane.b32.xlu0 %v646, 4
  %v820 = vpop.permute.xlu0 %819
  %821 = vrot.lane.b32.xlu0 %v658, 4
  %v822 = vpop.permute.xlu0 %821
  %823 = vrot.lane.b32.xlu0 %v670, 4
  %v824 = vpop.permute.xlu0 %823
  %825 = vrot.lane.b32.xlu0 %v682, 4
  %v826 = vpop.permute.xlu0 %825
  %827 = vrot.lane.b32.xlu0 %v694, 4
  %v828 = vpop.permute.xlu0 %827
  %829 = vrot.lane.b32.xlu0 %v706, 4
  %v830 = vpop.permute.xlu0 %829
  %831 = vrot.lane.b32.xlu0 %v718, 4
  %v832 = vpop.permute.xlu0 %831
  %833 = vrot.lane.b32.xlu0 %v730, 4
  %v834 = vpop.permute.xlu0 %833
  %835 = vrot.lane.b32.xlu0 %v742, 4
  %v836 = vpop.permute.xlu0 %835
  %837 = vrot.lane.b32.xlu0 %v754, 4
  %v838 = vpop.permute.xlu0 %837
  %839 = vrot.lane.b32.xlu0 %v766, 4
  %v840 = vpop.permute.xlu0 %839
  %841 = vrot.lane.b32.xlu0 %v778, 4
  %v842 = vpop.permute.xlu0 %841
  %vm843 = vcmask 1046528
  %v844 = vrot.slane %v266, 1
  %v845 = vrot.slane %v362, 1
  %v846 = vsel %vm843, %v844, %v845
  %v847 = vrot.slane %v267, 1
  %v848 = vrot.slane %v363, 1
  %v849 = vsel %vm843, %v847, %v848
  %v850 = vrot.slane %v268, 1
  %v851 = vrot.slane %v364, 1
  %v852 = vsel %vm843, %v850, %v851
  %v853 = vrot.slane %v269, 1
  %v854 = vrot.slane %v365, 1
  %v855 = vsel %vm843, %v853, %v854
  %v856 = vrot.slane %v270, 1
  %v857 = vrot.slane %v366, 1
  %v858 = vsel %vm843, %v856, %v857
  %v859 = vrot.slane %v271, 1
  %v860 = vrot.slane %v367, 1
  %v861 = vsel %vm843, %v859, %v860
  %v862 = vrot.slane %v272, 1
  %v863 = vrot.slane %v368, 1
  %v864 = vsel %vm843, %v862, %v863
  %v865 = vrot.slane %v273, 1
  %v866 = vrot.slane %v369, 1
  %v867 = vsel %vm843, %v865, %v866
  %v868 = vrot.slane %v274, 1
  %v869 = vrot.slane %v370, 1
  %v870 = vsel %vm843, %v868, %v869
  %v871 = vrot.slane %v275, 1
  %v872 = vrot.slane %v371, 1
  %v873 = vsel %vm843, %v871, %v872
  %v874 = vrot.slane %v276, 1
  %v875 = vrot.slane %v372, 1
  %v876 = vsel %vm843, %v874, %v875
  %v877 = vrot.slane %v277, 1
  %v878 = vrot.slane %v373, 1
  %v879 = vsel %vm843, %v877, %v878
  %v880 = vrot.slane %v278, 1
  %v881 = vrot.slane %v374, 1
  %v882 = vsel %vm843, %v880, %v881
  %v883 = vrot.slane %v279, 1
  %v884 = vrot.slane %v375, 1
  %v885 = vsel %vm843, %v883, %v884
  %v886 = vrot.slane %v280, 1
  %v887 = vrot.slane %v376, 1
  %v888 = vsel %vm843, %v886, %v887
  %v889 = vrot.slane %v281, 1
  %v890 = vrot.slane %v377, 1
  %v891 = vsel %vm843, %v889, %v890
  %v892 = vrot.slane %v282, 1
  %v893 = vrot.slane %v378, 1
  %v894 = vsel %vm843, %v892, %v893
  %v895 = vrot.slane %v283, 1
  %v896 = vrot.slane %v379, 1
  %v897 = vsel %vm843, %v895, %v896
  %v898 = vrot.slane %v284, 1
  %v899 = vrot.slane %v380, 1
  %v900 = vsel %vm843, %v898, %v899
  %v901 = vrot.slane %v285, 1
  %v902 = vrot.slane %v381, 1
  %v903 = vsel %vm843, %v901, %v902
  %v904 = vrot.slane %v286, 1
  %v905 = vrot.slane %v382, 1
  %v906 = vsel %vm843, %v904, %v905
  %v907 = vrot.slane %v287, 1
  %v908 = vrot.slane %v383, 1
  %v909 = vsel %vm843, %v907, %v908
  %v910 = vrot.slane %v288, 1
  %v911 = vrot.slane %v384, 1
  %v912 = vsel %vm843, %v910, %v911
  %v913 = vrot.slane %v289, 1
  %v914 = vrot.slane %v385, 1
  %v915 = vsel %vm843, %v913, %v914
  %v916 = vrot.slane %v290, 1
  %v917 = vrot.slane %v386, 1
  %v918 = vsel %vm843, %v916, %v917
  %v919 = vrot.slane %v291, 1
  %v920 = vrot.slane %v387, 1
  %v921 = vsel %vm843, %v919, %v920
  %v922 = vrot.slane %v292, 1
  %v923 = vrot.slane %v388, 1
  %v924 = vsel %vm843, %v922, %v923
  %v925 = vrot.slane %v293, 1
  %v926 = vrot.slane %v389, 1
  %v927 = vsel %vm843, %v925, %v926
  %v928 = vrot.slane %v294, 1
  %v929 = vrot.slane %v390, 1
  %v930 = vsel %vm843, %v928, %v929
  %v931 = vrot.slane %v295, 1
  %v932 = vrot.slane %v391, 1
  %v933 = vsel %vm843, %v931, %v932
  %v934 = vrot.slane %v296, 1
  %v935 = vrot.slane %v392, 1
  %v936 = vsel %vm843, %v934, %v935
  %v937 = vrot.slane %v297, 1
  %v938 = vrot.slane %v393, 1
  %v939 = vsel %vm843, %v937, %v938
  %940 = vrot.lane.b32.xlu0 %v846, 8
  %v941 = vpop.permute.xlu0 %940
  %942 = vrot.lane.b32.xlu0 %v849, 8
  %v943 = vpop.permute.xlu0 %942
  %944 = vrot.lane.b32.xlu0 %v852, 8
  %v945 = vpop.permute.xlu0 %944
  %946 = vrot.lane.b32.xlu0 %v855, 8
  %v947 = vpop.permute.xlu0 %946
  %948 = vrot.lane.b32.xlu0 %v858, 8
  %v949 = vpop.permute.xlu0 %948
  %950 = vrot.lane.b32.xlu0 %v861, 8
  %v951 = vpop.permute.xlu0 %950
  %952 = vrot.lane.b32.xlu0 %v864, 8
  %v953 = vpop.permute.xlu0 %952
  %954 = vrot.lane.b32.xlu0 %v867, 8
  %v955 = vpop.permute.xlu0 %954
  %956 = vrot.lane.b32.xlu0 %v870, 8
  %v957 = vpop.permute.xlu0 %956
  %958 = vrot.lane.b32.xlu0 %v873, 8
  %v959 = vpop.permute.xlu0 %958
  %960 = vrot.lane.b32.xlu0 %v876, 8
  %v961 = vpop.permute.xlu0 %960
  %962 = vrot.lane.b32.xlu0 %v879, 8
  %v963 = vpop.permute.xlu0 %962
  %964 = vrot.lane.b32.xlu0 %v882, 8
  %v965 = vpop.permute.xlu0 %964
  %966 = vrot.lane.b32.xlu0 %v885, 8
  %v967 = vpop.permute.xlu0 %966
  %968 = vrot.lane.b32.xlu0 %v888, 8
  %v969 = vpop.permute.xlu0 %968
  %970 = vrot.lane.b32.xlu0 %v891, 8
  %v971 = vpop.permute.xlu0 %970
  %972 = vrot.lane.b32.xlu0 %v894, 8
  %v973 = vpop.permute.xlu0 %972
  %974 = vrot.lane.b32.xlu0 %v897, 8
  %v975 = vpop.permute.xlu0 %974
  %976 = vrot.lane.b32.xlu0 %v900, 8
  %v977 = vpop.permute.xlu0 %976
  %978 = vrot.lane.b32.xlu0 %v903, 8
  %v979 = vpop.permute.xlu0 %978
  %980 = vrot.lane.b32.xlu0 %v906, 8
  %v981 = vpop.permute.xlu0 %980
  %982 = vrot.lane.b32.xlu0 %v909, 8
  %v983 = vpop.permute.xlu0 %982
  %984 = vrot.lane.b32.xlu0 %v912, 8
  %v985 = vpop.permute.xlu0 %984
  %986 = vrot.lane.b32.xlu0 %v915, 8
  %v987 = vpop.permute.xlu0 %986
  %988 = vrot.lane.b32.xlu0 %v918, 8
  %v989 = vpop.permute.xlu0 %988
  %990 = vrot.lane.b32.xlu0 %v921, 8
  %v991 = vpop.permute.xlu0 %990
  %992 = vrot.lane.b32.xlu0 %v924, 8
  %v993 = vpop.permute.xlu0 %992
  %994 = vrot.lane.b32.xlu0 %v927, 8
  %v995 = vpop.permute.xlu0 %994
  %996 = vrot.lane.b32.xlu0 %v930, 8
  %v997 = vpop.permute.xlu0 %996
  %998 = vrot.lane.b32.xlu0 %v933, 8
  %v999 = vpop.permute.xlu0 %998
  %1000 = vrot.lane.b32.xlu0 %v936, 8
  %v1001 = vpop.permute.xlu0 %1000
  %1002 = vrot.lane.b32.xlu0 %v939, 8
  %v1003 = vpop.permute.xlu0 %1002
  %v1008 = vunpack.c.l.b16 %v78
  %v1009 = vunpack.c.l.b16 %v79
  %v1010 = vunpack.c.l.b16 %v132
  %v1011 = vunpack.c.l.b16 %v133
  %v1012 = vpack.c.b16 %v1009, %v1008
  %v1013 = vpack.c.b16 %v1011, %v1010
  %1014 = vrot.lane.b32.xlu0 %v267, 12
  %v1015 = vpop.permute.xlu0 %1014
  %1016 = vrot.lane.b32.xlu0 %v268, 12
  %v1017 = vpop.permute.xlu0 %1016
  %1018 = vrot.lane.b32.xlu0 %v269, 12
  %v1019 = vpop.permute.xlu0 %1018
  %1020 = vrot.lane.b32.xlu0 %v270, 12
  %v1021 = vpop.permute.xlu0 %1020
  %1022 = vrot.lane.b32.xlu0 %v271, 12
  %v1023 = vpop.permute.xlu0 %1022
  %1024 = vrot.lane.b32.xlu0 %v272, 12
  %v1025 = vpop.permute.xlu0 %1024
  %1026 = vrot.lane.b32.xlu0 %v273, 12
  %v1027 = vpop.permute.xlu0 %1026
  %1028 = vrot.lane.b32.xlu0 %v274, 12
  %v1029 = vpop.permute.xlu0 %1028
  %1030 = vrot.lane.b32.xlu0 %v275, 12
  %v1031 = vpop.permute.xlu0 %1030
  %1032 = vrot.lane.b32.xlu0 %v276, 12
  %v1033 = vpop.permute.xlu0 %1032
  %1034 = vrot.lane.b32.xlu0 %v277, 12
  %v1035 = vpop.permute.xlu0 %1034
  %1036 = vrot.lane.b32.xlu0 %v278, 12
  %v1037 = vpop.permute.xlu0 %1036
  %1038 = vrot.lane.b32.xlu0 %v279, 12
  %v1039 = vpop.permute.xlu0 %1038
  %1040 = vrot.lane.b32.xlu0 %v280, 12
  %v1041 = vpop.permute.xlu0 %1040
  %1042 = vrot.lane.b32.xlu0 %v281, 12
  %v1043 = vpop.permute.xlu0 %1042
  %1044 = vrot.lane.b32.xlu0 %v1012, 12
  %v1045 = vpop.permute.xlu0 %1044
  %1046 = vrot.lane.b32.xlu0 %v283, 12
  %v1047 = vpop.permute.xlu0 %1046
  %1048 = vrot.lane.b32.xlu0 %v284, 12
  %v1049 = vpop.permute.xlu0 %1048
  %1050 = vrot.lane.b32.xlu0 %v285, 12
  %v1051 = vpop.permute.xlu0 %1050
  %1052 = vrot.lane.b32.xlu0 %v286, 12
  %v1053 = vpop.permute.xlu0 %1052
  %1054 = vrot.lane.b32.xlu0 %v287, 12
  %v1055 = vpop.permute.xlu0 %1054
  %1056 = vrot.lane.b32.xlu0 %v288, 12
  %v1057 = vpop.permute.xlu0 %1056
  %1058 = vrot.lane.b32.xlu0 %v289, 12
  %v1059 = vpop.permute.xlu0 %1058
  %1060 = vrot.lane.b32.xlu0 %v290, 12
  %v1061 = vpop.permute.xlu0 %1060
  %1062 = vrot.lane.b32.xlu0 %v291, 12
  %v1063 = vpop.permute.xlu0 %1062
  %1064 = vrot.lane.b32.xlu0 %v292, 12
  %v1065 = vpop.permute.xlu0 %1064
  %1066 = vrot.lane.b32.xlu0 %v293, 12
  %v1067 = vpop.permute.xlu0 %1066
  %1068 = vrot.lane.b32.xlu0 %v294, 12
  %v1069 = vpop.permute.xlu0 %1068
  %1070 = vrot.lane.b32.xlu0 %v295, 12
  %v1071 = vpop.permute.xlu0 %1070
  %1072 = vrot.lane.b32.xlu0 %v296, 12
  %v1073 = vpop.permute.xlu0 %1072
  %1074 = vrot.lane.b32.xlu0 %v297, 12
  %v1075 = vpop.permute.xlu0 %1074
  %1076 = vrot.lane.b32.xlu0 %v1013, 12
  %v1077 = vpop.permute.xlu0 %1076
  %v1080 = vunpack.c.l.b16 %v80
  %v1081 = vunpack.c.l.b16 %v134
  %v1082 = vpack.c.b16 %v1080, %v1080
  %v1083 = vpack.c.b16 %v1081, %v1081
  %v1085 = vshrl.u32 %v1012, 16
  %v1087 = vshll.u32 %v1012, 16
  %v1089 = vrot.slane %v1087, 1
  %v1090 = vor.u32 %v1085, %v1089
  %v1092 = vshll.u32 %v1082, 16
  %v1094 = vrot.slane %v1092, 1
  %v1095 = vsel %vm394, %v1090, %v1094
  %v1097 = vshrl.u32 %v1013, 16
  %v1099 = vshll.u32 %v1013, 16
  %v1101 = vrot.slane %v1099, 1
  %v1102 = vor.u32 %v1097, %v1101
  %v1104 = vshll.u32 %v1083, 16
  %v1106 = vrot.slane %v1104, 1
  %v1107 = vsel %vm394, %v1102, %v1106
  %1108 = vrot.lane.b32.xlu0 %v418, 16
  %v1109 = vpop.permute.xlu0 %1108
  %1110 = vrot.lane.b32.xlu0 %v430, 16
  %v1111 = vpop.permute.xlu0 %1110
  %1112 = vrot.lane.b32.xlu0 %v442, 16
  %v1113 = vpop.permute.xlu0 %1112
  %1114 = vrot.lane.b32.xlu0 %v454, 16
  %v1115 = vpop.permute.xlu0 %1114
  %1116 = vrot.lane.b32.xlu0 %v466, 16
  %v1117 = vpop.permute.xlu0 %1116
  %1118 = vrot.lane.b32.xlu0 %v478, 16
  %v1119 = vpop.permute.xlu0 %1118
  %1120 = vrot.lane.b32.xlu0 %v490, 16
  %v1121 = vpop.permute.xlu0 %1120
  %1122 = vrot.lane.b32.xlu0 %v502, 16
  %v1123 = vpop.permute.xlu0 %1122
  %1124 = vrot.lane.b32.xlu0 %v514, 16
  %v1125 = vpop.permute.xlu0 %1124
  %1126 = vrot.lane.b32.xlu0 %v526, 16
  %v1127 = vpop.permute.xlu0 %1126
  %1128 = vrot.lane.b32.xlu0 %v538, 16
  %v1129 = vpop.permute.xlu0 %1128
  %1130 = vrot.lane.b32.xlu0 %v550, 16
  %v1131 = vpop.permute.xlu0 %1130
  %1132 = vrot.lane.b32.xlu0 %v562, 16
  %v1133 = vpop.permute.xlu0 %1132
  %1134 = vrot.lane.b32.xlu0 %v574, 16
  %v1135 = vpop.permute.xlu0 %1134
  %1136 = vrot.lane.b32.xlu0 %v586, 16
  %v1137 = vpop.permute.xlu0 %1136
  %1138 = vrot.lane.b32.xlu0 %v1095, 16
  %v1139 = vpop.permute.xlu0 %1138
  %1140 = vrot.lane.b32.xlu0 %v610, 16
  %v1141 = vpop.permute.xlu0 %1140
  %1142 = vrot.lane.b32.xlu0 %v622, 16
  %v1143 = vpop.permute.xlu0 %1142
  %1144 = vrot.lane.b32.xlu0 %v634, 16
  %v1145 = vpop.permute.xlu0 %1144
  %1146 = vrot.lane.b32.xlu0 %v646, 16
  %v1147 = vpop.permute.xlu0 %1146
  %1148 = vrot.lane.b32.xlu0 %v658, 16
  %v1149 = vpop.permute.xlu0 %1148
  %1150 = vrot.lane.b32.xlu0 %v670, 16
  %v1151 = vpop.permute.xlu0 %1150
  %1152 = vrot.lane.b32.xlu0 %v682, 16
  %v1153 = vpop.permute.xlu0 %1152
  %1154 = vrot.lane.b32.xlu0 %v694, 16
  %v1155 = vpop.permute.xlu0 %1154
  %1156 = vrot.lane.b32.xlu0 %v706, 16
  %v1157 = vpop.permute.xlu0 %1156
  %1158 = vrot.lane.b32.xlu0 %v718, 16
  %v1159 = vpop.permute.xlu0 %1158
  %1160 = vrot.lane.b32.xlu0 %v730, 16
  %v1161 = vpop.permute.xlu0 %1160
  %1162 = vrot.lane.b32.xlu0 %v742, 16
  %v1163 = vpop.permute.xlu0 %1162
  %1164 = vrot.lane.b32.xlu0 %v754, 16
  %v1165 = vpop.permute.xlu0 %1164
  %1166 = vrot.lane.b32.xlu0 %v766, 16
  %v1167 = vpop.permute.xlu0 %1166
  %1168 = vrot.lane.b32.xlu0 %v778, 16
  %v1169 = vpop.permute.xlu0 %1168
  %1170 = vrot.lane.b32.xlu0 %v1107, 16
  %v1171 = vpop.permute.xlu0 %1170
  %v1172 = vrot.slane %v1012, 1
  %v1173 = vrot.slane %v1082, 1
  %v1174 = vsel %vm843, %v1172, %v1173
  %v1175 = vrot.slane %v1013, 1
  %v1176 = vrot.slane %v1083, 1
  %v1177 = vsel %vm843, %v1175, %v1176
  %1178 = vrot.lane.b32.xlu0 %v849, 20
  %v1179 = vpop.permute.xlu0 %1178
  %1180 = vrot.lane.b32.xlu0 %v852, 20
  %v1181 = vpop.permute.xlu0 %1180
  %1182 = vrot.lane.b32.xlu0 %v855, 20
  %v1183 = vpop.permute.xlu0 %1182
  %1184 = vrot.lane.b32.xlu0 %v858, 20
  %v1185 = vpop.permute.xlu0 %1184
  %1186 = vrot.lane.b32.xlu0 %v861, 20
  %v1187 = vpop.permute.xlu0 %1186
  %1188 = vrot.lane.b32.xlu0 %v864, 20
  %v1189 = vpop.permute.xlu0 %1188
  %1190 = vrot.lane.b32.xlu0 %v867, 20
  %v1191 = vpop.permute.xlu0 %1190
  %1192 = vrot.lane.b32.xlu0 %v870, 20
  %v1193 = vpop.permute.xlu0 %1192
  %1194 = vrot.lane.b32.xlu0 %v873, 20
  %v1195 = vpop.permute.xlu0 %1194
  %1196 = vrot.lane.b32.xlu0 %v876, 20
  %v1197 = vpop.permute.xlu0 %1196
  %1198 = vrot.lane.b32.xlu0 %v879, 20
  %v1199 = vpop.permute.xlu0 %1198
  %1200 = vrot.lane.b32.xlu0 %v882, 20
  %v1201 = vpop.permute.xlu0 %1200
  %1202 = vrot.lane.b32.xlu0 %v885, 20
  %v1203 = vpop.permute.xlu0 %1202
  %1204 = vrot.lane.b32.xlu0 %v888, 20
  %v1205 = vpop.permute.xlu0 %1204
  %1206 = vrot.lane.b32.xlu0 %v891, 20
  %v1207 = vpop.permute.xlu0 %1206
  %1208 = vrot.lane.b32.xlu0 %v1174, 20
  %v1209 = vpop.permute.xlu0 %1208
  %1210 = vrot.lane.b32.xlu0 %v897, 20
  %v1211 = vpop.permute.xlu0 %1210
  %1212 = vrot.lane.b32.xlu0 %v900, 20
  %v1213 = vpop.permute.xlu0 %1212
  %1214 = vrot.lane.b32.xlu0 %v903, 20
  %v1215 = vpop.permute.xlu0 %1214
  %1216 = vrot.lane.b32.xlu0 %v906, 20
  %v1217 = vpop.permute.xlu0 %1216
  %1218 = vrot.lane.b32.xlu0 %v909, 20
  %v1219 = vpop.permute.xlu0 %1218
  %1220 = vrot.lane.b32.xlu0 %v912, 20
  %v1221 = vpop.permute.xlu0 %1220
  %1222 = vrot.lane.b32.xlu0 %v915, 20
  %v1223 = vpop.permute.xlu0 %1222
  %1224 = vrot.lane.b32.xlu0 %v918, 20
  %v1225 = vpop.permute.xlu0 %1224
  %1226 = vrot.lane.b32.xlu0 %v921, 20
  %v1227 = vpop.permute.xlu0 %1226
  %1228 = vrot.lane.b32.xlu0 %v924, 20
  %v1229 = vpop.permute.xlu0 %1228
  %1230 = vrot.lane.b32.xlu0 %v927, 20
  %v1231 = vpop.permute.xlu0 %1230
  %1232 = vrot.lane.b32.xlu0 %v930, 20
  %v1233 = vpop.permute.xlu0 %1232
  %1234 = vrot.lane.b32.xlu0 %v933, 20
  %v1235 = vpop.permute.xlu0 %1234
  %1236 = vrot.lane.b32.xlu0 %v936, 20
  %v1237 = vpop.permute.xlu0 %1236
  %1238 = vrot.lane.b32.xlu0 %v939, 20
  %v1239 = vpop.permute.xlu0 %1238
  %1240 = vrot.lane.b32.xlu0 %v1177, 20
  %v1241 = vpop.permute.xlu0 %1240
  %v1246 = vunpack.c.l.b16 %v81
  %v1247 = vunpack.c.l.b16 %v82
  %v1248 = vunpack.c.l.b16 %v135
  %v1249 = vunpack.c.l.b16 %v136
  %v1250 = vpack.c.b16 %v1247, %v1246
  %v1251 = vpack.c.b16 %v1249, %v1248
  %1252 = vrot.lane.b32.xlu0 %v268, 24
  %v1253 = vpop.permute.xlu0 %1252
  %1254 = vrot.lane.b32.xlu0 %v269, 24
  %v1255 = vpop.permute.xlu0 %1254
  %1256 = vrot.lane.b32.xlu0 %v270, 24
  %v1257 = vpop.permute.xlu0 %1256
  %1258 = vrot.lane.b32.xlu0 %v271, 24
  %v1259 = vpop.permute.xlu0 %1258
  %1260 = vrot.lane.b32.xlu0 %v272, 24
  %v1261 = vpop.permute.xlu0 %1260
  %1262 = vrot.lane.b32.xlu0 %v273, 24
  %v1263 = vpop.permute.xlu0 %1262
  %1264 = vrot.lane.b32.xlu0 %v274, 24
  %v1265 = vpop.permute.xlu0 %1264
  %1266 = vrot.lane.b32.xlu0 %v275, 24
  %v1267 = vpop.permute.xlu0 %1266
  %1268 = vrot.lane.b32.xlu0 %v276, 24
  %v1269 = vpop.permute.xlu0 %1268
  %1270 = vrot.lane.b32.xlu0 %v277, 24
  %v1271 = vpop.permute.xlu0 %1270
  %1272 = vrot.lane.b32.xlu0 %v278, 24
  %v1273 = vpop.permute.xlu0 %1272
  %1274 = vrot.lane.b32.xlu0 %v279, 24
  %v1275 = vpop.permute.xlu0 %1274
  %1276 = vrot.lane.b32.xlu0 %v280, 24
  %v1277 = vpop.permute.xlu0 %1276
  %1278 = vrot.lane.b32.xlu0 %v281, 24
  %v1279 = vpop.permute.xlu0 %1278
  %1280 = vrot.lane.b32.xlu0 %v1012, 24
  %v1281 = vpop.permute.xlu0 %1280
  %1282 = vrot.lane.b32.xlu0 %v1250, 24
  %v1283 = vpop.permute.xlu0 %1282
  %1284 = vrot.lane.b32.xlu0 %v284, 24
  %v1285 = vpop.permute.xlu0 %1284
  %1286 = vrot.lane.b32.xlu0 %v285, 24
  %v1287 = vpop.permute.xlu0 %1286
  %1288 = vrot.lane.b32.xlu0 %v286, 24
  %v1289 = vpop.permute.xlu0 %1288
  %1290 = vrot.lane.b32.xlu0 %v287, 24
  %v1291 = vpop.permute.xlu0 %1290
  %1292 = vrot.lane.b32.xlu0 %v288, 24
  %v1293 = vpop.permute.xlu0 %1292
  %1294 = vrot.lane.b32.xlu0 %v289, 24
  %v1295 = vpop.permute.xlu0 %1294
  %1296 = vrot.lane.b32.xlu0 %v290, 24
  %v1297 = vpop.permute.xlu0 %1296
  %1298 = vrot.lane.b32.xlu0 %v291, 24
  %v1299 = vpop.permute.xlu0 %1298
  %1300 = vrot.lane.b32.xlu0 %v292, 24
  %v1301 = vpop.permute.xlu0 %1300
  %1302 = vrot.lane.b32.xlu0 %v293, 24
  %v1303 = vpop.permute.xlu0 %1302
  %1304 = vrot.lane.b32.xlu0 %v294, 24
  %v1305 = vpop.permute.xlu0 %1304
  %1306 = vrot.lane.b32.xlu0 %v295, 24
  %v1307 = vpop.permute.xlu0 %1306
  %1308 = vrot.lane.b32.xlu0 %v296, 24
  %v1309 = vpop.permute.xlu0 %1308
  %1310 = vrot.lane.b32.xlu0 %v297, 24
  %v1311 = vpop.permute.xlu0 %1310
  %1312 = vrot.lane.b32.xlu0 %v1013, 24
  %v1313 = vpop.permute.xlu0 %1312
  %1314 = vrot.lane.b32.xlu0 %v1251, 24
  %v1315 = vpop.permute.xlu0 %1314
  %v1318 = vunpack.c.l.b16 %v83
  %v1319 = vunpack.c.l.b16 %v137
  %v1320 = vpack.c.b16 %v1318, %v1318
  %v1321 = vpack.c.b16 %v1319, %v1319
  %v1323 = vshrl.u32 %v1250, 16
  %v1325 = vshll.u32 %v1250, 16
  %v1327 = vrot.slane %v1325, 1
  %v1328 = vor.u32 %v1323, %v1327
  %v1330 = vshll.u32 %v1320, 16
  %v1332 = vrot.slane %v1330, 1
  %v1333 = vsel %vm394, %v1328, %v1332
  %v1335 = vshrl.u32 %v1251, 16
  %v1337 = vshll.u32 %v1251, 16
  %v1339 = vrot.slane %v1337, 1
  %v1340 = vor.u32 %v1335, %v1339
  %v1342 = vshll.u32 %v1321, 16
  %v1344 = vrot.slane %v1342, 1
  %v1345 = vsel %vm394, %v1340, %v1344
  %1346 = vrot.lane.b32.xlu0 %v430, 28
  %v1347 = vpop.permute.xlu0 %1346
  %1348 = vrot.lane.b32.xlu0 %v442, 28
  %v1349 = vpop.permute.xlu0 %1348
  %1350 = vrot.lane.b32.xlu0 %v454, 28
  %v1351 = vpop.permute.xlu0 %1350
  %1352 = vrot.lane.b32.xlu0 %v466, 28
  %v1353 = vpop.permute.xlu0 %1352
  %1354 = vrot.lane.b32.xlu0 %v478, 28
  %v1355 = vpop.permute.xlu0 %1354
  %1356 = vrot.lane.b32.xlu0 %v490, 28
  %v1357 = vpop.permute.xlu0 %1356
  %1358 = vrot.lane.b32.xlu0 %v502, 28
  %v1359 = vpop.permute.xlu0 %1358
  %1360 = vrot.lane.b32.xlu0 %v514, 28
  %v1361 = vpop.permute.xlu0 %1360
  %1362 = vrot.lane.b32.xlu0 %v526, 28
  %v1363 = vpop.permute.xlu0 %1362
  %1364 = vrot.lane.b32.xlu0 %v538, 28
  %v1365 = vpop.permute.xlu0 %1364
  %1366 = vrot.lane.b32.xlu0 %v550, 28
  %v1367 = vpop.permute.xlu0 %1366
  %1368 = vrot.lane.b32.xlu0 %v562, 28
  %v1369 = vpop.permute.xlu0 %1368
  %1370 = vrot.lane.b32.xlu0 %v574, 28
  %v1371 = vpop.permute.xlu0 %1370
  %1372 = vrot.lane.b32.xlu0 %v586, 28
  %v1373 = vpop.permute.xlu0 %1372
  %1374 = vrot.lane.b32.xlu0 %v1095, 28
  %v1375 = vpop.permute.xlu0 %1374
  %1376 = vrot.lane.b32.xlu0 %v1333, 28
  %v1377 = vpop.permute.xlu0 %1376
  %1378 = vrot.lane.b32.xlu0 %v622, 28
  %v1379 = vpop.permute.xlu0 %1378
  %1380 = vrot.lane.b32.xlu0 %v634, 28
  %v1381 = vpop.permute.xlu0 %1380
  %1382 = vrot.lane.b32.xlu0 %v646, 28
  %v1383 = vpop.permute.xlu0 %1382
  %1384 = vrot.lane.b32.xlu0 %v658, 28
  %v1385 = vpop.permute.xlu0 %1384
  %1386 = vrot.lane.b32.xlu0 %v670, 28
  %v1387 = vpop.permute.xlu0 %1386
  %1388 = vrot.lane.b32.xlu0 %v682, 28
  %v1389 = vpop.permute.xlu0 %1388
  %1390 = vrot.lane.b32.xlu0 %v694, 28
  %v1391 = vpop.permute.xlu0 %1390
  %1392 = vrot.lane.b32.xlu0 %v706, 28
  %v1393 = vpop.permute.xlu0 %1392
  %1394 = vrot.lane.b32.xlu0 %v718, 28
  %v1395 = vpop.permute.xlu0 %1394
  %1396 = vrot.lane.b32.xlu0 %v730, 28
  %v1397 = vpop.permute.xlu0 %1396
  %1398 = vrot.lane.b32.xlu0 %v742, 28
  %v1399 = vpop.permute.xlu0 %1398
  %1400 = vrot.lane.b32.xlu0 %v754, 28
  %v1401 = vpop.permute.xlu0 %1400
  %1402 = vrot.lane.b32.xlu0 %v766, 28
  %v1403 = vpop.permute.xlu0 %1402
  %1404 = vrot.lane.b32.xlu0 %v778, 28
  %v1405 = vpop.permute.xlu0 %1404
  %1406 = vrot.lane.b32.xlu0 %v1107, 28
  %v1407 = vpop.permute.xlu0 %1406
  %1408 = vrot.lane.b32.xlu0 %v1345, 28
  %v1409 = vpop.permute.xlu0 %1408
  %v1410 = vrot.slane %v1250, 1
  %v1411 = vrot.slane %v1320, 1
  %v1412 = vsel %vm843, %v1410, %v1411
  %v1413 = vrot.slane %v1251, 1
  %v1414 = vrot.slane %v1321, 1
  %v1415 = vsel %vm843, %v1413, %v1414
  %1416 = vrot.lane.b32.xlu0 %v852, 32
  %v1417 = vpop.permute.xlu0 %1416
  %1418 = vrot.lane.b32.xlu0 %v855, 32
  %v1419 = vpop.permute.xlu0 %1418
  %1420 = vrot.lane.b32.xlu0 %v858, 32
  %v1421 = vpop.permute.xlu0 %1420
  %1422 = vrot.lane.b32.xlu0 %v861, 32
  %v1423 = vpop.permute.xlu0 %1422
  %1424 = vrot.lane.b32.xlu0 %v864, 32
  %v1425 = vpop.permute.xlu0 %1424
  %1426 = vrot.lane.b32.xlu0 %v867, 32
  %v1427 = vpop.permute.xlu0 %1426
  %1428 = vrot.lane.b32.xlu0 %v870, 32
  %v1429 = vpop.permute.xlu0 %1428
  %1430 = vrot.lane.b32.xlu0 %v873, 32
  %v1431 = vpop.permute.xlu0 %1430
  %1432 = vrot.lane.b32.xlu0 %v876, 32
  %v1433 = vpop.permute.xlu0 %1432
  %1434 = vrot.lane.b32.xlu0 %v879, 32
  %v1435 = vpop.permute.xlu0 %1434
  %1436 = vrot.lane.b32.xlu0 %v882, 32
  %v1437 = vpop.permute.xlu0 %1436
  %1438 = vrot.lane.b32.xlu0 %v885, 32
  %v1439 = vpop.permute.xlu0 %1438
  %1440 = vrot.lane.b32.xlu0 %v888, 32
  %v1441 = vpop.permute.xlu0 %1440
  %1442 = vrot.lane.b32.xlu0 %v891, 32
  %v1443 = vpop.permute.xlu0 %1442
  %1444 = vrot.lane.b32.xlu0 %v1174, 32
  %v1445 = vpop.permute.xlu0 %1444
  %1446 = vrot.lane.b32.xlu0 %v1412, 32
  %v1447 = vpop.permute.xlu0 %1446
  %1448 = vrot.lane.b32.xlu0 %v900, 32
  %v1449 = vpop.permute.xlu0 %1448
  %1450 = vrot.lane.b32.xlu0 %v903, 32
  %v1451 = vpop.permute.xlu0 %1450
  %1452 = vrot.lane.b32.xlu0 %v906, 32
  %v1453 = vpop.permute.xlu0 %1452
  %1454 = vrot.lane.b32.xlu0 %v909, 32
  %v1455 = vpop.permute.xlu0 %1454
  %1456 = vrot.lane.b32.xlu0 %v912, 32
  %v1457 = vpop.permute.xlu0 %1456
  %1458 = vrot.lane.b32.xlu0 %v915, 32
  %v1459 = vpop.permute.xlu0 %1458
  %1460 = vrot.lane.b32.xlu0 %v918, 32
  %v1461 = vpop.permute.xlu0 %1460
  %1462 = vrot.lane.b32.xlu0 %v921, 32
  %v1463 = vpop.permute.xlu0 %1462
  %1464 = vrot.lane.b32.xlu0 %v924, 32
  %v1465 = vpop.permute.xlu0 %1464
  %1466 = vrot.lane.b32.xlu0 %v927, 32
  %v1467 = vpop.permute.xlu0 %1466
  %1468 = vrot.lane.b32.xlu0 %v930, 32
  %v1469 = vpop.permute.xlu0 %1468
  %1470 = vrot.lane.b32.xlu0 %v933, 32
  %v1471 = vpop.permute.xlu0 %1470
  %1472 = vrot.lane.b32.xlu0 %v936, 32
  %v1473 = vpop.permute.xlu0 %1472
  %1474 = vrot.lane.b32.xlu0 %v939, 32
  %v1475 = vpop.permute.xlu0 %1474
  %1476 = vrot.lane.b32.xlu0 %v1177, 32
  %v1477 = vpop.permute.xlu0 %1476
  %1478 = vrot.lane.b32.xlu0 %v1415, 32
  %v1479 = vpop.permute.xlu0 %1478
  %vm1480 = vcmask 31744
  %v1482 = vsel %vm1480, %v266, %v780
  %v1484 = vsel %vm1480, %v267, %v782
  %v1486 = vsel %vm1480, %v268, %v784
  %v1488 = vsel %vm1480, %v269, %v786
  %v1490 = vsel %vm1480, %v270, %v788
  %v1492 = vsel %vm1480, %v271, %v790
  %v1494 = vsel %vm1480, %v272, %v792
  %v1496 = vsel %vm1480, %v273, %v794
  %v1498 = vsel %vm1480, %v274, %v796
  %v1500 = vsel %vm1480, %v275, %v798
  %v1502 = vsel %vm1480, %v276, %v800
  %v1504 = vsel %vm1480, %v277, %v802
  %v1506 = vsel %vm1480, %v278, %v804
  %v1508 = vsel %vm1480, %v279, %v806
  %v1510 = vsel %vm1480, %v280, %v808
  %v1512 = vsel %vm1480, %v281, %v810
  %v1514 = vsel %vm1480, %v282, %v812
  %v1516 = vsel %vm1480, %v283, %v814
  %v1518 = vsel %vm1480, %v284, %v816
  %v1520 = vsel %vm1480, %v285, %v818
  %v1522 = vsel %vm1480, %v286, %v820
  %v1524 = vsel %vm1480, %v287, %v822
  %v1526 = vsel %vm1480, %v288, %v824
  %v1528 = vsel %vm1480, %v289, %v826
  %v1530 = vsel %vm1480, %v290, %v828
  %v1532 = vsel %vm1480, %v291, %v830
  %v1534 = vsel %vm1480, %v292, %v832
  %v1536 = vsel %vm1480, %v293, %v834
  %v1538 = vsel %vm1480, %v294, %v836
  %v1540 = vsel %vm1480, %v295, %v838
  %v1542 = vsel %vm1480, %v296, %v840
  %v1544 = vsel %vm1480, %v297, %v842
  %vm1545 = vcmask 64512
  %v1547 = vsel %vm1545, %v1482, %v941
  %v1549 = vsel %vm1545, %v1484, %v943
  %v1551 = vsel %vm1545, %v1486, %v945
  %v1553 = vsel %vm1545, %v1488, %v947
  %v1555 = vsel %vm1545, %v1490, %v949
  %v1557 = vsel %vm1545, %v1492, %v951
  %v1559 = vsel %vm1545, %v1494, %v953
  %v1561 = vsel %vm1545, %v1496, %v955
  %v1563 = vsel %vm1545, %v1498, %v957
  %v1565 = vsel %vm1545, %v1500, %v959
  %v1567 = vsel %vm1545, %v1502, %v961
  %v1569 = vsel %vm1545, %v1504, %v963
  %v1571 = vsel %vm1545, %v1506, %v965
  %v1573 = vsel %vm1545, %v1508, %v967
  %v1575 = vsel %vm1545, %v1510, %v969
  %v1577 = vsel %vm1545, %v1512, %v971
  %v1579 = vsel %vm1545, %v1514, %v973
  %v1581 = vsel %vm1545, %v1516, %v975
  %v1583 = vsel %vm1545, %v1518, %v977
  %v1585 = vsel %vm1545, %v1520, %v979
  %v1587 = vsel %vm1545, %v1522, %v981
  %v1589 = vsel %vm1545, %v1524, %v983
  %v1591 = vsel %vm1545, %v1526, %v985
  %v1593 = vsel %vm1545, %v1528, %v987
  %v1595 = vsel %vm1545, %v1530, %v989
  %v1597 = vsel %vm1545, %v1532, %v991
  %v1599 = vsel %vm1545, %v1534, %v993
  %v1601 = vsel %vm1545, %v1536, %v995
  %v1603 = vsel %vm1545, %v1538, %v997
  %v1605 = vsel %vm1545, %v1540, %v999
  %v1607 = vsel %vm1545, %v1542, %v1001
  %v1609 = vsel %vm1545, %v1544, %v1003
  %vm1610 = vcmask 97280
  %v1612 = vsel %vm1610, %v1547, %v1015
  %v1614 = vsel %vm1610, %v1549, %v1017
  %v1616 = vsel %vm1610, %v1551, %v1019
  %v1618 = vsel %vm1610, %v1553, %v1021
  %v1620 = vsel %vm1610, %v1555, %v1023
  %v1622 = vsel %vm1610, %v1557, %v1025
  %v1624 = vsel %vm1610, %v1559, %v1027
  %v1626 = vsel %vm1610, %v1561, %v1029
  %v1628 = vsel %vm1610, %v1563, %v1031
  %v1630 = vsel %vm1610, %v1565, %v1033
  %v1632 = vsel %vm1610, %v1567, %v1035
  %v1634 = vsel %vm1610, %v1569, %v1037
  %v1636 = vsel %vm1610, %v1571, %v1039
  %v1638 = vsel %vm1610, %v1573, %v1041
  %v1640 = vsel %vm1610, %v1575, %v1043
  %v1642 = vsel %vm1610, %v1577, %v1045
  %v1644 = vsel %vm1610, %v1579, %v1047
  %v1646 = vsel %vm1610, %v1581, %v1049
  %v1648 = vsel %vm1610, %v1583, %v1051
  %v1650 = vsel %vm1610, %v1585, %v1053
  %v1652 = vsel %vm1610, %v1587, %v1055
  %v1654 = vsel %vm1610, %v1589, %v1057
  %v1656 = vsel %vm1610, %v1591, %v1059
  %v1658 = vsel %vm1610, %v1593, %v1061
  %v1660 = vsel %vm1610, %v1595, %v1063
  %v1662 = vsel %vm1610, %v1597, %v1065
  %v1664 = vsel %vm1610, %v1599, %v1067
  %v1666 = vsel %vm1610, %v1601, %v1069
  %v1668 = vsel %vm1610, %v1603, %v1071
  %v1670 = vsel %vm1610, %v1605, %v1073
  %v1672 = vsel %vm1610, %v1607, %v1075
  %v1674 = vsel %vm1610, %v1609, %v1077
  %vm1675 = vcmask 130048
  %v1677 = vsel %vm1675, %v1612, %v1109
  %v1679 = vsel %vm1675, %v1614, %v1111
  %v1681 = vsel %vm1675, %v1616, %v1113
  %v1683 = vsel %vm1675, %v1618, %v1115
  %v1685 = vsel %vm1675, %v1620, %v1117
  %v1687 = vsel %vm1675, %v1622, %v1119
  %v1689 = vsel %vm1675, %v1624, %v1121
  %v1691 = vsel %vm1675, %v1626, %v1123
  %v1693 = vsel %vm1675, %v1628, %v1125
  %v1695 = vsel %vm1675, %v1630, %v1127
  %v1697 = vsel %vm1675, %v1632, %v1129
  %v1699 = vsel %vm1675, %v1634, %v1131
  %v1701 = vsel %vm1675, %v1636, %v1133
  %v1703 = vsel %vm1675, %v1638, %v1135
  %v1705 = vsel %vm1675, %v1640, %v1137
  %v1707 = vsel %vm1675, %v1642, %v1139
  %v1709 = vsel %vm1675, %v1644, %v1141
  %v1711 = vsel %vm1675, %v1646, %v1143
  %v1713 = vsel %vm1675, %v1648, %v1145
  %v1715 = vsel %vm1675, %v1650, %v1147
  %v1717 = vsel %vm1675, %v1652, %v1149
  %v1719 = vsel %vm1675, %v1654, %v1151
  %v1721 = vsel %vm1675, %v1656, %v1153
  %v1723 = vsel %vm1675, %v1658, %v1155
  %v1725 = vsel %vm1675, %v1660, %v1157
  %v1727 = vsel %vm1675, %v1662, %v1159
  %v1729 = vsel %vm1675, %v1664, %v1161
  %v1731 = vsel %vm1675, %v1666, %v1163
  %v1733 = vsel %vm1675, %v1668, %v1165
  %v1735 = vsel %vm1675, %v1670, %v1167
  %v1737 = vsel %vm1675, %v1672, %v1169
  %v1739 = vsel %vm1675, %v1674, %v1171
  %vm1740 = vcmask 162816
  %v1742 = vsel %vm1740, %v1677, %v1179
  %v1744 = vsel %vm1740, %v1679, %v1181
  %v1746 = vsel %vm1740, %v1681, %v1183
  %v1748 = vsel %vm1740, %v1683, %v1185
  %v1750 = vsel %vm1740, %v1685, %v1187
  %v1752 = vsel %vm1740, %v1687, %v1189
  %v1754 = vsel %vm1740, %v1689, %v1191
  %v1756 = vsel %vm1740, %v1691, %v1193
  %v1758 = vsel %vm1740, %v1693, %v1195
  %v1760 = vsel %vm1740, %v1695, %v1197
  %v1762 = vsel %vm1740, %v1697, %v1199
  %v1764 = vsel %vm1740, %v1699, %v1201
  %v1766 = vsel %vm1740, %v1701, %v1203
  %v1768 = vsel %vm1740, %v1703, %v1205
  %v1770 = vsel %vm1740, %v1705, %v1207
  %v1772 = vsel %vm1740, %v1707, %v1209
  %v1774 = vsel %vm1740, %v1709, %v1211
  %v1776 = vsel %vm1740, %v1711, %v1213
  %v1778 = vsel %vm1740, %v1713, %v1215
  %v1780 = vsel %vm1740, %v1715, %v1217
  %v1782 = vsel %vm1740, %v1717, %v1219
  %v1784 = vsel %vm1740, %v1719, %v1221
  %v1786 = vsel %vm1740, %v1721, %v1223
  %v1788 = vsel %vm1740, %v1723, %v1225
  %v1790 = vsel %vm1740, %v1725, %v1227
  %v1792 = vsel %vm1740, %v1727, %v1229
  %v1794 = vsel %vm1740, %v1729, %v1231
  %v1796 = vsel %vm1740, %v1731, %v1233
  %v1798 = vsel %vm1740, %v1733, %v1235
  %v1800 = vsel %vm1740, %v1735, %v1237
  %v1802 = vsel %vm1740, %v1737, %v1239
  %v1804 = vsel %vm1740, %v1739, %v1241
  %vm1805 = vcmask 195584
  %v1807 = vsel %vm1805, %v1742, %v1253
  %v1809 = vsel %vm1805, %v1744, %v1255
  %v1811 = vsel %vm1805, %v1746, %v1257
  %v1813 = vsel %vm1805, %v1748, %v1259
  %v1815 = vsel %vm1805, %v1750, %v1261
  %v1817 = vsel %vm1805, %v1752, %v1263
  %v1819 = vsel %vm1805, %v1754, %v1265
  %v1821 = vsel %vm1805, %v1756, %v1267
  %v1823 = vsel %vm1805, %v1758, %v1269
  %v1825 = vsel %vm1805, %v1760, %v1271
  %v1827 = vsel %vm1805, %v1762, %v1273
  %v1829 = vsel %vm1805, %v1764, %v1275
  %v1831 = vsel %vm1805, %v1766, %v1277
  %v1833 = vsel %vm1805, %v1768, %v1279
  %v1835 = vsel %vm1805, %v1770, %v1281
  %v1837 = vsel %vm1805, %v1772, %v1283
  %v1839 = vsel %vm1805, %v1774, %v1285
  %v1841 = vsel %vm1805, %v1776, %v1287
  %v1843 = vsel %vm1805, %v1778, %v1289
  %v1845 = vsel %vm1805, %v1780, %v1291
  %v1847 = vsel %vm1805, %v1782, %v1293
  %v1849 = vsel %vm1805, %v1784, %v1295
  %v1851 = vsel %vm1805, %v1786, %v1297
  %v1853 = vsel %vm1805, %v1788, %v1299
  %v1855 = vsel %vm1805, %v1790, %v1301
  %v1857 = vsel %vm1805, %v1792, %v1303
  %v1859 = vsel %vm1805, %v1794, %v1305
  %v1861 = vsel %vm1805, %v1796, %v1307
  %v1863 = vsel %vm1805, %v1798, %v1309
  %v1865 = vsel %vm1805, %v1800, %v1311
  %v1867 = vsel %vm1805, %v1802, %v1313
  %v1869 = vsel %vm1805, %v1804, %v1315
  %vm1870 = vcmask 228352
  %v1872 = vsel %vm1870, %v1807, %v1347
  %v1874 = vsel %vm1870, %v1809, %v1349
  %v1876 = vsel %vm1870, %v1811, %v1351
  %v1878 = vsel %vm1870, %v1813, %v1353
  %v1880 = vsel %vm1870, %v1815, %v1355
  %v1882 = vsel %vm1870, %v1817, %v1357
  %v1884 = vsel %vm1870, %v1819, %v1359
  %v1886 = vsel %vm1870, %v1821, %v1361
  %v1888 = vsel %vm1870, %v1823, %v1363
  %v1890 = vsel %vm1870, %v1825, %v1365
  %v1892 = vsel %vm1870, %v1827, %v1367
  %v1894 = vsel %vm1870, %v1829, %v1369
  %v1896 = vsel %vm1870, %v1831, %v1371
  %v1898 = vsel %vm1870, %v1833, %v1373
  %v1900 = vsel %vm1870, %v1835, %v1375
  %v1902 = vsel %vm1870, %v1837, %v1377
  %v1904 = vsel %vm1870, %v1839, %v1379
  %v1906 = vsel %vm1870, %v1841, %v1381
  %v1908 = vsel %vm1870, %v1843, %v1383
  %v1910 = vsel %vm1870, %v1845, %v1385
  %v1912 = vsel %vm1870, %v1847, %v1387
  %v1914 = vsel %vm1870, %v1849, %v1389
  %v1916 = vsel %vm1870, %v1851, %v1391
  %v1918 = vsel %vm1870, %v1853, %v1393
  %v1920 = vsel %vm1870, %v1855, %v1395
  %v1922 = vsel %vm1870, %v1857, %v1397
  %v1924 = vsel %vm1870, %v1859, %v1399
  %v1926 = vsel %vm1870, %v1861, %v1401
  %v1928 = vsel %vm1870, %v1863, %v1403
  %v1930 = vsel %vm1870, %v1865, %v1405
  %v1932 = vsel %vm1870, %v1867, %v1407
  %v1934 = vsel %vm1870, %v1869, %v1409
  %vm1935 = vcmask 261120
  %v1937 = vsel %vm1935, %v1872, %v1417
  %v1939 = vsel %vm1935, %v1874, %v1419
  %v1941 = vsel %vm1935, %v1876, %v1421
  %v1943 = vsel %vm1935, %v1878, %v1423
  %v1945 = vsel %vm1935, %v1880, %v1425
  %v1947 = vsel %vm1935, %v1882, %v1427
  %v1949 = vsel %vm1935, %v1884, %v1429
  %v1951 = vsel %vm1935, %v1886, %v1431
  %v1953 = vsel %vm1935, %v1888, %v1433
  %v1955 = vsel %vm1935, %v1890, %v1435
  %v1957 = vsel %vm1935, %v1892, %v1437
  %v1959 = vsel %vm1935, %v1894, %v1439
  %v1961 = vsel %vm1935, %v1896, %v1441
  %v1963 = vsel %vm1935, %v1898, %v1443
  %v1965 = vsel %vm1935, %v1900, %v1445
  %v1967 = vsel %vm1935, %v1902, %v1447
  %v1969 = vsel %vm1935, %v1904, %v1449
  %v1971 = vsel %vm1935, %v1906, %v1451
  %v1973 = vsel %vm1935, %v1908, %v1453
  %v1975 = vsel %vm1935, %v1910, %v1455
  %v1977 = vsel %vm1935, %v1912, %v1457
  %v1979 = vsel %vm1935, %v1914, %v1459
  %v1981 = vsel %vm1935, %v1916, %v1461
  %v1983 = vsel %vm1935, %v1918, %v1463
  %v1985 = vsel %vm1935, %v1920, %v1465
  %v1987 = vsel %vm1935, %v1922, %v1467
  %v1989 = vsel %vm1935, %v1924, %v1469
  %v1991 = vsel %vm1935, %v1926, %v1471
  %v1993 = vsel %vm1935, %v1928, %v1473
  %v1995 = vsel %vm1935, %v1930, %v1475
  %v1997 = vsel %vm1935, %v1932, %v1477
  %v1999 = vsel %vm1935, %v1934, %v1479
  %v2000 = vld [vmem:[%s2] sm:$0xf]
  %v2001 = vld [vmem:[%s2 + $0x4] sm:$0xf]
  %v2002 = vld [vmem:[%s2 + $0x8] sm:$0xf]
  %v2003 = vld [vmem:[%s2 + $0xc] sm:$0xf]
  %v2004 = vld [vmem:[%s2 + $0x10] sm:$0x3]
  %v2005 = vld [vmem:[%s3] sm:$0x1]
  %v2007 = vperm.slane %v2005, 0
  %v2014 = vunpack.c.l.b16 %v2000
  %v2015 = vunpack.c.l.b16 %v2001
  %v2016 = vunpack.c.l.b16 %v2002
  %v2017 = vunpack.c.l.b16 %v2003
  %v2018 = vunpack.c.l.b16 %v2004
  %v2019 = vpack.c.b16 %v2015, %v2014
  %v2020 = vpack.c.b16 %v2017, %v2016
  %v2021 = vpack.c.b16 %v2018, %v2018
  %vm2024 = vcmask 293888
  %v2025 = vsel %vm2024, %v1937, 0
  %v2027 = vsel %vm2024, %v1939, 0
  %v2029 = vsel %vm2024, %v1941, 0
  %v2031 = vsel %vm2024, %v1943, 0
  %v2033 = vsel %vm2024, %v1945, 0
  %v2035 = vsel %vm2024, %v1947, 0
  %v2037 = vsel %vm2024, %v1949, 0
  %v2039 = vsel %vm2024, %v1951, 0
  %v2041 = vsel %vm2024, %v1953, 0
  %v2043 = vsel %vm2024, %v1955, 0
  %v2045 = vsel %vm2024, %v1957, 0
  %v2047 = vsel %vm2024, %v1959, 0
  %v2049 = vsel %vm2024, %v1961, 0
  %v2051 = vsel %vm2024, %v1963, 0
  %v2053 = vsel %vm2024, %v1965, 0
  %v2055 = vsel %vm2024, %v1967, 0
  %v2057 = vsel %vm2024, %v1969, 0
  %v2059 = vsel %vm2024, %v1971, 0
  %v2061 = vsel %vm2024, %v1973, 0
  %v2063 = vsel %vm2024, %v1975, 0
  %v2065 = vsel %vm2024, %v1977, 0
  %v2067 = vsel %vm2024, %v1979, 0
  %v2069 = vsel %vm2024, %v1981, 0
  %v2071 = vsel %vm2024, %v1983, 0
  %v2073 = vsel %vm2024, %v1985, 0
  %v2075 = vsel %vm2024, %v1987, 0
  %v2077 = vsel %vm2024, %v1989, 0
  %v2079 = vsel %vm2024, %v1991, 0
  %v2081 = vsel %vm2024, %v1993, 0
  %v2083 = vsel %vm2024, %v1995, 0
  %v2085 = vsel %vm2024, %v1997, 0
  %v2087 = vsel %vm2024, %v1999, 0
  %vm2089 = vcmask 1041408
  %v2091 = vsel %vm2089, %v2021, 0
  %2093 = vmatpush.bf16.msra.mxu0 0
  %2094 = vmatpush.bf16.msra.mxu0 0
  %2095 = vmatpush.bf16.msra.mxu0 0
  %2096 = vmatpush.bf16.msra.mxu0 0
  %2097 = vmatpush.bf16.msra.mxu0 0
  %2098 = vmatpush.bf16.msra.mxu0 %v2091
  %2099 = vmatpush.bf16.msra.mxu0 %v2020
  %2100 = vmatpush.bf16.msra.mxu0 %v2019
  %2101 = vmatmul.bf16.gmra.mxu0 %v2025
  %v2102 = vpop.f32.mrf.mxu0
  %v2103 = vadd.f32 %v2007, %v2102
  %v2104 = vpop.f32.mrf.mxu0
  %v2105 = vadd.f32 %v2007, %v2104
  %2106 = vmatmul.bf16.gmra.mxu0 %v2027
  %v2107 = vpop.f32.mrf.mxu0
  %v2108 = vadd.f32 %v2007, %v2107
  %v2109 = vpop.f32.mrf.mxu0
  %v2110 = vadd.f32 %v2007, %v2109
  %2111 = vmatmul.bf16.gmra.mxu0 %v2029
  %v2112 = vpop.f32.mrf.mxu0
  %v2113 = vadd.f32 %v2007, %v2112
  %v2114 = vpop.f32.mrf.mxu0
  %v2115 = vadd.f32 %v2007, %v2114
  %2116 = vmatmul.bf16.gmra.mxu0 %v2031
  %v2117 = vpop.f32.mrf.mxu0
  %v2118 = vadd.f32 %v2007, %v2117
  %v2119 = vpop.f32.mrf.mxu0
  %v2120 = vadd.f32 %v2007, %v2119
  %2121 = vmatmul.bf16.gmra.mxu0 %v2033
  %v2122 = vpop.f32.mrf.mxu0
  %v2123 = vadd.f32 %v2007, %v2122
  %v2124 = vpop.f32.mrf.mxu0
  %v2125 = vadd.f32 %v2007, %v2124
  %2126 = vmatmul.bf16.gmra.mxu0 %v2035
  %v2127 = vpop.f32.mrf.mxu0
  %v2128 = vadd.f32 %v2007, %v2127
  %v2129 = vpop.f32.mrf.mxu0
  %v2130 = vadd.f32 %v2007, %v2129
  %2131 = vmatmul.bf16.gmra.mxu0 %v2037
  %v2132 = vpop.f32.mrf.mxu0
  %v2133 = vadd.f32 %v2007, %v2132
  %v2134 = vpop.f32.mrf.mxu0
  %v2135 = vadd.f32 %v2007, %v2134
  %2136 = vmatmul.bf16.gmra.mxu0 %v2039
  %v2137 = vpop.f32.mrf.mxu0
  %v2138 = vadd.f32 %v2007, %v2137
  %v2139 = vpop.f32.mrf.mxu0
  %v2140 = vadd.f32 %v2007, %v2139
  %2141 = vmatmul.bf16.gmra.mxu0 %v2041
  %v2142 = vpop.f32.mrf.mxu0
  %v2143 = vadd.f32 %v2007, %v2142
  %v2144 = vpop.f32.mrf.mxu0
  %v2145 = vadd.f32 %v2007, %v2144
  %2146 = vmatmul.bf16.gmra.mxu0 %v2043
  %v2147 = vpop.f32.mrf.mxu0
  %v2148 = vadd.f32 %v2007, %v2147
  %v2149 = vpop.f32.mrf.mxu0
  %v2150 = vadd.f32 %v2007, %v2149
  %2151 = vmatmul.bf16.gmra.mxu0 %v2045
  %v2152 = vpop.f32.mrf.mxu0
  %v2153 = vadd.f32 %v2007, %v2152
  %v2154 = vpop.f32.mrf.mxu0
  %v2155 = vadd.f32 %v2007, %v2154
  %2156 = vmatmul.bf16.gmra.mxu0 %v2047
  %v2157 = vpop.f32.mrf.mxu0
  %v2158 = vadd.f32 %v2007, %v2157
  %v2159 = vpop.f32.mrf.mxu0
  %v2160 = vadd.f32 %v2007, %v2159
  %2161 = vmatmul.bf16.gmra.mxu0 %v2049
  %v2162 = vpop.f32.mrf.mxu0
  %v2163 = vadd.f32 %v2007, %v2162
  %v2164 = vpop.f32.mrf.mxu0
  %v2165 = vadd.f32 %v2007, %v2164
  %2166 = vmatmul.bf16.gmra.mxu0 %v2051
  %v2167 = vpop.f32.mrf.mxu0
  %v2168 = vadd.f32 %v2007, %v2167
  %v2169 = vpop.f32.mrf.mxu0
  %v2170 = vadd.f32 %v2007, %v2169
  %2171 = vmatmul.bf16.gmra.mxu0 %v2053
  %v2172 = vpop.f32.mrf.mxu0
  %v2173 = vadd.f32 %v2007, %v2172
  %v2174 = vpop.f32.mrf.mxu0
  %v2175 = vadd.f32 %v2007, %v2174
  %2176 = vmatmul.bf16.gmra.mxu0 %v2055
  %v2177 = vpop.f32.mrf.mxu0
  %v2178 = vadd.f32 %v2007, %v2177
  %v2179 = vpop.f32.mrf.mxu0
  %v2180 = vadd.f32 %v2007, %v2179
  %2181 = vmatmul.bf16.gmra.mxu0 %v2057
  %v2182 = vpop.f32.mrf.mxu0
  %v2183 = vadd.f32 %v2007, %v2182
  %v2184 = vpop.f32.mrf.mxu0
  %v2185 = vadd.f32 %v2007, %v2184
  %2186 = vmatmul.bf16.gmra.mxu0 %v2059
  %v2187 = vpop.f32.mrf.mxu0
  %v2188 = vadd.f32 %v2007, %v2187
  %v2189 = vpop.f32.mrf.mxu0
  %v2190 = vadd.f32 %v2007, %v2189
  %2191 = vmatmul.bf16.gmra.mxu0 %v2061
  %v2192 = vpop.f32.mrf.mxu0
  %v2193 = vadd.f32 %v2007, %v2192
  %v2194 = vpop.f32.mrf.mxu0
  %v2195 = vadd.f32 %v2007, %v2194
  %2196 = vmatmul.bf16.gmra.mxu0 %v2063
  %v2197 = vpop.f32.mrf.mxu0
  %v2198 = vadd.f32 %v2007, %v2197
  %v2199 = vpop.f32.mrf.mxu0
  %v2200 = vadd.f32 %v2007, %v2199
  %2201 = vmatmul.bf16.gmra.mxu0 %v2065
  %v2202 = vpop.f32.mrf.mxu0
  %v2203 = vadd.f32 %v2007, %v2202
  %v2204 = vpop.f32.mrf.mxu0
  %v2205 = vadd.f32 %v2007, %v2204
  %2206 = vmatmul.bf16.gmra.mxu0 %v2067
  %v2207 = vpop.f32.mrf.mxu0
  %v2208 = vadd.f32 %v2007, %v2207
  %v2209 = vpop.f32.mrf.mxu0
  %v2210 = vadd.f32 %v2007, %v2209
  %2211 = vmatmul.bf16.gmra.mxu0 %v2069
  %v2212 = vpop.f32.mrf.mxu0
  %v2213 = vadd.f32 %v2007, %v2212
  %v2214 = vpop.f32.mrf.mxu0
  %v2215 = vadd.f32 %v2007, %v2214
  %2216 = vmatmul.bf16.gmra.mxu0 %v2071
  %v2217 = vpop.f32.mrf.mxu0
  %v2218 = vadd.f32 %v2007, %v2217
  %v2219 = vpop.f32.mrf.mxu0
  %v2220 = vadd.f32 %v2007, %v2219
  %2221 = vmatmul.bf16.gmra.mxu0 %v2073
  %v2222 = vpop.f32.mrf.mxu0
  %v2223 = vadd.f32 %v2007, %v2222
  %v2224 = vpop.f32.mrf.mxu0
  %v2225 = vadd.f32 %v2007, %v2224
  %2226 = vmatmul.bf16.gmra.mxu0 %v2075
  %v2227 = vpop.f32.mrf.mxu0
  %v2228 = vadd.f32 %v2007, %v2227
  %v2229 = vpop.f32.mrf.mxu0
  %v2230 = vadd.f32 %v2007, %v2229
  %2231 = vmatmul.bf16.gmra.mxu0 %v2077
  %v2232 = vpop.f32.mrf.mxu0
  %v2233 = vadd.f32 %v2007, %v2232
  %v2234 = vpop.f32.mrf.mxu0
  %v2235 = vadd.f32 %v2007, %v2234
  %2236 = vmatmul.bf16.gmra.mxu0 %v2079
  %v2237 = vpop.f32.mrf.mxu0
  %v2238 = vadd.f32 %v2007, %v2237
  %v2239 = vpop.f32.mrf.mxu0
  %v2240 = vadd.f32 %v2007, %v2239
  %2241 = vmatmul.bf16.gmra.mxu0 %v2081
  %v2242 = vpop.f32.mrf.mxu0
  %v2243 = vadd.f32 %v2007, %v2242
  %v2244 = vpop.f32.mrf.mxu0
  %v2245 = vadd.f32 %v2007, %v2244
  %2246 = vmatmul.bf16.gmra.mxu0 %v2083
  %v2247 = vpop.f32.mrf.mxu0
  %v2248 = vadd.f32 %v2007, %v2247
  %v2249 = vpop.f32.mrf.mxu0
  %v2250 = vadd.f32 %v2007, %v2249
  %2251 = vmatmul.bf16.gmra.mxu0 %v2085
  %v2252 = vpop.f32.mrf.mxu0
  %v2253 = vadd.f32 %v2007, %v2252
  %v2254 = vpop.f32.mrf.mxu0
  %v2255 = vadd.f32 %v2007, %v2254
  %2256 = vmatmul.bf16.gmra.mxu0 %v2087
  %v2257 = vpop.f32.mrf.mxu0
  %v2258 = vadd.f32 %v2007, %v2257
  %v2259 = vpop.f32.mrf.mxu0
  %v2260 = vadd.f32 %v2007, %v2259
  %2261 = vdwg.mxu0
  %v2262 = vsel %vm1545, %v2103, 0.0
  %v2263 = vsel %vm1545, %v2105, 0.0
  %v2264 = vadd.f32 %v2262, %v2263
  %v2265 = vsel %vm1545, %v2108, 0.0
  %v2266 = vadd.f32 %v2264, %v2265
  %v2267 = vsel %vm1545, %v2110, 0.0
  %v2268 = vadd.f32 %v2266, %v2267
  %v2269 = vsel %vm1545, %v2113, 0.0
  %v2270 = vadd.f32 %v2268, %v2269
  %v2271 = vsel %vm1545, %v2115, 0.0
  %v2272 = vadd.f32 %v2270, %v2271
  %v2273 = vsel %vm1545, %v2118, 0.0
  %v2274 = vadd.f32 %v2272, %v2273
  %v2275 = vsel %vm1545, %v2120, 0.0
  %v2276 = vadd.f32 %v2274, %v2275
  %v2277 = vsel %vm1545, %v2123, 0.0
  %v2278 = vadd.f32 %v2276, %v2277
  %v2279 = vsel %vm1545, %v2125, 0.0
  %v2280 = vadd.f32 %v2278, %v2279
  %v2281 = vsel %vm1545, %v2128, 0.0
  %v2282 = vadd.f32 %v2280, %v2281
  %v2283 = vsel %vm1545, %v2130, 0.0
  %v2284 = vadd.f32 %v2282, %v2283
  %v2285 = vsel %vm1545, %v2133, 0.0
  %v2286 = vadd.f32 %v2284, %v2285
  %v2287 = vsel %vm1545, %v2135, 0.0
  %v2288 = vadd.f32 %v2286, %v2287
  %v2289 = vsel %vm1545, %v2138, 0.0
  %v2290 = vadd.f32 %v2288, %v2289
  %v2291 = vsel %vm1545, %v2140, 0.0
  %v2292 = vadd.f32 %v2290, %v2291
  %v2293 = vsel %vm1545, %v2143, 0.0
  %v2294 = vadd.f32 %v2292, %v2293
  %v2295 = vsel %vm1545, %v2145, 0.0
  %v2296 = vadd.f32 %v2294, %v2295
  %v2297 = vsel %vm1545, %v2148, 0.0
  %v2298 = vadd.f32 %v2296, %v2297
  %v2299 = vsel %vm1545, %v2150, 0.0
  %v2300 = vadd.f32 %v2298, %v2299
  %v2301 = vsel %vm1545, %v2153, 0.0
  %v2302 = vadd.f32 %v2300, %v2301
  %v2303 = vsel %vm1545, %v2155, 0.0
  %v2304 = vadd.f32 %v2302, %v2303
  %v2305 = vsel %vm1545, %v2158, 0.0
  %v2306 = vadd.f32 %v2304, %v2305
  %v2307 = vsel %vm1545, %v2160, 0.0
  %v2308 = vadd.f32 %v2306, %v2307
  %v2309 = vsel %vm1545, %v2163, 0.0
  %v2310 = vadd.f32 %v2308, %v2309
  %v2311 = vsel %vm1545, %v2165, 0.0
  %v2312 = vadd.f32 %v2310, %v2311
  %v2313 = vsel %vm1545, %v2168, 0.0
  %v2314 = vadd.f32 %v2312, %v2313
  %v2315 = vsel %vm1545, %v2170, 0.0
  %v2316 = vadd.f32 %v2314, %v2315
  %v2317 = vsel %vm1545, %v2173, 0.0
  %v2318 = vadd.f32 %v2316, %v2317
  %v2319 = vsel %vm1545, %v2175, 0.0
  %v2320 = vadd.f32 %v2318, %v2319
  %v2321 = vsel %vm1545, %v2178, 0.0
  %v2322 = vadd.f32 %v2320, %v2321
  %v2323 = vsel %vm1545, %v2180, 0.0
  %v2324 = vadd.f32 %v2322, %v2323
  %v2325 = vsel %vm1545, %v2183, 0.0
  %v2326 = vadd.f32 %v2324, %v2325
  %v2327 = vsel %vm1545, %v2185, 0.0
  %v2328 = vadd.f32 %v2326, %v2327
  %v2329 = vsel %vm1545, %v2188, 0.0
  %v2330 = vadd.f32 %v2328, %v2329
  %v2331 = vsel %vm1545, %v2190, 0.0
  %v2332 = vadd.f32 %v2330, %v2331
  %v2333 = vsel %vm1545, %v2193, 0.0
  %v2334 = vadd.f32 %v2332, %v2333
  %v2335 = vsel %vm1545, %v2195, 0.0
  %v2336 = vadd.f32 %v2334, %v2335
  %v2337 = vsel %vm1545, %v2198, 0.0
  %v2338 = vadd.f32 %v2336, %v2337
  %v2339 = vsel %vm1545, %v2200, 0.0
  %v2340 = vadd.f32 %v2338, %v2339
  %v2341 = vsel %vm1545, %v2203, 0.0
  %v2342 = vadd.f32 %v2340, %v2341
  %v2343 = vsel %vm1545, %v2205, 0.0
  %v2344 = vadd.f32 %v2342, %v2343
  %v2345 = vsel %vm1545, %v2208, 0.0
  %v2346 = vadd.f32 %v2344, %v2345
  %v2347 = vsel %vm1545, %v2210, 0.0
  %v2348 = vadd.f32 %v2346, %v2347
  %v2349 = vsel %vm1545, %v2213, 0.0
  %v2350 = vadd.f32 %v2348, %v2349
  %v2351 = vsel %vm1545, %v2215, 0.0
  %v2352 = vadd.f32 %v2350, %v2351
  %v2353 = vsel %vm1545, %v2218, 0.0
  %v2354 = vadd.f32 %v2352, %v2353
  %v2355 = vsel %vm1545, %v2220, 0.0
  %v2356 = vadd.f32 %v2354, %v2355
  %v2357 = vsel %vm1545, %v2223, 0.0
  %v2358 = vadd.f32 %v2356, %v2357
  %v2359 = vsel %vm1545, %v2225, 0.0
  %v2360 = vadd.f32 %v2358, %v2359
  %v2361 = vsel %vm1545, %v2228, 0.0
  %v2362 = vadd.f32 %v2360, %v2361
  %v2363 = vsel %vm1545, %v2230, 0.0
  %v2364 = vadd.f32 %v2362, %v2363
  %v2365 = vsel %vm1545, %v2233, 0.0
  %v2366 = vadd.f32 %v2364, %v2365
  %v2367 = vsel %vm1545, %v2235, 0.0
  %v2368 = vadd.f32 %v2366, %v2367
  %v2369 = vsel %vm1545, %v2238, 0.0
  %v2370 = vadd.f32 %v2368, %v2369
  %v2371 = vsel %vm1545, %v2240, 0.0
  %v2372 = vadd.f32 %v2370, %v2371
  %v2373 = vsel %vm1545, %v2243, 0.0
  %v2374 = vadd.f32 %v2372, %v2373
  %v2375 = vsel %vm1545, %v2245, 0.0
  %v2376 = vadd.f32 %v2374, %v2375
  %v2377 = vsel %vm1545, %v2248, 0.0
  %v2378 = vadd.f32 %v2376, %v2377
  %v2379 = vsel %vm1545, %v2250, 0.0
  %v2380 = vadd.f32 %v2378, %v2379
  %v2381 = vsel %vm1545, %v2253, 0.0
  %v2382 = vadd.f32 %v2380, %v2381
  %v2383 = vsel %vm1545, %v2255, 0.0
  %v2384 = vadd.f32 %v2382, %v2383
  %v2385 = vsel %vm1545, %v2258, 0.0
  %v2386 = vadd.f32 %v2384, %v2385
  %v2387 = vsel %vm1545, %v2260, 0.0
  %v2388 = vadd.f32 %v2386, %v2387
  %v2389 = vrot.slane %v2388, 4
  %v2390 = vadd.f32 %v2388, %v2389
  %v2391 = vrot.slane %v2390, 2
  %v2392 = vadd.f32 %v2390, %v2391
  %v2393 = vrot.slane %v2392, 1
  %v2394 = vadd.f32 %v2392, %v2393
  %vm2395 = vcmask 57344
  %2396 = vst.msk [vmem:[%s8] sm:$0x1] %vm2395, %v2394
  %v2397 = vmul.f32 %v2103, %v2103
  %v2398 = vmul.f32 %v2105, %v2105
  %v2399 = vmul.f32 %v2108, %v2108
  %v2400 = vmul.f32 %v2110, %v2110
  %v2401 = vmul.f32 %v2113, %v2113
  %v2402 = vmul.f32 %v2115, %v2115
  %v2403 = vmul.f32 %v2118, %v2118
  %v2404 = vmul.f32 %v2120, %v2120
  %v2405 = vmul.f32 %v2123, %v2123
  %v2406 = vmul.f32 %v2125, %v2125
  %v2407 = vmul.f32 %v2128, %v2128
  %v2408 = vmul.f32 %v2130, %v2130
  %v2409 = vmul.f32 %v2133, %v2133
  %v2410 = vmul.f32 %v2135, %v2135
  %v2411 = vmul.f32 %v2138, %v2138
  %v2412 = vmul.f32 %v2140, %v2140
  %v2413 = vmul.f32 %v2143, %v2143
  %v2414 = vmul.f32 %v2145, %v2145
  %v2415 = vmul.f32 %v2148, %v2148
  %v2416 = vmul.f32 %v2150, %v2150
  %v2417 = vmul.f32 %v2153, %v2153
  %v2418 = vmul.f32 %v2155, %v2155
  %v2419 = vmul.f32 %v2158, %v2158
  %v2420 = vmul.f32 %v2160, %v2160
  %v2421 = vmul.f32 %v2163, %v2163
  %v2422 = vmul.f32 %v2165, %v2165
  %v2423 = vmul.f32 %v2168, %v2168
  %v2424 = vmul.f32 %v2170, %v2170
  %v2425 = vmul.f32 %v2173, %v2173
  %v2426 = vmul.f32 %v2175, %v2175
  %v2427 = vmul.f32 %v2178, %v2178
  %v2428 = vmul.f32 %v2180, %v2180
  %v2429 = vmul.f32 %v2183, %v2183
  %v2430 = vmul.f32 %v2185, %v2185
  %v2431 = vmul.f32 %v2188, %v2188
  %v2432 = vmul.f32 %v2190, %v2190
  %v2433 = vmul.f32 %v2193, %v2193
  %v2434 = vmul.f32 %v2195, %v2195
  %v2435 = vmul.f32 %v2198, %v2198
  %v2436 = vmul.f32 %v2200, %v2200
  %v2437 = vmul.f32 %v2203, %v2203
  %v2438 = vmul.f32 %v2205, %v2205
  %v2439 = vmul.f32 %v2208, %v2208
  %v2440 = vmul.f32 %v2210, %v2210
  %v2441 = vmul.f32 %v2213, %v2213
  %v2442 = vmul.f32 %v2215, %v2215
  %v2443 = vmul.f32 %v2218, %v2218
  %v2444 = vmul.f32 %v2220, %v2220
  %v2445 = vmul.f32 %v2223, %v2223
  %v2446 = vmul.f32 %v2225, %v2225
  %v2447 = vmul.f32 %v2228, %v2228
  %v2448 = vmul.f32 %v2230, %v2230
  %v2449 = vmul.f32 %v2233, %v2233
  %v2450 = vmul.f32 %v2235, %v2235
  %v2451 = vmul.f32 %v2238, %v2238
  %v2452 = vmul.f32 %v2240, %v2240
  %v2453 = vmul.f32 %v2243, %v2243
  %v2454 = vmul.f32 %v2245, %v2245
  %v2455 = vmul.f32 %v2248, %v2248
  %v2456 = vmul.f32 %v2250, %v2250
  %v2457 = vmul.f32 %v2253, %v2253
  %v2458 = vmul.f32 %v2255, %v2255
  %v2459 = vmul.f32 %v2258, %v2258
  %v2460 = vmul.f32 %v2260, %v2260
  %v2461 = vsel %vm1545, %v2397, 0.0
  %v2462 = vsel %vm1545, %v2398, 0.0
  %v2463 = vadd.f32 %v2461, %v2462
  %v2464 = vsel %vm1545, %v2399, 0.0
  %v2465 = vadd.f32 %v2463, %v2464
  %v2466 = vsel %vm1545, %v2400, 0.0
  %v2467 = vadd.f32 %v2465, %v2466
  %v2468 = vsel %vm1545, %v2401, 0.0
  %v2469 = vadd.f32 %v2467, %v2468
  %v2470 = vsel %vm1545, %v2402, 0.0
  %v2471 = vadd.f32 %v2469, %v2470
  %v2472 = vsel %vm1545, %v2403, 0.0
  %v2473 = vadd.f32 %v2471, %v2472
  %v2474 = vsel %vm1545, %v2404, 0.0
  %v2475 = vadd.f32 %v2473, %v2474
  %v2476 = vsel %vm1545, %v2405, 0.0
  %v2477 = vadd.f32 %v2475, %v2476
  %v2478 = vsel %vm1545, %v2406, 0.0
  %v2479 = vadd.f32 %v2477, %v2478
  %v2480 = vsel %vm1545, %v2407, 0.0
  %v2481 = vadd.f32 %v2479, %v2480
  %v2482 = vsel %vm1545, %v2408, 0.0
  %v2483 = vadd.f32 %v2481, %v2482
  %v2484 = vsel %vm1545, %v2409, 0.0
  %v2485 = vadd.f32 %v2483, %v2484
  %v2486 = vsel %vm1545, %v2410, 0.0
  %v2487 = vadd.f32 %v2485, %v2486
  %v2488 = vsel %vm1545, %v2411, 0.0
  %v2489 = vadd.f32 %v2487, %v2488
  %v2490 = vsel %vm1545, %v2412, 0.0
  %v2491 = vadd.f32 %v2489, %v2490
  %v2492 = vsel %vm1545, %v2413, 0.0
  %v2493 = vadd.f32 %v2491, %v2492
  %v2494 = vsel %vm1545, %v2414, 0.0
  %v2495 = vadd.f32 %v2493, %v2494
  %v2496 = vsel %vm1545, %v2415, 0.0
  %v2497 = vadd.f32 %v2495, %v2496
  %v2498 = vsel %vm1545, %v2416, 0.0
  %v2499 = vadd.f32 %v2497, %v2498
  %v2500 = vsel %vm1545, %v2417, 0.0
  %v2501 = vadd.f32 %v2499, %v2500
  %v2502 = vsel %vm1545, %v2418, 0.0
  %v2503 = vadd.f32 %v2501, %v2502
  %v2504 = vsel %vm1545, %v2419, 0.0
  %v2505 = vadd.f32 %v2503, %v2504
  %v2506 = vsel %vm1545, %v2420, 0.0
  %v2507 = vadd.f32 %v2505, %v2506
  %v2508 = vsel %vm1545, %v2421, 0.0
  %v2509 = vadd.f32 %v2507, %v2508
  %v2510 = vsel %vm1545, %v2422, 0.0
  %v2511 = vadd.f32 %v2509, %v2510
  %v2512 = vsel %vm1545, %v2423, 0.0
  %v2513 = vadd.f32 %v2511, %v2512
  %v2514 = vsel %vm1545, %v2424, 0.0
  %v2515 = vadd.f32 %v2513, %v2514
  %v2516 = vsel %vm1545, %v2425, 0.0
  %v2517 = vadd.f32 %v2515, %v2516
  %v2518 = vsel %vm1545, %v2426, 0.0
  %v2519 = vadd.f32 %v2517, %v2518
  %v2520 = vsel %vm1545, %v2427, 0.0
  %v2521 = vadd.f32 %v2519, %v2520
  %v2522 = vsel %vm1545, %v2428, 0.0
  %v2523 = vadd.f32 %v2521, %v2522
  %v2524 = vsel %vm1545, %v2429, 0.0
  %v2525 = vadd.f32 %v2523, %v2524
  %v2526 = vsel %vm1545, %v2430, 0.0
  %v2527 = vadd.f32 %v2525, %v2526
  %v2528 = vsel %vm1545, %v2431, 0.0
  %v2529 = vadd.f32 %v2527, %v2528
  %v2530 = vsel %vm1545, %v2432, 0.0
  %v2531 = vadd.f32 %v2529, %v2530
  %v2532 = vsel %vm1545, %v2433, 0.0
  %v2533 = vadd.f32 %v2531, %v2532
  %v2534 = vsel %vm1545, %v2434, 0.0
  %v2535 = vadd.f32 %v2533, %v2534
  %v2536 = vsel %vm1545, %v2435, 0.0
  %v2537 = vadd.f32 %v2535, %v2536
  %v2538 = vsel %vm1545, %v2436, 0.0
  %v2539 = vadd.f32 %v2537, %v2538
  %v2540 = vsel %vm1545, %v2437, 0.0
  %v2541 = vadd.f32 %v2539, %v2540
  %v2542 = vsel %vm1545, %v2438, 0.0
  %v2543 = vadd.f32 %v2541, %v2542
  %v2544 = vsel %vm1545, %v2439, 0.0
  %v2545 = vadd.f32 %v2543, %v2544
  %v2546 = vsel %vm1545, %v2440, 0.0
  %v2547 = vadd.f32 %v2545, %v2546
  %v2548 = vsel %vm1545, %v2441, 0.0
  %v2549 = vadd.f32 %v2547, %v2548
  %v2550 = vsel %vm1545, %v2442, 0.0
  %v2551 = vadd.f32 %v2549, %v2550
  %v2552 = vsel %vm1545, %v2443, 0.0
  %v2553 = vadd.f32 %v2551, %v2552
  %v2554 = vsel %vm1545, %v2444, 0.0
  %v2555 = vadd.f32 %v2553, %v2554
  %v2556 = vsel %vm1545, %v2445, 0.0
  %v2557 = vadd.f32 %v2555, %v2556
  %v2558 = vsel %vm1545, %v2446, 0.0
  %v2559 = vadd.f32 %v2557, %v2558
  %v2560 = vsel %vm1545, %v2447, 0.0
  %v2561 = vadd.f32 %v2559, %v2560
  %v2562 = vsel %vm1545, %v2448, 0.0
  %v2563 = vadd.f32 %v2561, %v2562
  %v2564 = vsel %vm1545, %v2449, 0.0
  %v2565 = vadd.f32 %v2563, %v2564
  %v2566 = vsel %vm1545, %v2450, 0.0
  %v2567 = vadd.f32 %v2565, %v2566
  %v2568 = vsel %vm1545, %v2451, 0.0
  %v2569 = vadd.f32 %v2567, %v2568
  %v2570 = vsel %vm1545, %v2452, 0.0
  %v2571 = vadd.f32 %v2569, %v2570
  %v2572 = vsel %vm1545, %v2453, 0.0
  %v2573 = vadd.f32 %v2571, %v2572
  %v2574 = vsel %vm1545, %v2454, 0.0
  %v2575 = vadd.f32 %v2573, %v2574
  %v2576 = vsel %vm1545, %v2455, 0.0
  %v2577 = vadd.f32 %v2575, %v2576
  %v2578 = vsel %vm1545, %v2456, 0.0
  %v2579 = vadd.f32 %v2577, %v2578
  %v2580 = vsel %vm1545, %v2457, 0.0
  %v2581 = vadd.f32 %v2579, %v2580
  %v2582 = vsel %vm1545, %v2458, 0.0
  %v2583 = vadd.f32 %v2581, %v2582
  %v2584 = vsel %vm1545, %v2459, 0.0
  %v2585 = vadd.f32 %v2583, %v2584
  %v2586 = vsel %vm1545, %v2460, 0.0
  %v2587 = vadd.f32 %v2585, %v2586
  %v2588 = vrot.slane %v2587, 4
  %v2589 = vadd.f32 %v2587, %v2588
  %v2590 = vrot.slane %v2589, 2
  %v2591 = vadd.f32 %v2589, %v2590
  %v2592 = vrot.slane %v2591, 1
  %v2593 = vadd.f32 %v2591, %v2592
  %2594 = vst.msk [vmem:[%s9] sm:$0x1] %vm2395, %v2593
  %v2595 = vpack.c.bf16 %v2103, %v2103
  %v2596 = vpack.c.bf16 %v2105, %v2105
  %v2597 = vpack.c.bf16 %v2108, %v2108
  %v2598 = vpack.c.bf16 %v2110, %v2110
  %v2599 = vpack.c.bf16 %v2113, %v2113
  %v2600 = vpack.c.bf16 %v2115, %v2115
  %v2601 = vpack.c.bf16 %v2118, %v2118
  %v2602 = vpack.c.bf16 %v2120, %v2120
  %v2603 = vpack.c.bf16 %v2123, %v2123
  %v2604 = vpack.c.bf16 %v2125, %v2125
  %v2605 = vpack.c.bf16 %v2128, %v2128
  %v2606 = vpack.c.bf16 %v2130, %v2130
  %v2607 = vpack.c.bf16 %v2133, %v2133
  %v2608 = vpack.c.bf16 %v2135, %v2135
  %v2609 = vpack.c.bf16 %v2138, %v2138
  %v2610 = vpack.c.bf16 %v2140, %v2140
  %v2611 = vpack.c.bf16 %v2143, %v2143
  %v2612 = vpack.c.bf16 %v2145, %v2145
  %v2613 = vpack.c.bf16 %v2148, %v2148
  %v2614 = vpack.c.bf16 %v2150, %v2150
  %v2615 = vpack.c.bf16 %v2153, %v2153
  %v2616 = vpack.c.bf16 %v2155, %v2155
  %v2617 = vpack.c.bf16 %v2158, %v2158
  %v2618 = vpack.c.bf16 %v2160, %v2160
  %v2619 = vpack.c.bf16 %v2163, %v2163
  %v2620 = vpack.c.bf16 %v2165, %v2165
  %v2621 = vpack.c.bf16 %v2168, %v2168
  %v2622 = vpack.c.bf16 %v2170, %v2170
  %v2623 = vpack.c.bf16 %v2173, %v2173
  %v2624 = vpack.c.bf16 %v2175, %v2175
  %v2625 = vpack.c.bf16 %v2178, %v2178
  %v2626 = vpack.c.bf16 %v2180, %v2180
  %v2627 = vpack.c.bf16 %v2183, %v2183
  %v2628 = vpack.c.bf16 %v2185, %v2185
  %v2629 = vpack.c.bf16 %v2188, %v2188
  %v2630 = vpack.c.bf16 %v2190, %v2190
  %v2631 = vpack.c.bf16 %v2193, %v2193
  %v2632 = vpack.c.bf16 %v2195, %v2195
  %v2633 = vpack.c.bf16 %v2198, %v2198
  %v2634 = vpack.c.bf16 %v2200, %v2200
  %v2635 = vpack.c.bf16 %v2203, %v2203
  %v2636 = vpack.c.bf16 %v2205, %v2205
  %v2637 = vpack.c.bf16 %v2208, %v2208
  %v2638 = vpack.c.bf16 %v2210, %v2210
  %v2639 = vpack.c.bf16 %v2213, %v2213
  %v2640 = vpack.c.bf16 %v2215, %v2215
  %v2641 = vpack.c.bf16 %v2218, %v2218
  %v2642 = vpack.c.bf16 %v2220, %v2220
  %v2643 = vpack.c.bf16 %v2223, %v2223
  %v2644 = vpack.c.bf16 %v2225, %v2225
  %v2645 = vpack.c.bf16 %v2228, %v2228
  %v2646 = vpack.c.bf16 %v2230, %v2230
  %v2647 = vpack.c.bf16 %v2233, %v2233
  %v2648 = vpack.c.bf16 %v2235, %v2235
  %v2649 = vpack.c.bf16 %v2238, %v2238
  %v2650 = vpack.c.bf16 %v2240, %v2240
  %v2651 = vpack.c.bf16 %v2243, %v2243
  %v2652 = vpack.c.bf16 %v2245, %v2245
  %v2653 = vpack.c.bf16 %v2248, %v2248
  %v2654 = vpack.c.bf16 %v2250, %v2250
  %v2655 = vpack.c.bf16 %v2253, %v2253
  %v2656 = vpack.c.bf16 %v2255, %v2255
  %v2657 = vpack.c.bf16 %v2258, %v2258
  %v2658 = vpack.c.bf16 %v2260, %v2260
  %vm2659 = vcmask 60416
  %2660 = vst.msk [vmem:[%s6] sm:$0xf] %vm2659, %v2595
  %2661 = vst.msk [vmem:[%s6 + $0x4] sm:$0xf] %vm2659, %v2596
  %2662 = vst.msk [vmem:[%s6 + $0x8] sm:$0xf] %vm2659, %v2597
  %2663 = vst.msk [vmem:[%s6 + $0xc] sm:$0xf] %vm2659, %v2598
  %2664 = vst.msk [vmem:[%s6 + $0x10] sm:$0xf] %vm2659, %v2599
  %2665 = vst.msk [vmem:[%s6 + $0x14] sm:$0xf] %vm2659, %v2600
  %2666 = vst.msk [vmem:[%s6 + $0x18] sm:$0xf] %vm2659, %v2601
  %2667 = vst.msk [vmem:[%s6 + $0x1c] sm:$0xf] %vm2659, %v2602
  %2668 = vst.msk [vmem:[%s6 + $0x20] sm:$0xf] %vm2659, %v2603
  %2669 = vst.msk [vmem:[%s6 + $0x24] sm:$0xf] %vm2659, %v2604
  %2670 = vst.msk [vmem:[%s6 + $0x28] sm:$0xf] %vm2659, %v2605
  %2671 = vst.msk [vmem:[%s6 + $0x2c] sm:$0xf] %vm2659, %v2606
  %2672 = vst.msk [vmem:[%s6 + $0x30] sm:$0xf] %vm2659, %v2607
  %2673 = vst.msk [vmem:[%s6 + $0x34] sm:$0xf] %vm2659, %v2608
  %2674 = vst.msk [vmem:[%s6 + $0x38] sm:$0xf] %vm2659, %v2609
  %2675 = vst.msk [vmem:[%s6 + $0x3c] sm:$0xf] %vm2659, %v2610
  %2676 = vst.msk [vmem:[%s6 + $0x40] sm:$0xf] %vm2659, %v2611
  %2677 = vst.msk [vmem:[%s6 + $0x44] sm:$0xf] %vm2659, %v2612
  %2678 = vst.msk [vmem:[%s6 + $0x48] sm:$0xf] %vm2659, %v2613
  %2679 = vst.msk [vmem:[%s6 + $0x4c] sm:$0xf] %vm2659, %v2614
  %2680 = vst.msk [vmem:[%s6 + $0x50] sm:$0xf] %vm2659, %v2615
  %2681 = vst.msk [vmem:[%s6 + $0x54] sm:$0xf] %vm2659, %v2616
  %2682 = vst.msk [vmem:[%s6 + $0x58] sm:$0xf] %vm2659, %v2617
  %2683 = vst.msk [vmem:[%s6 + $0x5c] sm:$0xf] %vm2659, %v2618
  %2684 = vst.msk [vmem:[%s6 + $0x60] sm:$0xf] %vm2659, %v2619
  %2685 = vst.msk [vmem:[%s6 + $0x64] sm:$0xf] %vm2659, %v2620
  %2686 = vst.msk [vmem:[%s6 + $0x68] sm:$0xf] %vm2659, %v2621
  %2687 = vst.msk [vmem:[%s6 + $0x6c] sm:$0xf] %vm2659, %v2622
  %2688 = vst.msk [vmem:[%s6 + $0x70] sm:$0xf] %vm2659, %v2623
  %2689 = vst.msk [vmem:[%s6 + $0x74] sm:$0xf] %vm2659, %v2624
  %2690 = vst.msk [vmem:[%s6 + $0x78] sm:$0xf] %vm2659, %v2625
  %2691 = vst.msk [vmem:[%s6 + $0x7c] sm:$0xf] %vm2659, %v2626
  %2692 = vst.msk [vmem:[%s6 + $0x80] sm:$0xf] %vm2659, %v2627
  %2693 = vst.msk [vmem:[%s6 + $0x84] sm:$0xf] %vm2659, %v2628
  %2694 = vst.msk [vmem:[%s6 + $0x88] sm:$0xf] %vm2659, %v2629
  %2695 = vst.msk [vmem:[%s6 + $0x8c] sm:$0xf] %vm2659, %v2630
  %2696 = vst.msk [vmem:[%s6 + $0x90] sm:$0xf] %vm2659, %v2631
  %2697 = vst.msk [vmem:[%s6 + $0x94] sm:$0xf] %vm2659, %v2632
  %2698 = vst.msk [vmem:[%s6 + $0x98] sm:$0xf] %vm2659, %v2633
  %2699 = vst.msk [vmem:[%s6 + $0x9c] sm:$0xf] %vm2659, %v2634
  %2700 = vst.msk [vmem:[%s6 + $0xa0] sm:$0xf] %vm2659, %v2635
  %2701 = vst.msk [vmem:[%s6 + $0xa4] sm:$0xf] %vm2659, %v2636
  %2702 = vst.msk [vmem:[%s6 + $0xa8] sm:$0xf] %vm2659, %v2637
  %2703 = vst.msk [vmem:[%s6 + $0xac] sm:$0xf] %vm2659, %v2638
  %2704 = vst.msk [vmem:[%s6 + $0xb0] sm:$0xf] %vm2659, %v2639
  %2705 = vst.msk [vmem:[%s6 + $0xb4] sm:$0xf] %vm2659, %v2640
  %2706 = vst.msk [vmem:[%s6 + $0xb8] sm:$0xf] %vm2659, %v2641
  %2707 = vst.msk [vmem:[%s6 + $0xbc] sm:$0xf] %vm2659, %v2642
  %2708 = vst.msk [vmem:[%s6 + $0xc0] sm:$0xf] %vm2659, %v2643
  %2709 = vst.msk [vmem:[%s6 + $0xc4] sm:$0xf] %vm2659, %v2644
  %2710 = vst.msk [vmem:[%s6 + $0xc8] sm:$0xf] %vm2659, %v2645
  %2711 = vst.msk [vmem:[%s6 + $0xcc] sm:$0xf] %vm2659, %v2646
  %2712 = vst.msk [vmem:[%s6 + $0xd0] sm:$0xf] %vm2659, %v2647
  %2713 = vst.msk [vmem:[%s6 + $0xd4] sm:$0xf] %vm2659, %v2648
  %2714 = vst.msk [vmem:[%s6 + $0xd8] sm:$0xf] %vm2659, %v2649
  %2715 = vst.msk [vmem:[%s6 + $0xdc] sm:$0xf] %vm2659, %v2650
  %2716 = vst.msk [vmem:[%s6 + $0xe0] sm:$0xf] %vm2659, %v2651
  %2717 = vst.msk [vmem:[%s6 + $0xe4] sm:$0xf] %vm2659, %v2652
  %2718 = vst.msk [vmem:[%s6 + $0xe8] sm:$0xf] %vm2659, %v2653
  %2719 = vst.msk [vmem:[%s6 + $0xec] sm:$0xf] %vm2659, %v2654
  %2720 = vst.msk [vmem:[%s6 + $0xf0] sm:$0xf] %vm2659, %v2655
  %2721 = vst.msk [vmem:[%s6 + $0xf4] sm:$0xf] %vm2659, %v2656
  %2722 = vst.msk [vmem:[%s6 + $0xf8] sm:$0xf] %vm2659, %v2657
  %2723 = vst.msk [vmem:[%s6 + $0xfc] sm:$0xf] %vm2659, %v2658
  %v2724 = vld [vmem:[%s1] sm:$0xf]
  %v2725 = vld [vmem:[%s1 + $0x4] sm:$0xf]
  %v2726 = vld [vmem:[%s1 + $0x8] sm:$0xf]
  %v2727 = vld [vmem:[%s1 + $0xc] sm:$0xf]
  %v2728 = vld [vmem:[%s1 + $0x10] sm:$0xf]
  %v2729 = vld [vmem:[%s1 + $0x14] sm:$0xf]
  %v2730 = vld [vmem:[%s1 + $0x18] sm:$0xf]
  %v2731 = vld [vmem:[%s1 + $0x1c] sm:$0xf]
  %v2732 = vld [vmem:[%s1 + $0x20] sm:$0xf]
  %v2733 = vld [vmem:[%s1 + $0x24] sm:$0xf]
  %v2734 = vld [vmem:[%s1 + $0x28] sm:$0xf]
  %v2735 = vld [vmem:[%s1 + $0x2c] sm:$0xf]
  %v2736 = vld [vmem:[%s1 + $0x30] sm:$0xf]
  %v2737 = vld [vmem:[%s1 + $0x34] sm:$0xf]
  %v2738 = vld [vmem:[%s1 + $0x38] sm:$0xf]
  %v2739 = vld [vmem:[%s1 + $0x3c] sm:$0xf]
  %v2740 = vld [vmem:[%s1 + $0x40] sm:$0xf]
  %v2741 = vld [vmem:[%s1 + $0x44] sm:$0xf]
  %v2742 = vld [vmem:[%s1 + $0x48] sm:$0xf]
  %v2743 = vld [vmem:[%s1 + $0x4c] sm:$0xf]
  %v2744 = vld [vmem:[%s1 + $0x50] sm:$0xf]
  %v2745 = vld [vmem:[%s1 + $0x54] sm:$0xf]
  %v2746 = vld [vmem:[%s1 + $0x58] sm:$0xf]
  %v2747 = vld [vmem:[%s1 + $0x5c] sm:$0xf]
  %v2748 = vld [vmem:[%s1 + $0x60] sm:$0xf]
  %v2749 = vld [vmem:[%s1 + $0x64] sm:$0xf]
  %v2750 = vld [vmem:[%s1 + $0x68] sm:$0xf]
  %v2751 = vld [vmem:[%s1 + $0x6c] sm:$0xf]
  %v2752 = vld [vmem:[%s1 + $0x70] sm:$0xf]
  %v2753 = vld [vmem:[%s1 + $0x74] sm:$0xf]
  %v2754 = vld [vmem:[%s1 + $0x78] sm:$0xf]
  %v2755 = vld [vmem:[%s1 + $0x7c] sm:$0xf]
  %v2756 = vld [vmem:[%s1 + $0x80] sm:$0xf]
  %v2757 = vld [vmem:[%s1 + $0x84] sm:$0xf]
  %v2758 = vld [vmem:[%s1 + $0x88] sm:$0xf]
  %v2759 = vld [vmem:[%s1 + $0x8c] sm:$0xf]
  %v2760 = vld [vmem:[%s1 + $0x90] sm:$0xf]
  %v2761 = vld [vmem:[%s1 + $0x94] sm:$0xf]
  %v2762 = vld [vmem:[%s1 + $0x98] sm:$0xf]
  %v2763 = vld [vmem:[%s1 + $0x9c] sm:$0xf]
  %v2764 = vld [vmem:[%s1 + $0xa0] sm:$0xf]
  %v2765 = vld [vmem:[%s1 + $0xa4] sm:$0xf]
  %v2766 = vld [vmem:[%s1 + $0xa8] sm:$0xf]
  %v2767 = vld [vmem:[%s1 + $0xac] sm:$0xf]
  %v2768 = vld [vmem:[%s1 + $0xb0] sm:$0xf]
  %v2769 = vld [vmem:[%s1 + $0xb4] sm:$0xf]
  %v2770 = vld [vmem:[%s1 + $0xb8] sm:$0xf]
  %v2771 = vld [vmem:[%s1 + $0xbc] sm:$0xf]
  %v2772 = vld [vmem:[%s1 + $0xc0] sm:$0xf]
  %v2773 = vld [vmem:[%s1 + $0xc4] sm:$0xf]
  %v2774 = vld [vmem:[%s1 + $0xc8] sm:$0xf]
  %v2775 = vld [vmem:[%s1 + $0xcc] sm:$0xf]
  %v2776 = vld [vmem:[%s1 + $0xd0] sm:$0xf]
  %v2777 = vld [vmem:[%s1 + $0xd4] sm:$0xf]
  %v2778 = vld [vmem:[%s1 + $0xd8] sm:$0xf]
  %v2779 = vld [vmem:[%s1 + $0xdc] sm:$0xf]
  %v2780 = vld [vmem:[%s1 + $0xe0] sm:$0xf]
  %v2781 = vld [vmem:[%s1 + $0xe4] sm:$0xf]
  %v2782 = vld [vmem:[%s1 + $0xe8] sm:$0xf]
  %v2783 = vld [vmem:[%s1 + $0xec] sm:$0xf]
  %v2784 = vld [vmem:[%s1 + $0xf0] sm:$0xf]
  %v2785 = vld [vmem:[%s1 + $0xf4] sm:$0xf]
  %v2786 = vld [vmem:[%s1 + $0xf8] sm:$0xf]
  %v2787 = vld [vmem:[%s1 + $0xfc] sm:$0xf]
  %v2788 = vld [vmem:[%s4] sm:$0x3]
  %v2789 = vld [vmem:[%s5] sm:$0x1]
  %v2791 = vperm.slane %v2789, 0
  %v2857 = vunpack.c.l.b16 %v2724
  %v2858 = vunpack.c.l.b16 %v2725
  %v2859 = vunpack.c.l.b16 %v2726
  %v2860 = vunpack.c.l.b16 %v2727
  %v2861 = vunpack.c.l.b16 %v2728
  %v2862 = vunpack.c.l.b16 %v2729
  %v2863 = vunpack.c.l.b16 %v2730
  %v2864 = vunpack.c.l.b16 %v2731
  %v2865 = vunpack.c.l.b16 %v2732
  %v2866 = vunpack.c.l.b16 %v2733
  %v2867 = vunpack.c.l.b16 %v2734
  %v2868 = vunpack.c.l.b16 %v2735
  %v2869 = vunpack.c.l.b16 %v2736
  %v2870 = vunpack.c.l.b16 %v2737
  %v2871 = vunpack.c.l.b16 %v2738
  %v2872 = vunpack.c.l.b16 %v2739
  %v2873 = vunpack.c.l.b16 %v2740
  %v2874 = vunpack.c.l.b16 %v2741
  %v2875 = vunpack.c.l.b16 %v2742
  %v2876 = vunpack.c.l.b16 %v2743
  %v2877 = vunpack.c.l.b16 %v2744
  %v2878 = vunpack.c.l.b16 %v2745
  %v2879 = vunpack.c.l.b16 %v2746
  %v2880 = vunpack.c.l.b16 %v2747
  %v2881 = vunpack.c.l.b16 %v2748
  %v2882 = vunpack.c.l.b16 %v2749
  %v2883 = vunpack.c.l.b16 %v2750
  %v2884 = vunpack.c.l.b16 %v2751
  %v2885 = vunpack.c.l.b16 %v2752
  %v2886 = vunpack.c.l.b16 %v2753
  %v2887 = vunpack.c.l.b16 %v2754
  %v2888 = vunpack.c.l.b16 %v2755
  %v2889 = vunpack.c.l.b16 %v2756
  %v2890 = vunpack.c.l.b16 %v2757
  %v2891 = vunpack.c.l.b16 %v2758
  %v2892 = vunpack.c.l.b16 %v2759
  %v2893 = vunpack.c.l.b16 %v2760
  %v2894 = vunpack.c.l.b16 %v2761
  %v2895 = vunpack.c.l.b16 %v2762
  %v2896 = vunpack.c.l.b16 %v2763
  %v2897 = vunpack.c.l.b16 %v2764
  %v2898 = vunpack.c.l.b16 %v2765
  %v2899 = vunpack.c.l.b16 %v2766
  %v2900 = vunpack.c.l.b16 %v2767
  %v2901 = vunpack.c.l.b16 %v2768
  %v2902 = vunpack.c.l.b16 %v2769
  %v2903 = vunpack.c.l.b16 %v2770
  %v2904 = vunpack.c.l.b16 %v2771
  %v2905 = vunpack.c.l.b16 %v2772
  %v2906 = vunpack.c.l.b16 %v2773
  %v2907 = vunpack.c.l.b16 %v2774
  %v2908 = vunpack.c.l.b16 %v2775
  %v2909 = vunpack.c.l.b16 %v2776
  %v2910 = vunpack.c.l.b16 %v2777
  %v2911 = vunpack.c.l.b16 %v2778
  %v2912 = vunpack.c.l.b16 %v2779
  %v2913 = vunpack.c.l.b16 %v2780
  %v2914 = vunpack.c.l.b16 %v2781
  %v2915 = vunpack.c.l.b16 %v2782
  %v2916 = vunpack.c.l.b16 %v2783
  %v2917 = vunpack.c.l.b16 %v2784
  %v2918 = vunpack.c.l.b16 %v2785
  %v2919 = vunpack.c.l.b16 %v2786
  %v2920 = vunpack.c.l.b16 %v2787
  %v2921 = vpack.c.b16 %v2858, %v2857
  %v2922 = vpack.c.b16 %v2860, %v2859
  %v2923 = vpack.c.b16 %v2862, %v2861
  %v2924 = vpack.c.b16 %v2864, %v2863
  %v2925 = vpack.c.b16 %v2866, %v2865
  %v2926 = vpack.c.b16 %v2868, %v2867
  %v2927 = vpack.c.b16 %v2870, %v2869
  %v2928 = vpack.c.b16 %v2872, %v2871
  %v2929 = vpack.c.b16 %v2874, %v2873
  %v2930 = vpack.c.b16 %v2876, %v2875
  %v2931 = vpack.c.b16 %v2878, %v2877
  %v2932 = vpack.c.b16 %v2880, %v2879
  %v2933 = vpack.c.b16 %v2882, %v2881
  %v2934 = vpack.c.b16 %v2884, %v2883
  %v2935 = vpack.c.b16 %v2886, %v2885
  %v2936 = vpack.c.b16 %v2888, %v2887
  %v2937 = vpack.c.b16 %v2890, %v2889
  %v2938 = vpack.c.b16 %v2892, %v2891
  %v2939 = vpack.c.b16 %v2894, %v2893
  %v2940 = vpack.c.b16 %v2896, %v2895
  %v2941 = vpack.c.b16 %v2898, %v2897
  %v2942 = vpack.c.b16 %v2900, %v2899
  %v2943 = vpack.c.b16 %v2902, %v2901
  %v2944 = vpack.c.b16 %v2904, %v2903
  %v2945 = vpack.c.b16 %v2906, %v2905
  %v2946 = vpack.c.b16 %v2908, %v2907
  %v2947 = vpack.c.b16 %v2910, %v2909
  %v2948 = vpack.c.b16 %v2912, %v2911
  %v2949 = vpack.c.b16 %v2914, %v2913
  %v2950 = vpack.c.b16 %v2916, %v2915
  %v2951 = vpack.c.b16 %v2918, %v2917
  %v2952 = vpack.c.b16 %v2920, %v2919
  %v2954 = vsel %vm1480, %v2921, 0
  %v2957 = vsel %vm1480, %v2922, 0
  %v2960 = vsel %vm1480, %v2923, 0
  %v2963 = vsel %vm1480, %v2924, 0
  %v2966 = vsel %vm1480, %v2925, 0
  %v2969 = vsel %vm1480, %v2926, 0
  %v2972 = vsel %vm1480, %v2927, 0
  %v2975 = vsel %vm1480, %v2928, 0
  %v2978 = vsel %vm1480, %v2929, 0
  %v2981 = vsel %vm1480, %v2930, 0
  %v2984 = vsel %vm1480, %v2931, 0
  %v2987 = vsel %vm1480, %v2932, 0
  %v2990 = vsel %vm1480, %v2933, 0
  %v2993 = vsel %vm1480, %v2934, 0
  %v2996 = vsel %vm1480, %v2935, 0
  %v2999 = vsel %vm1480, %v2936, 0
  %v3002 = vsel %vm1480, %v2937, 0
  %v3005 = vsel %vm1480, %v2938, 0
  %v3008 = vsel %vm1480, %v2939, 0
  %v3011 = vsel %vm1480, %v2940, 0
  %v3014 = vsel %vm1480, %v2941, 0
  %v3017 = vsel %vm1480, %v2942, 0
  %v3020 = vsel %vm1480, %v2943, 0
  %v3023 = vsel %vm1480, %v2944, 0
  %v3026 = vsel %vm1480, %v2945, 0
  %v3029 = vsel %vm1480, %v2946, 0
  %v3032 = vsel %vm1480, %v2947, 0
  %v3035 = vsel %vm1480, %v2948, 0
  %v3038 = vsel %vm1480, %v2949, 0
  %v3041 = vsel %vm1480, %v2950, 0
  %v3044 = vsel %vm1480, %v2951, 0
  %v3047 = vsel %vm1480, %v2952, 0
  %v3050 = vsel %vm2089, %v2788, 0
  %3052 = vmatpush.bf16.msra.mxu0 0
  %3053 = vmatpush.bf16.msra.mxu0 0
  %3054 = vmatpush.bf16.msra.mxu0 0
  %3055 = vmatpush.bf16.msra.mxu0 0
  %3056 = vmatpush.bf16.msra.mxu0 0
  %3057 = vmatpush.bf16.msra.mxu0 0
  %3058 = vmatpush.bf16.msra.mxu0 0
  %3059 = vmatpush.bf16.msra.mxu0 %v3050
  %3060 = vmatmul.bf16.gmra.mxu0 %v2954
  %v3061 = vpop.f32.mrf.mxu0
  %v3062 = vadd.f32 %v2791, %v3061
  %v3063 = vpop.f32.mrf.mxu0
  %v3064 = vadd.f32 %v2791, %v3063
  %3065 = vmatmul.bf16.gmra.mxu0 %v2957
  %v3066 = vpop.f32.mrf.mxu0
  %v3067 = vadd.f32 %v2791, %v3066
  %v3068 = vpop.f32.mrf.mxu0
  %v3069 = vadd.f32 %v2791, %v3068
  %3070 = vmatmul.bf16.gmra.mxu0 %v2960
  %v3071 = vpop.f32.mrf.mxu0
  %v3072 = vadd.f32 %v2791, %v3071
  %v3073 = vpop.f32.mrf.mxu0
  %v3074 = vadd.f32 %v2791, %v3073
  %3075 = vmatmul.bf16.gmra.mxu0 %v2963
  %v3076 = vpop.f32.mrf.mxu0
  %v3077 = vadd.f32 %v2791, %v3076
  %v3078 = vpop.f32.mrf.mxu0
  %v3079 = vadd.f32 %v2791, %v3078
  %3080 = vmatmul.bf16.gmra.mxu0 %v2966
  %v3081 = vpop.f32.mrf.mxu0
  %v3082 = vadd.f32 %v2791, %v3081
  %v3083 = vpop.f32.mrf.mxu0
  %v3084 = vadd.f32 %v2791, %v3083
  %3085 = vmatmul.bf16.gmra.mxu0 %v2969
  %v3086 = vpop.f32.mrf.mxu0
  %v3087 = vadd.f32 %v2791, %v3086
  %v3088 = vpop.f32.mrf.mxu0
  %v3089 = vadd.f32 %v2791, %v3088
  %3090 = vmatmul.bf16.gmra.mxu0 %v2972
  %v3091 = vpop.f32.mrf.mxu0
  %v3092 = vadd.f32 %v2791, %v3091
  %v3093 = vpop.f32.mrf.mxu0
  %v3094 = vadd.f32 %v2791, %v3093
  %3095 = vmatmul.bf16.gmra.mxu0 %v2975
  %v3096 = vpop.f32.mrf.mxu0
  %v3097 = vadd.f32 %v2791, %v3096
  %v3098 = vpop.f32.mrf.mxu0
  %v3099 = vadd.f32 %v2791, %v3098
  %3100 = vmatmul.bf16.gmra.mxu0 %v2978
  %v3101 = vpop.f32.mrf.mxu0
  %v3102 = vadd.f32 %v2791, %v3101
  %v3103 = vpop.f32.mrf.mxu0
  %v3104 = vadd.f32 %v2791, %v3103
  %3105 = vmatmul.bf16.gmra.mxu0 %v2981
  %v3106 = vpop.f32.mrf.mxu0
  %v3107 = vadd.f32 %v2791, %v3106
  %v3108 = vpop.f32.mrf.mxu0
  %v3109 = vadd.f32 %v2791, %v3108
  %3110 = vmatmul.bf16.gmra.mxu0 %v2984
  %v3111 = vpop.f32.mrf.mxu0
  %v3112 = vadd.f32 %v2791, %v3111
  %v3113 = vpop.f32.mrf.mxu0
  %v3114 = vadd.f32 %v2791, %v3113
  %3115 = vmatmul.bf16.gmra.mxu0 %v2987
  %v3116 = vpop.f32.mrf.mxu0
  %v3117 = vadd.f32 %v2791, %v3116
  %v3118 = vpop.f32.mrf.mxu0
  %v3119 = vadd.f32 %v2791, %v3118
  %3120 = vmatmul.bf16.gmra.mxu0 %v2990
  %v3121 = vpop.f32.mrf.mxu0
  %v3122 = vadd.f32 %v2791, %v3121
  %v3123 = vpop.f32.mrf.mxu0
  %v3124 = vadd.f32 %v2791, %v3123
  %3125 = vmatmul.bf16.gmra.mxu0 %v2993
  %v3126 = vpop.f32.mrf.mxu0
  %v3127 = vadd.f32 %v2791, %v3126
  %v3128 = vpop.f32.mrf.mxu0
  %v3129 = vadd.f32 %v2791, %v3128
  %3130 = vmatmul.bf16.gmra.mxu0 %v2996
  %v3131 = vpop.f32.mrf.mxu0
  %v3132 = vadd.f32 %v2791, %v3131
  %v3133 = vpop.f32.mrf.mxu0
  %v3134 = vadd.f32 %v2791, %v3133
  %3135 = vmatmul.bf16.gmra.mxu0 %v2999
  %v3136 = vpop.f32.mrf.mxu0
  %v3137 = vadd.f32 %v2791, %v3136
  %v3138 = vpop.f32.mrf.mxu0
  %v3139 = vadd.f32 %v2791, %v3138
  %3140 = vmatmul.bf16.gmra.mxu0 %v3002
  %v3141 = vpop.f32.mrf.mxu0
  %v3142 = vadd.f32 %v2791, %v3141
  %v3143 = vpop.f32.mrf.mxu0
  %v3144 = vadd.f32 %v2791, %v3143
  %3145 = vmatmul.bf16.gmra.mxu0 %v3005
  %v3146 = vpop.f32.mrf.mxu0
  %v3147 = vadd.f32 %v2791, %v3146
  %v3148 = vpop.f32.mrf.mxu0
  %v3149 = vadd.f32 %v2791, %v3148
  %3150 = vmatmul.bf16.gmra.mxu0 %v3008
  %v3151 = vpop.f32.mrf.mxu0
  %v3152 = vadd.f32 %v2791, %v3151
  %v3153 = vpop.f32.mrf.mxu0
  %v3154 = vadd.f32 %v2791, %v3153
  %3155 = vmatmul.bf16.gmra.mxu0 %v3011
  %v3156 = vpop.f32.mrf.mxu0
  %v3157 = vadd.f32 %v2791, %v3156
  %v3158 = vpop.f32.mrf.mxu0
  %v3159 = vadd.f32 %v2791, %v3158
  %3160 = vmatmul.bf16.gmra.mxu0 %v3014
  %v3161 = vpop.f32.mrf.mxu0
  %v3162 = vadd.f32 %v2791, %v3161
  %v3163 = vpop.f32.mrf.mxu0
  %v3164 = vadd.f32 %v2791, %v3163
  %3165 = vmatmul.bf16.gmra.mxu0 %v3017
  %v3166 = vpop.f32.mrf.mxu0
  %v3167 = vadd.f32 %v2791, %v3166
  %v3168 = vpop.f32.mrf.mxu0
  %v3169 = vadd.f32 %v2791, %v3168
  %3170 = vmatmul.bf16.gmra.mxu0 %v3020
  %v3171 = vpop.f32.mrf.mxu0
  %v3172 = vadd.f32 %v2791, %v3171
  %v3173 = vpop.f32.mrf.mxu0
  %v3174 = vadd.f32 %v2791, %v3173
  %3175 = vmatmul.bf16.gmra.mxu0 %v3023
  %v3176 = vpop.f32.mrf.mxu0
  %v3177 = vadd.f32 %v2791, %v3176
  %v3178 = vpop.f32.mrf.mxu0
  %v3179 = vadd.f32 %v2791, %v3178
  %3180 = vmatmul.bf16.gmra.mxu0 %v3026
  %v3181 = vpop.f32.mrf.mxu0
  %v3182 = vadd.f32 %v2791, %v3181
  %v3183 = vpop.f32.mrf.mxu0
  %v3184 = vadd.f32 %v2791, %v3183
  %3185 = vmatmul.bf16.gmra.mxu0 %v3029
  %v3186 = vpop.f32.mrf.mxu0
  %v3187 = vadd.f32 %v2791, %v3186
  %v3188 = vpop.f32.mrf.mxu0
  %v3189 = vadd.f32 %v2791, %v3188
  %3190 = vmatmul.bf16.gmra.mxu0 %v3032
  %v3191 = vpop.f32.mrf.mxu0
  %v3192 = vadd.f32 %v2791, %v3191
  %v3193 = vpop.f32.mrf.mxu0
  %v3194 = vadd.f32 %v2791, %v3193
  %3195 = vmatmul.bf16.gmra.mxu0 %v3035
  %v3196 = vpop.f32.mrf.mxu0
  %v3197 = vadd.f32 %v2791, %v3196
  %v3198 = vpop.f32.mrf.mxu0
  %v3199 = vadd.f32 %v2791, %v3198
  %3200 = vmatmul.bf16.gmra.mxu0 %v3038
  %v3201 = vpop.f32.mrf.mxu0
  %v3202 = vadd.f32 %v2791, %v3201
  %v3203 = vpop.f32.mrf.mxu0
  %v3204 = vadd.f32 %v2791, %v3203
  %3205 = vmatmul.bf16.gmra.mxu0 %v3041
  %v3206 = vpop.f32.mrf.mxu0
  %v3207 = vadd.f32 %v2791, %v3206
  %v3208 = vpop.f32.mrf.mxu0
  %v3209 = vadd.f32 %v2791, %v3208
  %3210 = vmatmul.bf16.gmra.mxu0 %v3044
  %v3211 = vpop.f32.mrf.mxu0
  %v3212 = vadd.f32 %v2791, %v3211
  %v3213 = vpop.f32.mrf.mxu0
  %v3214 = vadd.f32 %v2791, %v3213
  %3215 = vmatmul.bf16.gmra.mxu0 %v3047
  %v3216 = vpop.f32.mrf.mxu0
  %v3217 = vadd.f32 %v2791, %v3216
  %v3218 = vpop.f32.mrf.mxu0
  %v3219 = vadd.f32 %v2791, %v3218
  %3220 = vdwg.mxu0
  %v3221 = vsel %vm1545, %v3062, 0.0
  %v3222 = vsel %vm1545, %v3064, 0.0
  %v3223 = vadd.f32 %v3221, %v3222
  %v3224 = vsel %vm1545, %v3067, 0.0
  %v3225 = vadd.f32 %v3223, %v3224
  %v3226 = vsel %vm1545, %v3069, 0.0
  %v3227 = vadd.f32 %v3225, %v3226
  %v3228 = vsel %vm1545, %v3072, 0.0
  %v3229 = vadd.f32 %v3227, %v3228
  %v3230 = vsel %vm1545, %v3074, 0.0
  %v3231 = vadd.f32 %v3229, %v3230
  %v3232 = vsel %vm1545, %v3077, 0.0
  %v3233 = vadd.f32 %v3231, %v3232
  %v3234 = vsel %vm1545, %v3079, 0.0
  %v3235 = vadd.f32 %v3233, %v3234
  %v3236 = vsel %vm1545, %v3082, 0.0
  %v3237 = vadd.f32 %v3235, %v3236
  %v3238 = vsel %vm1545, %v3084, 0.0
  %v3239 = vadd.f32 %v3237, %v3238
  %v3240 = vsel %vm1545, %v3087, 0.0
  %v3241 = vadd.f32 %v3239, %v3240
  %v3242 = vsel %vm1545, %v3089, 0.0
  %v3243 = vadd.f32 %v3241, %v3242
  %v3244 = vsel %vm1545, %v3092, 0.0
  %v3245 = vadd.f32 %v3243, %v3244
  %v3246 = vsel %vm1545, %v3094, 0.0
  %v3247 = vadd.f32 %v3245, %v3246
  %v3248 = vsel %vm1545, %v3097, 0.0
  %v3249 = vadd.f32 %v3247, %v3248
  %v3250 = vsel %vm1545, %v3099, 0.0
  %v3251 = vadd.f32 %v3249, %v3250
  %v3252 = vsel %vm1545, %v3102, 0.0
  %v3253 = vadd.f32 %v3251, %v3252
  %v3254 = vsel %vm1545, %v3104, 0.0
  %v3255 = vadd.f32 %v3253, %v3254
  %v3256 = vsel %vm1545, %v3107, 0.0
  %v3257 = vadd.f32 %v3255, %v3256
  %v3258 = vsel %vm1545, %v3109, 0.0
  %v3259 = vadd.f32 %v3257, %v3258
  %v3260 = vsel %vm1545, %v3112, 0.0
  %v3261 = vadd.f32 %v3259, %v3260
  %v3262 = vsel %vm1545, %v3114, 0.0
  %v3263 = vadd.f32 %v3261, %v3262
  %v3264 = vsel %vm1545, %v3117, 0.0
  %v3265 = vadd.f32 %v3263, %v3264
  %v3266 = vsel %vm1545, %v3119, 0.0
  %v3267 = vadd.f32 %v3265, %v3266
  %v3268 = vsel %vm1545, %v3122, 0.0
  %v3269 = vadd.f32 %v3267, %v3268
  %v3270 = vsel %vm1545, %v3124, 0.0
  %v3271 = vadd.f32 %v3269, %v3270
  %v3272 = vsel %vm1545, %v3127, 0.0
  %v3273 = vadd.f32 %v3271, %v3272
  %v3274 = vsel %vm1545, %v3129, 0.0
  %v3275 = vadd.f32 %v3273, %v3274
  %v3276 = vsel %vm1545, %v3132, 0.0
  %v3277 = vadd.f32 %v3275, %v3276
  %v3278 = vsel %vm1545, %v3134, 0.0
  %v3279 = vadd.f32 %v3277, %v3278
  %v3280 = vsel %vm1545, %v3137, 0.0
  %v3281 = vadd.f32 %v3279, %v3280
  %v3282 = vsel %vm1545, %v3139, 0.0
  %v3283 = vadd.f32 %v3281, %v3282
  %v3284 = vsel %vm1545, %v3142, 0.0
  %v3285 = vadd.f32 %v3283, %v3284
  %v3286 = vsel %vm1545, %v3144, 0.0
  %v3287 = vadd.f32 %v3285, %v3286
  %v3288 = vsel %vm1545, %v3147, 0.0
  %v3289 = vadd.f32 %v3287, %v3288
  %v3290 = vsel %vm1545, %v3149, 0.0
  %v3291 = vadd.f32 %v3289, %v3290
  %v3292 = vsel %vm1545, %v3152, 0.0
  %v3293 = vadd.f32 %v3291, %v3292
  %v3294 = vsel %vm1545, %v3154, 0.0
  %v3295 = vadd.f32 %v3293, %v3294
  %v3296 = vsel %vm1545, %v3157, 0.0
  %v3297 = vadd.f32 %v3295, %v3296
  %v3298 = vsel %vm1545, %v3159, 0.0
  %v3299 = vadd.f32 %v3297, %v3298
  %v3300 = vsel %vm1545, %v3162, 0.0
  %v3301 = vadd.f32 %v3299, %v3300
  %v3302 = vsel %vm1545, %v3164, 0.0
  %v3303 = vadd.f32 %v3301, %v3302
  %v3304 = vsel %vm1545, %v3167, 0.0
  %v3305 = vadd.f32 %v3303, %v3304
  %v3306 = vsel %vm1545, %v3169, 0.0
  %v3307 = vadd.f32 %v3305, %v3306
  %v3308 = vsel %vm1545, %v3172, 0.0
  %v3309 = vadd.f32 %v3307, %v3308
  %v3310 = vsel %vm1545, %v3174, 0.0
  %v3311 = vadd.f32 %v3309, %v3310
  %v3312 = vsel %vm1545, %v3177, 0.0
  %v3313 = vadd.f32 %v3311, %v3312
  %v3314 = vsel %vm1545, %v3179, 0.0
  %v3315 = vadd.f32 %v3313, %v3314
  %v3316 = vsel %vm1545, %v3182, 0.0
  %v3317 = vadd.f32 %v3315, %v3316
  %v3318 = vsel %vm1545, %v3184, 0.0
  %v3319 = vadd.f32 %v3317, %v3318
  %v3320 = vsel %vm1545, %v3187, 0.0
  %v3321 = vadd.f32 %v3319, %v3320
  %v3322 = vsel %vm1545, %v3189, 0.0
  %v3323 = vadd.f32 %v3321, %v3322
  %v3324 = vsel %vm1545, %v3192, 0.0
  %v3325 = vadd.f32 %v3323, %v3324
  %v3326 = vsel %vm1545, %v3194, 0.0
  %v3327 = vadd.f32 %v3325, %v3326
  %v3328 = vsel %vm1545, %v3197, 0.0
  %v3329 = vadd.f32 %v3327, %v3328
  %v3330 = vsel %vm1545, %v3199, 0.0
  %v3331 = vadd.f32 %v3329, %v3330
  %v3332 = vsel %vm1545, %v3202, 0.0
  %v3333 = vadd.f32 %v3331, %v3332
  %v3334 = vsel %vm1545, %v3204, 0.0
  %v3335 = vadd.f32 %v3333, %v3334
  %v3336 = vsel %vm1545, %v3207, 0.0
  %v3337 = vadd.f32 %v3335, %v3336
  %v3338 = vsel %vm1545, %v3209, 0.0
  %v3339 = vadd.f32 %v3337, %v3338
  %v3340 = vsel %vm1545, %v3212, 0.0
  %v3341 = vadd.f32 %v3339, %v3340
  %v3342 = vsel %vm1545, %v3214, 0.0
  %v3343 = vadd.f32 %v3341, %v3342
  %v3344 = vsel %vm1545, %v3217, 0.0
  %v3345 = vadd.f32 %v3343, %v3344
  %v3346 = vsel %vm1545, %v3219, 0.0
  %v3347 = vadd.f32 %v3345, %v3346
  %v3348 = vrot.slane %v3347, 4
  %v3349 = vadd.f32 %v3347, %v3348
  %v3350 = vrot.slane %v3349, 2
  %v3351 = vadd.f32 %v3349, %v3350
  %v3352 = vrot.slane %v3351, 1
  %v3353 = vadd.f32 %v3351, %v3352
  %3354 = vst.msk [vmem:[%s10] sm:$0x1] %vm2395, %v3353
  %v3355 = vmul.f32 %v3062, %v3062
  %v3356 = vmul.f32 %v3064, %v3064
  %v3357 = vmul.f32 %v3067, %v3067
  %v3358 = vmul.f32 %v3069, %v3069
  %v3359 = vmul.f32 %v3072, %v3072
  %v3360 = vmul.f32 %v3074, %v3074
  %v3361 = vmul.f32 %v3077, %v3077
  %v3362 = vmul.f32 %v3079, %v3079
  %v3363 = vmul.f32 %v3082, %v3082
  %v3364 = vmul.f32 %v3084, %v3084
  %v3365 = vmul.f32 %v3087, %v3087
  %v3366 = vmul.f32 %v3089, %v3089
  %v3367 = vmul.f32 %v3092, %v3092
  %v3368 = vmul.f32 %v3094, %v3094
  %v3369 = vmul.f32 %v3097, %v3097
  %v3370 = vmul.f32 %v3099, %v3099
  %v3371 = vmul.f32 %v3102, %v3102
  %v3372 = vmul.f32 %v3104, %v3104
  %v3373 = vmul.f32 %v3107, %v3107
  %v3374 = vmul.f32 %v3109, %v3109
  %v3375 = vmul.f32 %v3112, %v3112
  %v3376 = vmul.f32 %v3114, %v3114
  %v3377 = vmul.f32 %v3117, %v3117
  %v3378 = vmul.f32 %v3119, %v3119
  %v3379 = vmul.f32 %v3122, %v3122
  %v3380 = vmul.f32 %v3124, %v3124
  %v3381 = vmul.f32 %v3127, %v3127
  %v3382 = vmul.f32 %v3129, %v3129
  %v3383 = vmul.f32 %v3132, %v3132
  %v3384 = vmul.f32 %v3134, %v3134
  %v3385 = vmul.f32 %v3137, %v3137
  %v3386 = vmul.f32 %v3139, %v3139
  %v3387 = vmul.f32 %v3142, %v3142
  %v3388 = vmul.f32 %v3144, %v3144
  %v3389 = vmul.f32 %v3147, %v3147
  %v3390 = vmul.f32 %v3149, %v3149
  %v3391 = vmul.f32 %v3152, %v3152
  %v3392 = vmul.f32 %v3154, %v3154
  %v3393 = vmul.f32 %v3157, %v3157
  %v3394 = vmul.f32 %v3159, %v3159
  %v3395 = vmul.f32 %v3162, %v3162
  %v3396 = vmul.f32 %v3164, %v3164
  %v3397 = vmul.f32 %v3167, %v3167
  %v3398 = vmul.f32 %v3169, %v3169
  %v3399 = vmul.f32 %v3172, %v3172
  %v3400 = vmul.f32 %v3174, %v3174
  %v3401 = vmul.f32 %v3177, %v3177
  %v3402 = vmul.f32 %v3179, %v3179
  %v3403 = vmul.f32 %v3182, %v3182
  %v3404 = vmul.f32 %v3184, %v3184
  %v3405 = vmul.f32 %v3187, %v3187
  %v3406 = vmul.f32 %v3189, %v3189
  %v3407 = vmul.f32 %v3192, %v3192
  %v3408 = vmul.f32 %v3194, %v3194
  %v3409 = vmul.f32 %v3197, %v3197
  %v3410 = vmul.f32 %v3199, %v3199
  %v3411 = vmul.f32 %v3202, %v3202
  %v3412 = vmul.f32 %v3204, %v3204
  %v3413 = vmul.f32 %v3207, %v3207
  %v3414 = vmul.f32 %v3209, %v3209
  %v3415 = vmul.f32 %v3212, %v3212
  %v3416 = vmul.f32 %v3214, %v3214
  %v3417 = vmul.f32 %v3217, %v3217
  %v3418 = vmul.f32 %v3219, %v3219
  %v3419 = vsel %vm1545, %v3355, 0.0
  %v3420 = vsel %vm1545, %v3356, 0.0
  %v3421 = vadd.f32 %v3419, %v3420
  %v3422 = vsel %vm1545, %v3357, 0.0
  %v3423 = vadd.f32 %v3421, %v3422
  %v3424 = vsel %vm1545, %v3358, 0.0
  %v3425 = vadd.f32 %v3423, %v3424
  %v3426 = vsel %vm1545, %v3359, 0.0
  %v3427 = vadd.f32 %v3425, %v3426
  %v3428 = vsel %vm1545, %v3360, 0.0
  %v3429 = vadd.f32 %v3427, %v3428
  %v3430 = vsel %vm1545, %v3361, 0.0
  %v3431 = vadd.f32 %v3429, %v3430
  %v3432 = vsel %vm1545, %v3362, 0.0
  %v3433 = vadd.f32 %v3431, %v3432
  %v3434 = vsel %vm1545, %v3363, 0.0
  %v3435 = vadd.f32 %v3433, %v3434
  %v3436 = vsel %vm1545, %v3364, 0.0
  %v3437 = vadd.f32 %v3435, %v3436
  %v3438 = vsel %vm1545, %v3365, 0.0
  %v3439 = vadd.f32 %v3437, %v3438
  %v3440 = vsel %vm1545, %v3366, 0.0
  %v3441 = vadd.f32 %v3439, %v3440
  %v3442 = vsel %vm1545, %v3367, 0.0
  %v3443 = vadd.f32 %v3441, %v3442
  %v3444 = vsel %vm1545, %v3368, 0.0
  %v3445 = vadd.f32 %v3443, %v3444
  %v3446 = vsel %vm1545, %v3369, 0.0
  %v3447 = vadd.f32 %v3445, %v3446
  %v3448 = vsel %vm1545, %v3370, 0.0
  %v3449 = vadd.f32 %v3447, %v3448
  %v3450 = vsel %vm1545, %v3371, 0.0
  %v3451 = vadd.f32 %v3449, %v3450
  %v3452 = vsel %vm1545, %v3372, 0.0
  %v3453 = vadd.f32 %v3451, %v3452
  %v3454 = vsel %vm1545, %v3373, 0.0
  %v3455 = vadd.f32 %v3453, %v3454
  %v3456 = vsel %vm1545, %v3374, 0.0
  %v3457 = vadd.f32 %v3455, %v3456
  %v3458 = vsel %vm1545, %v3375, 0.0
  %v3459 = vadd.f32 %v3457, %v3458
  %v3460 = vsel %vm1545, %v3376, 0.0
  %v3461 = vadd.f32 %v3459, %v3460
  %v3462 = vsel %vm1545, %v3377, 0.0
  %v3463 = vadd.f32 %v3461, %v3462
  %v3464 = vsel %vm1545, %v3378, 0.0
  %v3465 = vadd.f32 %v3463, %v3464
  %v3466 = vsel %vm1545, %v3379, 0.0
  %v3467 = vadd.f32 %v3465, %v3466
  %v3468 = vsel %vm1545, %v3380, 0.0
  %v3469 = vadd.f32 %v3467, %v3468
  %v3470 = vsel %vm1545, %v3381, 0.0
  %v3471 = vadd.f32 %v3469, %v3470
  %v3472 = vsel %vm1545, %v3382, 0.0
  %v3473 = vadd.f32 %v3471, %v3472
  %v3474 = vsel %vm1545, %v3383, 0.0
  %v3475 = vadd.f32 %v3473, %v3474
  %v3476 = vsel %vm1545, %v3384, 0.0
  %v3477 = vadd.f32 %v3475, %v3476
  %v3478 = vsel %vm1545, %v3385, 0.0
  %v3479 = vadd.f32 %v3477, %v3478
  %v3480 = vsel %vm1545, %v3386, 0.0
  %v3481 = vadd.f32 %v3479, %v3480
  %v3482 = vsel %vm1545, %v3387, 0.0
  %v3483 = vadd.f32 %v3481, %v3482
  %v3484 = vsel %vm1545, %v3388, 0.0
  %v3485 = vadd.f32 %v3483, %v3484
  %v3486 = vsel %vm1545, %v3389, 0.0
  %v3487 = vadd.f32 %v3485, %v3486
  %v3488 = vsel %vm1545, %v3390, 0.0
  %v3489 = vadd.f32 %v3487, %v3488
  %v3490 = vsel %vm1545, %v3391, 0.0
  %v3491 = vadd.f32 %v3489, %v3490
  %v3492 = vsel %vm1545, %v3392, 0.0
  %v3493 = vadd.f32 %v3491, %v3492
  %v3494 = vsel %vm1545, %v3393, 0.0
  %v3495 = vadd.f32 %v3493, %v3494
  %v3496 = vsel %vm1545, %v3394, 0.0
  %v3497 = vadd.f32 %v3495, %v3496
  %v3498 = vsel %vm1545, %v3395, 0.0
  %v3499 = vadd.f32 %v3497, %v3498
  %v3500 = vsel %vm1545, %v3396, 0.0
  %v3501 = vadd.f32 %v3499, %v3500
  %v3502 = vsel %vm1545, %v3397, 0.0
  %v3503 = vadd.f32 %v3501, %v3502
  %v3504 = vsel %vm1545, %v3398, 0.0
  %v3505 = vadd.f32 %v3503, %v3504
  %v3506 = vsel %vm1545, %v3399, 0.0
  %v3507 = vadd.f32 %v3505, %v3506
  %v3508 = vsel %vm1545, %v3400, 0.0
  %v3509 = vadd.f32 %v3507, %v3508
  %v3510 = vsel %vm1545, %v3401, 0.0
  %v3511 = vadd.f32 %v3509, %v3510
  %v3512 = vsel %vm1545, %v3402, 0.0
  %v3513 = vadd.f32 %v3511, %v3512
  %v3514 = vsel %vm1545, %v3403, 0.0
  %v3515 = vadd.f32 %v3513, %v3514
  %v3516 = vsel %vm1545, %v3404, 0.0
  %v3517 = vadd.f32 %v3515, %v3516
  %v3518 = vsel %vm1545, %v3405, 0.0
  %v3519 = vadd.f32 %v3517, %v3518
  %v3520 = vsel %vm1545, %v3406, 0.0
  %v3521 = vadd.f32 %v3519, %v3520
  %v3522 = vsel %vm1545, %v3407, 0.0
  %v3523 = vadd.f32 %v3521, %v3522
  %v3524 = vsel %vm1545, %v3408, 0.0
  %v3525 = vadd.f32 %v3523, %v3524
  %v3526 = vsel %vm1545, %v3409, 0.0
  %v3527 = vadd.f32 %v3525, %v3526
  %v3528 = vsel %vm1545, %v3410, 0.0
  %v3529 = vadd.f32 %v3527, %v3528
  %v3530 = vsel %vm1545, %v3411, 0.0
  %v3531 = vadd.f32 %v3529, %v3530
  %v3532 = vsel %vm1545, %v3412, 0.0
  %v3533 = vadd.f32 %v3531, %v3532
  %v3534 = vsel %vm1545, %v3413, 0.0
  %v3535 = vadd.f32 %v3533, %v3534
  %v3536 = vsel %vm1545, %v3414, 0.0
  %v3537 = vadd.f32 %v3535, %v3536
  %v3538 = vsel %vm1545, %v3415, 0.0
  %v3539 = vadd.f32 %v3537, %v3538
  %v3540 = vsel %vm1545, %v3416, 0.0
  %v3541 = vadd.f32 %v3539, %v3540
  %v3542 = vsel %vm1545, %v3417, 0.0
  %v3543 = vadd.f32 %v3541, %v3542
  %v3544 = vsel %vm1545, %v3418, 0.0
  %v3545 = vadd.f32 %v3543, %v3544
  %v3546 = vrot.slane %v3545, 4
  %v3547 = vadd.f32 %v3545, %v3546
  %v3548 = vrot.slane %v3547, 2
  %v3549 = vadd.f32 %v3547, %v3548
  %v3550 = vrot.slane %v3549, 1
  %v3551 = vadd.f32 %v3549, %v3550
  %3552 = vst.msk [vmem:[%s11] sm:$0x1] %vm2395, %v3551
  %v3553 = vpack.c.bf16 %v3062, %v3062
  %v3554 = vpack.c.bf16 %v3064, %v3064
  %v3555 = vpack.c.bf16 %v3067, %v3067
  %v3556 = vpack.c.bf16 %v3069, %v3069
  %v3557 = vpack.c.bf16 %v3072, %v3072
  %v3558 = vpack.c.bf16 %v3074, %v3074
  %v3559 = vpack.c.bf16 %v3077, %v3077
  %v3560 = vpack.c.bf16 %v3079, %v3079
  %v3561 = vpack.c.bf16 %v3082, %v3082
  %v3562 = vpack.c.bf16 %v3084, %v3084
  %v3563 = vpack.c.bf16 %v3087, %v3087
  %v3564 = vpack.c.bf16 %v3089, %v3089
  %v3565 = vpack.c.bf16 %v3092, %v3092
  %v3566 = vpack.c.bf16 %v3094, %v3094
  %v3567 = vpack.c.bf16 %v3097, %v3097
  %v3568 = vpack.c.bf16 %v3099, %v3099
  %v3569 = vpack.c.bf16 %v3102, %v3102
  %v3570 = vpack.c.bf16 %v3104, %v3104
  %v3571 = vpack.c.bf16 %v3107, %v3107
  %v3572 = vpack.c.bf16 %v3109, %v3109
  %v3573 = vpack.c.bf16 %v3112, %v3112
  %v3574 = vpack.c.bf16 %v3114, %v3114
  %v3575 = vpack.c.bf16 %v3117, %v3117
  %v3576 = vpack.c.bf16 %v3119, %v3119
  %v3577 = vpack.c.bf16 %v3122, %v3122
  %v3578 = vpack.c.bf16 %v3124, %v3124
  %v3579 = vpack.c.bf16 %v3127, %v3127
  %v3580 = vpack.c.bf16 %v3129, %v3129
  %v3581 = vpack.c.bf16 %v3132, %v3132
  %v3582 = vpack.c.bf16 %v3134, %v3134
  %v3583 = vpack.c.bf16 %v3137, %v3137
  %v3584 = vpack.c.bf16 %v3139, %v3139
  %v3585 = vpack.c.bf16 %v3142, %v3142
  %v3586 = vpack.c.bf16 %v3144, %v3144
  %v3587 = vpack.c.bf16 %v3147, %v3147
  %v3588 = vpack.c.bf16 %v3149, %v3149
  %v3589 = vpack.c.bf16 %v3152, %v3152
  %v3590 = vpack.c.bf16 %v3154, %v3154
  %v3591 = vpack.c.bf16 %v3157, %v3157
  %v3592 = vpack.c.bf16 %v3159, %v3159
  %v3593 = vpack.c.bf16 %v3162, %v3162
  %v3594 = vpack.c.bf16 %v3164, %v3164
  %v3595 = vpack.c.bf16 %v3167, %v3167
  %v3596 = vpack.c.bf16 %v3169, %v3169
  %v3597 = vpack.c.bf16 %v3172, %v3172
  %v3598 = vpack.c.bf16 %v3174, %v3174
  %v3599 = vpack.c.bf16 %v3177, %v3177
  %v3600 = vpack.c.bf16 %v3179, %v3179
  %v3601 = vpack.c.bf16 %v3182, %v3182
  %v3602 = vpack.c.bf16 %v3184, %v3184
  %v3603 = vpack.c.bf16 %v3187, %v3187
  %v3604 = vpack.c.bf16 %v3189, %v3189
  %v3605 = vpack.c.bf16 %v3192, %v3192
  %v3606 = vpack.c.bf16 %v3194, %v3194
  %v3607 = vpack.c.bf16 %v3197, %v3197
  %v3608 = vpack.c.bf16 %v3199, %v3199
  %v3609 = vpack.c.bf16 %v3202, %v3202
  %v3610 = vpack.c.bf16 %v3204, %v3204
  %v3611 = vpack.c.bf16 %v3207, %v3207
  %v3612 = vpack.c.bf16 %v3209, %v3209
  %v3613 = vpack.c.bf16 %v3212, %v3212
  %v3614 = vpack.c.bf16 %v3214, %v3214
  %v3615 = vpack.c.bf16 %v3217, %v3217
  %v3616 = vpack.c.bf16 %v3219, %v3219
  %3617 = vst.msk [vmem:[%s7] sm:$0xf] %vm2659, %v3553
  %3618 = vst.msk [vmem:[%s7 + $0x4] sm:$0xf] %vm2659, %v3554
  %3619 = vst.msk [vmem:[%s7 + $0x8] sm:$0xf] %vm2659, %v3555
  %3620 = vst.msk [vmem:[%s7 + $0xc] sm:$0xf] %vm2659, %v3556
  %3621 = vst.msk [vmem:[%s7 + $0x10] sm:$0xf] %vm2659, %v3557
  %3622 = vst.msk [vmem:[%s7 + $0x14] sm:$0xf] %vm2659, %v3558
  %3623 = vst.msk [vmem:[%s7 + $0x18] sm:$0xf] %vm2659, %v3559
  %3624 = vst.msk [vmem:[%s7 + $0x1c] sm:$0xf] %vm2659, %v3560
  %3625 = vst.msk [vmem:[%s7 + $0x20] sm:$0xf] %vm2659, %v3561
  %3626 = vst.msk [vmem:[%s7 + $0x24] sm:$0xf] %vm2659, %v3562
  %3627 = vst.msk [vmem:[%s7 + $0x28] sm:$0xf] %vm2659, %v3563
  %3628 = vst.msk [vmem:[%s7 + $0x2c] sm:$0xf] %vm2659, %v3564
  %3629 = vst.msk [vmem:[%s7 + $0x30] sm:$0xf] %vm2659, %v3565
  %3630 = vst.msk [vmem:[%s7 + $0x34] sm:$0xf] %vm2659, %v3566
  %3631 = vst.msk [vmem:[%s7 + $0x38] sm:$0xf] %vm2659, %v3567
  %3632 = vst.msk [vmem:[%s7 + $0x3c] sm:$0xf] %vm2659, %v3568
  %3633 = vst.msk [vmem:[%s7 + $0x40] sm:$0xf] %vm2659, %v3569
  %3634 = vst.msk [vmem:[%s7 + $0x44] sm:$0xf] %vm2659, %v3570
  %3635 = vst.msk [vmem:[%s7 + $0x48] sm:$0xf] %vm2659, %v3571
  %3636 = vst.msk [vmem:[%s7 + $0x4c] sm:$0xf] %vm2659, %v3572
  %3637 = vst.msk [vmem:[%s7 + $0x50] sm:$0xf] %vm2659, %v3573
  %3638 = vst.msk [vmem:[%s7 + $0x54] sm:$0xf] %vm2659, %v3574
  %3639 = vst.msk [vmem:[%s7 + $0x58] sm:$0xf] %vm2659, %v3575
  %3640 = vst.msk [vmem:[%s7 + $0x5c] sm:$0xf] %vm2659, %v3576
  %3641 = vst.msk [vmem:[%s7 + $0x60] sm:$0xf] %vm2659, %v3577
  %3642 = vst.msk [vmem:[%s7 + $0x64] sm:$0xf] %vm2659, %v3578
  %3643 = vst.msk [vmem:[%s7 + $0x68] sm:$0xf] %vm2659, %v3579
  %3644 = vst.msk [vmem:[%s7 + $0x6c] sm:$0xf] %vm2659, %v3580
  %3645 = vst.msk [vmem:[%s7 + $0x70] sm:$0xf] %vm2659, %v3581
  %3646 = vst.msk [vmem:[%s7 + $0x74] sm:$0xf] %vm2659, %v3582
  %3647 = vst.msk [vmem:[%s7 + $0x78] sm:$0xf] %vm2659, %v3583
  %3648 = vst.msk [vmem:[%s7 + $0x7c] sm:$0xf] %vm2659, %v3584
  %3649 = vst.msk [vmem:[%s7 + $0x80] sm:$0xf] %vm2659, %v3585
  %3650 = vst.msk [vmem:[%s7 + $0x84] sm:$0xf] %vm2659, %v3586
  %3651 = vst.msk [vmem:[%s7 + $0x88] sm:$0xf] %vm2659, %v3587
  %3652 = vst.msk [vmem:[%s7 + $0x8c] sm:$0xf] %vm2659, %v3588
  %3653 = vst.msk [vmem:[%s7 + $0x90] sm:$0xf] %vm2659, %v3589
  %3654 = vst.msk [vmem:[%s7 + $0x94] sm:$0xf] %vm2659, %v3590
  %3655 = vst.msk [vmem:[%s7 + $0x98] sm:$0xf] %vm2659, %v3591
  %3656 = vst.msk [vmem:[%s7 + $0x9c] sm:$0xf] %vm2659, %v3592
  %3657 = vst.msk [vmem:[%s7 + $0xa0] sm:$0xf] %vm2659, %v3593
  %3658 = vst.msk [vmem:[%s7 + $0xa4] sm:$0xf] %vm2659, %v3594
  %3659 = vst.msk [vmem:[%s7 + $0xa8] sm:$0xf] %vm2659, %v3595
  %3660 = vst.msk [vmem:[%s7 + $0xac] sm:$0xf] %vm2659, %v3596
  %3661 = vst.msk [vmem:[%s7 + $0xb0] sm:$0xf] %vm2659, %v3597
  %3662 = vst.msk [vmem:[%s7 + $0xb4] sm:$0xf] %vm2659, %v3598
  %3663 = vst.msk [vmem:[%s7 + $0xb8] sm:$0xf] %vm2659, %v3599
  %3664 = vst.msk [vmem:[%s7 + $0xbc] sm:$0xf] %vm2659, %v3600
  %3665 = vst.msk [vmem:[%s7 + $0xc0] sm:$0xf] %vm2659, %v3601
  %3666 = vst.msk [vmem:[%s7 + $0xc4] sm:$0xf] %vm2659, %v3602
  %3667 = vst.msk [vmem:[%s7 + $0xc8] sm:$0xf] %vm2659, %v3603
  %3668 = vst.msk [vmem:[%s7 + $0xcc] sm:$0xf] %vm2659, %v3604
  %3669 = vst.msk [vmem:[%s7 + $0xd0] sm:$0xf] %vm2659, %v3605
  %3670 = vst.msk [vmem:[%s7 + $0xd4] sm:$0xf] %vm2659, %v3606
  %3671 = vst.msk [vmem:[%s7 + $0xd8] sm:$0xf] %vm2659, %v3607
  %3672 = vst.msk [vmem:[%s7 + $0xdc] sm:$0xf] %vm2659, %v3608
  %3673 = vst.msk [vmem:[%s7 + $0xe0] sm:$0xf] %vm2659, %v3609
  %3674 = vst.msk [vmem:[%s7 + $0xe4] sm:$0xf] %vm2659, %v3610
  %3675 = vst.msk [vmem:[%s7 + $0xe8] sm:$0xf] %vm2659, %v3611
  %3676 = vst.msk [vmem:[%s7 + $0xec] sm:$0xf] %vm2659, %v3612
  %3677 = vst.msk [vmem:[%s7 + $0xf0] sm:$0xf] %vm2659, %v3613
  %3678 = vst.msk [vmem:[%s7 + $0xf4] sm:$0xf] %vm2659, %v3614
  %3679 = vst.msk [vmem:[%s7 + $0xf8] sm:$0xf] %vm2659, %v3615
  %3680 = vst.msk [vmem:[%s7 + $0xfc] sm:$0xf] %vm2659, %v3616
  // Predicated region
  $region26: #{basicblock_forward.3} parent=0 // pred_check
    _
  $region27: #{basicblock_forward.3} parent=0 // pred_check_branch
    %3682 = sbr.rel (0) target = $region29
  $region28: #{basicblock_forward.3} parent=0 // pred_region
    _
  $region29: #{basicblock_forward.3} parent=0 // pred_fallthru
    _
  // Predicated region
  $region30: #{basicblock_forward.3} parent=0 // pred_check
    _
  $region31: #{basicblock_forward.3} parent=0 // pred_check_branch
    %3684 = sbr.rel (0) target = $region33
  $region32: #{basicblock_forward.3} parent=0 // pred_region
    _
  $region33: #{basicblock_forward.3} parent=0 // pred_fallthru
    _
  // Predicated region
  $region34: #{basicblock_forward.3} parent=0 // pred_check
    _
  $region35: #{basicblock_forward.3} parent=0 // pred_check_branch
    %3686 = sbr.rel (0) target = $region37
  $region36: #{basicblock_forward.3} parent=0 // pred_region
    _
  $region37: #{basicblock_forward.3} parent=0 // pred_fallthru
    _
  // Predicated region
  $region38: #{basicblock_forward.3} parent=0 // pred_check
    _
  $region39: #{basicblock_forward.3} parent=0 // pred_check_branch
    %3688 = sbr.rel (0) target = $region41
  $region40: #{basicblock_forward.3} parent=0 // pred_region
    _
  $region41: #{basicblock_forward.3} parent=0 // pred_fallthru
    _
  // Predicated region
  $region42: #{basicblock_forward.3} parent=0 // pred_check
    _
  $region43: #{basicblock_forward.3} parent=0 // pred_check_branch
    %3690 = sbr.rel (0) target = $region45
  $region44: #{basicblock_forward.3} parent=0 // pred_region
    _
  $region45: #{basicblock_forward.3} parent=0 // pred_fallthru
    _
  // Predicated region
  $region46: #{basicblock_forward.3} parent=0 // pred_check
    _
  $region47: #{basicblock_forward.3} parent=0 // pred_check_branch
    %3692 = sbr.rel (0) target = $region49
  $region48: #{basicblock_forward.3} parent=0 // pred_region
    _
  $region49: #{basicblock_forward.3} parent=0 // pred_fallthru
    _
  // Predicated region
  $region50: #{basicblock_forward.3} parent=0 // pred_check
    _
  $region51: #{basicblock_forward.3} parent=0 // pred_check_branch
    %3694 = sbr.rel (0) target = $region53
  $region52: #{basicblock_forward.3} parent=0 // pred_region
    _
  $region53: #{basicblock_forward.3} parent=0 // pred_fallthru
    _
  // Predicated region
  $region54: #{basicblock_forward.3} parent=0 // pred_check
    _
  $region55: #{basicblock_forward.3} parent=0 // pred_check_branch
    %3696 = sbr.rel (0) target = $region57
  $region56: #{basicblock_forward.3} parent=0 // pred_region
    _
  $region57: #{basicblock_forward.3} parent=0 // pred_fallthru
    _
  // Predicated region
  $region58: #{basicblock_forward.3} parent=0 // pred_check
    _
  $region59: #{basicblock_forward.3} parent=0 // pred_check_branch
    %3698 = sbr.rel (0) target = $region61
  $region60: #{basicblock_forward.3} parent=0 // pred_region
    _
  $region61: #{basicblock_forward.3} parent=0 // pred_fallthru
    _
  // Predicated region
  $region62: #{basicblock_forward.3} parent=0 // pred_check
    _
  $region63: #{basicblock_forward.3} parent=0 // pred_check_branch
    %3700 = sbr.rel (0) target = $region65
  $region64: #{basicblock_forward.3} parent=0 // pred_region
    _
  $region65: #{basicblock_forward.3} parent=0 // pred_fallthru
    _
  // Predicated region
  $region66: #{basicblock_forward.3} parent=0 // pred_check
    _
  $region67: #{basicblock_forward.3} parent=0 // pred_check_branch
    %3702 = sbr.rel (0) target = $region69
  $region68: #{basicblock_forward.3} parent=0 // pred_region
    _
  $region69: #{basicblock_forward.3} parent=0 // pred_fallthru
    _
  // Predicated region
  $region70: #{basicblock_forward.3} parent=0 // pred_check
    _
  $region71: #{basicblock_forward.3} parent=0 // pred_check_branch
    %3704 = sbr.rel (0) target = $region73
  $region72: #{basicblock_forward.3} parent=0 // pred_region
    _
  $region73: #{basicblock_forward.3} parent=0 // pred_fallthru
    _

// kernel: basicblock_forward.4
$region0: #{basicblock_forward.4}
  #allocation0 [shape = 'u32[]', space=smem, size = 0x4, offset = 0x4, fixed_abs, tag = 'smem constant byte address 0x4 - core index']
  #allocation1 [shape = 'u32[72,128]{1,0:T(1,128)}', space=vmem, size = 0x9000, scoped, tag = 'internal scratch']
  #allocation2 [shape = 'bf16[2,18,33,8]{3,2,1,0:T(8,128)(2,1)}', space=vmem, size = 0x5a000, scoped, tag = 'scratch operand']
  %s0 = inlined_call_operand.vmem [shape: bf16[2,16,16,8], index: 0, kind: input, shape index: {}]
  %s1 = inlined_call_operand.vmem [shape: f32[1,8], index: 1, kind: input, shape index: {}]
  %s2 = inlined_call_operand.vmem [shape: f32[1,8], index: 2, kind: input, shape index: {}]
  %s3 = inlined_call_operand.vmem [shape: bf16[72,8], index: 3, kind: input, shape index: {}]
  %s4 = inlined_call_operand.vmem [shape: f32[1,8], index: 4, kind: input, shape index: {}]
  %s5 = inlined_call_operand.vmem [shape: bf16[2,256,8], index: 5, kind: output, shape index: {0}]
  %s6 = inlined_call_operand.vmem [shape: f32[1,1,8], index: 6, kind: output, shape index: {1}]
  %s7 = inlined_call_operand.vmem [shape: f32[1,1,8], index: 7, kind: output, shape index: {2}]
  %8 = xla_tuple %s5, %s6, %s7
  %s9 = sld [smem:[#allocation0]]
  $region46: #{basicblock_forward.4} parent=0
    _
  %s11 = ssub.s32 1, %s9
  %s12 = scalar_select 0, %s11, %s9
  // Predicated region
  $region2: #{basicblock_forward.4} parent=0 // pred_check
    _
  $region3: #{basicblock_forward.4} parent=0 // pred_check_branch
    %14 = sbr.rel (0) target = $region5
  $region4: #{basicblock_forward.4} parent=0 // pred_region
    _
  $region5: #{basicblock_forward.4} parent=0 // pred_fallthru
    _
  // Predicated region
  $region6: #{basicblock_forward.4} parent=0 // pred_check
    _
  $region7: #{basicblock_forward.4} parent=0 // pred_check_branch
    %16 = sbr.rel (0) target = $region9
  $region8: #{basicblock_forward.4} parent=0 // pred_region
    _
  $region9: #{basicblock_forward.4} parent=0 // pred_fallthru
    _
  // Predicated region
  $region10: #{basicblock_forward.4} parent=0 // pred_check
    _
  $region11: #{basicblock_forward.4} parent=0 // pred_check_branch
    %18 = sbr.rel (0) target = $region13
  $region12: #{basicblock_forward.4} parent=0 // pred_region
    _
  $region13: #{basicblock_forward.4} parent=0 // pred_fallthru
    _
  // Predicated region
  $region14: #{basicblock_forward.4} parent=0 // pred_check
    _
  $region15: #{basicblock_forward.4} parent=0 // pred_check_branch
    %20 = sbr.rel (0) target = $region17
  $region16: #{basicblock_forward.4} parent=0 // pred_region
    _
  $region17: #{basicblock_forward.4} parent=0 // pred_fallthru
    _
  // Predicated region
  $region18: #{basicblock_forward.4} parent=0 // pred_check
    _
  $region19: #{basicblock_forward.4} parent=0 // pred_check_branch
    %22 = sbr.rel (0) target = $region21
  $region20: #{basicblock_forward.4} parent=0 // pred_region
    _
  $region21: #{basicblock_forward.4} parent=0 // pred_fallthru
    _
  %vm24 = vcmask 60419
  %vm25 = vsmask.f32 7950
  %vm26 = vmand %vm24, %vm25
  %v27 = vld [vmem:[#allocation2 + $0x4] sm:$0x8]
  %v28 = vsel %vm26, 0, %v27
  %29 = vst [vmem:[#allocation2 + $0x4] sm:$0x8] %v28
  %vm30 = vcmask 60416
  %31 = vst.msk [vmem:[#allocation2 + $0x8] sm:$0xf] %vm30, 0
  %32 = vst.msk [vmem:[#allocation2 + $0xc] sm:$0xf] %vm30, 0
  %vm33 = vcmask 57344
  %vm34 = vsmask.f32 256
  %vm35 = vmand %vm33, %vm34
  %v36 = vld [vmem:[#allocation2 + $0x10] sm:$0x1]
  %v37 = vsel %vm35, 0, %v36
  %38 = vst [vmem:[#allocation2 + $0x10] sm:$0x1] %v37
  %v39 = vld [vmem:[#allocation2 + $0x16c] sm:$0x8]
  %v40 = vsel %vm26, 0, %v39
  %41 = vst [vmem:[#allocation2 + $0x16c] sm:$0x8] %v40
  %42 = vst.msk [vmem:[#allocation2 + $0x170] sm:$0xf] %vm30, 0
  %43 = vst.msk [vmem:[#allocation2 + $0x174] sm:$0xf] %vm30, 0
  %v44 = vld [vmem:[#allocation2 + $0x178] sm:$0x1]
  %v45 = vsel %vm35, 0, %v44
  %46 = vst [vmem:[#allocation2 + $0x178] sm:$0x1] %v45
  %s47 = scalar_lea.vmem [#allocation2], 340
  %v48 = vld [vmem:[%s47 + $0x4] sm:$0x8]
  %v49 = vsel %vm26, 0, %v48
  %50 = vst [vmem:[%s47 + $0x4] sm:$0x8] %v49
  %51 = vst.msk [vmem:[%s47 + $0x8] sm:$0xf] %vm30, 0
  %52 = vst.msk [vmem:[%s47 + $0xc] sm:$0xf] %vm30, 0
  %v53 = vld [vmem:[%s47 + $0x10] sm:$0x1]
  %v54 = vsel %vm35, 0, %v53
  %55 = vst [vmem:[%s47 + $0x10] sm:$0x1] %v54
  %v56 = vld [vmem:[%s47 + $0x16c] sm:$0x8]
  %v57 = vsel %vm26, 0, %v56
  %58 = vst [vmem:[%s47 + $0x16c] sm:$0x8] %v57
  %59 = vst.msk [vmem:[%s47 + $0x170] sm:$0xf] %vm30, 0
  %60 = vst.msk [vmem:[%s47 + $0x174] sm:$0xf] %vm30, 0
  %v61 = vld [vmem:[%s47 + $0x178] sm:$0x1]
  %v62 = vsel %vm35, 0, %v61
  %63 = vst [vmem:[%s47 + $0x178] sm:$0x1] %v62
  %v64 = vld [vmem:[#allocation2 + $0x4] sm:$0x8]
  %v65 = vsel %vm26, 0, %v64
  %66 = vst [vmem:[#allocation2 + $0x4] sm:$0x8] %v65
  %v67 = vld [vmem:[#allocation2 + $0x18] sm:$0x8]
  %v68 = vsel %vm26, 0, %v67
  %69 = vst [vmem:[#allocation2 + $0x18] sm:$0x8] %v68
  %v70 = vld [vmem:[#allocation2 + $0x2c] sm:$0x8]
  %v71 = vsel %vm26, 0, %v70
  %72 = vst [vmem:[#allocation2 + $0x2c] sm:$0x8] %v71
  %v73 = vld [vmem:[#allocation2 + $0x40] sm:$0x8]
  %v74 = vsel %vm26, 0, %v73
  %75 = vst [vmem:[#allocation2 + $0x40] sm:$0x8] %v74
  %v76 = vld [vmem:[#allocation2 + $0x54] sm:$0x8]
  %v77 = vsel %vm26, 0, %v76
  %78 = vst [vmem:[#allocation2 + $0x54] sm:$0x8] %v77
  %v79 = vld [vmem:[#allocation2 + $0x68] sm:$0x8]
  %v80 = vsel %vm26, 0, %v79
  %81 = vst [vmem:[#allocation2 + $0x68] sm:$0x8] %v80
  %v82 = vld [vmem:[#allocation2 + $0x7c] sm:$0x8]
  %v83 = vsel %vm26, 0, %v82
  %84 = vst [vmem:[#allocation2 + $0x7c] sm:$0x8] %v83
  %v85 = vld [vmem:[#allocation2 + $0x90] sm:$0x8]
  %v86 = vsel %vm26, 0, %v85
  %87 = vst [vmem:[#allocation2 + $0x90] sm:$0x8] %v86
  %v88 = vld [vmem:[#allocation2 + $0xa4] sm:$0x8]
  %v89 = vsel %vm26, 0, %v88
  %90 = vst [vmem:[#allocation2 + $0xa4] sm:$0x8] %v89
  %v91 = vld [vmem:[#allocation2 + $0xb8] sm:$0x8]
  %v92 = vsel %vm26, 0, %v91
  %93 = vst [vmem:[#allocation2 + $0xb8] sm:$0x8] %v92
  %v94 = vld [vmem:[#allocation2 + $0xcc] sm:$0x8]
  %v95 = vsel %vm26, 0, %v94
  %96 = vst [vmem:[#allocation2 + $0xcc] sm:$0x8] %v95
  %v97 = vld [vmem:[#allocation2 + $0xe0] sm:$0x8]
  %v98 = vsel %vm26, 0, %v97
  %99 = vst [vmem:[#allocation2 + $0xe0] sm:$0x8] %v98
  %v100 = vld [vmem:[#allocation2 + $0xf4] sm:$0x8]
  %v101 = vsel %vm26, 0, %v100
  %102 = vst [vmem:[#allocation2 + $0xf4] sm:$0x8] %v101
  %v103 = vld [vmem:[#allocation2 + $0x108] sm:$0x8]
  %v104 = vsel %vm26, 0, %v103
  %105 = vst [vmem:[#allocation2 + $0x108] sm:$0x8] %v104
  %v106 = vld [vmem:[#allocation2 + $0x11c] sm:$0x8]
  %v107 = vsel %vm26, 0, %v106
  %108 = vst [vmem:[#allocation2 + $0x11c] sm:$0x8] %v107
  %v109 = vld [vmem:[#allocation2 + $0x130] sm:$0x8]
  %v110 = vsel %vm26, 0, %v109
  %111 = vst [vmem:[#allocation2 + $0x130] sm:$0x8] %v110
  %v112 = vld [vmem:[#allocation2 + $0x144] sm:$0x8]
  %v113 = vsel %vm26, 0, %v112
  %114 = vst [vmem:[#allocation2 + $0x144] sm:$0x8] %v113
  %v115 = vld [vmem:[#allocation2 + $0x158] sm:$0x8]
  %v116 = vsel %vm26, 0, %v115
  %117 = vst [vmem:[#allocation2 + $0x158] sm:$0x8] %v116
  %v118 = vld [vmem:[#allocation2 + $0x16c] sm:$0x8]
  %v119 = vsel %vm26, 0, %v118
  %120 = vst [vmem:[#allocation2 + $0x16c] sm:$0x8] %v119
  %v121 = vld [vmem:[#allocation2 + $0x180] sm:$0x8]
  %v122 = vsel %vm26, 0, %v121
  %123 = vst [vmem:[#allocation2 + $0x180] sm:$0x8] %v122
  %v124 = vld [vmem:[#allocation2 + $0x194] sm:$0x8]
  %v125 = vsel %vm26, 0, %v124
  %126 = vst [vmem:[#allocation2 + $0x194] sm:$0x8] %v125
  %v127 = vld [vmem:[#allocation2 + $0x1a8] sm:$0x8]
  %v128 = vsel %vm26, 0, %v127
  %129 = vst [vmem:[#allocation2 + $0x1a8] sm:$0x8] %v128
  %v130 = vld [vmem:[#allocation2 + $0x1bc] sm:$0x8]
  %v131 = vsel %vm26, 0, %v130
  %132 = vst [vmem:[#allocation2 + $0x1bc] sm:$0x8] %v131
  %v133 = vld [vmem:[#allocation2 + $0x1d0] sm:$0x8]
  %v134 = vsel %vm26, 0, %v133
  %135 = vst [vmem:[#allocation2 + $0x1d0] sm:$0x8] %v134
  %v136 = vld [vmem:[#allocation2 + $0x1e4] sm:$0x8]
  %v137 = vsel %vm26, 0, %v136
  %138 = vst [vmem:[#allocation2 + $0x1e4] sm:$0x8] %v137
  %v139 = vld [vmem:[#allocation2 + $0x1f8] sm:$0x8]
  %v140 = vsel %vm26, 0, %v139
  %141 = vst [vmem:[#allocation2 + $0x1f8] sm:$0x8] %v140
  %v142 = vld [vmem:[#allocation2 + $0x20c] sm:$0x8]
  %v143 = vsel %vm26, 0, %v142
  %144 = vst [vmem:[#allocation2 + $0x20c] sm:$0x8] %v143
  %v145 = vld [vmem:[#allocation2 + $0x220] sm:$0x8]
  %v146 = vsel %vm26, 0, %v145
  %147 = vst [vmem:[#allocation2 + $0x220] sm:$0x8] %v146
  %v148 = vld [vmem:[#allocation2 + $0x234] sm:$0x8]
  %v149 = vsel %vm26, 0, %v148
  %150 = vst [vmem:[#allocation2 + $0x234] sm:$0x8] %v149
  %v151 = vld [vmem:[#allocation2 + $0x248] sm:$0x8]
  %v152 = vsel %vm26, 0, %v151
  %153 = vst [vmem:[#allocation2 + $0x248] sm:$0x8] %v152
  %v154 = vld [vmem:[#allocation2 + $0x25c] sm:$0x8]
  %v155 = vsel %vm26, 0, %v154
  %156 = vst [vmem:[#allocation2 + $0x25c] sm:$0x8] %v155
  %v157 = vld [vmem:[#allocation2 + $0x270] sm:$0x8]
  %v158 = vsel %vm26, 0, %v157
  %159 = vst [vmem:[#allocation2 + $0x270] sm:$0x8] %v158
  %v160 = vld [vmem:[#allocation2 + $0x284] sm:$0x8]
  %v161 = vsel %vm26, 0, %v160
  %162 = vst [vmem:[#allocation2 + $0x284] sm:$0x8] %v161
  %v163 = vld [vmem:[#allocation2 + $0x298] sm:$0x8]
  %v164 = vsel %vm26, 0, %v163
  %165 = vst [vmem:[#allocation2 + $0x298] sm:$0x8] %v164
  %v166 = vld [vmem:[#allocation2 + $0x2ac] sm:$0x8]
  %v167 = vsel %vm26, 0, %v166
  %168 = vst [vmem:[#allocation2 + $0x2ac] sm:$0x8] %v167
  %v169 = vld [vmem:[#allocation2 + $0x2c0] sm:$0x8]
  %v170 = vsel %vm26, 0, %v169
  %171 = vst [vmem:[#allocation2 + $0x2c0] sm:$0x8] %v170
  %v172 = vld [vmem:[#allocation2 + $0x10] sm:$0x1]
  %v173 = vsel %vm35, 0, %v172
  %174 = vst [vmem:[#allocation2 + $0x10] sm:$0x1] %v173
  %v175 = vld [vmem:[#allocation2 + $0x24] sm:$0x1]
  %v176 = vsel %vm35, 0, %v175
  %177 = vst [vmem:[#allocation2 + $0x24] sm:$0x1] %v176
  %v178 = vld [vmem:[#allocation2 + $0x38] sm:$0x1]
  %v179 = vsel %vm35, 0, %v178
  %180 = vst [vmem:[#allocation2 + $0x38] sm:$0x1] %v179
  %v181 = vld [vmem:[#allocation2 + $0x4c] sm:$0x1]
  %v182 = vsel %vm35, 0, %v181
  %183 = vst [vmem:[#allocation2 + $0x4c] sm:$0x1] %v182
  %v184 = vld [vmem:[#allocation2 + $0x60] sm:$0x1]
  %v185 = vsel %vm35, 0, %v184
  %186 = vst [vmem:[#allocation2 + $0x60] sm:$0x1] %v185
  %v187 = vld [vmem:[#allocation2 + $0x74] sm:$0x1]
  %v188 = vsel %vm35, 0, %v187
  %189 = vst [vmem:[#allocation2 + $0x74] sm:$0x1] %v188
  %v190 = vld [vmem:[#allocation2 + $0x88] sm:$0x1]
  %v191 = vsel %vm35, 0, %v190
  %192 = vst [vmem:[#allocation2 + $0x88] sm:$0x1] %v191
  %v193 = vld [vmem:[#allocation2 + $0x9c] sm:$0x1]
  %v194 = vsel %vm35, 0, %v193
  %195 = vst [vmem:[#allocation2 + $0x9c] sm:$0x1] %v194
  %v196 = vld [vmem:[#allocation2 + $0xb0] sm:$0x1]
  %v197 = vsel %vm35, 0, %v196
  %198 = vst [vmem:[#allocation2 + $0xb0] sm:$0x1] %v197
  %v199 = vld [vmem:[#allocation2 + $0xc4] sm:$0x1]
  %v200 = vsel %vm35, 0, %v199
  %201 = vst [vmem:[#allocation2 + $0xc4] sm:$0x1] %v200
  %v202 = vld [vmem:[#allocation2 + $0xd8] sm:$0x1]
  %v203 = vsel %vm35, 0, %v202
  %204 = vst [vmem:[#allocation2 + $0xd8] sm:$0x1] %v203
  %v205 = vld [vmem:[#allocation2 + $0xec] sm:$0x1]
  %v206 = vsel %vm35, 0, %v205
  %207 = vst [vmem:[#allocation2 + $0xec] sm:$0x1] %v206
  %v208 = vld [vmem:[#allocation2 + $0x100] sm:$0x1]
  %v209 = vsel %vm35, 0, %v208
  %210 = vst [vmem:[#allocation2 + $0x100] sm:$0x1] %v209
  %v211 = vld [vmem:[#allocation2 + $0x114] sm:$0x1]
  %v212 = vsel %vm35, 0, %v211
  %213 = vst [vmem:[#allocation2 + $0x114] sm:$0x1] %v212
  %v214 = vld [vmem:[#allocation2 + $0x128] sm:$0x1]
  %v215 = vsel %vm35, 0, %v214
  %216 = vst [vmem:[#allocation2 + $0x128] sm:$0x1] %v215
  %v217 = vld [vmem:[#allocation2 + $0x13c] sm:$0x1]
  %v218 = vsel %vm35, 0, %v217
  %219 = vst [vmem:[#allocation2 + $0x13c] sm:$0x1] %v218
  %v220 = vld [vmem:[#allocation2 + $0x150] sm:$0x1]
  %v221 = vsel %vm35, 0, %v220
  %222 = vst [vmem:[#allocation2 + $0x150] sm:$0x1] %v221
  %v223 = vld [vmem:[#allocation2 + $0x164] sm:$0x1]
  %v224 = vsel %vm35, 0, %v223
  %225 = vst [vmem:[#allocation2 + $0x164] sm:$0x1] %v224
  %v226 = vld [vmem:[#allocation2 + $0x178] sm:$0x1]
  %v227 = vsel %vm35, 0, %v226
  %228 = vst [vmem:[#allocation2 + $0x178] sm:$0x1] %v227
  %v229 = vld [vmem:[#allocation2 + $0x18c] sm:$0x1]
  %v230 = vsel %vm35, 0, %v229
  %231 = vst [vmem:[#allocation2 + $0x18c] sm:$0x1] %v230
  %v232 = vld [vmem:[#allocation2 + $0x1a0] sm:$0x1]
  %v233 = vsel %vm35, 0, %v232
  %234 = vst [vmem:[#allocation2 + $0x1a0] sm:$0x1] %v233
  %v235 = vld [vmem:[#allocation2 + $0x1b4] sm:$0x1]
  %v236 = vsel %vm35, 0, %v235
  %237 = vst [vmem:[#allocation2 + $0x1b4] sm:$0x1] %v236
  %v238 = vld [vmem:[#allocation2 + $0x1c8] sm:$0x1]
  %v239 = vsel %vm35, 0, %v238
  %240 = vst [vmem:[#allocation2 + $0x1c8] sm:$0x1] %v239
  %v241 = vld [vmem:[#allocation2 + $0x1dc] sm:$0x1]
  %v242 = vsel %vm35, 0, %v241
  %243 = vst [vmem:[#allocation2 + $0x1dc] sm:$0x1] %v242
  %v244 = vld [vmem:[#allocation2 + $0x1f0] sm:$0x1]
  %v245 = vsel %vm35, 0, %v244
  %246 = vst [vmem:[#allocation2 + $0x1f0] sm:$0x1] %v245
  %v247 = vld [vmem:[#allocation2 + $0x204] sm:$0x1]
  %v248 = vsel %vm35, 0, %v247
  %249 = vst [vmem:[#allocation2 + $0x204] sm:$0x1] %v248
  %v250 = vld [vmem:[#allocation2 + $0x218] sm:$0x1]
  %v251 = vsel %vm35, 0, %v250
  %252 = vst [vmem:[#allocation2 + $0x218] sm:$0x1] %v251
  %v253 = vld [vmem:[#allocation2 + $0x22c] sm:$0x1]
  %v254 = vsel %vm35, 0, %v253
  %255 = vst [vmem:[#allocation2 + $0x22c] sm:$0x1] %v254
  %v256 = vld [vmem:[#allocation2 + $0x240] sm:$0x1]
  %v257 = vsel %vm35, 0, %v256
  %258 = vst [vmem:[#allocation2 + $0x240] sm:$0x1] %v257
  %v259 = vld [vmem:[#allocation2 + $0x254] sm:$0x1]
  %v260 = vsel %vm35, 0, %v259
  %261 = vst [vmem:[#allocation2 + $0x254] sm:$0x1] %v260
  %v262 = vld [vmem:[#allocation2 + $0x268] sm:$0x1]
  %v263 = vsel %vm35, 0, %v262
  %264 = vst [vmem:[#allocation2 + $0x268] sm:$0x1] %v263
  %v265 = vld [vmem:[#allocation2 + $0x27c] sm:$0x1]
  %v266 = vsel %vm35, 0, %v265
  %267 = vst [vmem:[#allocation2 + $0x27c] sm:$0x1] %v266
  %v268 = vld [vmem:[#allocation2 + $0x290] sm:$0x1]
  %v269 = vsel %vm35, 0, %v268
  %270 = vst [vmem:[#allocation2 + $0x290] sm:$0x1] %v269
  %v271 = vld [vmem:[#allocation2 + $0x2a4] sm:$0x1]
  %v272 = vsel %vm35, 0, %v271
  %273 = vst [vmem:[#allocation2 + $0x2a4] sm:$0x1] %v272
  %v274 = vld [vmem:[#allocation2 + $0x2b8] sm:$0x1]
  %v275 = vsel %vm35, 0, %v274
  %276 = vst [vmem:[#allocation2 + $0x2b8] sm:$0x1] %v275
  %v277 = vld [vmem:[#allocation2 + $0x2cc] sm:$0x1]
  %v278 = vsel %vm35, 0, %v277
  %279 = vst [vmem:[#allocation2 + $0x2cc] sm:$0x1] %v278
  %v280 = vld [vmem:[%s0] sm:$0xf]
  %v281 = vld [vmem:[%s0 + $0x4] sm:$0xf]
  %v282 = vld [vmem:[%s0 + $0x8] sm:$0xf]
  %v283 = vld [vmem:[%s0 + $0xc] sm:$0xf]
  %v284 = vld [vmem:[%s0 + $0x10] sm:$0xf]
  %v285 = vld [vmem:[%s0 + $0x14] sm:$0xf]
  %v286 = vld [vmem:[%s0 + $0x18] sm:$0xf]
  %v287 = vld [vmem:[%s0 + $0x1c] sm:$0xf]
  %v288 = vld [vmem:[%s0 + $0x20] sm:$0xf]
  %v289 = vld [vmem:[%s0 + $0x24] sm:$0xf]
  %v290 = vld [vmem:[%s0 + $0x28] sm:$0xf]
  %v291 = vld [vmem:[%s0 + $0x2c] sm:$0xf]
  %v292 = vld [vmem:[%s0 + $0x30] sm:$0xf]
  %v293 = vld [vmem:[%s0 + $0x34] sm:$0xf]
  %v294 = vld [vmem:[%s0 + $0x38] sm:$0xf]
  %v295 = vld [vmem:[%s0 + $0x3c] sm:$0xf]
  %v296 = vld [vmem:[%s0 + $0x40] sm:$0xf]
  %v297 = vld [vmem:[%s0 + $0x44] sm:$0xf]
  %v298 = vld [vmem:[%s0 + $0x48] sm:$0xf]
  %v299 = vld [vmem:[%s0 + $0x4c] sm:$0xf]
  %v300 = vld [vmem:[%s0 + $0x50] sm:$0xf]
  %v301 = vld [vmem:[%s0 + $0x54] sm:$0xf]
  %v302 = vld [vmem:[%s0 + $0x58] sm:$0xf]
  %v303 = vld [vmem:[%s0 + $0x5c] sm:$0xf]
  %v304 = vld [vmem:[%s0 + $0x60] sm:$0xf]
  %v305 = vld [vmem:[%s0 + $0x64] sm:$0xf]
  %v306 = vld [vmem:[%s0 + $0x68] sm:$0xf]
  %v307 = vld [vmem:[%s0 + $0x6c] sm:$0xf]
  %v308 = vld [vmem:[%s0 + $0x70] sm:$0xf]
  %v309 = vld [vmem:[%s0 + $0x74] sm:$0xf]
  %v310 = vld [vmem:[%s0 + $0x78] sm:$0xf]
  %v311 = vld [vmem:[%s0 + $0x7c] sm:$0xf]
  %v312 = vld [vmem:[%s0 + $0x80] sm:$0xf]
  %v313 = vld [vmem:[%s0 + $0x84] sm:$0xf]
  %v314 = vld [vmem:[%s0 + $0x88] sm:$0xf]
  %v315 = vld [vmem:[%s0 + $0x8c] sm:$0xf]
  %v316 = vld [vmem:[%s0 + $0x90] sm:$0xf]
  %v317 = vld [vmem:[%s0 + $0x94] sm:$0xf]
  %v318 = vld [vmem:[%s0 + $0x98] sm:$0xf]
  %v319 = vld [vmem:[%s0 + $0x9c] sm:$0xf]
  %v320 = vld [vmem:[%s0 + $0xa0] sm:$0xf]
  %v321 = vld [vmem:[%s0 + $0xa4] sm:$0xf]
  %v322 = vld [vmem:[%s0 + $0xa8] sm:$0xf]
  %v323 = vld [vmem:[%s0 + $0xac] sm:$0xf]
  %v324 = vld [vmem:[%s0 + $0xb0] sm:$0xf]
  %v325 = vld [vmem:[%s0 + $0xb4] sm:$0xf]
  %v326 = vld [vmem:[%s0 + $0xb8] sm:$0xf]
  %v327 = vld [vmem:[%s0 + $0xbc] sm:$0xf]
  %v328 = vld [vmem:[%s0 + $0xc0] sm:$0xf]
  %v329 = vld [vmem:[%s0 + $0xc4] sm:$0xf]
  %v330 = vld [vmem:[%s0 + $0xc8] sm:$0xf]
  %v331 = vld [vmem:[%s0 + $0xcc] sm:$0xf]
  %v332 = vld [vmem:[%s0 + $0xd0] sm:$0xf]
  %v333 = vld [vmem:[%s0 + $0xd4] sm:$0xf]
  %v334 = vld [vmem:[%s0 + $0xd8] sm:$0xf]
  %v335 = vld [vmem:[%s0 + $0xdc] sm:$0xf]
  %v336 = vld [vmem:[%s0 + $0xe0] sm:$0xf]
  %v337 = vld [vmem:[%s0 + $0xe4] sm:$0xf]
  %v338 = vld [vmem:[%s0 + $0xe8] sm:$0xf]
  %v339 = vld [vmem:[%s0 + $0xec] sm:$0xf]
  %v340 = vld [vmem:[%s0 + $0xf0] sm:$0xf]
  %v341 = vld [vmem:[%s0 + $0xf4] sm:$0xf]
  %v342 = vld [vmem:[%s0 + $0xf8] sm:$0xf]
  %v343 = vld [vmem:[%s0 + $0xfc] sm:$0xf]
  %v344 = vunpack.c.l.bf16 %v280
  %v345 = vunpack.c.l.bf16 %v281
  %v346 = vunpack.c.l.bf16 %v282
  %v347 = vunpack.c.l.bf16 %v283
  %v348 = vunpack.c.l.bf16 %v284
  %v349 = vunpack.c.l.bf16 %v285
  %v350 = vunpack.c.l.bf16 %v286
  %v351 = vunpack.c.l.bf16 %v287
  %v352 = vunpack.c.l.bf16 %v288
  %v353 = vunpack.c.l.bf16 %v289
  %v354 = vunpack.c.l.bf16 %v290
  %v355 = vunpack.c.l.bf16 %v291
  %v356 = vunpack.c.l.bf16 %v292
  %v357 = vunpack.c.l.bf16 %v293
  %v358 = vunpack.c.l.bf16 %v294
  %v359 = vunpack.c.l.bf16 %v295
  %v360 = vunpack.c.l.bf16 %v296
  %v361 = vunpack.c.l.bf16 %v297
  %v362 = vunpack.c.l.bf16 %v298
  %v363 = vunpack.c.l.bf16 %v299
  %v364 = vunpack.c.l.bf16 %v300
  %v365 = vunpack.c.l.bf16 %v301
  %v366 = vunpack.c.l.bf16 %v302
  %v367 = vunpack.c.l.bf16 %v303
  %v368 = vunpack.c.l.bf16 %v304
  %v369 = vunpack.c.l.bf16 %v305
  %v370 = vunpack.c.l.bf16 %v306
  %v371 = vunpack.c.l.bf16 %v307
  %v372 = vunpack.c.l.bf16 %v308
  %v373 = vunpack.c.l.bf16 %v309
  %v374 = vunpack.c.l.bf16 %v310
  %v375 = vunpack.c.l.bf16 %v311
  %v376 = vunpack.c.l.bf16 %v312
  %v377 = vunpack.c.l.bf16 %v313
  %v378 = vunpack.c.l.bf16 %v314
  %v379 = vunpack.c.l.bf16 %v315
  %v380 = vunpack.c.l.bf16 %v316
  %v381 = vunpack.c.l.bf16 %v317
  %v382 = vunpack.c.l.bf16 %v318
  %v383 = vunpack.c.l.bf16 %v319
  %v384 = vunpack.c.l.bf16 %v320
  %v385 = vunpack.c.l.bf16 %v321
  %v386 = vunpack.c.l.bf16 %v322
  %v387 = vunpack.c.l.bf16 %v323
  %v388 = vunpack.c.l.bf16 %v324
  %v389 = vunpack.c.l.bf16 %v325
  %v390 = vunpack.c.l.bf16 %v326
  %v391 = vunpack.c.l.bf16 %v327
  %v392 = vunpack.c.l.bf16 %v328
  %v393 = vunpack.c.l.bf16 %v329
  %v394 = vunpack.c.l.bf16 %v330
  %v395 = vunpack.c.l.bf16 %v331
  %v396 = vunpack.c.l.bf16 %v332
  %v397 = vunpack.c.l.bf16 %v333
  %v398 = vunpack.c.l.bf16 %v334
  %v399 = vunpack.c.l.bf16 %v335
  %v400 = vunpack.c.l.bf16 %v336
  %v401 = vunpack.c.l.bf16 %v337
  %v402 = vunpack.c.l.bf16 %v338
  %v403 = vunpack.c.l.bf16 %v339
  %v404 = vunpack.c.l.bf16 %v340
  %v405 = vunpack.c.l.bf16 %v341
  %v406 = vunpack.c.l.bf16 %v342
  %v407 = vunpack.c.l.bf16 %v343
  %v408 = vld [vmem:[%s1] sm:$0x1]
  %v410 = vperm.slane %v408, 0
  %v412 = vmul.f32 %v344, %v410
  %v413 = vmul.f32 %v345, %v410
  %v414 = vmul.f32 %v346, %v410
  %v415 = vmul.f32 %v347, %v410
  %v416 = vmul.f32 %v348, %v410
  %v417 = vmul.f32 %v349, %v410
  %v418 = vmul.f32 %v350, %v410
  %v419 = vmul.f32 %v351, %v410
  %v420 = vmul.f32 %v352, %v410
  %v421 = vmul.f32 %v353, %v410
  %v422 = vmul.f32 %v354, %v410
  %v423 = vmul.f32 %v355, %v410
  %v424 = vmul.f32 %v356, %v410
  %v425 = vmul.f32 %v357, %v410
  %v426 = vmul.f32 %v358, %v410
  %v427 = vmul.f32 %v359, %v410
  %v428 = vmul.f32 %v360, %v410
  %v429 = vmul.f32 %v361, %v410
  %v430 = vmul.f32 %v362, %v410
  %v431 = vmul.f32 %v363, %v410
  %v432 = vmul.f32 %v364, %v410
  %v433 = vmul.f32 %v365, %v410
  %v434 = vmul.f32 %v366, %v410
  %v435 = vmul.f32 %v367, %v410
  %v436 = vmul.f32 %v368, %v410
  %v437 = vmul.f32 %v369, %v410
  %v438 = vmul.f32 %v370, %v410
  %v439 = vmul.f32 %v371, %v410
  %v440 = vmul.f32 %v372, %v410
  %v441 = vmul.f32 %v373, %v410
  %v442 = vmul.f32 %v374, %v410
  %v443 = vmul.f32 %v375, %v410
  %v444 = vmul.f32 %v376, %v410
  %v445 = vmul.f32 %v377, %v410
  %v446 = vmul.f32 %v378, %v410
  %v447 = vmul.f32 %v379, %v410
  %v448 = vmul.f32 %v380, %v410
  %v449 = vmul.f32 %v381, %v410
  %v450 = vmul.f32 %v382, %v410
  %v451 = vmul.f32 %v383, %v410
  %v452 = vmul.f32 %v384, %v410
  %v453 = vmul.f32 %v385, %v410
  %v454 = vmul.f32 %v386, %v410
  %v455 = vmul.f32 %v387, %v410
  %v456 = vmul.f32 %v388, %v410
  %v457 = vmul.f32 %v389, %v410
  %v458 = vmul.f32 %v390, %v410
  %v459 = vmul.f32 %v391, %v410
  %v460 = vmul.f32 %v392, %v410
  %v461 = vmul.f32 %v393, %v410
  %v462 = vmul.f32 %v394, %v410
  %v463 = vmul.f32 %v395, %v410
  %v464 = vmul.f32 %v396, %v410
  %v465 = vmul.f32 %v397, %v410
  %v466 = vmul.f32 %v398, %v410
  %v467 = vmul.f32 %v399, %v410
  %v468 = vmul.f32 %v400, %v410
  %v469 = vmul.f32 %v401, %v410
  %v470 = vmul.f32 %v402, %v410
  %v471 = vmul.f32 %v403, %v410
  %v472 = vmul.f32 %v404, %v410
  %v473 = vmul.f32 %v405, %v410
  %v474 = vmul.f32 %v406, %v410
  %v475 = vmul.f32 %v407, %v410
  %v476 = vld [vmem:[%s2] sm:$0x1]
  %v478 = vperm.slane %v476, 0
  %v480 = vadd.f32 %v412, %v478
  %v481 = vadd.f32 %v413, %v478
  %v482 = vadd.f32 %v414, %v478
  %v483 = vadd.f32 %v415, %v478
  %v484 = vadd.f32 %v416, %v478
  %v485 = vadd.f32 %v417, %v478
  %v486 = vadd.f32 %v418, %v478
  %v487 = vadd.f32 %v419, %v478
  %v488 = vadd.f32 %v420, %v478
  %v489 = vadd.f32 %v421, %v478
  %v490 = vadd.f32 %v422, %v478
  %v491 = vadd.f32 %v423, %v478
  %v492 = vadd.f32 %v424, %v478
  %v493 = vadd.f32 %v425, %v478
  %v494 = vadd.f32 %v426, %v478
  %v495 = vadd.f32 %v427, %v478
  %v496 = vadd.f32 %v428, %v478
  %v497 = vadd.f32 %v429, %v478
  %v498 = vadd.f32 %v430, %v478
  %v499 = vadd.f32 %v431, %v478
  %v500 = vadd.f32 %v432, %v478
  %v501 = vadd.f32 %v433, %v478
  %v502 = vadd.f32 %v434, %v478
  %v503 = vadd.f32 %v435, %v478
  %v504 = vadd.f32 %v436, %v478
  %v505 = vadd.f32 %v437, %v478
  %v506 = vadd.f32 %v438, %v478
  %v507 = vadd.f32 %v439, %v478
  %v508 = vadd.f32 %v440, %v478
  %v509 = vadd.f32 %v441, %v478
  %v510 = vadd.f32 %v442, %v478
  %v511 = vadd.f32 %v443, %v478
  %v512 = vadd.f32 %v444, %v478
  %v513 = vadd.f32 %v445, %v478
  %v514 = vadd.f32 %v446, %v478
  %v515 = vadd.f32 %v447, %v478
  %v516 = vadd.f32 %v448, %v478
  %v517 = vadd.f32 %v449, %v478
  %v518 = vadd.f32 %v450, %v478
  %v519 = vadd.f32 %v451, %v478
  %v520 = vadd.f32 %v452, %v478
  %v521 = vadd.f32 %v453, %v478
  %v522 = vadd.f32 %v454, %v478
  %v523 = vadd.f32 %v455, %v478
  %v524 = vadd.f32 %v456, %v478
  %v525 = vadd.f32 %v457, %v478
  %v526 = vadd.f32 %v458, %v478
  %v527 = vadd.f32 %v459, %v478
  %v528 = vadd.f32 %v460, %v478
  %v529 = vadd.f32 %v461, %v478
  %v530 = vadd.f32 %v462, %v478
  %v531 = vadd.f32 %v463, %v478
  %v532 = vadd.f32 %v464, %v478
  %v533 = vadd.f32 %v465, %v478
  %v534 = vadd.f32 %v466, %v478
  %v535 = vadd.f32 %v467, %v478
  %v536 = vadd.f32 %v468, %v478
  %v537 = vadd.f32 %v469, %v478
  %v538 = vadd.f32 %v470, %v478
  %v539 = vadd.f32 %v471, %v478
  %v540 = vadd.f32 %v472, %v478
  %v541 = vadd.f32 %v473, %v478
  %v542 = vadd.f32 %v474, %v478
  %v543 = vadd.f32 %v475, %v478
  %v544 = vmax.f32 %v480, 0.0
  %v545 = vmax.f32 %v481, 0.0
  %v546 = vmax.f32 %v482, 0.0
  %v547 = vmax.f32 %v483, 0.0
  %v548 = vmax.f32 %v484, 0.0
  %v549 = vmax.f32 %v485, 0.0
  %v550 = vmax.f32 %v486, 0.0
  %v551 = vmax.f32 %v487, 0.0
  %v552 = vmax.f32 %v488, 0.0
  %v553 = vmax.f32 %v489, 0.0
  %v554 = vmax.f32 %v490, 0.0
  %v555 = vmax.f32 %v491, 0.0
  %v556 = vmax.f32 %v492, 0.0
  %v557 = vmax.f32 %v493, 0.0
  %v558 = vmax.f32 %v494, 0.0
  %v559 = vmax.f32 %v495, 0.0
  %v560 = vmax.f32 %v496, 0.0
  %v561 = vmax.f32 %v497, 0.0
  %v562 = vmax.f32 %v498, 0.0
  %v563 = vmax.f32 %v499, 0.0
  %v564 = vmax.f32 %v500, 0.0
  %v565 = vmax.f32 %v501, 0.0
  %v566 = vmax.f32 %v502, 0.0
  %v567 = vmax.f32 %v503, 0.0
  %v568 = vmax.f32 %v504, 0.0
  %v569 = vmax.f32 %v505, 0.0
  %v570 = vmax.f32 %v506, 0.0
  %v571 = vmax.f32 %v507, 0.0
  %v572 = vmax.f32 %v508, 0.0
  %v573 = vmax.f32 %v509, 0.0
  %v574 = vmax.f32 %v510, 0.0
  %v575 = vmax.f32 %v511, 0.0
  %v576 = vmax.f32 %v512, 0.0
  %v577 = vmax.f32 %v513, 0.0
  %v578 = vmax.f32 %v514, 0.0
  %v579 = vmax.f32 %v515, 0.0
  %v580 = vmax.f32 %v516, 0.0
  %v581 = vmax.f32 %v517, 0.0
  %v582 = vmax.f32 %v518, 0.0
  %v583 = vmax.f32 %v519, 0.0
  %v584 = vmax.f32 %v520, 0.0
  %v585 = vmax.f32 %v521, 0.0
  %v586 = vmax.f32 %v522, 0.0
  %v587 = vmax.f32 %v523, 0.0
  %v588 = vmax.f32 %v524, 0.0
  %v589 = vmax.f32 %v525, 0.0
  %v590 = vmax.f32 %v526, 0.0
  %v591 = vmax.f32 %v527, 0.0
  %v592 = vmax.f32 %v528, 0.0
  %v593 = vmax.f32 %v529, 0.0
  %v594 = vmax.f32 %v530, 0.0
  %v595 = vmax.f32 %v531, 0.0
  %v596 = vmax.f32 %v532, 0.0
  %v597 = vmax.f32 %v533, 0.0
  %v598 = vmax.f32 %v534, 0.0
  %v599 = vmax.f32 %v535, 0.0
  %v600 = vmax.f32 %v536, 0.0
  %v601 = vmax.f32 %v537, 0.0
  %v602 = vmax.f32 %v538, 0.0
  %v603 = vmax.f32 %v539, 0.0
  %v604 = vmax.f32 %v540, 0.0
  %v605 = vmax.f32 %v541, 0.0
  %v606 = vmax.f32 %v542, 0.0
  %v607 = vmax.f32 %v543, 0.0
  %v608 = vpack.c.bf16 %v544, %v544
  %v609 = vpack.c.bf16 %v545, %v545
  %v610 = vpack.c.bf16 %v546, %v546
  %v611 = vpack.c.bf16 %v547, %v547
  %v612 = vpack.c.bf16 %v548, %v548
  %v613 = vpack.c.bf16 %v549, %v549
  %v614 = vpack.c.bf16 %v550, %v550
  %v615 = vpack.c.bf16 %v551, %v551
  %v616 = vpack.c.bf16 %v552, %v552
  %v617 = vpack.c.bf16 %v553, %v553
  %v618 = vpack.c.bf16 %v554, %v554
  %v619 = vpack.c.bf16 %v555, %v555
  %v620 = vpack.c.bf16 %v556, %v556
  %v621 = vpack.c.bf16 %v557, %v557
  %v622 = vpack.c.bf16 %v558, %v558
  %v623 = vpack.c.bf16 %v559, %v559
  %v624 = vpack.c.bf16 %v560, %v560
  %v625 = vpack.c.bf16 %v561, %v561
  %v626 = vpack.c.bf16 %v562, %v562
  %v627 = vpack.c.bf16 %v563, %v563
  %v628 = vpack.c.bf16 %v564, %v564
  %v629 = vpack.c.bf16 %v565, %v565
  %v630 = vpack.c.bf16 %v566, %v566
  %v631 = vpack.c.bf16 %v567, %v567
  %v632 = vpack.c.bf16 %v568, %v568
  %v633 = vpack.c.bf16 %v569, %v569
  %v634 = vpack.c.bf16 %v570, %v570
  %v635 = vpack.c.bf16 %v571, %v571
  %v636 = vpack.c.bf16 %v572, %v572
  %v637 = vpack.c.bf16 %v573, %v573
  %v638 = vpack.c.bf16 %v574, %v574
  %v639 = vpack.c.bf16 %v575, %v575
  %v640 = vpack.c.bf16 %v576, %v576
  %v641 = vpack.c.bf16 %v577, %v577
  %v642 = vpack.c.bf16 %v578, %v578
  %v643 = vpack.c.bf16 %v579, %v579
  %v644 = vpack.c.bf16 %v580, %v580
  %v645 = vpack.c.bf16 %v581, %v581
  %v646 = vpack.c.bf16 %v582, %v582
  %v647 = vpack.c.bf16 %v583, %v583
  %v648 = vpack.c.bf16 %v584, %v584
  %v649 = vpack.c.bf16 %v585, %v585
  %v650 = vpack.c.bf16 %v586, %v586
  %v651 = vpack.c.bf16 %v587, %v587
  %v652 = vpack.c.bf16 %v588, %v588
  %v653 = vpack.c.bf16 %v589, %v589
  %v654 = vpack.c.bf16 %v590, %v590
  %v655 = vpack.c.bf16 %v591, %v591
  %v656 = vpack.c.bf16 %v592, %v592
  %v657 = vpack.c.bf16 %v593, %v593
  %v658 = vpack.c.bf16 %v594, %v594
  %v659 = vpack.c.bf16 %v595, %v595
  %v660 = vpack.c.bf16 %v596, %v596
  %v661 = vpack.c.bf16 %v597, %v597
  %v662 = vpack.c.bf16 %v598, %v598
  %v663 = vpack.c.bf16 %v599, %v599
  %v664 = vpack.c.bf16 %v600, %v600
  %v665 = vpack.c.bf16 %v601, %v601
  %v666 = vpack.c.bf16 %v602, %v602
  %v667 = vpack.c.bf16 %v603, %v603
  %v668 = vpack.c.bf16 %v604, %v604
  %v669 = vpack.c.bf16 %v605, %v605
  %v670 = vpack.c.bf16 %v606, %v606
  %v671 = vpack.c.bf16 %v607, %v607
  %s672 = scalar_lea.vmem [#allocation2], 20
  %673 = vst.msk [vmem:[%s672 + $0x8] sm:$0xf] %vm30, %v608
  %674 = vst.msk [vmem:[%s672 + $0xc] sm:$0xf] %vm30, %v609
  %675 = vst.msk [vmem:[%s672 + $0x1c] sm:$0xf] %vm30, %v610
  %676 = vst.msk [vmem:[%s672 + $0x20] sm:$0xf] %vm30, %v611
  %677 = vst.msk [vmem:[%s672 + $0x30] sm:$0xf] %vm30, %v612
  %678 = vst.msk [vmem:[%s672 + $0x34] sm:$0xf] %vm30, %v613
  %679 = vst.msk [vmem:[%s672 + $0x44] sm:$0xf] %vm30, %v614
  %680 = vst.msk [vmem:[%s672 + $0x48] sm:$0xf] %vm30, %v615
  %681 = vst.msk [vmem:[%s672 + $0x58] sm:$0xf] %vm30, %v616
  %682 = vst.msk [vmem:[%s672 + $0x5c] sm:$0xf] %vm30, %v617
  %683 = vst.msk [vmem:[%s672 + $0x6c] sm:$0xf] %vm30, %v618
  %684 = vst.msk [vmem:[%s672 + $0x70] sm:$0xf] %vm30, %v619
  %685 = vst.msk [vmem:[%s672 + $0x80] sm:$0xf] %vm30, %v620
  %686 = vst.msk [vmem:[%s672 + $0x84] sm:$0xf] %vm30, %v621
  %687 = vst.msk [vmem:[%s672 + $0x94] sm:$0xf] %vm30, %v622
  %688 = vst.msk [vmem:[%s672 + $0x98] sm:$0xf] %vm30, %v623
  %689 = vst.msk [vmem:[%s672 + $0xa8] sm:$0xf] %vm30, %v624
  %690 = vst.msk [vmem:[%s672 + $0xac] sm:$0xf] %vm30, %v625
  %691 = vst.msk [vmem:[%s672 + $0xbc] sm:$0xf] %vm30, %v626
  %692 = vst.msk [vmem:[%s672 + $0xc0] sm:$0xf] %vm30, %v627
  %693 = vst.msk [vmem:[%s672 + $0xd0] sm:$0xf] %vm30, %v628
  %694 = vst.msk [vmem:[%s672 + $0xd4] sm:$0xf] %vm30, %v629
  %695 = vst.msk [vmem:[%s672 + $0xe4] sm:$0xf] %vm30, %v630
  %696 = vst.msk [vmem:[%s672 + $0xe8] sm:$0xf] %vm30, %v631
  %697 = vst.msk [vmem:[%s672 + $0xf8] sm:$0xf] %vm30, %v632
  %698 = vst.msk [vmem:[%s672 + $0xfc] sm:$0xf] %vm30, %v633
  %699 = vst.msk [vmem:[%s672 + $0x10c] sm:$0xf] %vm30, %v634
  %700 = vst.msk [vmem:[%s672 + $0x110] sm:$0xf] %vm30, %v635
  %701 = vst.msk [vmem:[%s672 + $0x120] sm:$0xf] %vm30, %v636
  %702 = vst.msk [vmem:[%s672 + $0x124] sm:$0xf] %vm30, %v637
  %703 = vst.msk [vmem:[%s672 + $0x134] sm:$0xf] %vm30, %v638
  %704 = vst.msk [vmem:[%s672 + $0x138] sm:$0xf] %vm30, %v639
  %705 = vst.msk [vmem:[%s672 + $0x170] sm:$0xf] %vm30, %v640
  %706 = vst.msk [vmem:[%s672 + $0x174] sm:$0xf] %vm30, %v641
  %707 = vst.msk [vmem:[%s672 + $0x184] sm:$0xf] %vm30, %v642
  %708 = vst.msk [vmem:[%s672 + $0x188] sm:$0xf] %vm30, %v643
  %709 = vst.msk [vmem:[%s672 + $0x198] sm:$0xf] %vm30, %v644
  %710 = vst.msk [vmem:[%s672 + $0x19c] sm:$0xf] %vm30, %v645
  %711 = vst.msk [vmem:[%s672 + $0x1ac] sm:$0xf] %vm30, %v646
  %712 = vst.msk [vmem:[%s672 + $0x1b0] sm:$0xf] %vm30, %v647
  %713 = vst.msk [vmem:[%s672 + $0x1c0] sm:$0xf] %vm30, %v648
  %714 = vst.msk [vmem:[%s672 + $0x1c4] sm:$0xf] %vm30, %v649
  %715 = vst.msk [vmem:[%s672 + $0x1d4] sm:$0xf] %vm30, %v650
  %716 = vst.msk [vmem:[%s672 + $0x1d8] sm:$0xf] %vm30, %v651
  %717 = vst.msk [vmem:[%s672 + $0x1e8] sm:$0xf] %vm30, %v652
  %718 = vst.msk [vmem:[%s672 + $0x1ec] sm:$0xf] %vm30, %v653
  %719 = vst.msk [vmem:[%s672 + $0x1fc] sm:$0xf] %vm30, %v654
  %720 = vst.msk [vmem:[%s672 + $0x200] sm:$0xf] %vm30, %v655
  %721 = vst.msk [vmem:[%s672 + $0x210] sm:$0xf] %vm30, %v656
  %722 = vst.msk [vmem:[%s672 + $0x214] sm:$0xf] %vm30, %v657
  %723 = vst.msk [vmem:[%s672 + $0x224] sm:$0xf] %vm30, %v658
  %724 = vst.msk [vmem:[%s672 + $0x228] sm:$0xf] %vm30, %v659
  %725 = vst.msk [vmem:[%s672 + $0x238] sm:$0xf] %vm30, %v660
  %726 = vst.msk [vmem:[%s672 + $0x23c] sm:$0xf] %vm30, %v661
  %727 = vst.msk [vmem:[%s672 + $0x24c] sm:$0xf] %vm30, %v662
  %728 = vst.msk [vmem:[%s672 + $0x250] sm:$0xf] %vm30, %v663
  %729 = vst.msk [vmem:[%s672 + $0x260] sm:$0xf] %vm30, %v664
  %730 = vst.msk [vmem:[%s672 + $0x264] sm:$0xf] %vm30, %v665
  %731 = vst.msk [vmem:[%s672 + $0x274] sm:$0xf] %vm30, %v666
  %732 = vst.msk [vmem:[%s672 + $0x278] sm:$0xf] %vm30, %v667
  %733 = vst.msk [vmem:[%s672 + $0x288] sm:$0xf] %vm30, %v668
  %734 = vst.msk [vmem:[%s672 + $0x28c] sm:$0xf] %vm30, %v669
  %735 = vst.msk [vmem:[%s672 + $0x29c] sm:$0xf] %vm30, %v670
  %736 = vst.msk [vmem:[%s672 + $0x2a0] sm:$0xf] %vm30, %v671
  %v737 = vld [vmem:[#allocation2 + $0x4] sm:$0x8]
  %v738 = vld [vmem:[#allocation2 + $0x8] sm:$0xf]
  %v739 = vld [vmem:[#allocation2 + $0xc] sm:$0xf]
  %v740 = vld [vmem:[#allocation2 + $0x10] sm:$0x1]
  %v741 = vld [vmem:[#allocation2 + $0x18] sm:$0x8]
  %v742 = vld [vmem:[#allocation2 + $0x1c] sm:$0xf]
  %v743 = vld [vmem:[#allocation2 + $0x20] sm:$0xf]
  %v744 = vld [vmem:[#allocation2 + $0x24] sm:$0x1]
  %v745 = vld [vmem:[#allocation2 + $0x2c] sm:$0x8]
  %v746 = vld [vmem:[#allocation2 + $0x30] sm:$0xf]
  %v747 = vld [vmem:[#allocation2 + $0x34] sm:$0xf]
  %v748 = vld [vmem:[#allocation2 + $0x38] sm:$0x1]
  %v749 = vld [vmem:[#allocation2 + $0x40] sm:$0x8]
  %v750 = vld [vmem:[#allocation2 + $0x44] sm:$0xf]
  %v751 = vld [vmem:[#allocation2 + $0x48] sm:$0xf]
  %v752 = vld [vmem:[#allocation2 + $0x4c] sm:$0x1]
  %v753 = vld [vmem:[#allocation2 + $0x54] sm:$0x8]
  %v754 = vld [vmem:[#allocation2 + $0x58] sm:$0xf]
  %v755 = vld [vmem:[#allocation2 + $0x5c] sm:$0xf]
  %v756 = vld [vmem:[#allocation2 + $0x60] sm:$0x1]
  %v757 = vld [vmem:[#allocation2 + $0x68] sm:$0x8]
  %v758 = vld [vmem:[#allocation2 + $0x6c] sm:$0xf]
  %v759 = vld [vmem:[#allocation2 + $0x70] sm:$0xf]
  %v760 = vld [vmem:[#allocation2 + $0x74] sm:$0x1]
  %v761 = vld [vmem:[#allocation2 + $0x7c] sm:$0x8]
  %v762 = vld [vmem:[#allocation2 + $0x80] sm:$0xf]
  %v763 = vld [vmem:[#allocation2 + $0x84] sm:$0xf]
  %v764 = vld [vmem:[#allocation2 + $0x88] sm:$0x1]
  %v765 = vld [vmem:[#allocation2 + $0x90] sm:$0x8]
  %v766 = vld [vmem:[#allocation2 + $0x94] sm:$0xf]
  %v767 = vld [vmem:[#allocation2 + $0x98] sm:$0xf]
  %v768 = vld [vmem:[#allocation2 + $0x9c] sm:$0x1]
  %v769 = vld [vmem:[#allocation2 + $0xa4] sm:$0x8]
  %v770 = vld [vmem:[#allocation2 + $0xa8] sm:$0xf]
  %v771 = vld [vmem:[#allocation2 + $0xac] sm:$0xf]
  %v772 = vld [vmem:[#allocation2 + $0xb0] sm:$0x1]
  %v773 = vld [vmem:[#allocation2 + $0xb8] sm:$0x8]
  %v774 = vld [vmem:[#allocation2 + $0xbc] sm:$0xf]
  %v775 = vld [vmem:[#allocation2 + $0xc0] sm:$0xf]
  %v776 = vld [vmem:[#allocation2 + $0xc4] sm:$0x1]
  %v777 = vld [vmem:[#allocation2 + $0xcc] sm:$0x8]
  %v778 = vld [vmem:[#allocation2 + $0xd0] sm:$0xf]
  %v779 = vld [vmem:[#allocation2 + $0xd4] sm:$0xf]
  %v780 = vld [vmem:[#allocation2 + $0xd8] sm:$0x1]
  %v781 = vld [vmem:[#allocation2 + $0xe0] sm:$0x8]
  %v782 = vld [vmem:[#allocation2 + $0xe4] sm:$0xf]
  %v783 = vld [vmem:[#allocation2 + $0xe8] sm:$0xf]
  %v784 = vld [vmem:[#allocation2 + $0xec] sm:$0x1]
  %v785 = vld [vmem:[#allocation2 + $0xf4] sm:$0x8]
  %v786 = vld [vmem:[#allocation2 + $0xf8] sm:$0xf]
  %v787 = vld [vmem:[#allocation2 + $0xfc] sm:$0xf]
  %v788 = vld [vmem:[#allocation2 + $0x100] sm:$0x1]
  %v789 = vld [vmem:[#allocation2 + $0x108] sm:$0x8]
  %v790 = vld [vmem:[#allocation2 + $0x10c] sm:$0xf]
  %v791 = vld [vmem:[#allocation2 + $0x110] sm:$0xf]
  %v792 = vld [vmem:[#allocation2 + $0x114] sm:$0x1]
  %v793 = vld [vmem:[#allocation2 + $0x11c] sm:$0x8]
  %v794 = vld [vmem:[#allocation2 + $0x120] sm:$0xf]
  %v795 = vld [vmem:[#allocation2 + $0x124] sm:$0xf]
  %v796 = vld [vmem:[#allocation2 + $0x128] sm:$0x1]
  %v797 = vld [vmem:[#allocation2 + $0x130] sm:$0x8]
  %v798 = vld [vmem:[#allocation2 + $0x134] sm:$0xf]
  %v799 = vld [vmem:[#allocation2 + $0x138] sm:$0xf]
  %v800 = vld [vmem:[#allocation2 + $0x13c] sm:$0x1]
  %v801 = vld [vmem:[#allocation2 + $0x144] sm:$0x8]
  %v802 = vld [vmem:[#allocation2 + $0x148] sm:$0xf]
  %v803 = vld [vmem:[#allocation2 + $0x14c] sm:$0xf]
  %v804 = vld [vmem:[#allocation2 + $0x150] sm:$0x1]
  %v805 = vld [vmem:[#allocation2 + $0x158] sm:$0x8]
  %v806 = vld [vmem:[#allocation2 + $0x15c] sm:$0xf]
  %v807 = vld [vmem:[#allocation2 + $0x160] sm:$0xf]
  %v808 = vld [vmem:[#allocation2 + $0x164] sm:$0x1]
  %v809 = vld [vmem:[#allocation2 + $0x16c] sm:$0x8]
  %v810 = vld [vmem:[#allocation2 + $0x170] sm:$0xf]
  %v811 = vld [vmem:[#allocation2 + $0x174] sm:$0xf]
  %v812 = vld [vmem:[#allocation2 + $0x178] sm:$0x1]
  %v813 = vld [vmem:[#allocation2 + $0x180] sm:$0x8]
  %v814 = vld [vmem:[#allocation2 + $0x184] sm:$0xf]
  %v815 = vld [vmem:[#allocation2 + $0x188] sm:$0xf]
  %v816 = vld [vmem:[#allocation2 + $0x18c] sm:$0x1]
  %v817 = vld [vmem:[#allocation2 + $0x194] sm:$0x8]
  %v818 = vld [vmem:[#allocation2 + $0x198] sm:$0xf]
  %v819 = vld [vmem:[#allocation2 + $0x19c] sm:$0xf]
  %v820 = vld [vmem:[#allocation2 + $0x1a0] sm:$0x1]
  %v821 = vld [vmem:[#allocation2 + $0x1a8] sm:$0x8]
  %v822 = vld [vmem:[#allocation2 + $0x1ac] sm:$0xf]
  %v823 = vld [vmem:[#allocation2 + $0x1b0] sm:$0xf]
  %v824 = vld [vmem:[#allocation2 + $0x1b4] sm:$0x1]
  %v825 = vld [vmem:[#allocation2 + $0x1bc] sm:$0x8]
  %v826 = vld [vmem:[#allocation2 + $0x1c0] sm:$0xf]
  %v827 = vld [vmem:[#allocation2 + $0x1c4] sm:$0xf]
  %v828 = vld [vmem:[#allocation2 + $0x1c8] sm:$0x1]
  %v829 = vld [vmem:[#allocation2 + $0x1d0] sm:$0x8]
  %v830 = vld [vmem:[#allocation2 + $0x1d4] sm:$0xf]
  %v831 = vld [vmem:[#allocation2 + $0x1d8] sm:$0xf]
  %v832 = vld [vmem:[#allocation2 + $0x1dc] sm:$0x1]
  %v833 = vld [vmem:[#allocation2 + $0x1e4] sm:$0x8]
  %v834 = vld [vmem:[#allocation2 + $0x1e8] sm:$0xf]
  %v835 = vld [vmem:[#allocation2 + $0x1ec] sm:$0xf]
  %v836 = vld [vmem:[#allocation2 + $0x1f0] sm:$0x1]
  %v837 = vld [vmem:[#allocation2 + $0x1f8] sm:$0x8]
  %v838 = vld [vmem:[#allocation2 + $0x1fc] sm:$0xf]
  %v839 = vld [vmem:[#allocation2 + $0x200] sm:$0xf]
  %v840 = vld [vmem:[#allocation2 + $0x204] sm:$0x1]
  %v841 = vld [vmem:[#allocation2 + $0x20c] sm:$0x8]
  %v842 = vld [vmem:[#allocation2 + $0x210] sm:$0xf]
  %v843 = vld [vmem:[#allocation2 + $0x214] sm:$0xf]
  %v844 = vld [vmem:[#allocation2 + $0x218] sm:$0x1]
  %v845 = vld [vmem:[#allocation2 + $0x220] sm:$0x8]
  %v846 = vld [vmem:[#allocation2 + $0x224] sm:$0xf]
  %v847 = vld [vmem:[#allocation2 + $0x228] sm:$0xf]
  %v848 = vld [vmem:[#allocation2 + $0x22c] sm:$0x1]
  %v849 = vld [vmem:[#allocation2 + $0x234] sm:$0x8]
  %v850 = vld [vmem:[#allocation2 + $0x238] sm:$0xf]
  %v851 = vld [vmem:[#allocation2 + $0x23c] sm:$0xf]
  %v852 = vld [vmem:[#allocation2 + $0x240] sm:$0x1]
  %v853 = vld [vmem:[#allocation2 + $0x248] sm:$0x8]
  %v854 = vld [vmem:[#allocation2 + $0x24c] sm:$0xf]
  %v855 = vld [vmem:[#allocation2 + $0x250] sm:$0xf]
  %v856 = vld [vmem:[#allocation2 + $0x254] sm:$0x1]
  %v857 = vld [vmem:[#allocation2 + $0x25c] sm:$0x8]
  %v858 = vld [vmem:[#allocation2 + $0x260] sm:$0xf]
  %v859 = vld [vmem:[#allocation2 + $0x264] sm:$0xf]
  %v860 = vld [vmem:[#allocation2 + $0x268] sm:$0x1]
  %v861 = vld [vmem:[#allocation2 + $0x270] sm:$0x8]
  %v862 = vld [vmem:[#allocation2 + $0x274] sm:$0xf]
  %v863 = vld [vmem:[#allocation2 + $0x278] sm:$0xf]
  %v864 = vld [vmem:[#allocation2 + $0x27c] sm:$0x1]
  %v865 = vld [vmem:[#allocation2 + $0x284] sm:$0x8]
  %v866 = vld [vmem:[#allocation2 + $0x288] sm:$0xf]
  %v867 = vld [vmem:[#allocation2 + $0x28c] sm:$0xf]
  %v868 = vld [vmem:[#allocation2 + $0x290] sm:$0x1]
  %v869 = vld [vmem:[#allocation2 + $0x298] sm:$0x8]
  %v870 = vld [vmem:[#allocation2 + $0x29c] sm:$0xf]
  %v871 = vld [vmem:[#allocation2 + $0x2a0] sm:$0xf]
  %v872 = vld [vmem:[#allocation2 + $0x2a4] sm:$0x1]
  %v873 = vld [vmem:[#allocation2 + $0x2ac] sm:$0x8]
  %v874 = vld [vmem:[#allocation2 + $0x2b0] sm:$0xf]
  %v875 = vld [vmem:[#allocation2 + $0x2b4] sm:$0xf]
  %v876 = vld [vmem:[#allocation2 + $0x2b8] sm:$0x1]
  %v877 = vld [vmem:[#allocation2 + $0x2c0] sm:$0x8]
  %v878 = vld [vmem:[#allocation2 + $0x2c4] sm:$0xf]
  %v879 = vld [vmem:[#allocation2 + $0x2c8] sm:$0xf]
  %v880 = vld [vmem:[#allocation2 + $0x2cc] sm:$0x1]
  %v977 = vunpack.c.l.b16 %v737
  %v978 = vunpack.c.l.b16 %v738
  %v979 = vunpack.c.l.b16 %v739
  %v980 = vunpack.c.l.b16 %v741
  %v981 = vunpack.c.l.b16 %v742
  %v982 = vunpack.c.l.b16 %v743
  %v983 = vunpack.c.l.b16 %v745
  %v984 = vunpack.c.l.b16 %v746
  %v985 = vunpack.c.l.b16 %v747
  %v986 = vunpack.c.l.b16 %v749
  %v987 = vunpack.c.l.b16 %v750
  %v988 = vunpack.c.l.b16 %v751
  %v989 = vunpack.c.l.b16 %v753
  %v990 = vunpack.c.l.b16 %v754
  %v991 = vunpack.c.l.b16 %v755
  %v992 = vunpack.c.l.b16 %v757
  %v993 = vunpack.c.l.b16 %v758
  %v994 = vunpack.c.l.b16 %v759
  %v995 = vunpack.c.l.b16 %v761
  %v996 = vunpack.c.l.b16 %v762
  %v997 = vunpack.c.l.b16 %v763
  %v998 = vunpack.c.l.b16 %v765
  %v999 = vunpack.c.l.b16 %v766
  %v1000 = vunpack.c.l.b16 %v767
  %v1001 = vunpack.c.l.b16 %v769
  %v1002 = vunpack.c.l.b16 %v770
  %v1003 = vunpack.c.l.b16 %v771
  %v1004 = vunpack.c.l.b16 %v773
  %v1005 = vunpack.c.l.b16 %v774
  %v1006 = vunpack.c.l.b16 %v775
  %v1007 = vunpack.c.l.b16 %v777
  %v1008 = vunpack.c.l.b16 %v778
  %v1009 = vunpack.c.l.b16 %v779
  %v1010 = vunpack.c.l.b16 %v781
  %v1011 = vunpack.c.l.b16 %v782
  %v1012 = vunpack.c.l.b16 %v783
  %v1013 = vunpack.c.l.b16 %v785
  %v1014 = vunpack.c.l.b16 %v786
  %v1015 = vunpack.c.l.b16 %v787
  %v1016 = vunpack.c.l.b16 %v789
  %v1017 = vunpack.c.l.b16 %v790
  %v1018 = vunpack.c.l.b16 %v791
  %v1019 = vunpack.c.l.b16 %v793
  %v1020 = vunpack.c.l.b16 %v794
  %v1021 = vunpack.c.l.b16 %v795
  %v1022 = vunpack.c.l.b16 %v797
  %v1023 = vunpack.c.l.b16 %v798
  %v1024 = vunpack.c.l.b16 %v799
  %v1025 = vunpack.c.l.b16 %v809
  %v1026 = vunpack.c.l.b16 %v810
  %v1027 = vunpack.c.l.b16 %v811
  %v1028 = vunpack.c.l.b16 %v813
  %v1029 = vunpack.c.l.b16 %v814
  %v1030 = vunpack.c.l.b16 %v815
  %v1031 = vunpack.c.l.b16 %v817
  %v1032 = vunpack.c.l.b16 %v818
  %v1033 = vunpack.c.l.b16 %v819
  %v1034 = vunpack.c.l.b16 %v821
  %v1035 = vunpack.c.l.b16 %v822
  %v1036 = vunpack.c.l.b16 %v823
  %v1037 = vunpack.c.l.b16 %v825
  %v1038 = vunpack.c.l.b16 %v826
  %v1039 = vunpack.c.l.b16 %v827
  %v1040 = vunpack.c.l.b16 %v829
  %v1041 = vunpack.c.l.b16 %v830
  %v1042 = vunpack.c.l.b16 %v831
  %v1043 = vunpack.c.l.b16 %v833
  %v1044 = vunpack.c.l.b16 %v834
  %v1045 = vunpack.c.l.b16 %v835
  %v1046 = vunpack.c.l.b16 %v837
  %v1047 = vunpack.c.l.b16 %v838
  %v1048 = vunpack.c.l.b16 %v839
  %v1049 = vunpack.c.l.b16 %v841
  %v1050 = vunpack.c.l.b16 %v842
  %v1051 = vunpack.c.l.b16 %v843
  %v1052 = vunpack.c.l.b16 %v845
  %v1053 = vunpack.c.l.b16 %v846
  %v1054 = vunpack.c.l.b16 %v847
  %v1055 = vunpack.c.l.b16 %v849
  %v1056 = vunpack.c.l.b16 %v850
  %v1057 = vunpack.c.l.b16 %v851
  %v1058 = vunpack.c.l.b16 %v853
  %v1059 = vunpack.c.l.b16 %v854
  %v1060 = vunpack.c.l.b16 %v855
  %v1061 = vunpack.c.l.b16 %v857
  %v1062 = vunpack.c.l.b16 %v858
  %v1063 = vunpack.c.l.b16 %v859
  %v1064 = vunpack.c.l.b16 %v861
  %v1065 = vunpack.c.l.b16 %v862
  %v1066 = vunpack.c.l.b16 %v863
  %v1067 = vunpack.c.l.b16 %v865
  %v1068 = vunpack.c.l.b16 %v866
  %v1069 = vunpack.c.l.b16 %v867
  %v1070 = vunpack.c.l.b16 %v869
  %v1071 = vunpack.c.l.b16 %v870
  %v1072 = vunpack.c.l.b16 %v871
  %v1073 = vpack.c.b16 %v978, %v977
  %v1074 = vpack.c.b16 %v979, %v979
  %v1075 = vpack.c.b16 %v981, %v980
  %v1076 = vpack.c.b16 %v982, %v982
  %v1077 = vpack.c.b16 %v984, %v983
  %v1078 = vpack.c.b16 %v985, %v985
  %v1079 = vpack.c.b16 %v987, %v986
  %v1080 = vpack.c.b16 %v988, %v988
  %v1081 = vpack.c.b16 %v990, %v989
  %v1082 = vpack.c.b16 %v991, %v991
  %v1083 = vpack.c.b16 %v993, %v992
  %v1084 = vpack.c.b16 %v994, %v994
  %v1085 = vpack.c.b16 %v996, %v995
  %v1086 = vpack.c.b16 %v997, %v997
  %v1087 = vpack.c.b16 %v999, %v998
  %v1088 = vpack.c.b16 %v1000, %v1000
  %v1089 = vpack.c.b16 %v1002, %v1001
  %v1090 = vpack.c.b16 %v1003, %v1003
  %v1091 = vpack.c.b16 %v1005, %v1004
  %v1092 = vpack.c.b16 %v1006, %v1006
  %v1093 = vpack.c.b16 %v1008, %v1007
  %v1094 = vpack.c.b16 %v1009, %v1009
  %v1095 = vpack.c.b16 %v1011, %v1010
  %v1096 = vpack.c.b16 %v1012, %v1012
  %v1097 = vpack.c.b16 %v1014, %v1013
  %v1098 = vpack.c.b16 %v1015, %v1015
  %v1099 = vpack.c.b16 %v1017, %v1016
  %v1100 = vpack.c.b16 %v1018, %v1018
  %v1101 = vpack.c.b16 %v1020, %v1019
  %v1102 = vpack.c.b16 %v1021, %v1021
  %v1103 = vpack.c.b16 %v1023, %v1022
  %v1104 = vpack.c.b16 %v1024, %v1024
  %v1105 = vpack.c.b16 %v1026, %v1025
  %v1106 = vpack.c.b16 %v1027, %v1027
  %v1107 = vpack.c.b16 %v1029, %v1028
  %v1108 = vpack.c.b16 %v1030, %v1030
  %v1109 = vpack.c.b16 %v1032, %v1031
  %v1110 = vpack.c.b16 %v1033, %v1033
  %v1111 = vpack.c.b16 %v1035, %v1034
  %v1112 = vpack.c.b16 %v1036, %v1036
  %v1113 = vpack.c.b16 %v1038, %v1037
  %v1114 = vpack.c.b16 %v1039, %v1039
  %v1115 = vpack.c.b16 %v1041, %v1040
  %v1116 = vpack.c.b16 %v1042, %v1042
  %v1117 = vpack.c.b16 %v1044, %v1043
  %v1118 = vpack.c.b16 %v1045, %v1045
  %v1119 = vpack.c.b16 %v1047, %v1046
  %v1120 = vpack.c.b16 %v1048, %v1048
  %v1121 = vpack.c.b16 %v1050, %v1049
  %v1122 = vpack.c.b16 %v1051, %v1051
  %v1123 = vpack.c.b16 %v1053, %v1052
  %v1124 = vpack.c.b16 %v1054, %v1054
  %v1125 = vpack.c.b16 %v1056, %v1055
  %v1126 = vpack.c.b16 %v1057, %v1057
  %v1127 = vpack.c.b16 %v1059, %v1058
  %v1128 = vpack.c.b16 %v1060, %v1060
  %v1129 = vpack.c.b16 %v1062, %v1061
  %v1130 = vpack.c.b16 %v1063, %v1063
  %v1131 = vpack.c.b16 %v1065, %v1064
  %v1132 = vpack.c.b16 %v1066, %v1066
  %v1133 = vpack.c.b16 %v1068, %v1067
  %v1134 = vpack.c.b16 %v1069, %v1069
  %v1135 = vpack.c.b16 %v1071, %v1070
  %v1136 = vpack.c.b16 %v1072, %v1072
  %v1137 = vpack.c.b16 %v979, %v978
  %v1138 = vpack.c.b16 %v982, %v981
  %v1139 = vpack.c.b16 %v985, %v984
  %v1140 = vpack.c.b16 %v988, %v987
  %v1141 = vpack.c.b16 %v991, %v990
  %v1142 = vpack.c.b16 %v994, %v993
  %v1143 = vpack.c.b16 %v997, %v996
  %v1144 = vpack.c.b16 %v1000, %v999
  %v1145 = vpack.c.b16 %v1003, %v1002
  %v1146 = vpack.c.b16 %v1006, %v1005
  %v1147 = vpack.c.b16 %v1009, %v1008
  %v1148 = vpack.c.b16 %v1012, %v1011
  %v1149 = vpack.c.b16 %v1015, %v1014
  %v1150 = vpack.c.b16 %v1018, %v1017
  %v1151 = vpack.c.b16 %v1021, %v1020
  %v1152 = vpack.c.b16 %v1024, %v1023
  %v1153 = vpack.c.b16 %v1027, %v1026
  %v1154 = vpack.c.b16 %v1030, %v1029
  %v1155 = vpack.c.b16 %v1033, %v1032
  %v1156 = vpack.c.b16 %v1036, %v1035
  %v1157 = vpack.c.b16 %v1039, %v1038
  %v1158 = vpack.c.b16 %v1042, %v1041
  %v1159 = vpack.c.b16 %v1045, %v1044
  %v1160 = vpack.c.b16 %v1048, %v1047
  %v1161 = vpack.c.b16 %v1051, %v1050
  %v1162 = vpack.c.b16 %v1054, %v1053
  %v1163 = vpack.c.b16 %v1057, %v1056
  %v1164 = vpack.c.b16 %v1060, %v1059
  %v1165 = vpack.c.b16 %v1063, %v1062
  %v1166 = vpack.c.b16 %v1066, %v1065
  %v1167 = vpack.c.b16 %v1069, %v1068
  %v1168 = vpack.c.b16 %v1072, %v1071
  %v1170 = vshrl.u32 %v1137, 16
  %v1172 = vrot.slane %v1170, 4
  %v1173 = vshll.u32 %v1137, 16
  %v1175 = vrot.slane %v1173, 5
  %v1176 = vor.u32 %v1172, %v1175
  %v1178 = vshrl.u32 %v1138, 16
  %v1180 = vrot.slane %v1178, 4
  %v1181 = vshll.u32 %v1138, 16
  %v1183 = vrot.slane %v1181, 5
  %v1184 = vor.u32 %v1180, %v1183
  %v1186 = vshrl.u32 %v1139, 16
  %v1188 = vrot.slane %v1186, 4
  %v1189 = vshll.u32 %v1139, 16
  %v1191 = vrot.slane %v1189, 5
  %v1192 = vor.u32 %v1188, %v1191
  %v1194 = vshrl.u32 %v1140, 16
  %v1196 = vrot.slane %v1194, 4
  %v1197 = vshll.u32 %v1140, 16
  %v1199 = vrot.slane %v1197, 5
  %v1200 = vor.u32 %v1196, %v1199
  %v1202 = vshrl.u32 %v1141, 16
  %v1204 = vrot.slane %v1202, 4
  %v1205 = vshll.u32 %v1141, 16
  %v1207 = vrot.slane %v1205, 5
  %v1208 = vor.u32 %v1204, %v1207
  %v1210 = vshrl.u32 %v1142, 16
  %v1212 = vrot.slane %v1210, 4
  %v1213 = vshll.u32 %v1142, 16
  %v1215 = vrot.slane %v1213, 5
  %v1216 = vor.u32 %v1212, %v1215
  %v1218 = vshrl.u32 %v1143, 16
  %v1220 = vrot.slane %v1218, 4
  %v1221 = vshll.u32 %v1143, 16
  %v1223 = vrot.slane %v1221, 5
  %v1224 = vor.u32 %v1220, %v1223
  %v1226 = vshrl.u32 %v1144, 16
  %v1228 = vrot.slane %v1226, 4
  %v1229 = vshll.u32 %v1144, 16
  %v1231 = vrot.slane %v1229, 5
  %v1232 = vor.u32 %v1228, %v1231
  %v1234 = vshrl.u32 %v1145, 16
  %v1236 = vrot.slane %v1234, 4
  %v1237 = vshll.u32 %v1145, 16
  %v1239 = vrot.slane %v1237, 5
  %v1240 = vor.u32 %v1236, %v1239
  %v1242 = vshrl.u32 %v1146, 16
  %v1244 = vrot.slane %v1242, 4
  %v1245 = vshll.u32 %v1146, 16
  %v1247 = vrot.slane %v1245, 5
  %v1248 = vor.u32 %v1244, %v1247
  %v1250 = vshrl.u32 %v1147, 16
  %v1252 = vrot.slane %v1250, 4
  %v1253 = vshll.u32 %v1147, 16
  %v1255 = vrot.slane %v1253, 5
  %v1256 = vor.u32 %v1252, %v1255
  %v1258 = vshrl.u32 %v1148, 16
  %v1260 = vrot.slane %v1258, 4
  %v1261 = vshll.u32 %v1148, 16
  %v1263 = vrot.slane %v1261, 5
  %v1264 = vor.u32 %v1260, %v1263
  %v1266 = vshrl.u32 %v1149, 16
  %v1268 = vrot.slane %v1266, 4
  %v1269 = vshll.u32 %v1149, 16
  %v1271 = vrot.slane %v1269, 5
  %v1272 = vor.u32 %v1268, %v1271
  %v1274 = vshrl.u32 %v1150, 16
  %v1276 = vrot.slane %v1274, 4
  %v1277 = vshll.u32 %v1150, 16
  %v1279 = vrot.slane %v1277, 5
  %v1280 = vor.u32 %v1276, %v1279
  %v1282 = vshrl.u32 %v1151, 16
  %v1284 = vrot.slane %v1282, 4
  %v1285 = vshll.u32 %v1151, 16
  %v1287 = vrot.slane %v1285, 5
  %v1288 = vor.u32 %v1284, %v1287
  %v1290 = vshrl.u32 %v1152, 16
  %v1292 = vrot.slane %v1290, 4
  %v1293 = vshll.u32 %v1152, 16
  %v1295 = vrot.slane %v1293, 5
  %v1296 = vor.u32 %v1292, %v1295
  %v1298 = vshrl.u32 %v1153, 16
  %v1300 = vrot.slane %v1298, 4
  %v1301 = vshll.u32 %v1153, 16
  %v1303 = vrot.slane %v1301, 5
  %v1304 = vor.u32 %v1300, %v1303
  %v1306 = vshrl.u32 %v1154, 16
  %v1308 = vrot.slane %v1306, 4
  %v1309 = vshll.u32 %v1154, 16
  %v1311 = vrot.slane %v1309, 5
  %v1312 = vor.u32 %v1308, %v1311
  %v1314 = vshrl.u32 %v1155, 16
  %v1316 = vrot.slane %v1314, 4
  %v1317 = vshll.u32 %v1155, 16
  %v1319 = vrot.slane %v1317, 5
  %v1320 = vor.u32 %v1316, %v1319
  %v1322 = vshrl.u32 %v1156, 16
  %v1324 = vrot.slane %v1322, 4
  %v1325 = vshll.u32 %v1156, 16
  %v1327 = vrot.slane %v1325, 5
  %v1328 = vor.u32 %v1324, %v1327
  %v1330 = vshrl.u32 %v1157, 16
  %v1332 = vrot.slane %v1330, 4
  %v1333 = vshll.u32 %v1157, 16
  %v1335 = vrot.slane %v1333, 5
  %v1336 = vor.u32 %v1332, %v1335
  %v1338 = vshrl.u32 %v1158, 16
  %v1340 = vrot.slane %v1338, 4
  %v1341 = vshll.u32 %v1158, 16
  %v1343 = vrot.slane %v1341, 5
  %v1344 = vor.u32 %v1340, %v1343
  %v1346 = vshrl.u32 %v1159, 16
  %v1348 = vrot.slane %v1346, 4
  %v1349 = vshll.u32 %v1159, 16
  %v1351 = vrot.slane %v1349, 5
  %v1352 = vor.u32 %v1348, %v1351
  %v1354 = vshrl.u32 %v1160, 16
  %v1356 = vrot.slane %v1354, 4
  %v1357 = vshll.u32 %v1160, 16
  %v1359 = vrot.slane %v1357, 5
  %v1360 = vor.u32 %v1356, %v1359
  %v1362 = vshrl.u32 %v1161, 16
  %v1364 = vrot.slane %v1362, 4
  %v1365 = vshll.u32 %v1161, 16
  %v1367 = vrot.slane %v1365, 5
  %v1368 = vor.u32 %v1364, %v1367
  %v1370 = vshrl.u32 %v1162, 16
  %v1372 = vrot.slane %v1370, 4
  %v1373 = vshll.u32 %v1162, 16
  %v1375 = vrot.slane %v1373, 5
  %v1376 = vor.u32 %v1372, %v1375
  %v1378 = vshrl.u32 %v1163, 16
  %v1380 = vrot.slane %v1378, 4
  %v1381 = vshll.u32 %v1163, 16
  %v1383 = vrot.slane %v1381, 5
  %v1384 = vor.u32 %v1380, %v1383
  %v1386 = vshrl.u32 %v1164, 16
  %v1388 = vrot.slane %v1386, 4
  %v1389 = vshll.u32 %v1164, 16
  %v1391 = vrot.slane %v1389, 5
  %v1392 = vor.u32 %v1388, %v1391
  %v1394 = vshrl.u32 %v1165, 16
  %v1396 = vrot.slane %v1394, 4
  %v1397 = vshll.u32 %v1165, 16
  %v1399 = vrot.slane %v1397, 5
  %v1400 = vor.u32 %v1396, %v1399
  %v1402 = vshrl.u32 %v1166, 16
  %v1404 = vrot.slane %v1402, 4
  %v1405 = vshll.u32 %v1166, 16
  %v1407 = vrot.slane %v1405, 5
  %v1408 = vor.u32 %v1404, %v1407
  %v1410 = vshrl.u32 %v1167, 16
  %v1412 = vrot.slane %v1410, 4
  %v1413 = vshll.u32 %v1167, 16
  %v1415 = vrot.slane %v1413, 5
  %v1416 = vor.u32 %v1412, %v1415
  %v1418 = vshrl.u32 %v1168, 16
  %v1420 = vrot.slane %v1418, 4
  %v1421 = vshll.u32 %v1168, 16
  %v1423 = vrot.slane %v1421, 5
  %v1424 = vor.u32 %v1420, %v1423
  %1425 = vrot.lane.b32.xlu0 %v1176, 8
  %v1426 = vpop.permute.xlu0 %1425
  %1427 = vrot.lane.b32.xlu0 %v1184, 8
  %v1428 = vpop.permute.xlu0 %1427
  %1429 = vrot.lane.b32.xlu0 %v1192, 8
  %v1430 = vpop.permute.xlu0 %1429
  %1431 = vrot.lane.b32.xlu0 %v1200, 8
  %v1432 = vpop.permute.xlu0 %1431
  %1433 = vrot.lane.b32.xlu0 %v1208, 8
  %v1434 = vpop.permute.xlu0 %1433
  %1435 = vrot.lane.b32.xlu0 %v1216, 8
  %v1436 = vpop.permute.xlu0 %1435
  %1437 = vrot.lane.b32.xlu0 %v1224, 8
  %v1438 = vpop.permute.xlu0 %1437
  %1439 = vrot.lane.b32.xlu0 %v1232, 8
  %v1440 = vpop.permute.xlu0 %1439
  %1441 = vrot.lane.b32.xlu0 %v1240, 8
  %v1442 = vpop.permute.xlu0 %1441
  %1443 = vrot.lane.b32.xlu0 %v1248, 8
  %v1444 = vpop.permute.xlu0 %1443
  %1445 = vrot.lane.b32.xlu0 %v1256, 8
  %v1446 = vpop.permute.xlu0 %1445
  %1447 = vrot.lane.b32.xlu0 %v1264, 8
  %v1448 = vpop.permute.xlu0 %1447
  %1449 = vrot.lane.b32.xlu0 %v1272, 8
  %v1450 = vpop.permute.xlu0 %1449
  %1451 = vrot.lane.b32.xlu0 %v1280, 8
  %v1452 = vpop.permute.xlu0 %1451
  %1453 = vrot.lane.b32.xlu0 %v1288, 8
  %v1454 = vpop.permute.xlu0 %1453
  %1455 = vrot.lane.b32.xlu0 %v1296, 8
  %v1456 = vpop.permute.xlu0 %1455
  %1457 = vrot.lane.b32.xlu0 %v1304, 8
  %v1458 = vpop.permute.xlu0 %1457
  %1459 = vrot.lane.b32.xlu0 %v1312, 8
  %v1460 = vpop.permute.xlu0 %1459
  %1461 = vrot.lane.b32.xlu0 %v1320, 8
  %v1462 = vpop.permute.xlu0 %1461
  %1463 = vrot.lane.b32.xlu0 %v1328, 8
  %v1464 = vpop.permute.xlu0 %1463
  %1465 = vrot.lane.b32.xlu0 %v1336, 8
  %v1466 = vpop.permute.xlu0 %1465
  %1467 = vrot.lane.b32.xlu0 %v1344, 8
  %v1468 = vpop.permute.xlu0 %1467
  %1469 = vrot.lane.b32.xlu0 %v1352, 8
  %v1470 = vpop.permute.xlu0 %1469
  %1471 = vrot.lane.b32.xlu0 %v1360, 8
  %v1472 = vpop.permute.xlu0 %1471
  %1473 = vrot.lane.b32.xlu0 %v1368, 8
  %v1474 = vpop.permute.xlu0 %1473
  %1475 = vrot.lane.b32.xlu0 %v1376, 8
  %v1476 = vpop.permute.xlu0 %1475
  %1477 = vrot.lane.b32.xlu0 %v1384, 8
  %v1478 = vpop.permute.xlu0 %1477
  %1479 = vrot.lane.b32.xlu0 %v1392, 8
  %v1480 = vpop.permute.xlu0 %1479
  %1481 = vrot.lane.b32.xlu0 %v1400, 8
  %v1482 = vpop.permute.xlu0 %1481
  %1483 = vrot.lane.b32.xlu0 %v1408, 8
  %v1484 = vpop.permute.xlu0 %1483
  %1485 = vrot.lane.b32.xlu0 %v1416, 8
  %v1486 = vpop.permute.xlu0 %1485
  %1487 = vrot.lane.b32.xlu0 %v1424, 8
  %v1488 = vpop.permute.xlu0 %1487
  %v1521 = vunpack.c.l.b16 %v740
  %v1522 = vunpack.c.l.b16 %v744
  %v1523 = vunpack.c.l.b16 %v748
  %v1524 = vunpack.c.l.b16 %v752
  %v1525 = vunpack.c.l.b16 %v756
  %v1526 = vunpack.c.l.b16 %v760
  %v1527 = vunpack.c.l.b16 %v764
  %v1528 = vunpack.c.l.b16 %v768
  %v1529 = vunpack.c.l.b16 %v772
  %v1530 = vunpack.c.l.b16 %v776
  %v1531 = vunpack.c.l.b16 %v780
  %v1532 = vunpack.c.l.b16 %v784
  %v1533 = vunpack.c.l.b16 %v788
  %v1534 = vunpack.c.l.b16 %v792
  %v1535 = vunpack.c.l.b16 %v796
  %v1536 = vunpack.c.l.b16 %v800
  %v1537 = vunpack.c.l.b16 %v812
  %v1538 = vunpack.c.l.b16 %v816
  %v1539 = vunpack.c.l.b16 %v820
  %v1540 = vunpack.c.l.b16 %v824
  %v1541 = vunpack.c.l.b16 %v828
  %v1542 = vunpack.c.l.b16 %v832
  %v1543 = vunpack.c.l.b16 %v836
  %v1544 = vunpack.c.l.b16 %v840
  %v1545 = vunpack.c.l.b16 %v844
  %v1546 = vunpack.c.l.b16 %v848
  %v1547 = vunpack.c.l.b16 %v852
  %v1548 = vunpack.c.l.b16 %v856
  %v1549 = vunpack.c.l.b16 %v860
  %v1550 = vunpack.c.l.b16 %v864
  %v1551 = vunpack.c.l.b16 %v868
  %v1552 = vunpack.c.l.b16 %v872
  %v1553 = vpack.c.b16 %v1521, %v1521
  %v1554 = vpack.c.b16 %v1522, %v1522
  %v1555 = vpack.c.b16 %v1523, %v1523
  %v1556 = vpack.c.b16 %v1524, %v1524
  %v1557 = vpack.c.b16 %v1525, %v1525
  %v1558 = vpack.c.b16 %v1526, %v1526
  %v1559 = vpack.c.b16 %v1527, %v1527
  %v1560 = vpack.c.b16 %v1528, %v1528
  %v1561 = vpack.c.b16 %v1529, %v1529
  %v1562 = vpack.c.b16 %v1530, %v1530
  %v1563 = vpack.c.b16 %v1531, %v1531
  %v1564 = vpack.c.b16 %v1532, %v1532
  %v1565 = vpack.c.b16 %v1533, %v1533
  %v1566 = vpack.c.b16 %v1534, %v1534
  %v1567 = vpack.c.b16 %v1535, %v1535
  %v1568 = vpack.c.b16 %v1536, %v1536
  %v1569 = vpack.c.b16 %v1537, %v1537
  %v1570 = vpack.c.b16 %v1538, %v1538
  %v1571 = vpack.c.b16 %v1539, %v1539
  %v1572 = vpack.c.b16 %v1540, %v1540
  %v1573 = vpack.c.b16 %v1541, %v1541
  %v1574 = vpack.c.b16 %v1542, %v1542
  %v1575 = vpack.c.b16 %v1543, %v1543
  %v1576 = vpack.c.b16 %v1544, %v1544
  %v1577 = vpack.c.b16 %v1545, %v1545
  %v1578 = vpack.c.b16 %v1546, %v1546
  %v1579 = vpack.c.b16 %v1547, %v1547
  %v1580 = vpack.c.b16 %v1548, %v1548
  %v1581 = vpack.c.b16 %v1549, %v1549
  %v1582 = vpack.c.b16 %v1550, %v1550
  %v1583 = vpack.c.b16 %v1551, %v1551
  %v1584 = vpack.c.b16 %v1552, %v1552
  %vm1585 = vcmask 1042432
  %v1586 = vrot.slane %v1137, 5
  %v1587 = vrot.slane %v1553, 5
  %v1588 = vsel %vm1585, %v1586, %v1587
  %v1589 = vrot.slane %v1138, 5
  %v1590 = vrot.slane %v1554, 5
  %v1591 = vsel %vm1585, %v1589, %v1590
  %v1592 = vrot.slane %v1139, 5
  %v1593 = vrot.slane %v1555, 5
  %v1594 = vsel %vm1585, %v1592, %v1593
  %v1595 = vrot.slane %v1140, 5
  %v1596 = vrot.slane %v1556, 5
  %v1597 = vsel %vm1585, %v1595, %v1596
  %v1598 = vrot.slane %v1141, 5
  %v1599 = vrot.slane %v1557, 5
  %v1600 = vsel %vm1585, %v1598, %v1599
  %v1601 = vrot.slane %v1142, 5
  %v1602 = vrot.slane %v1558, 5
  %v1603 = vsel %vm1585, %v1601, %v1602
  %v1604 = vrot.slane %v1143, 5
  %v1605 = vrot.slane %v1559, 5
  %v1606 = vsel %vm1585, %v1604, %v1605
  %v1607 = vrot.slane %v1144, 5
  %v1608 = vrot.slane %v1560, 5
  %v1609 = vsel %vm1585, %v1607, %v1608
  %v1610 = vrot.slane %v1145, 5
  %v1611 = vrot.slane %v1561, 5
  %v1612 = vsel %vm1585, %v1610, %v1611
  %v1613 = vrot.slane %v1146, 5
  %v1614 = vrot.slane %v1562, 5
  %v1615 = vsel %vm1585, %v1613, %v1614
  %v1616 = vrot.slane %v1147, 5
  %v1617 = vrot.slane %v1563, 5
  %v1618 = vsel %vm1585, %v1616, %v1617
  %v1619 = vrot.slane %v1148, 5
  %v1620 = vrot.slane %v1564, 5
  %v1621 = vsel %vm1585, %v1619, %v1620
  %v1622 = vrot.slane %v1149, 5
  %v1623 = vrot.slane %v1565, 5
  %v1624 = vsel %vm1585, %v1622, %v1623
  %v1625 = vrot.slane %v1150, 5
  %v1626 = vrot.slane %v1566, 5
  %v1627 = vsel %vm1585, %v1625, %v1626
  %v1628 = vrot.slane %v1151, 5
  %v1629 = vrot.slane %v1567, 5
  %v1630 = vsel %vm1585, %v1628, %v1629
  %v1631 = vrot.slane %v1152, 5
  %v1632 = vrot.slane %v1568, 5
  %v1633 = vsel %vm1585, %v1631, %v1632
  %v1634 = vrot.slane %v1153, 5
  %v1635 = vrot.slane %v1569, 5
  %v1636 = vsel %vm1585, %v1634, %v1635
  %v1637 = vrot.slane %v1154, 5
  %v1638 = vrot.slane %v1570, 5
  %v1639 = vsel %vm1585, %v1637, %v1638
  %v1640 = vrot.slane %v1155, 5
  %v1641 = vrot.slane %v1571, 5
  %v1642 = vsel %vm1585, %v1640, %v1641
  %v1643 = vrot.slane %v1156, 5
  %v1644 = vrot.slane %v1572, 5
  %v1645 = vsel %vm1585, %v1643, %v1644
  %v1646 = vrot.slane %v1157, 5
  %v1647 = vrot.slane %v1573, 5
  %v1648 = vsel %vm1585, %v1646, %v1647
  %v1649 = vrot.slane %v1158, 5
  %v1650 = vrot.slane %v1574, 5
  %v1651 = vsel %vm1585, %v1649, %v1650
  %v1652 = vrot.slane %v1159, 5
  %v1653 = vrot.slane %v1575, 5
  %v1654 = vsel %vm1585, %v1652, %v1653
  %v1655 = vrot.slane %v1160, 5
  %v1656 = vrot.slane %v1576, 5
  %v1657 = vsel %vm1585, %v1655, %v1656
  %v1658 = vrot.slane %v1161, 5
  %v1659 = vrot.slane %v1577, 5
  %v1660 = vsel %vm1585, %v1658, %v1659
  %v1661 = vrot.slane %v1162, 5
  %v1662 = vrot.slane %v1578, 5
  %v1663 = vsel %vm1585, %v1661, %v1662
  %v1664 = vrot.slane %v1163, 5
  %v1665 = vrot.slane %v1579, 5
  %v1666 = vsel %vm1585, %v1664, %v1665
  %v1667 = vrot.slane %v1164, 5
  %v1668 = vrot.slane %v1580, 5
  %v1669 = vsel %vm1585, %v1667, %v1668
  %v1670 = vrot.slane %v1165, 5
  %v1671 = vrot.slane %v1581, 5
  %v1672 = vsel %vm1585, %v1670, %v1671
  %v1673 = vrot.slane %v1166, 5
  %v1674 = vrot.slane %v1582, 5
  %v1675 = vsel %vm1585, %v1673, %v1674
  %v1676 = vrot.slane %v1167, 5
  %v1677 = vrot.slane %v1583, 5
  %v1678 = vsel %vm1585, %v1676, %v1677
  %v1679 = vrot.slane %v1168, 5
  %v1680 = vrot.slane %v1584, 5
  %v1681 = vsel %vm1585, %v1679, %v1680
  %1682 = vrot.lane.b32.xlu0 %v1586, 16
  %v1683 = vpop.permute.xlu0 %1682
  %1684 = vrot.lane.b32.xlu0 %v1588, 16
  %v1685 = vpop.permute.xlu0 %1684
  %1686 = vrot.lane.b32.xlu0 %v1589, 16
  %v1687 = vpop.permute.xlu0 %1686
  %1688 = vrot.lane.b32.xlu0 %v1591, 16
  %v1689 = vpop.permute.xlu0 %1688
  %1690 = vrot.lane.b32.xlu0 %v1592, 16
  %v1691 = vpop.permute.xlu0 %1690
  %1692 = vrot.lane.b32.xlu0 %v1594, 16
  %v1693 = vpop.permute.xlu0 %1692
  %1694 = vrot.lane.b32.xlu0 %v1595, 16
  %v1695 = vpop.permute.xlu0 %1694
  %1696 = vrot.lane.b32.xlu0 %v1597, 16
  %v1697 = vpop.permute.xlu0 %1696
  %1698 = vrot.lane.b32.xlu0 %v1598, 16
  %v1699 = vpop.permute.xlu0 %1698
  %1700 = vrot.lane.b32.xlu0 %v1600, 16
  %v1701 = vpop.permute.xlu0 %1700
  %1702 = vrot.lane.b32.xlu0 %v1601, 16
  %v1703 = vpop.permute.xlu0 %1702
  %1704 = vrot.lane.b32.xlu0 %v1603, 16
  %v1705 = vpop.permute.xlu0 %1704
  %1706 = vrot.lane.b32.xlu0 %v1604, 16
  %v1707 = vpop.permute.xlu0 %1706
  %1708 = vrot.lane.b32.xlu0 %v1606, 16
  %v1709 = vpop.permute.xlu0 %1708
  %1710 = vrot.lane.b32.xlu0 %v1607, 16
  %v1711 = vpop.permute.xlu0 %1710
  %1712 = vrot.lane.b32.xlu0 %v1609, 16
  %v1713 = vpop.permute.xlu0 %1712
  %1714 = vrot.lane.b32.xlu0 %v1610, 16
  %v1715 = vpop.permute.xlu0 %1714
  %1716 = vrot.lane.b32.xlu0 %v1612, 16
  %v1717 = vpop.permute.xlu0 %1716
  %1718 = vrot.lane.b32.xlu0 %v1613, 16
  %v1719 = vpop.permute.xlu0 %1718
  %1720 = vrot.lane.b32.xlu0 %v1615, 16
  %v1721 = vpop.permute.xlu0 %1720
  %1722 = vrot.lane.b32.xlu0 %v1616, 16
  %v1723 = vpop.permute.xlu0 %1722
  %1724 = vrot.lane.b32.xlu0 %v1618, 16
  %v1725 = vpop.permute.xlu0 %1724
  %1726 = vrot.lane.b32.xlu0 %v1619, 16
  %v1727 = vpop.permute.xlu0 %1726
  %1728 = vrot.lane.b32.xlu0 %v1621, 16
  %v1729 = vpop.permute.xlu0 %1728
  %1730 = vrot.lane.b32.xlu0 %v1622, 16
  %v1731 = vpop.permute.xlu0 %1730
  %1732 = vrot.lane.b32.xlu0 %v1624, 16
  %v1733 = vpop.permute.xlu0 %1732
  %1734 = vrot.lane.b32.xlu0 %v1625, 16
  %v1735 = vpop.permute.xlu0 %1734
  %1736 = vrot.lane.b32.xlu0 %v1627, 16
  %v1737 = vpop.permute.xlu0 %1736
  %1738 = vrot.lane.b32.xlu0 %v1628, 16
  %v1739 = vpop.permute.xlu0 %1738
  %1740 = vrot.lane.b32.xlu0 %v1630, 16
  %v1741 = vpop.permute.xlu0 %1740
  %1742 = vrot.lane.b32.xlu0 %v1631, 16
  %v1743 = vpop.permute.xlu0 %1742
  %1744 = vrot.lane.b32.xlu0 %v1633, 16
  %v1745 = vpop.permute.xlu0 %1744
  %1746 = vrot.lane.b32.xlu0 %v1634, 16
  %v1747 = vpop.permute.xlu0 %1746
  %1748 = vrot.lane.b32.xlu0 %v1636, 16
  %v1749 = vpop.permute.xlu0 %1748
  %1750 = vrot.lane.b32.xlu0 %v1637, 16
  %v1751 = vpop.permute.xlu0 %1750
  %1752 = vrot.lane.b32.xlu0 %v1639, 16
  %v1753 = vpop.permute.xlu0 %1752
  %1754 = vrot.lane.b32.xlu0 %v1640, 16
  %v1755 = vpop.permute.xlu0 %1754
  %1756 = vrot.lane.b32.xlu0 %v1642, 16
  %v1757 = vpop.permute.xlu0 %1756
  %1758 = vrot.lane.b32.xlu0 %v1643, 16
  %v1759 = vpop.permute.xlu0 %1758
  %1760 = vrot.lane.b32.xlu0 %v1645, 16
  %v1761 = vpop.permute.xlu0 %1760
  %1762 = vrot.lane.b32.xlu0 %v1646, 16
  %v1763 = vpop.permute.xlu0 %1762
  %1764 = vrot.lane.b32.xlu0 %v1648, 16
  %v1765 = vpop.permute.xlu0 %1764
  %1766 = vrot.lane.b32.xlu0 %v1649, 16
  %v1767 = vpop.permute.xlu0 %1766
  %1768 = vrot.lane.b32.xlu0 %v1651, 16
  %v1769 = vpop.permute.xlu0 %1768
  %1770 = vrot.lane.b32.xlu0 %v1652, 16
  %v1771 = vpop.permute.xlu0 %1770
  %1772 = vrot.lane.b32.xlu0 %v1654, 16
  %v1773 = vpop.permute.xlu0 %1772
  %1774 = vrot.lane.b32.xlu0 %v1655, 16
  %v1775 = vpop.permute.xlu0 %1774
  %1776 = vrot.lane.b32.xlu0 %v1657, 16
  %v1777 = vpop.permute.xlu0 %1776
  %1778 = vrot.lane.b32.xlu0 %v1658, 16
  %v1779 = vpop.permute.xlu0 %1778
  %1780 = vrot.lane.b32.xlu0 %v1660, 16
  %v1781 = vpop.permute.xlu0 %1780
  %1782 = vrot.lane.b32.xlu0 %v1661, 16
  %v1783 = vpop.permute.xlu0 %1782
  %1784 = vrot.lane.b32.xlu0 %v1663, 16
  %v1785 = vpop.permute.xlu0 %1784
  %1786 = vrot.lane.b32.xlu0 %v1664, 16
  %v1787 = vpop.permute.xlu0 %1786
  %1788 = vrot.lane.b32.xlu0 %v1666, 16
  %v1789 = vpop.permute.xlu0 %1788
  %1790 = vrot.lane.b32.xlu0 %v1667, 16
  %v1791 = vpop.permute.xlu0 %1790
  %1792 = vrot.lane.b32.xlu0 %v1669, 16
  %v1793 = vpop.permute.xlu0 %1792
  %1794 = vrot.lane.b32.xlu0 %v1670, 16
  %v1795 = vpop.permute.xlu0 %1794
  %1796 = vrot.lane.b32.xlu0 %v1672, 16
  %v1797 = vpop.permute.xlu0 %1796
  %1798 = vrot.lane.b32.xlu0 %v1673, 16
  %v1799 = vpop.permute.xlu0 %1798
  %1800 = vrot.lane.b32.xlu0 %v1675, 16
  %v1801 = vpop.permute.xlu0 %1800
  %1802 = vrot.lane.b32.xlu0 %v1676, 16
  %v1803 = vpop.permute.xlu0 %1802
  %1804 = vrot.lane.b32.xlu0 %v1678, 16
  %v1805 = vpop.permute.xlu0 %1804
  %1806 = vrot.lane.b32.xlu0 %v1679, 16
  %v1807 = vpop.permute.xlu0 %1806
  %1808 = vrot.lane.b32.xlu0 %v1681, 16
  %v1809 = vpop.permute.xlu0 %1808
  %v1816 = vunpack.c.l.b16 %v801
  %v1817 = vunpack.c.l.b16 %v802
  %v1818 = vunpack.c.l.b16 %v803
  %v1819 = vunpack.c.l.b16 %v873
  %v1820 = vunpack.c.l.b16 %v874
  %v1821 = vunpack.c.l.b16 %v875
  %v1822 = vpack.c.b16 %v1817, %v1816
  %v1823 = vpack.c.b16 %v1818, %v1818
  %v1824 = vpack.c.b16 %v1820, %v1819
  %v1825 = vpack.c.b16 %v1821, %v1821
  %1826 = vrot.lane.b32.xlu0 %v1075, 24
  %v1827 = vpop.permute.xlu0 %1826
  %1828 = vrot.lane.b32.xlu0 %v1076, 24
  %v1829 = vpop.permute.xlu0 %1828
  %1830 = vrot.lane.b32.xlu0 %v1077, 24
  %v1831 = vpop.permute.xlu0 %1830
  %1832 = vrot.lane.b32.xlu0 %v1078, 24
  %v1833 = vpop.permute.xlu0 %1832
  %1834 = vrot.lane.b32.xlu0 %v1079, 24
  %v1835 = vpop.permute.xlu0 %1834
  %1836 = vrot.lane.b32.xlu0 %v1080, 24
  %v1837 = vpop.permute.xlu0 %1836
  %1838 = vrot.lane.b32.xlu0 %v1081, 24
  %v1839 = vpop.permute.xlu0 %1838
  %1840 = vrot.lane.b32.xlu0 %v1082, 24
  %v1841 = vpop.permute.xlu0 %1840
  %1842 = vrot.lane.b32.xlu0 %v1083, 24
  %v1843 = vpop.permute.xlu0 %1842
  %1844 = vrot.lane.b32.xlu0 %v1084, 24
  %v1845 = vpop.permute.xlu0 %1844
  %1846 = vrot.lane.b32.xlu0 %v1085, 24
  %v1847 = vpop.permute.xlu0 %1846
  %1848 = vrot.lane.b32.xlu0 %v1086, 24
  %v1849 = vpop.permute.xlu0 %1848
  %1850 = vrot.lane.b32.xlu0 %v1087, 24
  %v1851 = vpop.permute.xlu0 %1850
  %1852 = vrot.lane.b32.xlu0 %v1088, 24
  %v1853 = vpop.permute.xlu0 %1852
  %1854 = vrot.lane.b32.xlu0 %v1089, 24
  %v1855 = vpop.permute.xlu0 %1854
  %1856 = vrot.lane.b32.xlu0 %v1090, 24
  %v1857 = vpop.permute.xlu0 %1856
  %1858 = vrot.lane.b32.xlu0 %v1091, 24
  %v1859 = vpop.permute.xlu0 %1858
  %1860 = vrot.lane.b32.xlu0 %v1092, 24
  %v1861 = vpop.permute.xlu0 %1860
  %1862 = vrot.lane.b32.xlu0 %v1093, 24
  %v1863 = vpop.permute.xlu0 %1862
  %1864 = vrot.lane.b32.xlu0 %v1094, 24
  %v1865 = vpop.permute.xlu0 %1864
  %1866 = vrot.lane.b32.xlu0 %v1095, 24
  %v1867 = vpop.permute.xlu0 %1866
  %1868 = vrot.lane.b32.xlu0 %v1096, 24
  %v1869 = vpop.permute.xlu0 %1868
  %1870 = vrot.lane.b32.xlu0 %v1097, 24
  %v1871 = vpop.permute.xlu0 %1870
  %1872 = vrot.lane.b32.xlu0 %v1098, 24
  %v1873 = vpop.permute.xlu0 %1872
  %1874 = vrot.lane.b32.xlu0 %v1099, 24
  %v1875 = vpop.permute.xlu0 %1874
  %1876 = vrot.lane.b32.xlu0 %v1100, 24
  %v1877 = vpop.permute.xlu0 %1876
  %1878 = vrot.lane.b32.xlu0 %v1101, 24
  %v1879 = vpop.permute.xlu0 %1878
  %1880 = vrot.lane.b32.xlu0 %v1102, 24
  %v1881 = vpop.permute.xlu0 %1880
  %1882 = vrot.lane.b32.xlu0 %v1103, 24
  %v1883 = vpop.permute.xlu0 %1882
  %1884 = vrot.lane.b32.xlu0 %v1104, 24
  %v1885 = vpop.permute.xlu0 %1884
  %1886 = vrot.lane.b32.xlu0 %v1822, 24
  %v1887 = vpop.permute.xlu0 %1886
  %1888 = vrot.lane.b32.xlu0 %v1823, 24
  %v1889 = vpop.permute.xlu0 %1888
  %1890 = vrot.lane.b32.xlu0 %v1107, 24
  %v1891 = vpop.permute.xlu0 %1890
  %1892 = vrot.lane.b32.xlu0 %v1108, 24
  %v1893 = vpop.permute.xlu0 %1892
  %1894 = vrot.lane.b32.xlu0 %v1109, 24
  %v1895 = vpop.permute.xlu0 %1894
  %1896 = vrot.lane.b32.xlu0 %v1110, 24
  %v1897 = vpop.permute.xlu0 %1896
  %1898 = vrot.lane.b32.xlu0 %v1111, 24
  %v1899 = vpop.permute.xlu0 %1898
  %1900 = vrot.lane.b32.xlu0 %v1112, 24
  %v1901 = vpop.permute.xlu0 %1900
  %1902 = vrot.lane.b32.xlu0 %v1113, 24
  %v1903 = vpop.permute.xlu0 %1902
  %1904 = vrot.lane.b32.xlu0 %v1114, 24
  %v1905 = vpop.permute.xlu0 %1904
  %1906 = vrot.lane.b32.xlu0 %v1115, 24
  %v1907 = vpop.permute.xlu0 %1906
  %1908 = vrot.lane.b32.xlu0 %v1116, 24
  %v1909 = vpop.permute.xlu0 %1908
  %1910 = vrot.lane.b32.xlu0 %v1117, 24
  %v1911 = vpop.permute.xlu0 %1910
  %1912 = vrot.lane.b32.xlu0 %v1118, 24
  %v1913 = vpop.permute.xlu0 %1912
  %1914 = vrot.lane.b32.xlu0 %v1119, 24
  %v1915 = vpop.permute.xlu0 %1914
  %1916 = vrot.lane.b32.xlu0 %v1120, 24
  %v1917 = vpop.permute.xlu0 %1916
  %1918 = vrot.lane.b32.xlu0 %v1121, 24
  %v1919 = vpop.permute.xlu0 %1918
  %1920 = vrot.lane.b32.xlu0 %v1122, 24
  %v1921 = vpop.permute.xlu0 %1920
  %1922 = vrot.lane.b32.xlu0 %v1123, 24
  %v1923 = vpop.permute.xlu0 %1922
  %1924 = vrot.lane.b32.xlu0 %v1124, 24
  %v1925 = vpop.permute.xlu0 %1924
  %1926 = vrot.lane.b32.xlu0 %v1125, 24
  %v1927 = vpop.permute.xlu0 %1926
  %1928 = vrot.lane.b32.xlu0 %v1126, 24
  %v1929 = vpop.permute.xlu0 %1928
  %1930 = vrot.lane.b32.xlu0 %v1127, 24
  %v1931 = vpop.permute.xlu0 %1930
  %1932 = vrot.lane.b32.xlu0 %v1128, 24
  %v1933 = vpop.permute.xlu0 %1932
  %1934 = vrot.lane.b32.xlu0 %v1129, 24
  %v1935 = vpop.permute.xlu0 %1934
  %1936 = vrot.lane.b32.xlu0 %v1130, 24
  %v1937 = vpop.permute.xlu0 %1936
  %1938 = vrot.lane.b32.xlu0 %v1131, 24
  %v1939 = vpop.permute.xlu0 %1938
  %1940 = vrot.lane.b32.xlu0 %v1132, 24
  %v1941 = vpop.permute.xlu0 %1940
  %1942 = vrot.lane.b32.xlu0 %v1133, 24
  %v1943 = vpop.permute.xlu0 %1942
  %1944 = vrot.lane.b32.xlu0 %v1134, 24
  %v1945 = vpop.permute.xlu0 %1944
  %1946 = vrot.lane.b32.xlu0 %v1135, 24
  %v1947 = vpop.permute.xlu0 %1946
  %1948 = vrot.lane.b32.xlu0 %v1136, 24
  %v1949 = vpop.permute.xlu0 %1948
  %1950 = vrot.lane.b32.xlu0 %v1824, 24
  %v1951 = vpop.permute.xlu0 %1950
  %1952 = vrot.lane.b32.xlu0 %v1825, 24
  %v1953 = vpop.permute.xlu0 %1952
  %v1954 = vpack.c.b16 %v1818, %v1817
  %v1955 = vpack.c.b16 %v1821, %v1820
  %v1957 = vshrl.u32 %v1954, 16
  %v1959 = vrot.slane %v1957, 4
  %v1960 = vshll.u32 %v1954, 16
  %v1962 = vrot.slane %v1960, 5
  %v1963 = vor.u32 %v1959, %v1962
  %v1965 = vshrl.u32 %v1955, 16
  %v1967 = vrot.slane %v1965, 4
  %v1968 = vshll.u32 %v1955, 16
  %v1970 = vrot.slane %v1968, 5
  %v1971 = vor.u32 %v1967, %v1970
  %1972 = vrot.lane.b32.xlu0 %v1184, 32
  %v1973 = vpop.permute.xlu0 %1972
  %1974 = vrot.lane.b32.xlu0 %v1192, 32
  %v1975 = vpop.permute.xlu0 %1974
  %1976 = vrot.lane.b32.xlu0 %v1200, 32
  %v1977 = vpop.permute.xlu0 %1976
  %1978 = vrot.lane.b32.xlu0 %v1208, 32
  %v1979 = vpop.permute.xlu0 %1978
  %1980 = vrot.lane.b32.xlu0 %v1216, 32
  %v1981 = vpop.permute.xlu0 %1980
  %1982 = vrot.lane.b32.xlu0 %v1224, 32
  %v1983 = vpop.permute.xlu0 %1982
  %1984 = vrot.lane.b32.xlu0 %v1232, 32
  %v1985 = vpop.permute.xlu0 %1984
  %1986 = vrot.lane.b32.xlu0 %v1240, 32
  %v1987 = vpop.permute.xlu0 %1986
  %1988 = vrot.lane.b32.xlu0 %v1248, 32
  %v1989 = vpop.permute.xlu0 %1988
  %1990 = vrot.lane.b32.xlu0 %v1256, 32
  %v1991 = vpop.permute.xlu0 %1990
  %1992 = vrot.lane.b32.xlu0 %v1264, 32
  %v1993 = vpop.permute.xlu0 %1992
  %1994 = vrot.lane.b32.xlu0 %v1272, 32
  %v1995 = vpop.permute.xlu0 %1994
  %1996 = vrot.lane.b32.xlu0 %v1280, 32
  %v1997 = vpop.permute.xlu0 %1996
  %1998 = vrot.lane.b32.xlu0 %v1288, 32
  %v1999 = vpop.permute.xlu0 %1998
  %2000 = vrot.lane.b32.xlu0 %v1296, 32
  %v2001 = vpop.permute.xlu0 %2000
  %2002 = vrot.lane.b32.xlu0 %v1963, 32
  %v2003 = vpop.permute.xlu0 %2002
  %2004 = vrot.lane.b32.xlu0 %v1312, 32
  %v2005 = vpop.permute.xlu0 %2004
  %2006 = vrot.lane.b32.xlu0 %v1320, 32
  %v2007 = vpop.permute.xlu0 %2006
  %2008 = vrot.lane.b32.xlu0 %v1328, 32
  %v2009 = vpop.permute.xlu0 %2008
  %2010 = vrot.lane.b32.xlu0 %v1336, 32
  %v2011 = vpop.permute.xlu0 %2010
  %2012 = vrot.lane.b32.xlu0 %v1344, 32
  %v2013 = vpop.permute.xlu0 %2012
  %2014 = vrot.lane.b32.xlu0 %v1352, 32
  %v2015 = vpop.permute.xlu0 %2014
  %2016 = vrot.lane.b32.xlu0 %v1360, 32
  %v2017 = vpop.permute.xlu0 %2016
  %2018 = vrot.lane.b32.xlu0 %v1368, 32
  %v2019 = vpop.permute.xlu0 %2018
  %2020 = vrot.lane.b32.xlu0 %v1376, 32
  %v2021 = vpop.permute.xlu0 %2020
  %2022 = vrot.lane.b32.xlu0 %v1384, 32
  %v2023 = vpop.permute.xlu0 %2022
  %2024 = vrot.lane.b32.xlu0 %v1392, 32
  %v2025 = vpop.permute.xlu0 %2024
  %2026 = vrot.lane.b32.xlu0 %v1400, 32
  %v2027 = vpop.permute.xlu0 %2026
  %2028 = vrot.lane.b32.xlu0 %v1408, 32
  %v2029 = vpop.permute.xlu0 %2028
  %2030 = vrot.lane.b32.xlu0 %v1416, 32
  %v2031 = vpop.permute.xlu0 %2030
  %2032 = vrot.lane.b32.xlu0 %v1424, 32
  %v2033 = vpop.permute.xlu0 %2032
  %2034 = vrot.lane.b32.xlu0 %v1971, 32
  %v2035 = vpop.permute.xlu0 %2034
  %v2038 = vunpack.c.l.b16 %v804
  %v2039 = vunpack.c.l.b16 %v876
  %v2040 = vpack.c.b16 %v2038, %v2038
  %v2041 = vpack.c.b16 %v2039, %v2039
  %v2042 = vrot.slane %v1954, 5
  %v2043 = vrot.slane %v2040, 5
  %v2044 = vsel %vm1585, %v2042, %v2043
  %v2045 = vrot.slane %v1955, 5
  %v2046 = vrot.slane %v2041, 5
  %v2047 = vsel %vm1585, %v2045, %v2046
  %2048 = vrot.lane.b32.xlu0 %v1589, 40
  %v2049 = vpop.permute.xlu0 %2048
  %2050 = vrot.lane.b32.xlu0 %v1591, 40
  %v2051 = vpop.permute.xlu0 %2050
  %2052 = vrot.lane.b32.xlu0 %v1592, 40
  %v2053 = vpop.permute.xlu0 %2052
  %2054 = vrot.lane.b32.xlu0 %v1594, 40
  %v2055 = vpop.permute.xlu0 %2054
  %2056 = vrot.lane.b32.xlu0 %v1595, 40
  %v2057 = vpop.permute.xlu0 %2056
  %2058 = vrot.lane.b32.xlu0 %v1597, 40
  %v2059 = vpop.permute.xlu0 %2058
  %2060 = vrot.lane.b32.xlu0 %v1598, 40
  %v2061 = vpop.permute.xlu0 %2060
  %2062 = vrot.lane.b32.xlu0 %v1600, 40
  %v2063 = vpop.permute.xlu0 %2062
  %2064 = vrot.lane.b32.xlu0 %v1601, 40
  %v2065 = vpop.permute.xlu0 %2064
  %2066 = vrot.lane.b32.xlu0 %v1603, 40
  %v2067 = vpop.permute.xlu0 %2066
  %2068 = vrot.lane.b32.xlu0 %v1604, 40
  %v2069 = vpop.permute.xlu0 %2068
  %2070 = vrot.lane.b32.xlu0 %v1606, 40
  %v2071 = vpop.permute.xlu0 %2070
  %2072 = vrot.lane.b32.xlu0 %v1607, 40
  %v2073 = vpop.permute.xlu0 %2072
  %2074 = vrot.lane.b32.xlu0 %v1609, 40
  %v2075 = vpop.permute.xlu0 %2074
  %2076 = vrot.lane.b32.xlu0 %v1610, 40
  %v2077 = vpop.permute.xlu0 %2076
  %2078 = vrot.lane.b32.xlu0 %v1612, 40
  %v2079 = vpop.permute.xlu0 %2078
  %2080 = vrot.lane.b32.xlu0 %v1613, 40
  %v2081 = vpop.permute.xlu0 %2080
  %2082 = vrot.lane.b32.xlu0 %v1615, 40
  %v2083 = vpop.permute.xlu0 %2082
  %2084 = vrot.lane.b32.xlu0 %v1616, 40
  %v2085 = vpop.permute.xlu0 %2084
  %2086 = vrot.lane.b32.xlu0 %v1618, 40
  %v2087 = vpop.permute.xlu0 %2086
  %2088 = vrot.lane.b32.xlu0 %v1619, 40
  %v2089 = vpop.permute.xlu0 %2088
  %2090 = vrot.lane.b32.xlu0 %v1621, 40
  %v2091 = vpop.permute.xlu0 %2090
  %2092 = vrot.lane.b32.xlu0 %v1622, 40
  %v2093 = vpop.permute.xlu0 %2092
  %2094 = vrot.lane.b32.xlu0 %v1624, 40
  %v2095 = vpop.permute.xlu0 %2094
  %2096 = vrot.lane.b32.xlu0 %v1625, 40
  %v2097 = vpop.permute.xlu0 %2096
  %2098 = vrot.lane.b32.xlu0 %v1627, 40
  %v2099 = vpop.permute.xlu0 %2098
  %2100 = vrot.lane.b32.xlu0 %v1628, 40
  %v2101 = vpop.permute.xlu0 %2100
  %2102 = vrot.lane.b32.xlu0 %v1630, 40
  %v2103 = vpop.permute.xlu0 %2102
  %2104 = vrot.lane.b32.xlu0 %v1631, 40
  %v2105 = vpop.permute.xlu0 %2104
  %2106 = vrot.lane.b32.xlu0 %v1633, 40
  %v2107 = vpop.permute.xlu0 %2106
  %2108 = vrot.lane.b32.xlu0 %v2042, 40
  %v2109 = vpop.permute.xlu0 %2108
  %2110 = vrot.lane.b32.xlu0 %v2044, 40
  %v2111 = vpop.permute.xlu0 %2110
  %2112 = vrot.lane.b32.xlu0 %v1637, 40
  %v2113 = vpop.permute.xlu0 %2112
  %2114 = vrot.lane.b32.xlu0 %v1639, 40
  %v2115 = vpop.permute.xlu0 %2114
  %2116 = vrot.lane.b32.xlu0 %v1640, 40
  %v2117 = vpop.permute.xlu0 %2116
  %2118 = vrot.lane.b32.xlu0 %v1642, 40
  %v2119 = vpop.permute.xlu0 %2118
  %2120 = vrot.lane.b32.xlu0 %v1643, 40
  %v2121 = vpop.permute.xlu0 %2120
  %2122 = vrot.lane.b32.xlu0 %v1645, 40
  %v2123 = vpop.permute.xlu0 %2122
  %2124 = vrot.lane.b32.xlu0 %v1646, 40
  %v2125 = vpop.permute.xlu0 %2124
  %2126 = vrot.lane.b32.xlu0 %v1648, 40
  %v2127 = vpop.permute.xlu0 %2126
  %2128 = vrot.lane.b32.xlu0 %v1649, 40
  %v2129 = vpop.permute.xlu0 %2128
  %2130 = vrot.lane.b32.xlu0 %v1651, 40
  %v2131 = vpop.permute.xlu0 %2130
  %2132 = vrot.lane.b32.xlu0 %v1652, 40
  %v2133 = vpop.permute.xlu0 %2132
  %2134 = vrot.lane.b32.xlu0 %v1654, 40
  %v2135 = vpop.permute.xlu0 %2134
  %2136 = vrot.lane.b32.xlu0 %v1655, 40
  %v2137 = vpop.permute.xlu0 %2136
  %2138 = vrot.lane.b32.xlu0 %v1657, 40
  %v2139 = vpop.permute.xlu0 %2138
  %2140 = vrot.lane.b32.xlu0 %v1658, 40
  %v2141 = vpop.permute.xlu0 %2140
  %2142 = vrot.lane.b32.xlu0 %v1660, 40
  %v2143 = vpop.permute.xlu0 %2142
  %2144 = vrot.lane.b32.xlu0 %v1661, 40
  %v2145 = vpop.permute.xlu0 %2144
  %2146 = vrot.lane.b32.xlu0 %v1663, 40
  %v2147 = vpop.permute.xlu0 %2146
  %2148 = vrot.lane.b32.xlu0 %v1664, 40
  %v2149 = vpop.permute.xlu0 %2148
  %2150 = vrot.lane.b32.xlu0 %v1666, 40
  %v2151 = vpop.permute.xlu0 %2150
  %2152 = vrot.lane.b32.xlu0 %v1667, 40
  %v2153 = vpop.permute.xlu0 %2152
  %2154 = vrot.lane.b32.xlu0 %v1669, 40
  %v2155 = vpop.permute.xlu0 %2154
  %2156 = vrot.lane.b32.xlu0 %v1670, 40
  %v2157 = vpop.permute.xlu0 %2156
  %2158 = vrot.lane.b32.xlu0 %v1672, 40
  %v2159 = vpop.permute.xlu0 %2158
  %2160 = vrot.lane.b32.xlu0 %v1673, 40
  %v2161 = vpop.permute.xlu0 %2160
  %2162 = vrot.lane.b32.xlu0 %v1675, 40
  %v2163 = vpop.permute.xlu0 %2162
  %2164 = vrot.lane.b32.xlu0 %v1676, 40
  %v2165 = vpop.permute.xlu0 %2164
  %2166 = vrot.lane.b32.xlu0 %v1678, 40
  %v2167 = vpop.permute.xlu0 %2166
  %2168 = vrot.lane.b32.xlu0 %v1679, 40
  %v2169 = vpop.permute.xlu0 %2168
  %2170 = vrot.lane.b32.xlu0 %v1681, 40
  %v2171 = vpop.permute.xlu0 %2170
  %2172 = vrot.lane.b32.xlu0 %v2045, 40
  %v2173 = vpop.permute.xlu0 %2172
  %2174 = vrot.lane.b32.xlu0 %v2047, 40
  %v2175 = vpop.permute.xlu0 %2174
  %v2182 = vunpack.c.l.b16 %v805
  %v2183 = vunpack.c.l.b16 %v806
  %v2184 = vunpack.c.l.b16 %v807
  %v2185 = vunpack.c.l.b16 %v877
  %v2186 = vunpack.c.l.b16 %v878
  %v2187 = vunpack.c.l.b16 %v879
  %v2188 = vpack.c.b16 %v2183, %v2182
  %v2189 = vpack.c.b16 %v2184, %v2184
  %v2190 = vpack.c.b16 %v2186, %v2185
  %v2191 = vpack.c.b16 %v2187, %v2187
  %2192 = vrot.lane.b32.xlu0 %v1077, 48
  %v2193 = vpop.permute.xlu0 %2192
  %2194 = vrot.lane.b32.xlu0 %v1078, 48
  %v2195 = vpop.permute.xlu0 %2194
  %2196 = vrot.lane.b32.xlu0 %v1079, 48
  %v2197 = vpop.permute.xlu0 %2196
  %2198 = vrot.lane.b32.xlu0 %v1080, 48
  %v2199 = vpop.permute.xlu0 %2198
  %2200 = vrot.lane.b32.xlu0 %v1081, 48
  %v2201 = vpop.permute.xlu0 %2200
  %2202 = vrot.lane.b32.xlu0 %v1082, 48
  %v2203 = vpop.permute.xlu0 %2202
  %2204 = vrot.lane.b32.xlu0 %v1083, 48
  %v2205 = vpop.permute.xlu0 %2204
  %2206 = vrot.lane.b32.xlu0 %v1084, 48
  %v2207 = vpop.permute.xlu0 %2206
  %2208 = vrot.lane.b32.xlu0 %v1085, 48
  %v2209 = vpop.permute.xlu0 %2208
  %2210 = vrot.lane.b32.xlu0 %v1086, 48
  %v2211 = vpop.permute.xlu0 %2210
  %2212 = vrot.lane.b32.xlu0 %v1087, 48
  %v2213 = vpop.permute.xlu0 %2212
  %2214 = vrot.lane.b32.xlu0 %v1088, 48
  %v2215 = vpop.permute.xlu0 %2214
  %2216 = vrot.lane.b32.xlu0 %v1089, 48
  %v2217 = vpop.permute.xlu0 %2216
  %2218 = vrot.lane.b32.xlu0 %v1090, 48
  %v2219 = vpop.permute.xlu0 %2218
  %2220 = vrot.lane.b32.xlu0 %v1091, 48
  %v2221 = vpop.permute.xlu0 %2220
  %2222 = vrot.lane.b32.xlu0 %v1092, 48
  %v2223 = vpop.permute.xlu0 %2222
  %2224 = vrot.lane.b32.xlu0 %v1093, 48
  %v2225 = vpop.permute.xlu0 %2224
  %2226 = vrot.lane.b32.xlu0 %v1094, 48
  %v2227 = vpop.permute.xlu0 %2226
  %2228 = vrot.lane.b32.xlu0 %v1095, 48
  %v2229 = vpop.permute.xlu0 %2228
  %2230 = vrot.lane.b32.xlu0 %v1096, 48
  %v2231 = vpop.permute.xlu0 %2230
  %2232 = vrot.lane.b32.xlu0 %v1097, 48
  %v2233 = vpop.permute.xlu0 %2232
  %2234 = vrot.lane.b32.xlu0 %v1098, 48
  %v2235 = vpop.permute.xlu0 %2234
  %2236 = vrot.lane.b32.xlu0 %v1099, 48
  %v2237 = vpop.permute.xlu0 %2236
  %2238 = vrot.lane.b32.xlu0 %v1100, 48
  %v2239 = vpop.permute.xlu0 %2238
  %2240 = vrot.lane.b32.xlu0 %v1101, 48
  %v2241 = vpop.permute.xlu0 %2240
  %2242 = vrot.lane.b32.xlu0 %v1102, 48
  %v2243 = vpop.permute.xlu0 %2242
  %2244 = vrot.lane.b32.xlu0 %v1103, 48
  %v2245 = vpop.permute.xlu0 %2244
  %2246 = vrot.lane.b32.xlu0 %v1104, 48
  %v2247 = vpop.permute.xlu0 %2246
  %2248 = vrot.lane.b32.xlu0 %v1822, 48
  %v2249 = vpop.permute.xlu0 %2248
  %2250 = vrot.lane.b32.xlu0 %v1823, 48
  %v2251 = vpop.permute.xlu0 %2250
  %2252 = vrot.lane.b32.xlu0 %v2188, 48
  %v2253 = vpop.permute.xlu0 %2252
  %2254 = vrot.lane.b32.xlu0 %v2189, 48
  %v2255 = vpop.permute.xlu0 %2254
  %2256 = vrot.lane.b32.xlu0 %v1109, 48
  %v2257 = vpop.permute.xlu0 %2256
  %2258 = vrot.lane.b32.xlu0 %v1110, 48
  %v2259 = vpop.permute.xlu0 %2258
  %2260 = vrot.lane.b32.xlu0 %v1111, 48
  %v2261 = vpop.permute.xlu0 %2260
  %2262 = vrot.lane.b32.xlu0 %v1112, 48
  %v2263 = vpop.permute.xlu0 %2262
  %2264 = vrot.lane.b32.xlu0 %v1113, 48
  %v2265 = vpop.permute.xlu0 %2264
  %2266 = vrot.lane.b32.xlu0 %v1114, 48
  %v2267 = vpop.permute.xlu0 %2266
  %2268 = vrot.lane.b32.xlu0 %v1115, 48
  %v2269 = vpop.permute.xlu0 %2268
  %2270 = vrot.lane.b32.xlu0 %v1116, 48
  %v2271 = vpop.permute.xlu0 %2270
  %2272 = vrot.lane.b32.xlu0 %v1117, 48
  %v2273 = vpop.permute.xlu0 %2272
  %2274 = vrot.lane.b32.xlu0 %v1118, 48
  %v2275 = vpop.permute.xlu0 %2274
  %2276 = vrot.lane.b32.xlu0 %v1119, 48
  %v2277 = vpop.permute.xlu0 %2276
  %2278 = vrot.lane.b32.xlu0 %v1120, 48
  %v2279 = vpop.permute.xlu0 %2278
  %2280 = vrot.lane.b32.xlu0 %v1121, 48
  %v2281 = vpop.permute.xlu0 %2280
  %2282 = vrot.lane.b32.xlu0 %v1122, 48
  %v2283 = vpop.permute.xlu0 %2282
  %2284 = vrot.lane.b32.xlu0 %v1123, 48
  %v2285 = vpop.permute.xlu0 %2284
  %2286 = vrot.lane.b32.xlu0 %v1124, 48
  %v2287 = vpop.permute.xlu0 %2286
  %2288 = vrot.lane.b32.xlu0 %v1125, 48
  %v2289 = vpop.permute.xlu0 %2288
  %2290 = vrot.lane.b32.xlu0 %v1126, 48
  %v2291 = vpop.permute.xlu0 %2290
  %2292 = vrot.lane.b32.xlu0 %v1127, 48
  %v2293 = vpop.permute.xlu0 %2292
  %2294 = vrot.lane.b32.xlu0 %v1128, 48
  %v2295 = vpop.permute.xlu0 %2294
  %2296 = vrot.lane.b32.xlu0 %v1129, 48
  %v2297 = vpop.permute.xlu0 %2296
  %2298 = vrot.lane.b32.xlu0 %v1130, 48
  %v2299 = vpop.permute.xlu0 %2298
  %2300 = vrot.lane.b32.xlu0 %v1131, 48
  %v2301 = vpop.permute.xlu0 %2300
  %2302 = vrot.lane.b32.xlu0 %v1132, 48
  %v2303 = vpop.permute.xlu0 %2302
  %2304 = vrot.lane.b32.xlu0 %v1133, 48
  %v2305 = vpop.permute.xlu0 %2304
  %2306 = vrot.lane.b32.xlu0 %v1134, 48
  %v2307 = vpop.permute.xlu0 %2306
  %2308 = vrot.lane.b32.xlu0 %v1135, 48
  %v2309 = vpop.permute.xlu0 %2308
  %2310 = vrot.lane.b32.xlu0 %v1136, 48
  %v2311 = vpop.permute.xlu0 %2310
  %2312 = vrot.lane.b32.xlu0 %v1824, 48
  %v2313 = vpop.permute.xlu0 %2312
  %2314 = vrot.lane.b32.xlu0 %v1825, 48
  %v2315 = vpop.permute.xlu0 %2314
  %2316 = vrot.lane.b32.xlu0 %v2190, 48
  %v2317 = vpop.permute.xlu0 %2316
  %2318 = vrot.lane.b32.xlu0 %v2191, 48
  %v2319 = vpop.permute.xlu0 %2318
  %v2320 = vpack.c.b16 %v2184, %v2183
  %v2321 = vpack.c.b16 %v2187, %v2186
  %v2323 = vshrl.u32 %v2320, 16
  %v2325 = vrot.slane %v2323, 4
  %v2326 = vshll.u32 %v2320, 16
  %v2328 = vrot.slane %v2326, 5
  %v2329 = vor.u32 %v2325, %v2328
  %v2331 = vshrl.u32 %v2321, 16
  %v2333 = vrot.slane %v2331, 4
  %v2334 = vshll.u32 %v2321, 16
  %v2336 = vrot.slane %v2334, 5
  %v2337 = vor.u32 %v2333, %v2336
  %2338 = vrot.lane.b32.xlu0 %v1192, 56
  %v2339 = vpop.permute.xlu0 %2338
  %2340 = vrot.lane.b32.xlu0 %v1200, 56
  %v2341 = vpop.permute.xlu0 %2340
  %2342 = vrot.lane.b32.xlu0 %v1208, 56
  %v2343 = vpop.permute.xlu0 %2342
  %2344 = vrot.lane.b32.xlu0 %v1216, 56
  %v2345 = vpop.permute.xlu0 %2344
  %2346 = vrot.lane.b32.xlu0 %v1224, 56
  %v2347 = vpop.permute.xlu0 %2346
  %2348 = vrot.lane.b32.xlu0 %v1232, 56
  %v2349 = vpop.permute.xlu0 %2348
  %2350 = vrot.lane.b32.xlu0 %v1240, 56
  %v2351 = vpop.permute.xlu0 %2350
  %2352 = vrot.lane.b32.xlu0 %v1248, 56
  %v2353 = vpop.permute.xlu0 %2352
  %2354 = vrot.lane.b32.xlu0 %v1256, 56
  %v2355 = vpop.permute.xlu0 %2354
  %2356 = vrot.lane.b32.xlu0 %v1264, 56
  %v2357 = vpop.permute.xlu0 %2356
  %2358 = vrot.lane.b32.xlu0 %v1272, 56
  %v2359 = vpop.permute.xlu0 %2358
  %2360 = vrot.lane.b32.xlu0 %v1280, 56
  %v2361 = vpop.permute.xlu0 %2360
  %2362 = vrot.lane.b32.xlu0 %v1288, 56
  %v2363 = vpop.permute.xlu0 %2362
  %2364 = vrot.lane.b32.xlu0 %v1296, 56
  %v2365 = vpop.permute.xlu0 %2364
  %2366 = vrot.lane.b32.xlu0 %v1963, 56
  %v2367 = vpop.permute.xlu0 %2366
  %2368 = vrot.lane.b32.xlu0 %v2329, 56
  %v2369 = vpop.permute.xlu0 %2368
  %2370 = vrot.lane.b32.xlu0 %v1320, 56
  %v2371 = vpop.permute.xlu0 %2370
  %2372 = vrot.lane.b32.xlu0 %v1328, 56
  %v2373 = vpop.permute.xlu0 %2372
  %2374 = vrot.lane.b32.xlu0 %v1336, 56
  %v2375 = vpop.permute.xlu0 %2374
  %2376 = vrot.lane.b32.xlu0 %v1344, 56
  %v2377 = vpop.permute.xlu0 %2376
  %2378 = vrot.lane.b32.xlu0 %v1352, 56
  %v2379 = vpop.permute.xlu0 %2378
  %2380 = vrot.lane.b32.xlu0 %v1360, 56
  %v2381 = vpop.permute.xlu0 %2380
  %2382 = vrot.lane.b32.xlu0 %v1368, 56
  %v2383 = vpop.permute.xlu0 %2382
  %2384 = vrot.lane.b32.xlu0 %v1376, 56
  %v2385 = vpop.permute.xlu0 %2384
  %2386 = vrot.lane.b32.xlu0 %v1384, 56
  %v2387 = vpop.permute.xlu0 %2386
  %2388 = vrot.lane.b32.xlu0 %v1392, 56
  %v2389 = vpop.permute.xlu0 %2388
  %2390 = vrot.lane.b32.xlu0 %v1400, 56
  %v2391 = vpop.permute.xlu0 %2390
  %2392 = vrot.lane.b32.xlu0 %v1408, 56
  %v2393 = vpop.permute.xlu0 %2392
  %2394 = vrot.lane.b32.xlu0 %v1416, 56
  %v2395 = vpop.permute.xlu0 %2394
  %2396 = vrot.lane.b32.xlu0 %v1424, 56
  %v2397 = vpop.permute.xlu0 %2396
  %2398 = vrot.lane.b32.xlu0 %v1971, 56
  %v2399 = vpop.permute.xlu0 %2398
  %2400 = vrot.lane.b32.xlu0 %v2337, 56
  %v2401 = vpop.permute.xlu0 %2400
  %v2404 = vunpack.c.l.b16 %v808
  %v2405 = vunpack.c.l.b16 %v880
  %v2406 = vpack.c.b16 %v2404, %v2404
  %v2407 = vpack.c.b16 %v2405, %v2405
  %v2408 = vrot.slane %v2320, 5
  %v2409 = vrot.slane %v2406, 5
  %v2410 = vsel %vm1585, %v2408, %v2409
  %v2411 = vrot.slane %v2321, 5
  %v2412 = vrot.slane %v2407, 5
  %v2413 = vsel %vm1585, %v2411, %v2412
  %2414 = vrot.lane.b32.xlu0 %v1592, 64
  %v2415 = vpop.permute.xlu0 %2414
  %2416 = vrot.lane.b32.xlu0 %v1594, 64
  %v2417 = vpop.permute.xlu0 %2416
  %2418 = vrot.lane.b32.xlu0 %v1595, 64
  %v2419 = vpop.permute.xlu0 %2418
  %2420 = vrot.lane.b32.xlu0 %v1597, 64
  %v2421 = vpop.permute.xlu0 %2420
  %2422 = vrot.lane.b32.xlu0 %v1598, 64
  %v2423 = vpop.permute.xlu0 %2422
  %2424 = vrot.lane.b32.xlu0 %v1600, 64
  %v2425 = vpop.permute.xlu0 %2424
  %2426 = vrot.lane.b32.xlu0 %v1601, 64
  %v2427 = vpop.permute.xlu0 %2426
  %2428 = vrot.lane.b32.xlu0 %v1603, 64
  %v2429 = vpop.permute.xlu0 %2428
  %2430 = vrot.lane.b32.xlu0 %v1604, 64
  %v2431 = vpop.permute.xlu0 %2430
  %2432 = vrot.lane.b32.xlu0 %v1606, 64
  %v2433 = vpop.permute.xlu0 %2432
  %2434 = vrot.lane.b32.xlu0 %v1607, 64
  %v2435 = vpop.permute.xlu0 %2434
  %2436 = vrot.lane.b32.xlu0 %v1609, 64
  %v2437 = vpop.permute.xlu0 %2436
  %2438 = vrot.lane.b32.xlu0 %v1610, 64
  %v2439 = vpop.permute.xlu0 %2438
  %2440 = vrot.lane.b32.xlu0 %v1612, 64
  %v2441 = vpop.permute.xlu0 %2440
  %2442 = vrot.lane.b32.xlu0 %v1613, 64
  %v2443 = vpop.permute.xlu0 %2442
  %2444 = vrot.lane.b32.xlu0 %v1615, 64
  %v2445 = vpop.permute.xlu0 %2444
  %2446 = vrot.lane.b32.xlu0 %v1616, 64
  %v2447 = vpop.permute.xlu0 %2446
  %2448 = vrot.lane.b32.xlu0 %v1618, 64
  %v2449 = vpop.permute.xlu0 %2448
  %2450 = vrot.lane.b32.xlu0 %v1619, 64
  %v2451 = vpop.permute.xlu0 %2450
  %2452 = vrot.lane.b32.xlu0 %v1621, 64
  %v2453 = vpop.permute.xlu0 %2452
  %2454 = vrot.lane.b32.xlu0 %v1622, 64
  %v2455 = vpop.permute.xlu0 %2454
  %2456 = vrot.lane.b32.xlu0 %v1624, 64
  %v2457 = vpop.permute.xlu0 %2456
  %2458 = vrot.lane.b32.xlu0 %v1625, 64
  %v2459 = vpop.permute.xlu0 %2458
  %2460 = vrot.lane.b32.xlu0 %v1627, 64
  %v2461 = vpop.permute.xlu0 %2460
  %2462 = vrot.lane.b32.xlu0 %v1628, 64
  %v2463 = vpop.permute.xlu0 %2462
  %2464 = vrot.lane.b32.xlu0 %v1630, 64
  %v2465 = vpop.permute.xlu0 %2464
  %2466 = vrot.lane.b32.xlu0 %v1631, 64
  %v2467 = vpop.permute.xlu0 %2466
  %2468 = vrot.lane.b32.xlu0 %v1633, 64
  %v2469 = vpop.permute.xlu0 %2468
  %2470 = vrot.lane.b32.xlu0 %v2042, 64
  %v2471 = vpop.permute.xlu0 %2470
  %2472 = vrot.lane.b32.xlu0 %v2044, 64
  %v2473 = vpop.permute.xlu0 %2472
  %2474 = vrot.lane.b32.xlu0 %v2408, 64
  %v2475 = vpop.permute.xlu0 %2474
  %2476 = vrot.lane.b32.xlu0 %v2410, 64
  %v2477 = vpop.permute.xlu0 %2476
  %2478 = vrot.lane.b32.xlu0 %v1640, 64
  %v2479 = vpop.permute.xlu0 %2478
  %2480 = vrot.lane.b32.xlu0 %v1642, 64
  %v2481 = vpop.permute.xlu0 %2480
  %2482 = vrot.lane.b32.xlu0 %v1643, 64
  %v2483 = vpop.permute.xlu0 %2482
  %2484 = vrot.lane.b32.xlu0 %v1645, 64
  %v2485 = vpop.permute.xlu0 %2484
  %2486 = vrot.lane.b32.xlu0 %v1646, 64
  %v2487 = vpop.permute.xlu0 %2486
  %2488 = vrot.lane.b32.xlu0 %v1648, 64
  %v2489 = vpop.permute.xlu0 %2488
  %2490 = vrot.lane.b32.xlu0 %v1649, 64
  %v2491 = vpop.permute.xlu0 %2490
  %2492 = vrot.lane.b32.xlu0 %v1651, 64
  %v2493 = vpop.permute.xlu0 %2492
  %2494 = vrot.lane.b32.xlu0 %v1652, 64
  %v2495 = vpop.permute.xlu0 %2494
  %2496 = vrot.lane.b32.xlu0 %v1654, 64
  %v2497 = vpop.permute.xlu0 %2496
  %2498 = vrot.lane.b32.xlu0 %v1655, 64
  %v2499 = vpop.permute.xlu0 %2498
  %2500 = vrot.lane.b32.xlu0 %v1657, 64
  %v2501 = vpop.permute.xlu0 %2500
  %2502 = vrot.lane.b32.xlu0 %v1658, 64
  %v2503 = vpop.permute.xlu0 %2502
  %2504 = vrot.lane.b32.xlu0 %v1660, 64
  %v2505 = vpop.permute.xlu0 %2504
  %2506 = vrot.lane.b32.xlu0 %v1661, 64
  %v2507 = vpop.permute.xlu0 %2506
  %2508 = vrot.lane.b32.xlu0 %v1663, 64
  %v2509 = vpop.permute.xlu0 %2508
  %2510 = vrot.lane.b32.xlu0 %v1664, 64
  %v2511 = vpop.permute.xlu0 %2510
  %2512 = vrot.lane.b32.xlu0 %v1666, 64
  %v2513 = vpop.permute.xlu0 %2512
  %2514 = vrot.lane.b32.xlu0 %v1667, 64
  %v2515 = vpop.permute.xlu0 %2514
  %2516 = vrot.lane.b32.xlu0 %v1669, 64
  %v2517 = vpop.permute.xlu0 %2516
  %2518 = vrot.lane.b32.xlu0 %v1670, 64
  %v2519 = vpop.permute.xlu0 %2518
  %2520 = vrot.lane.b32.xlu0 %v1672, 64
  %v2521 = vpop.permute.xlu0 %2520
  %2522 = vrot.lane.b32.xlu0 %v1673, 64
  %v2523 = vpop.permute.xlu0 %2522
  %2524 = vrot.lane.b32.xlu0 %v1675, 64
  %v2525 = vpop.permute.xlu0 %2524
  %2526 = vrot.lane.b32.xlu0 %v1676, 64
  %v2527 = vpop.permute.xlu0 %2526
  %2528 = vrot.lane.b32.xlu0 %v1678, 64
  %v2529 = vpop.permute.xlu0 %2528
  %2530 = vrot.lane.b32.xlu0 %v1679, 64
  %v2531 = vpop.permute.xlu0 %2530
  %2532 = vrot.lane.b32.xlu0 %v1681, 64
  %v2533 = vpop.permute.xlu0 %2532
  %2534 = vrot.lane.b32.xlu0 %v2045, 64
  %v2535 = vpop.permute.xlu0 %2534
  %2536 = vrot.lane.b32.xlu0 %v2047, 64
  %v2537 = vpop.permute.xlu0 %2536
  %2538 = vrot.lane.b32.xlu0 %v2411, 64
  %v2539 = vpop.permute.xlu0 %2538
  %2540 = vrot.lane.b32.xlu0 %v2413, 64
  %v2541 = vpop.permute.xlu0 %2540
  %vm2542 = vcmask 64512
  %v2545 = vsel %vm2542, %v1073, %v1426
  %v2547 = vsel %vm2542, %v1074, %v1426
  %v2550 = vsel %vm2542, %v1075, %v1428
  %v2552 = vsel %vm2542, %v1076, %v1428
  %v2555 = vsel %vm2542, %v1077, %v1430
  %v2557 = vsel %vm2542, %v1078, %v1430
  %v2560 = vsel %vm2542, %v1079, %v1432
  %v2562 = vsel %vm2542, %v1080, %v1432
  %v2565 = vsel %vm2542, %v1081, %v1434
  %v2567 = vsel %vm2542, %v1082, %v1434
  %v2570 = vsel %vm2542, %v1083, %v1436
  %v2572 = vsel %vm2542, %v1084, %v1436
  %v2575 = vsel %vm2542, %v1085, %v1438
  %v2577 = vsel %vm2542, %v1086, %v1438
  %v2580 = vsel %vm2542, %v1087, %v1440
  %v2582 = vsel %vm2542, %v1088, %v1440
  %v2585 = vsel %vm2542, %v1089, %v1442
  %v2587 = vsel %vm2542, %v1090, %v1442
  %v2590 = vsel %vm2542, %v1091, %v1444
  %v2592 = vsel %vm2542, %v1092, %v1444
  %v2595 = vsel %vm2542, %v1093, %v1446
  %v2597 = vsel %vm2542, %v1094, %v1446
  %v2600 = vsel %vm2542, %v1095, %v1448
  %v2602 = vsel %vm2542, %v1096, %v1448
  %v2605 = vsel %vm2542, %v1097, %v1450
  %v2607 = vsel %vm2542, %v1098, %v1450
  %v2610 = vsel %vm2542, %v1099, %v1452
  %v2612 = vsel %vm2542, %v1100, %v1452
  %v2615 = vsel %vm2542, %v1101, %v1454
  %v2617 = vsel %vm2542, %v1102, %v1454
  %v2620 = vsel %vm2542, %v1103, %v1456
  %v2622 = vsel %vm2542, %v1104, %v1456
  %v2625 = vsel %vm2542, %v1105, %v1458
  %v2627 = vsel %vm2542, %v1106, %v1458
  %v2630 = vsel %vm2542, %v1107, %v1460
  %v2632 = vsel %vm2542, %v1108, %v1460
  %v2635 = vsel %vm2542, %v1109, %v1462
  %v2637 = vsel %vm2542, %v1110, %v1462
  %v2640 = vsel %vm2542, %v1111, %v1464
  %v2642 = vsel %vm2542, %v1112, %v1464
  %v2645 = vsel %vm2542, %v1113, %v1466
  %v2647 = vsel %vm2542, %v1114, %v1466
  %v2650 = vsel %vm2542, %v1115, %v1468
  %v2652 = vsel %vm2542, %v1116, %v1468
  %v2655 = vsel %vm2542, %v1117, %v1470
  %v2657 = vsel %vm2542, %v1118, %v1470
  %v2660 = vsel %vm2542, %v1119, %v1472
  %v2662 = vsel %vm2542, %v1120, %v1472
  %v2665 = vsel %vm2542, %v1121, %v1474
  %v2667 = vsel %vm2542, %v1122, %v1474
  %v2670 = vsel %vm2542, %v1123, %v1476
  %v2672 = vsel %vm2542, %v1124, %v1476
  %v2675 = vsel %vm2542, %v1125, %v1478
  %v2677 = vsel %vm2542, %v1126, %v1478
  %v2680 = vsel %vm2542, %v1127, %v1480
  %v2682 = vsel %vm2542, %v1128, %v1480
  %v2685 = vsel %vm2542, %v1129, %v1482
  %v2687 = vsel %vm2542, %v1130, %v1482
  %v2690 = vsel %vm2542, %v1131, %v1484
  %v2692 = vsel %vm2542, %v1132, %v1484
  %v2695 = vsel %vm2542, %v1133, %v1486
  %v2697 = vsel %vm2542, %v1134, %v1486
  %v2700 = vsel %vm2542, %v1135, %v1488
  %v2702 = vsel %vm2542, %v1136, %v1488
  %vm2703 = vcmask 130048
  %v2705 = vsel %vm2703, %v2545, %v1683
  %v2707 = vsel %vm2703, %v2547, %v1685
  %v2709 = vsel %vm2703, %v2550, %v1687
  %v2711 = vsel %vm2703, %v2552, %v1689
  %v2713 = vsel %vm2703, %v2555, %v1691
  %v2715 = vsel %vm2703, %v2557, %v1693
  %v2717 = vsel %vm2703, %v2560, %v1695
  %v2719 = vsel %vm2703, %v2562, %v1697
  %v2721 = vsel %vm2703, %v2565, %v1699
  %v2723 = vsel %vm2703, %v2567, %v1701
  %v2725 = vsel %vm2703, %v2570, %v1703
  %v2727 = vsel %vm2703, %v2572, %v1705
  %v2729 = vsel %vm2703, %v2575, %v1707
  %v2731 = vsel %vm2703, %v2577, %v1709
  %v2733 = vsel %vm2703, %v2580, %v1711
  %v2735 = vsel %vm2703, %v2582, %v1713
  %v2737 = vsel %vm2703, %v2585, %v1715
  %v2739 = vsel %vm2703, %v2587, %v1717
  %v2741 = vsel %vm2703, %v2590, %v1719
  %v2743 = vsel %vm2703, %v2592, %v1721
  %v2745 = vsel %vm2703, %v2595, %v1723
  %v2747 = vsel %vm2703, %v2597, %v1725
  %v2749 = vsel %vm2703, %v2600, %v1727
  %v2751 = vsel %vm2703, %v2602, %v1729
  %v2753 = vsel %vm2703, %v2605, %v1731
  %v2755 = vsel %vm2703, %v2607, %v1733
  %v2757 = vsel %vm2703, %v2610, %v1735
  %v2759 = vsel %vm2703, %v2612, %v1737
  %v2761 = vsel %vm2703, %v2615, %v1739
  %v2763 = vsel %vm2703, %v2617, %v1741
  %v2765 = vsel %vm2703, %v2620, %v1743
  %v2767 = vsel %vm2703, %v2622, %v1745
  %v2769 = vsel %vm2703, %v2625, %v1747
  %v2771 = vsel %vm2703, %v2627, %v1749
  %v2773 = vsel %vm2703, %v2630, %v1751
  %v2775 = vsel %vm2703, %v2632, %v1753
  %v2777 = vsel %vm2703, %v2635, %v1755
  %v2779 = vsel %vm2703, %v2637, %v1757
  %v2781 = vsel %vm2703, %v2640, %v1759
  %v2783 = vsel %vm2703, %v2642, %v1761
  %v2785 = vsel %vm2703, %v2645, %v1763
  %v2787 = vsel %vm2703, %v2647, %v1765
  %v2789 = vsel %vm2703, %v2650, %v1767
  %v2791 = vsel %vm2703, %v2652, %v1769
  %v2793 = vsel %vm2703, %v2655, %v1771
  %v2795 = vsel %vm2703, %v2657, %v1773
  %v2797 = vsel %vm2703, %v2660, %v1775
  %v2799 = vsel %vm2703, %v2662, %v1777
  %v2801 = vsel %vm2703, %v2665, %v1779
  %v2803 = vsel %vm2703, %v2667, %v1781
  %v2805 = vsel %vm2703, %v2670, %v1783
  %v2807 = vsel %vm2703, %v2672, %v1785
  %v2809 = vsel %vm2703, %v2675, %v1787
  %v2811 = vsel %vm2703, %v2677, %v1789
  %v2813 = vsel %vm2703, %v2680, %v1791
  %v2815 = vsel %vm2703, %v2682, %v1793
  %v2817 = vsel %vm2703, %v2685, %v1795
  %v2819 = vsel %vm2703, %v2687, %v1797
  %v2821 = vsel %vm2703, %v2690, %v1799
  %v2823 = vsel %vm2703, %v2692, %v1801
  %v2825 = vsel %vm2703, %v2695, %v1803
  %v2827 = vsel %vm2703, %v2697, %v1805
  %v2829 = vsel %vm2703, %v2700, %v1807
  %v2831 = vsel %vm2703, %v2702, %v1809
  %vm2832 = vcmask 195584
  %v2834 = vsel %vm2832, %v2705, %v1827
  %v2836 = vsel %vm2832, %v2707, %v1829
  %v2838 = vsel %vm2832, %v2709, %v1831
  %v2840 = vsel %vm2832, %v2711, %v1833
  %v2842 = vsel %vm2832, %v2713, %v1835
  %v2844 = vsel %vm2832, %v2715, %v1837
  %v2846 = vsel %vm2832, %v2717, %v1839
  %v2848 = vsel %vm2832, %v2719, %v1841
  %v2850 = vsel %vm2832, %v2721, %v1843
  %v2852 = vsel %vm2832, %v2723, %v1845
  %v2854 = vsel %vm2832, %v2725, %v1847
  %v2856 = vsel %vm2832, %v2727, %v1849
  %v2858 = vsel %vm2832, %v2729, %v1851
  %v2860 = vsel %vm2832, %v2731, %v1853
  %v2862 = vsel %vm2832, %v2733, %v1855
  %v2864 = vsel %vm2832, %v2735, %v1857
  %v2866 = vsel %vm2832, %v2737, %v1859
  %v2868 = vsel %vm2832, %v2739, %v1861
  %v2870 = vsel %vm2832, %v2741, %v1863
  %v2872 = vsel %vm2832, %v2743, %v1865
  %v2874 = vsel %vm2832, %v2745, %v1867
  %v2876 = vsel %vm2832, %v2747, %v1869
  %v2878 = vsel %vm2832, %v2749, %v1871
  %v2880 = vsel %vm2832, %v2751, %v1873
  %v2882 = vsel %vm2832, %v2753, %v1875
  %v2884 = vsel %vm2832, %v2755, %v1877
  %v2886 = vsel %vm2832, %v2757, %v1879
  %v2888 = vsel %vm2832, %v2759, %v1881
  %v2890 = vsel %vm2832, %v2761, %v1883
  %v2892 = vsel %vm2832, %v2763, %v1885
  %v2894 = vsel %vm2832, %v2765, %v1887
  %v2896 = vsel %vm2832, %v2767, %v1889
  %v2898 = vsel %vm2832, %v2769, %v1891
  %v2900 = vsel %vm2832, %v2771, %v1893
  %v2902 = vsel %vm2832, %v2773, %v1895
  %v2904 = vsel %vm2832, %v2775, %v1897
  %v2906 = vsel %vm2832, %v2777, %v1899
  %v2908 = vsel %vm2832, %v2779, %v1901
  %v2910 = vsel %vm2832, %v2781, %v1903
  %v2912 = vsel %vm2832, %v2783, %v1905
  %v2914 = vsel %vm2832, %v2785, %v1907
  %v2916 = vsel %vm2832, %v2787, %v1909
  %v2918 = vsel %vm2832, %v2789, %v1911
  %v2920 = vsel %vm2832, %v2791, %v1913
  %v2922 = vsel %vm2832, %v2793, %v1915
  %v2924 = vsel %vm2832, %v2795, %v1917
  %v2926 = vsel %vm2832, %v2797, %v1919
  %v2928 = vsel %vm2832, %v2799, %v1921
  %v2930 = vsel %vm2832, %v2801, %v1923
  %v2932 = vsel %vm2832, %v2803, %v1925
  %v2934 = vsel %vm2832, %v2805, %v1927
  %v2936 = vsel %vm2832, %v2807, %v1929
  %v2938 = vsel %vm2832, %v2809, %v1931
  %v2940 = vsel %vm2832, %v2811, %v1933
  %v2942 = vsel %vm2832, %v2813, %v1935
  %v2944 = vsel %vm2832, %v2815, %v1937
  %v2946 = vsel %vm2832, %v2817, %v1939
  %v2948 = vsel %vm2832, %v2819, %v1941
  %v2950 = vsel %vm2832, %v2821, %v1943
  %v2952 = vsel %vm2832, %v2823, %v1945
  %v2954 = vsel %vm2832, %v2825, %v1947
  %v2956 = vsel %vm2832, %v2827, %v1949
  %v2958 = vsel %vm2832, %v2829, %v1951
  %v2960 = vsel %vm2832, %v2831, %v1953
  %vm2961 = vcmask 261120
  %v2963 = vsel %vm2961, %v2834, %v1973
  %v2964 = vsel %vm2961, %v2836, %v1973
  %v2966 = vsel %vm2961, %v2838, %v1975
  %v2967 = vsel %vm2961, %v2840, %v1975
  %v2969 = vsel %vm2961, %v2842, %v1977
  %v2970 = vsel %vm2961, %v2844, %v1977
  %v2972 = vsel %vm2961, %v2846, %v1979
  %v2973 = vsel %vm2961, %v2848, %v1979
  %v2975 = vsel %vm2961, %v2850, %v1981
  %v2976 = vsel %vm2961, %v2852, %v1981
  %v2978 = vsel %vm2961, %v2854, %v1983
  %v2979 = vsel %vm2961, %v2856, %v1983
  %v2981 = vsel %vm2961, %v2858, %v1985
  %v2982 = vsel %vm2961, %v2860, %v1985
  %v2984 = vsel %vm2961, %v2862, %v1987
  %v2985 = vsel %vm2961, %v2864, %v1987
  %v2987 = vsel %vm2961, %v2866, %v1989
  %v2988 = vsel %vm2961, %v2868, %v1989
  %v2990 = vsel %vm2961, %v2870, %v1991
  %v2991 = vsel %vm2961, %v2872, %v1991
  %v2993 = vsel %vm2961, %v2874, %v1993
  %v2994 = vsel %vm2961, %v2876, %v1993
  %v2996 = vsel %vm2961, %v2878, %v1995
  %v2997 = vsel %vm2961, %v2880, %v1995
  %v2999 = vsel %vm2961, %v2882, %v1997
  %v3000 = vsel %vm2961, %v2884, %v1997
  %v3002 = vsel %vm2961, %v2886, %v1999
  %v3003 = vsel %vm2961, %v2888, %v1999
  %v3005 = vsel %vm2961, %v2890, %v2001
  %v3006 = vsel %vm2961, %v2892, %v2001
  %v3008 = vsel %vm2961, %v2894, %v2003
  %v3009 = vsel %vm2961, %v2896, %v2003
  %v3011 = vsel %vm2961, %v2898, %v2005
  %v3012 = vsel %vm2961, %v2900, %v2005
  %v3014 = vsel %vm2961, %v2902, %v2007
  %v3015 = vsel %vm2961, %v2904, %v2007
  %v3017 = vsel %vm2961, %v2906, %v2009
  %v3018 = vsel %vm2961, %v2908, %v2009
  %v3020 = vsel %vm2961, %v2910, %v2011
  %v3021 = vsel %vm2961, %v2912, %v2011
  %v3023 = vsel %vm2961, %v2914, %v2013
  %v3024 = vsel %vm2961, %v2916, %v2013
  %v3026 = vsel %vm2961, %v2918, %v2015
  %v3027 = vsel %vm2961, %v2920, %v2015
  %v3029 = vsel %vm2961, %v2922, %v2017
  %v3030 = vsel %vm2961, %v2924, %v2017
  %v3032 = vsel %vm2961, %v2926, %v2019
  %v3033 = vsel %vm2961, %v2928, %v2019
  %v3035 = vsel %vm2961, %v2930, %v2021
  %v3036 = vsel %vm2961, %v2932, %v2021
  %v3038 = vsel %vm2961, %v2934, %v2023
  %v3039 = vsel %vm2961, %v2936, %v2023
  %v3041 = vsel %vm2961, %v2938, %v2025
  %v3042 = vsel %vm2961, %v2940, %v2025
  %v3044 = vsel %vm2961, %v2942, %v2027
  %v3045 = vsel %vm2961, %v2944, %v2027
  %v3047 = vsel %vm2961, %v2946, %v2029
  %v3048 = vsel %vm2961, %v2948, %v2029
  %v3050 = vsel %vm2961, %v2950, %v2031
  %v3051 = vsel %vm2961, %v2952, %v2031
  %v3053 = vsel %vm2961, %v2954, %v2033
  %v3054 = vsel %vm2961, %v2956, %v2033
  %v3056 = vsel %vm2961, %v2958, %v2035
  %v3057 = vsel %vm2961, %v2960, %v2035
  %vm3058 = vcmask 326656
  %v3060 = vsel %vm3058, %v2963, %v2049
  %v3062 = vsel %vm3058, %v2964, %v2051
  %v3064 = vsel %vm3058, %v2966, %v2053
  %v3066 = vsel %vm3058, %v2967, %v2055
  %v3068 = vsel %vm3058, %v2969, %v2057
  %v3070 = vsel %vm3058, %v2970, %v2059
  %v3072 = vsel %vm3058, %v2972, %v2061
  %v3074 = vsel %vm3058, %v2973, %v2063
  %v3076 = vsel %vm3058, %v2975, %v2065
  %v3078 = vsel %vm3058, %v2976, %v2067
  %v3080 = vsel %vm3058, %v2978, %v2069
  %v3082 = vsel %vm3058, %v2979, %v2071
  %v3084 = vsel %vm3058, %v2981, %v2073
  %v3086 = vsel %vm3058, %v2982, %v2075
  %v3088 = vsel %vm3058, %v2984, %v2077
  %v3090 = vsel %vm3058, %v2985, %v2079
  %v3092 = vsel %vm3058, %v2987, %v2081
  %v3094 = vsel %vm3058, %v2988, %v2083
  %v3096 = vsel %vm3058, %v2990, %v2085
  %v3098 = vsel %vm3058, %v2991, %v2087
  %v3100 = vsel %vm3058, %v2993, %v2089
  %v3102 = vsel %vm3058, %v2994, %v2091
  %v3104 = vsel %vm3058, %v2996, %v2093
  %v3106 = vsel %vm3058, %v2997, %v2095
  %v3108 = vsel %vm3058, %v2999, %v2097
  %v3110 = vsel %vm3058, %v3000, %v2099
  %v3112 = vsel %vm3058, %v3002, %v2101
  %v3114 = vsel %vm3058, %v3003, %v2103
  %v3116 = vsel %vm3058, %v3005, %v2105
  %v3118 = vsel %vm3058, %v3006, %v2107
  %v3120 = vsel %vm3058, %v3008, %v2109
  %v3122 = vsel %vm3058, %v3009, %v2111
  %v3124 = vsel %vm3058, %v3011, %v2113
  %v3126 = vsel %vm3058, %v3012, %v2115
  %v3128 = vsel %vm3058, %v3014, %v2117
  %v3130 = vsel %vm3058, %v3015, %v2119
  %v3132 = vsel %vm3058, %v3017, %v2121
  %v3134 = vsel %vm3058, %v3018, %v2123
  %v3136 = vsel %vm3058, %v3020, %v2125
  %v3138 = vsel %vm3058, %v3021, %v2127
  %v3140 = vsel %vm3058, %v3023, %v2129
  %v3142 = vsel %vm3058, %v3024, %v2131
  %v3144 = vsel %vm3058, %v3026, %v2133
  %v3146 = vsel %vm3058, %v3027, %v2135
  %v3148 = vsel %vm3058, %v3029, %v2137
  %v3150 = vsel %vm3058, %v3030, %v2139
  %v3152 = vsel %vm3058, %v3032, %v2141
  %v3154 = vsel %vm3058, %v3033, %v2143
  %v3156 = vsel %vm3058, %v3035, %v2145
  %v3158 = vsel %vm3058, %v3036, %v2147
  %v3160 = vsel %vm3058, %v3038, %v2149
  %v3162 = vsel %vm3058, %v3039, %v2151
  %v3164 = vsel %vm3058, %v3041, %v2153
  %v3166 = vsel %vm3058, %v3042, %v2155
  %v3168 = vsel %vm3058, %v3044, %v2157
  %v3170 = vsel %vm3058, %v3045, %v2159
  %v3172 = vsel %vm3058, %v3047, %v2161
  %v3174 = vsel %vm3058, %v3048, %v2163
  %v3176 = vsel %vm3058, %v3050, %v2165
  %v3178 = vsel %vm3058, %v3051, %v2167
  %v3180 = vsel %vm3058, %v3053, %v2169
  %v3182 = vsel %vm3058, %v3054, %v2171
  %v3184 = vsel %vm3058, %v3056, %v2173
  %v3186 = vsel %vm3058, %v3057, %v2175
  %vm3187 = vcmask 392192
  %v3189 = vsel %vm3187, %v3060, %v2193
  %v3191 = vsel %vm3187, %v3062, %v2195
  %v3193 = vsel %vm3187, %v3064, %v2197
  %v3195 = vsel %vm3187, %v3066, %v2199
  %v3197 = vsel %vm3187, %v3068, %v2201
  %v3199 = vsel %vm3187, %v3070, %v2203
  %v3201 = vsel %vm3187, %v3072, %v2205
  %v3203 = vsel %vm3187, %v3074, %v2207
  %v3205 = vsel %vm3187, %v3076, %v2209
  %v3207 = vsel %vm3187, %v3078, %v2211
  %v3209 = vsel %vm3187, %v3080, %v2213
  %v3211 = vsel %vm3187, %v3082, %v2215
  %v3213 = vsel %vm3187, %v3084, %v2217
  %v3215 = vsel %vm3187, %v3086, %v2219
  %v3217 = vsel %vm3187, %v3088, %v2221
  %v3219 = vsel %vm3187, %v3090, %v2223
  %v3221 = vsel %vm3187, %v3092, %v2225
  %v3223 = vsel %vm3187, %v3094, %v2227
  %v3225 = vsel %vm3187, %v3096, %v2229
  %v3227 = vsel %vm3187, %v3098, %v2231
  %v3229 = vsel %vm3187, %v3100, %v2233
  %v3231 = vsel %vm3187, %v3102, %v2235
  %v3233 = vsel %vm3187, %v3104, %v2237
  %v3235 = vsel %vm3187, %v3106, %v2239
  %v3237 = vsel %vm3187, %v3108, %v2241
  %v3239 = vsel %vm3187, %v3110, %v2243
  %v3241 = vsel %vm3187, %v3112, %v2245
  %v3243 = vsel %vm3187, %v3114, %v2247
  %v3245 = vsel %vm3187, %v3116, %v2249
  %v3247 = vsel %vm3187, %v3118, %v2251
  %v3249 = vsel %vm3187, %v3120, %v2253
  %v3251 = vsel %vm3187, %v3122, %v2255
  %v3253 = vsel %vm3187, %v3124, %v2257
  %v3255 = vsel %vm3187, %v3126, %v2259
  %v3257 = vsel %vm3187, %v3128, %v2261
  %v3259 = vsel %vm3187, %v3130, %v2263
  %v3261 = vsel %vm3187, %v3132, %v2265
  %v3263 = vsel %vm3187, %v3134, %v2267
  %v3265 = vsel %vm3187, %v3136, %v2269
  %v3267 = vsel %vm3187, %v3138, %v2271
  %v3269 = vsel %vm3187, %v3140, %v2273
  %v3271 = vsel %vm3187, %v3142, %v2275
  %v3273 = vsel %vm3187, %v3144, %v2277
  %v3275 = vsel %vm3187, %v3146, %v2279
  %v3277 = vsel %vm3187, %v3148, %v2281
  %v3279 = vsel %vm3187, %v3150, %v2283
  %v3281 = vsel %vm3187, %v3152, %v2285
  %v3283 = vsel %vm3187, %v3154, %v2287
  %v3285 = vsel %vm3187, %v3156, %v2289
  %v3287 = vsel %vm3187, %v3158, %v2291
  %v3289 = vsel %vm3187, %v3160, %v2293
  %v3291 = vsel %vm3187, %v3162, %v2295
  %v3293 = vsel %vm3187, %v3164, %v2297
  %v3295 = vsel %vm3187, %v3166, %v2299
  %v3297 = vsel %vm3187, %v3168, %v2301
  %v3299 = vsel %vm3187, %v3170, %v2303
  %v3301 = vsel %vm3187, %v3172, %v2305
  %v3303 = vsel %vm3187, %v3174, %v2307
  %v3305 = vsel %vm3187, %v3176, %v2309
  %v3307 = vsel %vm3187, %v3178, %v2311
  %v3309 = vsel %vm3187, %v3180, %v2313
  %v3311 = vsel %vm3187, %v3182, %v2315
  %v3313 = vsel %vm3187, %v3184, %v2317
  %v3315 = vsel %vm3187, %v3186, %v2319
  %vm3316 = vcmask 457728
  %v3318 = vsel %vm3316, %v3189, %v2339
  %v3319 = vsel %vm3316, %v3191, %v2339
  %v3321 = vsel %vm3316, %v3193, %v2341
  %v3322 = vsel %vm3316, %v3195, %v2341
  %v3324 = vsel %vm3316, %v3197, %v2343
  %v3325 = vsel %vm3316, %v3199, %v2343
  %v3327 = vsel %vm3316, %v3201, %v2345
  %v3328 = vsel %vm3316, %v3203, %v2345
  %v3330 = vsel %vm3316, %v3205, %v2347
  %v3331 = vsel %vm3316, %v3207, %v2347
  %v3333 = vsel %vm3316, %v3209, %v2349
  %v3334 = vsel %vm3316, %v3211, %v2349
  %v3336 = vsel %vm3316, %v3213, %v2351
  %v3337 = vsel %vm3316, %v3215, %v2351
  %v3339 = vsel %vm3316, %v3217, %v2353
  %v3340 = vsel %vm3316, %v3219, %v2353
  %v3342 = vsel %vm3316, %v3221, %v2355
  %v3343 = vsel %vm3316, %v3223, %v2355
  %v3345 = vsel %vm3316, %v3225, %v2357
  %v3346 = vsel %vm3316, %v3227, %v2357
  %v3348 = vsel %vm3316, %v3229, %v2359
  %v3349 = vsel %vm3316, %v3231, %v2359
  %v3351 = vsel %vm3316, %v3233, %v2361
  %v3352 = vsel %vm3316, %v3235, %v2361
  %v3354 = vsel %vm3316, %v3237, %v2363
  %v3355 = vsel %vm3316, %v3239, %v2363
  %v3357 = vsel %vm3316, %v3241, %v2365
  %v3358 = vsel %vm3316, %v3243, %v2365
  %v3360 = vsel %vm3316, %v3245, %v2367
  %v3361 = vsel %vm3316, %v3247, %v2367
  %v3363 = vsel %vm3316, %v3249, %v2369
  %v3364 = vsel %vm3316, %v3251, %v2369
  %v3366 = vsel %vm3316, %v3253, %v2371
  %v3367 = vsel %vm3316, %v3255, %v2371
  %v3369 = vsel %vm3316, %v3257, %v2373
  %v3370 = vsel %vm3316, %v3259, %v2373
  %v3372 = vsel %vm3316, %v3261, %v2375
  %v3373 = vsel %vm3316, %v3263, %v2375
  %v3375 = vsel %vm3316, %v3265, %v2377
  %v3376 = vsel %vm3316, %v3267, %v2377
  %v3378 = vsel %vm3316, %v3269, %v2379
  %v3379 = vsel %vm3316, %v3271, %v2379
  %v3381 = vsel %vm3316, %v3273, %v2381
  %v3382 = vsel %vm3316, %v3275, %v2381
  %v3384 = vsel %vm3316, %v3277, %v2383
  %v3385 = vsel %vm3316, %v3279, %v2383
  %v3387 = vsel %vm3316, %v3281, %v2385
  %v3388 = vsel %vm3316, %v3283, %v2385
  %v3390 = vsel %vm3316, %v3285, %v2387
  %v3391 = vsel %vm3316, %v3287, %v2387
  %v3393 = vsel %vm3316, %v3289, %v2389
  %v3394 = vsel %vm3316, %v3291, %v2389
  %v3396 = vsel %vm3316, %v3293, %v2391
  %v3397 = vsel %vm3316, %v3295, %v2391
  %v3399 = vsel %vm3316, %v3297, %v2393
  %v3400 = vsel %vm3316, %v3299, %v2393
  %v3402 = vsel %vm3316, %v3301, %v2395
  %v3403 = vsel %vm3316, %v3303, %v2395
  %v3405 = vsel %vm3316, %v3305, %v2397
  %v3406 = vsel %vm3316, %v3307, %v2397
  %v3408 = vsel %vm3316, %v3309, %v2399
  %v3409 = vsel %vm3316, %v3311, %v2399
  %v3411 = vsel %vm3316, %v3313, %v2401
  %v3412 = vsel %vm3316, %v3315, %v2401
  %vm3413 = vcmask 523264
  %v3415 = vsel %vm3413, %v3318, %v2415
  %v3417 = vsel %vm3413, %v3319, %v2417
  %v3419 = vsel %vm3413, %v3321, %v2419
  %v3421 = vsel %vm3413, %v3322, %v2421
  %v3423 = vsel %vm3413, %v3324, %v2423
  %v3425 = vsel %vm3413, %v3325, %v2425
  %v3427 = vsel %vm3413, %v3327, %v2427
  %v3429 = vsel %vm3413, %v3328, %v2429
  %v3431 = vsel %vm3413, %v3330, %v2431
  %v3433 = vsel %vm3413, %v3331, %v2433
  %v3435 = vsel %vm3413, %v3333, %v2435
  %v3437 = vsel %vm3413, %v3334, %v2437
  %v3439 = vsel %vm3413, %v3336, %v2439
  %v3441 = vsel %vm3413, %v3337, %v2441
  %v3443 = vsel %vm3413, %v3339, %v2443
  %v3445 = vsel %vm3413, %v3340, %v2445
  %v3447 = vsel %vm3413, %v3342, %v2447
  %v3449 = vsel %vm3413, %v3343, %v2449
  %v3451 = vsel %vm3413, %v3345, %v2451
  %v3453 = vsel %vm3413, %v3346, %v2453
  %v3455 = vsel %vm3413, %v3348, %v2455
  %v3457 = vsel %vm3413, %v3349, %v2457
  %v3459 = vsel %vm3413, %v3351, %v2459
  %v3461 = vsel %vm3413, %v3352, %v2461
  %v3463 = vsel %vm3413, %v3354, %v2463
  %v3465 = vsel %vm3413, %v3355, %v2465
  %v3467 = vsel %vm3413, %v3357, %v2467
  %v3469 = vsel %vm3413, %v3358, %v2469
  %v3471 = vsel %vm3413, %v3360, %v2471
  %v3473 = vsel %vm3413, %v3361, %v2473
  %v3475 = vsel %vm3413, %v3363, %v2475
  %v3477 = vsel %vm3413, %v3364, %v2477
  %v3479 = vsel %vm3413, %v3366, %v2479
  %v3481 = vsel %vm3413, %v3367, %v2481
  %v3483 = vsel %vm3413, %v3369, %v2483
  %v3485 = vsel %vm3413, %v3370, %v2485
  %v3487 = vsel %vm3413, %v3372, %v2487
  %v3489 = vsel %vm3413, %v3373, %v2489
  %v3491 = vsel %vm3413, %v3375, %v2491
  %v3493 = vsel %vm3413, %v3376, %v2493
  %v3495 = vsel %vm3413, %v3378, %v2495
  %v3497 = vsel %vm3413, %v3379, %v2497
  %v3499 = vsel %vm3413, %v3381, %v2499
  %v3501 = vsel %vm3413, %v3382, %v2501
  %v3503 = vsel %vm3413, %v3384, %v2503
  %v3505 = vsel %vm3413, %v3385, %v2505
  %v3507 = vsel %vm3413, %v3387, %v2507
  %v3509 = vsel %vm3413, %v3388, %v2509
  %v3511 = vsel %vm3413, %v3390, %v2511
  %v3513 = vsel %vm3413, %v3391, %v2513
  %v3515 = vsel %vm3413, %v3393, %v2515
  %v3517 = vsel %vm3413, %v3394, %v2517
  %v3519 = vsel %vm3413, %v3396, %v2519
  %v3521 = vsel %vm3413, %v3397, %v2521
  %v3523 = vsel %vm3413, %v3399, %v2523
  %v3525 = vsel %vm3413, %v3400, %v2525
  %v3527 = vsel %vm3413, %v3402, %v2527
  %v3529 = vsel %vm3413, %v3403, %v2529
  %v3531 = vsel %vm3413, %v3405, %v2531
  %v3533 = vsel %vm3413, %v3406, %v2533
  %v3535 = vsel %vm3413, %v3408, %v2535
  %v3537 = vsel %vm3413, %v3409, %v2537
  %v3539 = vsel %vm3413, %v3411, %v2539
  %v3541 = vsel %vm3413, %v3412, %v2541
  %vm3542 = vsmask.f32 4352
  %v3543 = vshrl.u32 %v3415, 16
  %v3545 = vrot.slane %v3543, 3
  %v3546 = vshll.u32 %v3415, 16
  %v3548 = vrot.slane %v3546, 4
  %v3549 = vor.u32 %v3545, %v3548
  %v3550 = vshrl.u32 %v3417, 16
  %v3552 = vrot.slane %v3550, 3
  %v3553 = vshll.u32 %v3417, 16
  %v3555 = vrot.slane %v3553, 4
  %v3556 = vor.u32 %v3552, %v3555
  %v3557 = vsel %vm3542, %v3549, %v3556
  %v3558 = vshrl.u32 %v3419, 16
  %v3560 = vrot.slane %v3558, 3
  %v3561 = vshll.u32 %v3419, 16
  %v3563 = vrot.slane %v3561, 4
  %v3564 = vor.u32 %v3560, %v3563
  %v3565 = vshrl.u32 %v3421, 16
  %v3567 = vrot.slane %v3565, 3
  %v3568 = vshll.u32 %v3421, 16
  %v3570 = vrot.slane %v3568, 4
  %v3571 = vor.u32 %v3567, %v3570
  %v3572 = vsel %vm3542, %v3564, %v3571
  %v3573 = vshrl.u32 %v3423, 16
  %v3575 = vrot.slane %v3573, 3
  %v3576 = vshll.u32 %v3423, 16
  %v3578 = vrot.slane %v3576, 4
  %v3579 = vor.u32 %v3575, %v3578
  %v3580 = vshrl.u32 %v3425, 16
  %v3582 = vrot.slane %v3580, 3
  %v3583 = vshll.u32 %v3425, 16
  %v3585 = vrot.slane %v3583, 4
  %v3586 = vor.u32 %v3582, %v3585
  %v3587 = vsel %vm3542, %v3579, %v3586
  %v3588 = vshrl.u32 %v3427, 16
  %v3590 = vrot.slane %v3588, 3
  %v3591 = vshll.u32 %v3427, 16
  %v3593 = vrot.slane %v3591, 4
  %v3594 = vor.u32 %v3590, %v3593
  %v3595 = vshrl.u32 %v3429, 16
  %v3597 = vrot.slane %v3595, 3
  %v3598 = vshll.u32 %v3429, 16
  %v3600 = vrot.slane %v3598, 4
  %v3601 = vor.u32 %v3597, %v3600
  %v3602 = vsel %vm3542, %v3594, %v3601
  %v3603 = vshrl.u32 %v3431, 16
  %v3605 = vrot.slane %v3603, 3
  %v3606 = vshll.u32 %v3431, 16
  %v3608 = vrot.slane %v3606, 4
  %v3609 = vor.u32 %v3605, %v3608
  %v3610 = vshrl.u32 %v3433, 16
  %v3612 = vrot.slane %v3610, 3
  %v3613 = vshll.u32 %v3433, 16
  %v3615 = vrot.slane %v3613, 4
  %v3616 = vor.u32 %v3612, %v3615
  %v3617 = vsel %vm3542, %v3609, %v3616
  %v3618 = vshrl.u32 %v3435, 16
  %v3620 = vrot.slane %v3618, 3
  %v3621 = vshll.u32 %v3435, 16
  %v3623 = vrot.slane %v3621, 4
  %v3624 = vor.u32 %v3620, %v3623
  %v3625 = vshrl.u32 %v3437, 16
  %v3627 = vrot.slane %v3625, 3
  %v3628 = vshll.u32 %v3437, 16
  %v3630 = vrot.slane %v3628, 4
  %v3631 = vor.u32 %v3627, %v3630
  %v3632 = vsel %vm3542, %v3624, %v3631
  %v3633 = vshrl.u32 %v3439, 16
  %v3635 = vrot.slane %v3633, 3
  %v3636 = vshll.u32 %v3439, 16
  %v3638 = vrot.slane %v3636, 4
  %v3639 = vor.u32 %v3635, %v3638
  %v3640 = vshrl.u32 %v3441, 16
  %v3642 = vrot.slane %v3640, 3
  %v3643 = vshll.u32 %v3441, 16
  %v3645 = vrot.slane %v3643, 4
  %v3646 = vor.u32 %v3642, %v3645
  %v3647 = vsel %vm3542, %v3639, %v3646
  %v3648 = vshrl.u32 %v3443, 16
  %v3650 = vrot.slane %v3648, 3
  %v3651 = vshll.u32 %v3443, 16
  %v3653 = vrot.slane %v3651, 4
  %v3654 = vor.u32 %v3650, %v3653
  %v3655 = vshrl.u32 %v3445, 16
  %v3657 = vrot.slane %v3655, 3
  %v3658 = vshll.u32 %v3445, 16
  %v3660 = vrot.slane %v3658, 4
  %v3661 = vor.u32 %v3657, %v3660
  %v3662 = vsel %vm3542, %v3654, %v3661
  %v3663 = vshrl.u32 %v3447, 16
  %v3665 = vrot.slane %v3663, 3
  %v3666 = vshll.u32 %v3447, 16
  %v3668 = vrot.slane %v3666, 4
  %v3669 = vor.u32 %v3665, %v3668
  %v3670 = vshrl.u32 %v3449, 16
  %v3672 = vrot.slane %v3670, 3
  %v3673 = vshll.u32 %v3449, 16
  %v3675 = vrot.slane %v3673, 4
  %v3676 = vor.u32 %v3672, %v3675
  %v3677 = vsel %vm3542, %v3669, %v3676
  %v3678 = vshrl.u32 %v3451, 16
  %v3680 = vrot.slane %v3678, 3
  %v3681 = vshll.u32 %v3451, 16
  %v3683 = vrot.slane %v3681, 4
  %v3684 = vor.u32 %v3680, %v3683
  %v3685 = vshrl.u32 %v3453, 16
  %v3687 = vrot.slane %v3685, 3
  %v3688 = vshll.u32 %v3453, 16
  %v3690 = vrot.slane %v3688, 4
  %v3691 = vor.u32 %v3687, %v3690
  %v3692 = vsel %vm3542, %v3684, %v3691
  %v3693 = vshrl.u32 %v3455, 16
  %v3695 = vrot.slane %v3693, 3
  %v3696 = vshll.u32 %v3455, 16
  %v3698 = vrot.slane %v3696, 4
  %v3699 = vor.u32 %v3695, %v3698
  %v3700 = vshrl.u32 %v3457, 16
  %v3702 = vrot.slane %v3700, 3
  %v3703 = vshll.u32 %v3457, 16
  %v3705 = vrot.slane %v3703, 4
  %v3706 = vor.u32 %v3702, %v3705
  %v3707 = vsel %vm3542, %v3699, %v3706
  %v3708 = vshrl.u32 %v3459, 16
  %v3710 = vrot.slane %v3708, 3
  %v3711 = vshll.u32 %v3459, 16
  %v3713 = vrot.slane %v3711, 4
  %v3714 = vor.u32 %v3710, %v3713
  %v3715 = vshrl.u32 %v3461, 16
  %v3717 = vrot.slane %v3715, 3
  %v3718 = vshll.u32 %v3461, 16
  %v3720 = vrot.slane %v3718, 4
  %v3721 = vor.u32 %v3717, %v3720
  %v3722 = vsel %vm3542, %v3714, %v3721
  %v3723 = vshrl.u32 %v3463, 16
  %v3725 = vrot.slane %v3723, 3
  %v3726 = vshll.u32 %v3463, 16
  %v3728 = vrot.slane %v3726, 4
  %v3729 = vor.u32 %v3725, %v3728
  %v3730 = vshrl.u32 %v3465, 16
  %v3732 = vrot.slane %v3730, 3
  %v3733 = vshll.u32 %v3465, 16
  %v3735 = vrot.slane %v3733, 4
  %v3736 = vor.u32 %v3732, %v3735
  %v3737 = vsel %vm3542, %v3729, %v3736
  %v3738 = vshrl.u32 %v3467, 16
  %v3740 = vrot.slane %v3738, 3
  %v3741 = vshll.u32 %v3467, 16
  %v3743 = vrot.slane %v3741, 4
  %v3744 = vor.u32 %v3740, %v3743
  %v3745 = vshrl.u32 %v3469, 16
  %v3747 = vrot.slane %v3745, 3
  %v3748 = vshll.u32 %v3469, 16
  %v3750 = vrot.slane %v3748, 4
  %v3751 = vor.u32 %v3747, %v3750
  %v3752 = vsel %vm3542, %v3744, %v3751
  %v3753 = vshrl.u32 %v3471, 16
  %v3755 = vrot.slane %v3753, 3
  %v3756 = vshll.u32 %v3471, 16
  %v3758 = vrot.slane %v3756, 4
  %v3759 = vor.u32 %v3755, %v3758
  %v3760 = vshrl.u32 %v3473, 16
  %v3762 = vrot.slane %v3760, 3
  %v3763 = vshll.u32 %v3473, 16
  %v3765 = vrot.slane %v3763, 4
  %v3766 = vor.u32 %v3762, %v3765
  %v3767 = vsel %vm3542, %v3759, %v3766
  %v3768 = vshrl.u32 %v3475, 16
  %v3770 = vrot.slane %v3768, 3
  %v3771 = vshll.u32 %v3475, 16
  %v3773 = vrot.slane %v3771, 4
  %v3774 = vor.u32 %v3770, %v3773
  %v3775 = vshrl.u32 %v3477, 16
  %v3777 = vrot.slane %v3775, 3
  %v3778 = vshll.u32 %v3477, 16
  %v3780 = vrot.slane %v3778, 4
  %v3781 = vor.u32 %v3777, %v3780
  %v3782 = vsel %vm3542, %v3774, %v3781
  %v3783 = vshrl.u32 %v3479, 16
  %v3785 = vrot.slane %v3783, 3
  %v3786 = vshll.u32 %v3479, 16
  %v3788 = vrot.slane %v3786, 4
  %v3789 = vor.u32 %v3785, %v3788
  %v3790 = vshrl.u32 %v3481, 16
  %v3792 = vrot.slane %v3790, 3
  %v3793 = vshll.u32 %v3481, 16
  %v3795 = vrot.slane %v3793, 4
  %v3796 = vor.u32 %v3792, %v3795
  %v3797 = vsel %vm3542, %v3789, %v3796
  %v3798 = vshrl.u32 %v3483, 16
  %v3800 = vrot.slane %v3798, 3
  %v3801 = vshll.u32 %v3483, 16
  %v3803 = vrot.slane %v3801, 4
  %v3804 = vor.u32 %v3800, %v3803
  %v3805 = vshrl.u32 %v3485, 16
  %v3807 = vrot.slane %v3805, 3
  %v3808 = vshll.u32 %v3485, 16
  %v3810 = vrot.slane %v3808, 4
  %v3811 = vor.u32 %v3807, %v3810
  %v3812 = vsel %vm3542, %v3804, %v3811
  %v3813 = vshrl.u32 %v3487, 16
  %v3815 = vrot.slane %v3813, 3
  %v3816 = vshll.u32 %v3487, 16
  %v3818 = vrot.slane %v3816, 4
  %v3819 = vor.u32 %v3815, %v3818
  %v3820 = vshrl.u32 %v3489, 16
  %v3822 = vrot.slane %v3820, 3
  %v3823 = vshll.u32 %v3489, 16
  %v3825 = vrot.slane %v3823, 4
  %v3826 = vor.u32 %v3822, %v3825
  %v3827 = vsel %vm3542, %v3819, %v3826
  %v3828 = vshrl.u32 %v3491, 16
  %v3830 = vrot.slane %v3828, 3
  %v3831 = vshll.u32 %v3491, 16
  %v3833 = vrot.slane %v3831, 4
  %v3834 = vor.u32 %v3830, %v3833
  %v3835 = vshrl.u32 %v3493, 16
  %v3837 = vrot.slane %v3835, 3
  %v3838 = vshll.u32 %v3493, 16
  %v3840 = vrot.slane %v3838, 4
  %v3841 = vor.u32 %v3837, %v3840
  %v3842 = vsel %vm3542, %v3834, %v3841
  %v3843 = vshrl.u32 %v3495, 16
  %v3845 = vrot.slane %v3843, 3
  %v3846 = vshll.u32 %v3495, 16
  %v3848 = vrot.slane %v3846, 4
  %v3849 = vor.u32 %v3845, %v3848
  %v3850 = vshrl.u32 %v3497, 16
  %v3852 = vrot.slane %v3850, 3
  %v3853 = vshll.u32 %v3497, 16
  %v3855 = vrot.slane %v3853, 4
  %v3856 = vor.u32 %v3852, %v3855
  %v3857 = vsel %vm3542, %v3849, %v3856
  %v3858 = vshrl.u32 %v3499, 16
  %v3860 = vrot.slane %v3858, 3
  %v3861 = vshll.u32 %v3499, 16
  %v3863 = vrot.slane %v3861, 4
  %v3864 = vor.u32 %v3860, %v3863
  %v3865 = vshrl.u32 %v3501, 16
  %v3867 = vrot.slane %v3865, 3
  %v3868 = vshll.u32 %v3501, 16
  %v3870 = vrot.slane %v3868, 4
  %v3871 = vor.u32 %v3867, %v3870
  %v3872 = vsel %vm3542, %v3864, %v3871
  %v3873 = vshrl.u32 %v3503, 16
  %v3875 = vrot.slane %v3873, 3
  %v3876 = vshll.u32 %v3503, 16
  %v3878 = vrot.slane %v3876, 4
  %v3879 = vor.u32 %v3875, %v3878
  %v3880 = vshrl.u32 %v3505, 16
  %v3882 = vrot.slane %v3880, 3
  %v3883 = vshll.u32 %v3505, 16
  %v3885 = vrot.slane %v3883, 4
  %v3886 = vor.u32 %v3882, %v3885
  %v3887 = vsel %vm3542, %v3879, %v3886
  %v3888 = vshrl.u32 %v3507, 16
  %v3890 = vrot.slane %v3888, 3
  %v3891 = vshll.u32 %v3507, 16
  %v3893 = vrot.slane %v3891, 4
  %v3894 = vor.u32 %v3890, %v3893
  %v3895 = vshrl.u32 %v3509, 16
  %v3897 = vrot.slane %v3895, 3
  %v3898 = vshll.u32 %v3509, 16
  %v3900 = vrot.slane %v3898, 4
  %v3901 = vor.u32 %v3897, %v3900
  %v3902 = vsel %vm3542, %v3894, %v3901
  %v3903 = vshrl.u32 %v3511, 16
  %v3905 = vrot.slane %v3903, 3
  %v3906 = vshll.u32 %v3511, 16
  %v3908 = vrot.slane %v3906, 4
  %v3909 = vor.u32 %v3905, %v3908
  %v3910 = vshrl.u32 %v3513, 16
  %v3912 = vrot.slane %v3910, 3
  %v3913 = vshll.u32 %v3513, 16
  %v3915 = vrot.slane %v3913, 4
  %v3916 = vor.u32 %v3912, %v3915
  %v3917 = vsel %vm3542, %v3909, %v3916
  %v3918 = vshrl.u32 %v3515, 16
  %v3920 = vrot.slane %v3918, 3
  %v3921 = vshll.u32 %v3515, 16
  %v3923 = vrot.slane %v3921, 4
  %v3924 = vor.u32 %v3920, %v3923
  %v3925 = vshrl.u32 %v3517, 16
  %v3927 = vrot.slane %v3925, 3
  %v3928 = vshll.u32 %v3517, 16
  %v3930 = vrot.slane %v3928, 4
  %v3931 = vor.u32 %v3927, %v3930
  %v3932 = vsel %vm3542, %v3924, %v3931
  %v3933 = vshrl.u32 %v3519, 16
  %v3935 = vrot.slane %v3933, 3
  %v3936 = vshll.u32 %v3519, 16
  %v3938 = vrot.slane %v3936, 4
  %v3939 = vor.u32 %v3935, %v3938
  %v3940 = vshrl.u32 %v3521, 16
  %v3942 = vrot.slane %v3940, 3
  %v3943 = vshll.u32 %v3521, 16
  %v3945 = vrot.slane %v3943, 4
  %v3946 = vor.u32 %v3942, %v3945
  %v3947 = vsel %vm3542, %v3939, %v3946
  %v3948 = vshrl.u32 %v3523, 16
  %v3950 = vrot.slane %v3948, 3
  %v3951 = vshll.u32 %v3523, 16
  %v3953 = vrot.slane %v3951, 4
  %v3954 = vor.u32 %v3950, %v3953
  %v3955 = vshrl.u32 %v3525, 16
  %v3957 = vrot.slane %v3955, 3
  %v3958 = vshll.u32 %v3525, 16
  %v3960 = vrot.slane %v3958, 4
  %v3961 = vor.u32 %v3957, %v3960
  %v3962 = vsel %vm3542, %v3954, %v3961
  %v3963 = vshrl.u32 %v3527, 16
  %v3965 = vrot.slane %v3963, 3
  %v3966 = vshll.u32 %v3527, 16
  %v3968 = vrot.slane %v3966, 4
  %v3969 = vor.u32 %v3965, %v3968
  %v3970 = vshrl.u32 %v3529, 16
  %v3972 = vrot.slane %v3970, 3
  %v3973 = vshll.u32 %v3529, 16
  %v3975 = vrot.slane %v3973, 4
  %v3976 = vor.u32 %v3972, %v3975
  %v3977 = vsel %vm3542, %v3969, %v3976
  %v3978 = vshrl.u32 %v3531, 16
  %v3980 = vrot.slane %v3978, 3
  %v3981 = vshll.u32 %v3531, 16
  %v3983 = vrot.slane %v3981, 4
  %v3984 = vor.u32 %v3980, %v3983
  %v3985 = vshrl.u32 %v3533, 16
  %v3987 = vrot.slane %v3985, 3
  %v3988 = vshll.u32 %v3533, 16
  %v3990 = vrot.slane %v3988, 4
  %v3991 = vor.u32 %v3987, %v3990
  %v3992 = vsel %vm3542, %v3984, %v3991
  %v3993 = vshrl.u32 %v3535, 16
  %v3995 = vrot.slane %v3993, 3
  %v3996 = vshll.u32 %v3535, 16
  %v3998 = vrot.slane %v3996, 4
  %v3999 = vor.u32 %v3995, %v3998
  %v4000 = vshrl.u32 %v3537, 16
  %v4002 = vrot.slane %v4000, 3
  %v4003 = vshll.u32 %v3537, 16
  %v4005 = vrot.slane %v4003, 4
  %v4006 = vor.u32 %v4002, %v4005
  %v4007 = vsel %vm3542, %v3999, %v4006
  %v4008 = vshrl.u32 %v3539, 16
  %v4010 = vrot.slane %v4008, 3
  %v4011 = vshll.u32 %v3539, 16
  %v4013 = vrot.slane %v4011, 4
  %v4014 = vor.u32 %v4010, %v4013
  %v4015 = vshrl.u32 %v3541, 16
  %v4017 = vrot.slane %v4015, 3
  %v4018 = vshll.u32 %v3541, 16
  %v4020 = vrot.slane %v4018, 4
  %v4021 = vor.u32 %v4017, %v4020
  %v4022 = vsel %vm3542, %v4014, %v4021
  %v4023 = vld [vmem:[%s3] sm:$0xf]
  %v4024 = vld [vmem:[%s3 + $0x4] sm:$0xf]
  %v4025 = vld [vmem:[%s3 + $0x8] sm:$0xf]
  %v4026 = vld [vmem:[%s3 + $0xc] sm:$0xf]
  %v4027 = vld [vmem:[%s3 + $0x10] sm:$0xf]
  %v4028 = vld [vmem:[%s3 + $0x14] sm:$0xf]
  %v4029 = vld [vmem:[%s3 + $0x18] sm:$0xf]
  %v4030 = vld [vmem:[%s3 + $0x1c] sm:$0xf]
  %v4031 = vld [vmem:[%s3 + $0x20] sm:$0xf]
  %v4032 = vld [vmem:[%s4] sm:$0x1]
  %v4034 = vperm.slane %v4032, 0
  %v4045 = vunpack.c.l.b16 %v4023
  %v4046 = vunpack.c.l.b16 %v4024
  %v4047 = vunpack.c.l.b16 %v4025
  %v4048 = vunpack.c.l.b16 %v4026
  %v4049 = vunpack.c.l.b16 %v4027
  %v4050 = vunpack.c.l.b16 %v4028
  %v4051 = vunpack.c.l.b16 %v4029
  %v4052 = vunpack.c.l.b16 %v4030
  %v4053 = vunpack.c.l.b16 %v4031
  %v4054 = vpack.c.b16 %v4046, %v4045
  %v4055 = vpack.c.b16 %v4048, %v4047
  %v4056 = vpack.c.b16 %v4050, %v4049
  %v4057 = vpack.c.b16 %v4052, %v4051
  %v4058 = vpack.c.b16 %v4053, %v4053
  %vm4063 = vcmask 588800
  %v4065 = vsel %vm4063, %v3557, 0
  %v4068 = vsel %vm4063, %v3572, 0
  %v4071 = vsel %vm4063, %v3587, 0
  %v4074 = vsel %vm4063, %v3602, 0
  %v4077 = vsel %vm4063, %v3617, 0
  %v4080 = vsel %vm4063, %v3632, 0
  %v4083 = vsel %vm4063, %v3647, 0
  %v4086 = vsel %vm4063, %v3662, 0
  %v4089 = vsel %vm4063, %v3677, 0
  %v4092 = vsel %vm4063, %v3692, 0
  %v4095 = vsel %vm4063, %v3707, 0
  %v4098 = vsel %vm4063, %v3722, 0
  %v4101 = vsel %vm4063, %v3737, 0
  %v4104 = vsel %vm4063, %v3752, 0
  %v4107 = vsel %vm4063, %v3767, 0
  %v4110 = vsel %vm4063, %v3782, 0
  %v4113 = vsel %vm4063, %v3797, 0
  %v4116 = vsel %vm4063, %v3812, 0
  %v4119 = vsel %vm4063, %v3827, 0
  %v4122 = vsel %vm4063, %v3842, 0
  %v4125 = vsel %vm4063, %v3857, 0
  %v4128 = vsel %vm4063, %v3872, 0
  %v4131 = vsel %vm4063, %v3887, 0
  %v4134 = vsel %vm4063, %v3902, 0
  %v4137 = vsel %vm4063, %v3917, 0
  %v4140 = vsel %vm4063, %v3932, 0
  %v4143 = vsel %vm4063, %v3947, 0
  %v4146 = vsel %vm4063, %v3962, 0
  %v4149 = vsel %vm4063, %v3977, 0
  %v4152 = vsel %vm4063, %v3992, 0
  %v4155 = vsel %vm4063, %v4007, 0
  %v4158 = vsel %vm4063, %v4022, 0
  %vm4160 = vcmask 1043456
  %v4162 = vsel %vm4160, %v4058, 0
  %4164 = vmatpush.bf16.msra.mxu0 0
  %4165 = vmatpush.bf16.msra.mxu0 0
  %4166 = vmatpush.bf16.msra.mxu0 0
  %4167 = vmatpush.bf16.msra.mxu0 %v4162
  %4168 = vmatpush.bf16.msra.mxu0 %v4057
  %4169 = vmatpush.bf16.msra.mxu0 %v4056
  %4170 = vmatpush.bf16.msra.mxu0 %v4055
  %4171 = vmatpush.bf16.msra.mxu0 %v4054
  %4172 = vmatmul.bf16.gmra.mxu0 %v4065
  %v4173 = vpop.f32.mrf.mxu0
  %v4174 = vadd.f32 %v4034, %v4173
  %v4175 = vpop.f32.mrf.mxu0
  %v4176 = vadd.f32 %v4034, %v4175
  %4177 = vmatmul.bf16.gmra.mxu0 %v4068
  %v4178 = vpop.f32.mrf.mxu0
  %v4179 = vadd.f32 %v4034, %v4178
  %v4180 = vpop.f32.mrf.mxu0
  %v4181 = vadd.f32 %v4034, %v4180
  %4182 = vmatmul.bf16.gmra.mxu0 %v4071
  %v4183 = vpop.f32.mrf.mxu0
  %v4184 = vadd.f32 %v4034, %v4183
  %v4185 = vpop.f32.mrf.mxu0
  %v4186 = vadd.f32 %v4034, %v4185
  %4187 = vmatmul.bf16.gmra.mxu0 %v4074
  %v4188 = vpop.f32.mrf.mxu0
  %v4189 = vadd.f32 %v4034, %v4188
  %v4190 = vpop.f32.mrf.mxu0
  %v4191 = vadd.f32 %v4034, %v4190
  %4192 = vmatmul.bf16.gmra.mxu0 %v4077
  %v4193 = vpop.f32.mrf.mxu0
  %v4194 = vadd.f32 %v4034, %v4193
  %v4195 = vpop.f32.mrf.mxu0
  %v4196 = vadd.f32 %v4034, %v4195
  %4197 = vmatmul.bf16.gmra.mxu0 %v4080
  %v4198 = vpop.f32.mrf.mxu0
  %v4199 = vadd.f32 %v4034, %v4198
  %v4200 = vpop.f32.mrf.mxu0
  %v4201 = vadd.f32 %v4034, %v4200
  %4202 = vmatmul.bf16.gmra.mxu0 %v4083
  %v4203 = vpop.f32.mrf.mxu0
  %v4204 = vadd.f32 %v4034, %v4203
  %v4205 = vpop.f32.mrf.mxu0
  %v4206 = vadd.f32 %v4034, %v4205
  %4207 = vmatmul.bf16.gmra.mxu0 %v4086
  %v4208 = vpop.f32.mrf.mxu0
  %v4209 = vadd.f32 %v4034, %v4208
  %v4210 = vpop.f32.mrf.mxu0
  %v4211 = vadd.f32 %v4034, %v4210
  %4212 = vmatmul.bf16.gmra.mxu0 %v4089
  %v4213 = vpop.f32.mrf.mxu0
  %v4214 = vadd.f32 %v4034, %v4213
  %v4215 = vpop.f32.mrf.mxu0
  %v4216 = vadd.f32 %v4034, %v4215
  %4217 = vmatmul.bf16.gmra.mxu0 %v4092
  %v4218 = vpop.f32.mrf.mxu0
  %v4219 = vadd.f32 %v4034, %v4218
  %v4220 = vpop.f32.mrf.mxu0
  %v4221 = vadd.f32 %v4034, %v4220
  %4222 = vmatmul.bf16.gmra.mxu0 %v4095
  %v4223 = vpop.f32.mrf.mxu0
  %v4224 = vadd.f32 %v4034, %v4223
  %v4225 = vpop.f32.mrf.mxu0
  %v4226 = vadd.f32 %v4034, %v4225
  %4227 = vmatmul.bf16.gmra.mxu0 %v4098
  %v4228 = vpop.f32.mrf.mxu0
  %v4229 = vadd.f32 %v4034, %v4228
  %v4230 = vpop.f32.mrf.mxu0
  %v4231 = vadd.f32 %v4034, %v4230
  %4232 = vmatmul.bf16.gmra.mxu0 %v4101
  %v4233 = vpop.f32.mrf.mxu0
  %v4234 = vadd.f32 %v4034, %v4233
  %v4235 = vpop.f32.mrf.mxu0
  %v4236 = vadd.f32 %v4034, %v4235
  %4237 = vmatmul.bf16.gmra.mxu0 %v4104
  %v4238 = vpop.f32.mrf.mxu0
  %v4239 = vadd.f32 %v4034, %v4238
  %v4240 = vpop.f32.mrf.mxu0
  %v4241 = vadd.f32 %v4034, %v4240
  %4242 = vmatmul.bf16.gmra.mxu0 %v4107
  %v4243 = vpop.f32.mrf.mxu0
  %v4244 = vadd.f32 %v4034, %v4243
  %v4245 = vpop.f32.mrf.mxu0
  %v4246 = vadd.f32 %v4034, %v4245
  %4247 = vmatmul.bf16.gmra.mxu0 %v4110
  %v4248 = vpop.f32.mrf.mxu0
  %v4249 = vadd.f32 %v4034, %v4248
  %v4250 = vpop.f32.mrf.mxu0
  %v4251 = vadd.f32 %v4034, %v4250
  %4252 = vmatmul.bf16.gmra.mxu0 %v4113
  %v4253 = vpop.f32.mrf.mxu0
  %v4254 = vadd.f32 %v4034, %v4253
  %v4255 = vpop.f32.mrf.mxu0
  %v4256 = vadd.f32 %v4034, %v4255
  %4257 = vmatmul.bf16.gmra.mxu0 %v4116
  %v4258 = vpop.f32.mrf.mxu0
  %v4259 = vadd.f32 %v4034, %v4258
  %v4260 = vpop.f32.mrf.mxu0
  %v4261 = vadd.f32 %v4034, %v4260
  %4262 = vmatmul.bf16.gmra.mxu0 %v4119
  %v4263 = vpop.f32.mrf.mxu0
  %v4264 = vadd.f32 %v4034, %v4263
  %v4265 = vpop.f32.mrf.mxu0
  %v4266 = vadd.f32 %v4034, %v4265
  %4267 = vmatmul.bf16.gmra.mxu0 %v4122
  %v4268 = vpop.f32.mrf.mxu0
  %v4269 = vadd.f32 %v4034, %v4268
  %v4270 = vpop.f32.mrf.mxu0
  %v4271 = vadd.f32 %v4034, %v4270
  %4272 = vmatmul.bf16.gmra.mxu0 %v4125
  %v4273 = vpop.f32.mrf.mxu0
  %v4274 = vadd.f32 %v4034, %v4273
  %v4275 = vpop.f32.mrf.mxu0
  %v4276 = vadd.f32 %v4034, %v4275
  %4277 = vmatmul.bf16.gmra.mxu0 %v4128
  %v4278 = vpop.f32.mrf.mxu0
  %v4279 = vadd.f32 %v4034, %v4278
  %v4280 = vpop.f32.mrf.mxu0
  %v4281 = vadd.f32 %v4034, %v4280
  %4282 = vmatmul.bf16.gmra.mxu0 %v4131
  %v4283 = vpop.f32.mrf.mxu0
  %v4284 = vadd.f32 %v4034, %v4283
  %v4285 = vpop.f32.mrf.mxu0
  %v4286 = vadd.f32 %v4034, %v4285
  %4287 = vmatmul.bf16.gmra.mxu0 %v4134
  %v4288 = vpop.f32.mrf.mxu0
  %v4289 = vadd.f32 %v4034, %v4288
  %v4290 = vpop.f32.mrf.mxu0
  %v4291 = vadd.f32 %v4034, %v4290
  %4292 = vmatmul.bf16.gmra.mxu0 %v4137
  %v4293 = vpop.f32.mrf.mxu0
  %v4294 = vadd.f32 %v4034, %v4293
  %v4295 = vpop.f32.mrf.mxu0
  %v4296 = vadd.f32 %v4034, %v4295
  %4297 = vmatmul.bf16.gmra.mxu0 %v4140
  %v4298 = vpop.f32.mrf.mxu0
  %v4299 = vadd.f32 %v4034, %v4298
  %v4300 = vpop.f32.mrf.mxu0
  %v4301 = vadd.f32 %v4034, %v4300
  %4302 = vmatmul.bf16.gmra.mxu0 %v4143
  %v4303 = vpop.f32.mrf.mxu0
  %v4304 = vadd.f32 %v4034, %v4303
  %v4305 = vpop.f32.mrf.mxu0
  %v4306 = vadd.f32 %v4034, %v4305
  %4307 = vmatmul.bf16.gmra.mxu0 %v4146
  %v4308 = vpop.f32.mrf.mxu0
  %v4309 = vadd.f32 %v4034, %v4308
  %v4310 = vpop.f32.mrf.mxu0
  %v4311 = vadd.f32 %v4034, %v4310
  %4312 = vmatmul.bf16.gmra.mxu0 %v4149
  %v4313 = vpop.f32.mrf.mxu0
  %v4314 = vadd.f32 %v4034, %v4313
  %v4315 = vpop.f32.mrf.mxu0
  %v4316 = vadd.f32 %v4034, %v4315
  %4317 = vmatmul.bf16.gmra.mxu0 %v4152
  %v4318 = vpop.f32.mrf.mxu0
  %v4319 = vadd.f32 %v4034, %v4318
  %v4320 = vpop.f32.mrf.mxu0
  %v4321 = vadd.f32 %v4034, %v4320
  %4322 = vmatmul.bf16.gmra.mxu0 %v4155
  %v4323 = vpop.f32.mrf.mxu0
  %v4324 = vadd.f32 %v4034, %v4323
  %v4325 = vpop.f32.mrf.mxu0
  %v4326 = vadd.f32 %v4034, %v4325
  %4327 = vmatmul.bf16.gmra.mxu0 %v4158
  %v4328 = vpop.f32.mrf.mxu0
  %v4329 = vadd.f32 %v4034, %v4328
  %v4330 = vpop.f32.mrf.mxu0
  %v4331 = vadd.f32 %v4034, %v4330
  %4332 = vdwg.mxu0
  %v4333 = vsel %vm2542, %v4174, 0.0
  %v4334 = vsel %vm2542, %v4176, 0.0
  %v4335 = vadd.f32 %v4333, %v4334
  %v4336 = vsel %vm2542, %v4179, 0.0
  %v4337 = vadd.f32 %v4335, %v4336
  %v4338 = vsel %vm2542, %v4181, 0.0
  %v4339 = vadd.f32 %v4337, %v4338
  %v4340 = vsel %vm2542, %v4184, 0.0
  %v4341 = vadd.f32 %v4339, %v4340
  %v4342 = vsel %vm2542, %v4186, 0.0
  %v4343 = vadd.f32 %v4341, %v4342
  %v4344 = vsel %vm2542, %v4189, 0.0
  %v4345 = vadd.f32 %v4343, %v4344
  %v4346 = vsel %vm2542, %v4191, 0.0
  %v4347 = vadd.f32 %v4345, %v4346
  %v4348 = vsel %vm2542, %v4194, 0.0
  %v4349 = vadd.f32 %v4347, %v4348
  %v4350 = vsel %vm2542, %v4196, 0.0
  %v4351 = vadd.f32 %v4349, %v4350
  %v4352 = vsel %vm2542, %v4199, 0.0
  %v4353 = vadd.f32 %v4351, %v4352
  %v4354 = vsel %vm2542, %v4201, 0.0
  %v4355 = vadd.f32 %v4353, %v4354
  %v4356 = vsel %vm2542, %v4204, 0.0
  %v4357 = vadd.f32 %v4355, %v4356
  %v4358 = vsel %vm2542, %v4206, 0.0
  %v4359 = vadd.f32 %v4357, %v4358
  %v4360 = vsel %vm2542, %v4209, 0.0
  %v4361 = vadd.f32 %v4359, %v4360
  %v4362 = vsel %vm2542, %v4211, 0.0
  %v4363 = vadd.f32 %v4361, %v4362
  %v4364 = vsel %vm2542, %v4214, 0.0
  %v4365 = vadd.f32 %v4363, %v4364
  %v4366 = vsel %vm2542, %v4216, 0.0
  %v4367 = vadd.f32 %v4365, %v4366
  %v4368 = vsel %vm2542, %v4219, 0.0
  %v4369 = vadd.f32 %v4367, %v4368
  %v4370 = vsel %vm2542, %v4221, 0.0
  %v4371 = vadd.f32 %v4369, %v4370
  %v4372 = vsel %vm2542, %v4224, 0.0
  %v4373 = vadd.f32 %v4371, %v4372
  %v4374 = vsel %vm2542, %v4226, 0.0
  %v4375 = vadd.f32 %v4373, %v4374
  %v4376 = vsel %vm2542, %v4229, 0.0
  %v4377 = vadd.f32 %v4375, %v4376
  %v4378 = vsel %vm2542, %v4231, 0.0
  %v4379 = vadd.f32 %v4377, %v4378
  %v4380 = vsel %vm2542, %v4234, 0.0
  %v4381 = vadd.f32 %v4379, %v4380
  %v4382 = vsel %vm2542, %v4236, 0.0
  %v4383 = vadd.f32 %v4381, %v4382
  %v4384 = vsel %vm2542, %v4239, 0.0
  %v4385 = vadd.f32 %v4383, %v4384
  %v4386 = vsel %vm2542, %v4241, 0.0
  %v4387 = vadd.f32 %v4385, %v4386
  %v4388 = vsel %vm2542, %v4244, 0.0
  %v4389 = vadd.f32 %v4387, %v4388
  %v4390 = vsel %vm2542, %v4246, 0.0
  %v4391 = vadd.f32 %v4389, %v4390
  %v4392 = vsel %vm2542, %v4249, 0.0
  %v4393 = vadd.f32 %v4391, %v4392
  %v4394 = vsel %vm2542, %v4251, 0.0
  %v4395 = vadd.f32 %v4393, %v4394
  %v4396 = vsel %vm2542, %v4254, 0.0
  %v4397 = vadd.f32 %v4395, %v4396
  %v4398 = vsel %vm2542, %v4256, 0.0
  %v4399 = vadd.f32 %v4397, %v4398
  %v4400 = vsel %vm2542, %v4259, 0.0
  %v4401 = vadd.f32 %v4399, %v4400
  %v4402 = vsel %vm2542, %v4261, 0.0
  %v4403 = vadd.f32 %v4401, %v4402
  %v4404 = vsel %vm2542, %v4264, 0.0
  %v4405 = vadd.f32 %v4403, %v4404
  %v4406 = vsel %vm2542, %v4266, 0.0
  %v4407 = vadd.f32 %v4405, %v4406
  %v4408 = vsel %vm2542, %v4269, 0.0
  %v4409 = vadd.f32 %v4407, %v4408
  %v4410 = vsel %vm2542, %v4271, 0.0
  %v4411 = vadd.f32 %v4409, %v4410
  %v4412 = vsel %vm2542, %v4274, 0.0
  %v4413 = vadd.f32 %v4411, %v4412
  %v4414 = vsel %vm2542, %v4276, 0.0
  %v4415 = vadd.f32 %v4413, %v4414
  %v4416 = vsel %vm2542, %v4279, 0.0
  %v4417 = vadd.f32 %v4415, %v4416
  %v4418 = vsel %vm2542, %v4281, 0.0
  %v4419 = vadd.f32 %v4417, %v4418
  %v4420 = vsel %vm2542, %v4284, 0.0
  %v4421 = vadd.f32 %v4419, %v4420
  %v4422 = vsel %vm2542, %v4286, 0.0
  %v4423 = vadd.f32 %v4421, %v4422
  %v4424 = vsel %vm2542, %v4289, 0.0
  %v4425 = vadd.f32 %v4423, %v4424
  %v4426 = vsel %vm2542, %v4291, 0.0
  %v4427 = vadd.f32 %v4425, %v4426
  %v4428 = vsel %vm2542, %v4294, 0.0
  %v4429 = vadd.f32 %v4427, %v4428
  %v4430 = vsel %vm2542, %v4296, 0.0
  %v4431 = vadd.f32 %v4429, %v4430
  %v4432 = vsel %vm2542, %v4299, 0.0
  %v4433 = vadd.f32 %v4431, %v4432
  %v4434 = vsel %vm2542, %v4301, 0.0
  %v4435 = vadd.f32 %v4433, %v4434
  %v4436 = vsel %vm2542, %v4304, 0.0
  %v4437 = vadd.f32 %v4435, %v4436
  %v4438 = vsel %vm2542, %v4306, 0.0
  %v4439 = vadd.f32 %v4437, %v4438
  %v4440 = vsel %vm2542, %v4309, 0.0
  %v4441 = vadd.f32 %v4439, %v4440
  %v4442 = vsel %vm2542, %v4311, 0.0
  %v4443 = vadd.f32 %v4441, %v4442
  %v4444 = vsel %vm2542, %v4314, 0.0
  %v4445 = vadd.f32 %v4443, %v4444
  %v4446 = vsel %vm2542, %v4316, 0.0
  %v4447 = vadd.f32 %v4445, %v4446
  %v4448 = vsel %vm2542, %v4319, 0.0
  %v4449 = vadd.f32 %v4447, %v4448
  %v4450 = vsel %vm2542, %v4321, 0.0
  %v4451 = vadd.f32 %v4449, %v4450
  %v4452 = vsel %vm2542, %v4324, 0.0
  %v4453 = vadd.f32 %v4451, %v4452
  %v4454 = vsel %vm2542, %v4326, 0.0
  %v4455 = vadd.f32 %v4453, %v4454
  %v4456 = vsel %vm2542, %v4329, 0.0
  %v4457 = vadd.f32 %v4455, %v4456
  %v4458 = vsel %vm2542, %v4331, 0.0
  %v4459 = vadd.f32 %v4457, %v4458
  %v4460 = vrot.slane %v4459, 4
  %v4461 = vadd.f32 %v4459, %v4460
  %v4462 = vrot.slane %v4461, 2
  %v4463 = vadd.f32 %v4461, %v4462
  %v4464 = vrot.slane %v4463, 1
  %v4465 = vadd.f32 %v4463, %v4464
  %vm4466 = vcmask 57344
  %4467 = vst.msk [vmem:[%s6] sm:$0x1] %vm4466, %v4465
  %v4468 = vmul.f32 %v4174, %v4174
  %v4469 = vmul.f32 %v4176, %v4176
  %v4470 = vmul.f32 %v4179, %v4179
  %v4471 = vmul.f32 %v4181, %v4181
  %v4472 = vmul.f32 %v4184, %v4184
  %v4473 = vmul.f32 %v4186, %v4186
  %v4474 = vmul.f32 %v4189, %v4189
  %v4475 = vmul.f32 %v4191, %v4191
  %v4476 = vmul.f32 %v4194, %v4194
  %v4477 = vmul.f32 %v4196, %v4196
  %v4478 = vmul.f32 %v4199, %v4199
  %v4479 = vmul.f32 %v4201, %v4201
  %v4480 = vmul.f32 %v4204, %v4204
  %v4481 = vmul.f32 %v4206, %v4206
  %v4482 = vmul.f32 %v4209, %v4209
  %v4483 = vmul.f32 %v4211, %v4211
  %v4484 = vmul.f32 %v4214, %v4214
  %v4485 = vmul.f32 %v4216, %v4216
  %v4486 = vmul.f32 %v4219, %v4219
  %v4487 = vmul.f32 %v4221, %v4221
  %v4488 = vmul.f32 %v4224, %v4224
  %v4489 = vmul.f32 %v4226, %v4226
  %v4490 = vmul.f32 %v4229, %v4229
  %v4491 = vmul.f32 %v4231, %v4231
  %v4492 = vmul.f32 %v4234, %v4234
  %v4493 = vmul.f32 %v4236, %v4236
  %v4494 = vmul.f32 %v4239, %v4239
  %v4495 = vmul.f32 %v4241, %v4241
  %v4496 = vmul.f32 %v4244, %v4244
  %v4497 = vmul.f32 %v4246, %v4246
  %v4498 = vmul.f32 %v4249, %v4249
  %v4499 = vmul.f32 %v4251, %v4251
  %v4500 = vmul.f32 %v4254, %v4254
  %v4501 = vmul.f32 %v4256, %v4256
  %v4502 = vmul.f32 %v4259, %v4259
  %v4503 = vmul.f32 %v4261, %v4261
  %v4504 = vmul.f32 %v4264, %v4264
  %v4505 = vmul.f32 %v4266, %v4266
  %v4506 = vmul.f32 %v4269, %v4269
  %v4507 = vmul.f32 %v4271, %v4271
  %v4508 = vmul.f32 %v4274, %v4274
  %v4509 = vmul.f32 %v4276, %v4276
  %v4510 = vmul.f32 %v4279, %v4279
  %v4511 = vmul.f32 %v4281, %v4281
  %v4512 = vmul.f32 %v4284, %v4284
  %v4513 = vmul.f32 %v4286, %v4286
  %v4514 = vmul.f32 %v4289, %v4289
  %v4515 = vmul.f32 %v4291, %v4291
  %v4516 = vmul.f32 %v4294, %v4294
  %v4517 = vmul.f32 %v4296, %v4296
  %v4518 = vmul.f32 %v4299, %v4299
  %v4519 = vmul.f32 %v4301, %v4301
  %v4520 = vmul.f32 %v4304, %v4304
  %v4521 = vmul.f32 %v4306, %v4306
  %v4522 = vmul.f32 %v4309, %v4309
  %v4523 = vmul.f32 %v4311, %v4311
  %v4524 = vmul.f32 %v4314, %v4314
  %v4525 = vmul.f32 %v4316, %v4316
  %v4526 = vmul.f32 %v4319, %v4319
  %v4527 = vmul.f32 %v4321, %v4321
  %v4528 = vmul.f32 %v4324, %v4324
  %v4529 = vmul.f32 %v4326, %v4326
  %v4530 = vmul.f32 %v4329, %v4329
  %v4531 = vmul.f32 %v4331, %v4331
  %v4532 = vsel %vm2542, %v4468, 0.0
  %v4533 = vsel %vm2542, %v4469, 0.0
  %v4534 = vadd.f32 %v4532, %v4533
  %v4535 = vsel %vm2542, %v4470, 0.0
  %v4536 = vadd.f32 %v4534, %v4535
  %v4537 = vsel %vm2542, %v4471, 0.0
  %v4538 = vadd.f32 %v4536, %v4537
  %v4539 = vsel %vm2542, %v4472, 0.0
  %v4540 = vadd.f32 %v4538, %v4539
  %v4541 = vsel %vm2542, %v4473, 0.0
  %v4542 = vadd.f32 %v4540, %v4541
  %v4543 = vsel %vm2542, %v4474, 0.0
  %v4544 = vadd.f32 %v4542, %v4543
  %v4545 = vsel %vm2542, %v4475, 0.0
  %v4546 = vadd.f32 %v4544, %v4545
  %v4547 = vsel %vm2542, %v4476, 0.0
  %v4548 = vadd.f32 %v4546, %v4547
  %v4549 = vsel %vm2542, %v4477, 0.0
  %v4550 = vadd.f32 %v4548, %v4549
  %v4551 = vsel %vm2542, %v4478, 0.0
  %v4552 = vadd.f32 %v4550, %v4551
  %v4553 = vsel %vm2542, %v4479, 0.0
  %v4554 = vadd.f32 %v4552, %v4553
  %v4555 = vsel %vm2542, %v4480, 0.0
  %v4556 = vadd.f32 %v4554, %v4555
  %v4557 = vsel %vm2542, %v4481, 0.0
  %v4558 = vadd.f32 %v4556, %v4557
  %v4559 = vsel %vm2542, %v4482, 0.0
  %v4560 = vadd.f32 %v4558, %v4559
  %v4561 = vsel %vm2542, %v4483, 0.0
  %v4562 = vadd.f32 %v4560, %v4561
  %v4563 = vsel %vm2542, %v4484, 0.0
  %v4564 = vadd.f32 %v4562, %v4563
  %v4565 = vsel %vm2542, %v4485, 0.0
  %v4566 = vadd.f32 %v4564, %v4565
  %v4567 = vsel %vm2542, %v4486, 0.0
  %v4568 = vadd.f32 %v4566, %v4567
  %v4569 = vsel %vm2542, %v4487, 0.0
  %v4570 = vadd.f32 %v4568, %v4569
  %v4571 = vsel %vm2542, %v4488, 0.0
  %v4572 = vadd.f32 %v4570, %v4571
  %v4573 = vsel %vm2542, %v4489, 0.0
  %v4574 = vadd.f32 %v4572, %v4573
  %v4575 = vsel %vm2542, %v4490, 0.0
  %v4576 = vadd.f32 %v4574, %v4575
  %v4577 = vsel %vm2542, %v4491, 0.0
  %v4578 = vadd.f32 %v4576, %v4577
  %v4579 = vsel %vm2542, %v4492, 0.0
  %v4580 = vadd.f32 %v4578, %v4579
  %v4581 = vsel %vm2542, %v4493, 0.0
  %v4582 = vadd.f32 %v4580, %v4581
  %v4583 = vsel %vm2542, %v4494, 0.0
  %v4584 = vadd.f32 %v4582, %v4583
  %v4585 = vsel %vm2542, %v4495, 0.0
  %v4586 = vadd.f32 %v4584, %v4585
  %v4587 = vsel %vm2542, %v4496, 0.0
  %v4588 = vadd.f32 %v4586, %v4587
  %v4589 = vsel %vm2542, %v4497, 0.0
  %v4590 = vadd.f32 %v4588, %v4589
  %v4591 = vsel %vm2542, %v4498, 0.0
  %v4592 = vadd.f32 %v4590, %v4591
  %v4593 = vsel %vm2542, %v4499, 0.0
  %v4594 = vadd.f32 %v4592, %v4593
  %v4595 = vsel %vm2542, %v4500, 0.0
  %v4596 = vadd.f32 %v4594, %v4595
  %v4597 = vsel %vm2542, %v4501, 0.0
  %v4598 = vadd.f32 %v4596, %v4597
  %v4599 = vsel %vm2542, %v4502, 0.0
  %v4600 = vadd.f32 %v4598, %v4599
  %v4601 = vsel %vm2542, %v4503, 0.0
  %v4602 = vadd.f32 %v4600, %v4601
  %v4603 = vsel %vm2542, %v4504, 0.0
  %v4604 = vadd.f32 %v4602, %v4603
  %v4605 = vsel %vm2542, %v4505, 0.0
  %v4606 = vadd.f32 %v4604, %v4605
  %v4607 = vsel %vm2542, %v4506, 0.0
  %v4608 = vadd.f32 %v4606, %v4607
  %v4609 = vsel %vm2542, %v4507, 0.0
  %v4610 = vadd.f32 %v4608, %v4609
  %v4611 = vsel %vm2542, %v4508, 0.0
  %v4612 = vadd.f32 %v4610, %v4611
  %v4613 = vsel %vm2542, %v4509, 0.0
  %v4614 = vadd.f32 %v4612, %v4613
  %v4615 = vsel %vm2542, %v4510, 0.0
  %v4616 = vadd.f32 %v4614, %v4615
  %v4617 = vsel %vm2542, %v4511, 0.0
  %v4618 = vadd.f32 %v4616, %v4617
  %v4619 = vsel %vm2542, %v4512, 0.0
  %v4620 = vadd.f32 %v4618, %v4619
  %v4621 = vsel %vm2542, %v4513, 0.0
  %v4622 = vadd.f32 %v4620, %v4621
  %v4623 = vsel %vm2542, %v4514, 0.0
  %v4624 = vadd.f32 %v4622, %v4623
  %v4625 = vsel %vm2542, %v4515, 0.0
  %v4626 = vadd.f32 %v4624, %v4625
  %v4627 = vsel %vm2542, %v4516, 0.0
  %v4628 = vadd.f32 %v4626, %v4627
  %v4629 = vsel %vm2542, %v4517, 0.0
  %v4630 = vadd.f32 %v4628, %v4629
  %v4631 = vsel %vm2542, %v4518, 0.0
  %v4632 = vadd.f32 %v4630, %v4631
  %v4633 = vsel %vm2542, %v4519, 0.0
  %v4634 = vadd.f32 %v4632, %v4633
  %v4635 = vsel %vm2542, %v4520, 0.0
  %v4636 = vadd.f32 %v4634, %v4635
  %v4637 = vsel %vm2542, %v4521, 0.0
  %v4638 = vadd.f32 %v4636, %v4637
  %v4639 = vsel %vm2542, %v4522, 0.0
  %v4640 = vadd.f32 %v4638, %v4639
  %v4641 = vsel %vm2542, %v4523, 0.0
  %v4642 = vadd.f32 %v4640, %v4641
  %v4643 = vsel %vm2542, %v4524, 0.0
  %v4644 = vadd.f32 %v4642, %v4643
  %v4645 = vsel %vm2542, %v4525, 0.0
  %v4646 = vadd.f32 %v4644, %v4645
  %v4647 = vsel %vm2542, %v4526, 0.0
  %v4648 = vadd.f32 %v4646, %v4647
  %v4649 = vsel %vm2542, %v4527, 0.0
  %v4650 = vadd.f32 %v4648, %v4649
  %v4651 = vsel %vm2542, %v4528, 0.0
  %v4652 = vadd.f32 %v4650, %v4651
  %v4653 = vsel %vm2542, %v4529, 0.0
  %v4654 = vadd.f32 %v4652, %v4653
  %v4655 = vsel %vm2542, %v4530, 0.0
  %v4656 = vadd.f32 %v4654, %v4655
  %v4657 = vsel %vm2542, %v4531, 0.0
  %v4658 = vadd.f32 %v4656, %v4657
  %v4659 = vrot.slane %v4658, 4
  %v4660 = vadd.f32 %v4658, %v4659
  %v4661 = vrot.slane %v4660, 2
  %v4662 = vadd.f32 %v4660, %v4661
  %v4663 = vrot.slane %v4662, 1
  %v4664 = vadd.f32 %v4662, %v4663
  %4665 = vst.msk [vmem:[%s7] sm:$0x1] %vm4466, %v4664
  %v4666 = vpack.c.bf16 %v4174, %v4174
  %v4667 = vpack.c.bf16 %v4176, %v4176
  %v4668 = vpack.c.bf16 %v4179, %v4179
  %v4669 = vpack.c.bf16 %v4181, %v4181
  %v4670 = vpack.c.bf16 %v4184, %v4184
  %v4671 = vpack.c.bf16 %v4186, %v4186
  %v4672 = vpack.c.bf16 %v4189, %v4189
  %v4673 = vpack.c.bf16 %v4191, %v4191
  %v4674 = vpack.c.bf16 %v4194, %v4194
  %v4675 = vpack.c.bf16 %v4196, %v4196
  %v4676 = vpack.c.bf16 %v4199, %v4199
  %v4677 = vpack.c.bf16 %v4201, %v4201
  %v4678 = vpack.c.bf16 %v4204, %v4204
  %v4679 = vpack.c.bf16 %v4206, %v4206
  %v4680 = vpack.c.bf16 %v4209, %v4209
  %v4681 = vpack.c.bf16 %v4211, %v4211
  %v4682 = vpack.c.bf16 %v4214, %v4214
  %v4683 = vpack.c.bf16 %v4216, %v4216
  %v4684 = vpack.c.bf16 %v4219, %v4219
  %v4685 = vpack.c.bf16 %v4221, %v4221
  %v4686 = vpack.c.bf16 %v4224, %v4224
  %v4687 = vpack.c.bf16 %v4226, %v4226
  %v4688 = vpack.c.bf16 %v4229, %v4229
  %v4689 = vpack.c.bf16 %v4231, %v4231
  %v4690 = vpack.c.bf16 %v4234, %v4234
  %v4691 = vpack.c.bf16 %v4236, %v4236
  %v4692 = vpack.c.bf16 %v4239, %v4239
  %v4693 = vpack.c.bf16 %v4241, %v4241
  %v4694 = vpack.c.bf16 %v4244, %v4244
  %v4695 = vpack.c.bf16 %v4246, %v4246
  %v4696 = vpack.c.bf16 %v4249, %v4249
  %v4697 = vpack.c.bf16 %v4251, %v4251
  %v4698 = vpack.c.bf16 %v4254, %v4254
  %v4699 = vpack.c.bf16 %v4256, %v4256
  %v4700 = vpack.c.bf16 %v4259, %v4259
  %v4701 = vpack.c.bf16 %v4261, %v4261
  %v4702 = vpack.c.bf16 %v4264, %v4264
  %v4703 = vpack.c.bf16 %v4266, %v4266
  %v4704 = vpack.c.bf16 %v4269, %v4269
  %v4705 = vpack.c.bf16 %v4271, %v4271
  %v4706 = vpack.c.bf16 %v4274, %v4274
  %v4707 = vpack.c.bf16 %v4276, %v4276
  %v4708 = vpack.c.bf16 %v4279, %v4279
  %v4709 = vpack.c.bf16 %v4281, %v4281
  %v4710 = vpack.c.bf16 %v4284, %v4284
  %v4711 = vpack.c.bf16 %v4286, %v4286
  %v4712 = vpack.c.bf16 %v4289, %v4289
  %v4713 = vpack.c.bf16 %v4291, %v4291
  %v4714 = vpack.c.bf16 %v4294, %v4294
  %v4715 = vpack.c.bf16 %v4296, %v4296
  %v4716 = vpack.c.bf16 %v4299, %v4299
  %v4717 = vpack.c.bf16 %v4301, %v4301
  %v4718 = vpack.c.bf16 %v4304, %v4304
  %v4719 = vpack.c.bf16 %v4306, %v4306
  %v4720 = vpack.c.bf16 %v4309, %v4309
  %v4721 = vpack.c.bf16 %v4311, %v4311
  %v4722 = vpack.c.bf16 %v4314, %v4314
  %v4723 = vpack.c.bf16 %v4316, %v4316
  %v4724 = vpack.c.bf16 %v4319, %v4319
  %v4725 = vpack.c.bf16 %v4321, %v4321
  %v4726 = vpack.c.bf16 %v4324, %v4324
  %v4727 = vpack.c.bf16 %v4326, %v4326
  %v4728 = vpack.c.bf16 %v4329, %v4329
  %v4729 = vpack.c.bf16 %v4331, %v4331
  %4730 = vst.msk [vmem:[%s5] sm:$0xf] %vm30, %v4666
  %4731 = vst.msk [vmem:[%s5 + $0x4] sm:$0xf] %vm30, %v4667
  %4732 = vst.msk [vmem:[%s5 + $0x8] sm:$0xf] %vm30, %v4668
  %4733 = vst.msk [vmem:[%s5 + $0xc] sm:$0xf] %vm30, %v4669
  %4734 = vst.msk [vmem:[%s5 + $0x10] sm:$0xf] %vm30, %v4670
  %4735 = vst.msk [vmem:[%s5 + $0x14] sm:$0xf] %vm30, %v4671
  %4736 = vst.msk [vmem:[%s5 + $0x18] sm:$0xf] %vm30, %v4672
  %4737 = vst.msk [vmem:[%s5 + $0x1c] sm:$0xf] %vm30, %v4673
  %4738 = vst.msk [vmem:[%s5 + $0x20] sm:$0xf] %vm30, %v4674
  %4739 = vst.msk [vmem:[%s5 + $0x24] sm:$0xf] %vm30, %v4675
  %4740 = vst.msk [vmem:[%s5 + $0x28] sm:$0xf] %vm30, %v4676
  %4741 = vst.msk [vmem:[%s5 + $0x2c] sm:$0xf] %vm30, %v4677
  %4742 = vst.msk [vmem:[%s5 + $0x30] sm:$0xf] %vm30, %v4678
  %4743 = vst.msk [vmem:[%s5 + $0x34] sm:$0xf] %vm30, %v4679
  %4744 = vst.msk [vmem:[%s5 + $0x38] sm:$0xf] %vm30, %v4680
  %4745 = vst.msk [vmem:[%s5 + $0x3c] sm:$0xf] %vm30, %v4681
  %4746 = vst.msk [vmem:[%s5 + $0x40] sm:$0xf] %vm30, %v4682
  %4747 = vst.msk [vmem:[%s5 + $0x44] sm:$0xf] %vm30, %v4683
  %4748 = vst.msk [vmem:[%s5 + $0x48] sm:$0xf] %vm30, %v4684
  %4749 = vst.msk [vmem:[%s5 + $0x4c] sm:$0xf] %vm30, %v4685
  %4750 = vst.msk [vmem:[%s5 + $0x50] sm:$0xf] %vm30, %v4686
  %4751 = vst.msk [vmem:[%s5 + $0x54] sm:$0xf] %vm30, %v4687
  %4752 = vst.msk [vmem:[%s5 + $0x58] sm:$0xf] %vm30, %v4688
  %4753 = vst.msk [vmem:[%s5 + $0x5c] sm:$0xf] %vm30, %v4689
  %4754 = vst.msk [vmem:[%s5 + $0x60] sm:$0xf] %vm30, %v4690
  %4755 = vst.msk [vmem:[%s5 + $0x64] sm:$0xf] %vm30, %v4691
  %4756 = vst.msk [vmem:[%s5 + $0x68] sm:$0xf] %vm30, %v4692
  %4757 = vst.msk [vmem:[%s5 + $0x6c] sm:$0xf] %vm30, %v4693
  %4758 = vst.msk [vmem:[%s5 + $0x70] sm:$0xf] %vm30, %v4694
  %4759 = vst.msk [vmem:[%s5 + $0x74] sm:$0xf] %vm30, %v4695
  %4760 = vst.msk [vmem:[%s5 + $0x78] sm:$0xf] %vm30, %v4696
  %4761 = vst.msk [vmem:[%s5 + $0x7c] sm:$0xf] %vm30, %v4697
  %4762 = vst.msk [vmem:[%s5 + $0x80] sm:$0xf] %vm30, %v4698
  %4763 = vst.msk [vmem:[%s5 + $0x84] sm:$0xf] %vm30, %v4699
  %4764 = vst.msk [vmem:[%s5 + $0x88] sm:$0xf] %vm30, %v4700
  %4765 = vst.msk [vmem:[%s5 + $0x8c] sm:$0xf] %vm30, %v4701
  %4766 = vst.msk [vmem:[%s5 + $0x90] sm:$0xf] %vm30, %v4702
  %4767 = vst.msk [vmem:[%s5 + $0x94] sm:$0xf] %vm30, %v4703
  %4768 = vst.msk [vmem:[%s5 + $0x98] sm:$0xf] %vm30, %v4704
  %4769 = vst.msk [vmem:[%s5 + $0x9c] sm:$0xf] %vm30, %v4705
  %4770 = vst.msk [vmem:[%s5 + $0xa0] sm:$0xf] %vm30, %v4706
  %4771 = vst.msk [vmem:[%s5 + $0xa4] sm:$0xf] %vm30, %v4707
  %4772 = vst.msk [vmem:[%s5 + $0xa8] sm:$0xf] %vm30, %v4708
  %4773 = vst.msk [vmem:[%s5 + $0xac] sm:$0xf] %vm30, %v4709
  %4774 = vst.msk [vmem:[%s5 + $0xb0] sm:$0xf] %vm30, %v4710
  %4775 = vst.msk [vmem:[%s5 + $0xb4] sm:$0xf] %vm30, %v4711
  %4776 = vst.msk [vmem:[%s5 + $0xb8] sm:$0xf] %vm30, %v4712
  %4777 = vst.msk [vmem:[%s5 + $0xbc] sm:$0xf] %vm30, %v4713
  %4778 = vst.msk [vmem:[%s5 + $0xc0] sm:$0xf] %vm30, %v4714
  %4779 = vst.msk [vmem:[%s5 + $0xc4] sm:$0xf] %vm30, %v4715
  %4780 = vst.msk [vmem:[%s5 + $0xc8] sm:$0xf] %vm30, %v4716
  %4781 = vst.msk [vmem:[%s5 + $0xcc] sm:$0xf] %vm30, %v4717
  %4782 = vst.msk [vmem:[%s5 + $0xd0] sm:$0xf] %vm30, %v4718
  %4783 = vst.msk [vmem:[%s5 + $0xd4] sm:$0xf] %vm30, %v4719
  %4784 = vst.msk [vmem:[%s5 + $0xd8] sm:$0xf] %vm30, %v4720
  %4785 = vst.msk [vmem:[%s5 + $0xdc] sm:$0xf] %vm30, %v4721
  %4786 = vst.msk [vmem:[%s5 + $0xe0] sm:$0xf] %vm30, %v4722
  %4787 = vst.msk [vmem:[%s5 + $0xe4] sm:$0xf] %vm30, %v4723
  %4788 = vst.msk [vmem:[%s5 + $0xe8] sm:$0xf] %vm30, %v4724
  %4789 = vst.msk [vmem:[%s5 + $0xec] sm:$0xf] %vm30, %v4725
  %4790 = vst.msk [vmem:[%s5 + $0xf0] sm:$0xf] %vm30, %v4726
  %4791 = vst.msk [vmem:[%s5 + $0xf4] sm:$0xf] %vm30, %v4727
  %4792 = vst.msk [vmem:[%s5 + $0xf8] sm:$0xf] %vm30, %v4728
  %4793 = vst.msk [vmem:[%s5 + $0xfc] sm:$0xf] %vm30, %v4729
  // Predicated region
  $region22: #{basicblock_forward.4} parent=0 // pred_check
    _
  $region23: #{basicblock_forward.4} parent=0 // pred_check_branch
    %4795 = sbr.rel (0) target = $region25
  $region24: #{basicblock_forward.4} parent=0 // pred_region
    _
  $region25: #{basicblock_forward.4} parent=0 // pred_fallthru
    _
  // Predicated region
  $region26: #{basicblock_forward.4} parent=0 // pred_check
    _
  $region27: #{basicblock_forward.4} parent=0 // pred_check_branch
    %4797 = sbr.rel (0) target = $region29
  $region28: #{basicblock_forward.4} parent=0 // pred_region
    _
  $region29: #{basicblock_forward.4} parent=0 // pred_fallthru
    _
  // Predicated region
  $region30: #{basicblock_forward.4} parent=0 // pred_check
    _
  $region31: #{basicblock_forward.4} parent=0 // pred_check_branch
    %4799 = sbr.rel (0) target = $region33
  $region32: #{basicblock_forward.4} parent=0 // pred_region
    _
  $region33: #{basicblock_forward.4} parent=0 // pred_fallthru
    _
  // Predicated region
  $region34: #{basicblock_forward.4} parent=0 // pred_check
    _
  $region35: #{basicblock_forward.4} parent=0 // pred_check_branch
    %4801 = sbr.rel (0) target = $region37
  $region36: #{basicblock_forward.4} parent=0 // pred_region
    _
  $region37: #{basicblock_forward.4} parent=0 // pred_fallthru
    _
  // Predicated region
  $region38: #{basicblock_forward.4} parent=0 // pred_check
    _
  $region39: #{basicblock_forward.4} parent=0 // pred_check_branch
    %4803 = sbr.rel (0) target = $region41
  $region40: #{basicblock_forward.4} parent=0 // pred_region
    _
  $region41: #{basicblock_forward.4} parent=0 // pred_fallthru
    _
  // Predicated region
  $region42: #{basicblock_forward.4} parent=0 // pred_check
    _
  $region43: #{basicblock_forward.4} parent=0 // pred_check_branch
    %4805 = sbr.rel (0) target = $region45
  $region44: #{basicblock_forward.4} parent=0 // pred_region
    _
  $region45: #{basicblock_forward.4} parent=0 // pred_fallthru
    _

</llo_original>
